<compile_context>
chip_gen: v6e
topology: v6e:2x2x1
jax: 0.10.0
libtpu: 0.0.40
codegen_flags: <defaults>
</compile_context>

<pallas_src>
import functools

import jax
import jax.numpy as jnp
from jax.experimental import pallas as pl
from jax.experimental.pallas import tpu as pltpu


# ---------------------------------------------------------------------------
# Model constants (fixed by the PyTorch module: Conv2d(1,10,5), Conv2d(10,20,3),
# Linear(2000,500), Linear(500,10), 28x28 input)
# ---------------------------------------------------------------------------
IN_CH = 1
C1_OUT = 10
C2_OUT = 20
K1 = 5
K2 = 3
FC1_OUT = 500
N_CLASSES = 10
IMG = 28
LANE = 128

H1 = IMG - K1 + 1          # 24  (conv1 output)
HP = H1 // 2               # 12  (after 2x2 pool)
H2 = HP - K2 + 1           # 10  (conv2 output)
FC1_IN = C2_OUT * H2 * H2  # 2000


def _round_up(x, m):
    return (x + m - 1) // m * m


# Zero rows appended to the pooled slab so that the row-shifted conv2 taps
# (max shift = (K2-1)*HP + (K2-1) = 26) stay in bounds.
CONV2_PAD_ROWS = _round_up((K2 - 1) * (HP + 1), 8)   # 32


_COMPILER_PARAMS = pltpu.CompilerParams(
    dimension_semantics=("parallel",),        # v7x: shard row/image tiles over 2 TCs
    vmem_limit_bytes=32 * 1024 * 1024,
)


# ---------------------------------------------------------------------------
# Tiling helpers (minimal padding, >=2 grid steps when there is enough work)
# ---------------------------------------------------------------------------
def _image_tiles(b, tb_max=8):
    """Images per conv-kernel grid step: <= tb_max, padding < one tile,
    and >=2 grid steps whenever there are >=2 images (v7x has 2 TCs)."""
    n = max(1, pl.cdiv(b, tb_max))
    if b >= 2:
        n = max(n, 2)
    tb = pl.cdiv(b, n)
    n = pl.cdiv(b, tb)
    return tb, n


def _row_tiles(m, tm_max=256):
    """Row-tile size + padded row count for the FC kernel: multiples of 8,
    padding < one tile, >=2 tiles once there is enough work."""
    if m <= 16:
        tm = _round_up(m, 8)
        return tm, tm
    n = max(2, pl.cdiv(m, tm_max))
    tm = _round_up(pl.cdiv(m, n), 8)
    n = pl.cdiv(m, tm)
    return tm, tm * n


# ---------------------------------------------------------------------------
# Pallas kernels
# ---------------------------------------------------------------------------
def convs_kernel(p_ref, w1_ref, b1_ref, w2_ref, b2_ref, o_ref):
    """Fused conv1(+bias+ReLU)+2x2 max-pool + conv2(+bias+ReLU).

    p_ref : (4, TM, K1pad) bf16 -- the 4 pool taps of every 2x2 window,
            im2col'ed; TM = TB*144 rows ordered (b, ph, pw).
    w1_ref: (K1pad, 128) bf16, b1_ref: (1, 128) f32.
    w2_ref: (9, 128, 128) bf16 -- one (ci, co) slab per 3x3 tap (dy*3+dx).
    b2_ref: (1, 128) f32.
    o_ref : (TM, 128) bf16 -- conv2 output on the over-computed 12x12 grid
            (rows with oh>9 or ow>9 are garbage and dropped downstream).
    """
    rows = o_ref.shape[0]                       # TB * 144

    # conv1 as matmul over the 4 pool taps; bias/ReLU after the max is valid
    # because the bias is shared across taps and ReLU is monotone.
    acc = jnp.dot(p_ref[0], w1_ref[...], preferred_element_type=jnp.float32)
    for t in range(1, 4):
        acc = jnp.maximum(
            acc, jnp.dot(p_ref[t], w1_ref[...], preferred_element_type=jnp.float32))
    pooled = jnp.maximum(acc + b1_ref[...], 0.0)          # (rows, 128) f32

    # Zero rows so the shifted tap slices below stay in bounds; padded channel
    # lanes of `pooled` are exactly zero (zero weight columns + zero bias).
    pooled = jnp.concatenate(
        [pooled, jnp.zeros((CONV2_PAD_ROWS, pooled.shape[1]), pooled.dtype)],
        axis=0)

    # conv2: tap (dy, dx) of output row q = pooled row q + dy*12 + dx.
    acc2 = None
    for t in range(K2 * K2):
        s = (t // K2) * HP + (t % K2)
        tap = pooled[s:s + rows].astype(w2_ref.dtype)      # bf16 MXU operand
        d = jnp.dot(tap, w2_ref[t], preferred_element_type=jnp.float32)
        acc2 = d if acc2 is None else acc2 + d
    o_ref[...] = jnp.maximum(acc2 + b2_ref[...], 0.0).astype(o_ref.dtype)


def fc_fused_kernel(x_ref, w1_ref, b1_ref, w2_ref, b2_ref, o_ref, *, num_classes):
    """o = log_softmax(relu(x @ w1 + b1) @ w2 + b2); padded classes masked."""
    h = jnp.dot(x_ref[...], w1_ref[...], preferred_element_type=jnp.float32)
    h = jnp.maximum(h + b1_ref[...], 0.0)
    logits = jnp.dot(h.astype(w2_ref.dtype), w2_ref[...],
                     preferred_element_type=jnp.float32) + b2_ref[...]
    col = jax.lax.broadcasted_iota(jnp.int32, logits.shape, 1)
    logits = jnp.where(col < num_classes, logits, -1e30)   # mask padded lanes (f32)
    m = jnp.max(logits, axis=-1, keepdims=True)
    s = logits - m
    o_ref[...] = (s - jnp.log(jnp.sum(jnp.exp(s), axis=-1, keepdims=True))
                  ).astype(o_ref.dtype)


# ---------------------------------------------------------------------------
# Pallas wrappers
# ---------------------------------------------------------------------------
def convs_fused(patches, w1, b1, w2, b2, *, tb, n_tiles, out_dtype=jnp.bfloat16):
    """patches: (4, n_tiles*tb*144, K1pad) bf16 -> conv2 activations
    (n_tiles*tb*144, 128) bf16 on the over-computed 12x12 grid."""
    _, m, kp = patches.shape
    rows = tb * HP * HP
    assert m == n_tiles * rows
    n = w2.shape[-1]
    flops = 2 * m * (4 * K1 * K1 * IN_CH * C1_OUT + K2 * K2 * C1_OUT * C2_OUT)
    bytes_accessed = (patches.size * patches.dtype.itemsize
                      + w1.size * w1.dtype.itemsize
                      + w2.size * w2.dtype.itemsize
                      + m * n * jnp.dtype(out_dtype).itemsize)
    return pl.pallas_call(
        convs_kernel,
        out_shape=jax.ShapeDtypeStruct((m, n), out_dtype),
        grid=(n_tiles,),
        in_specs=[
            pl.BlockSpec((4, rows, kp), lambda i: (0, i, 0)),       # patches
            pl.BlockSpec((kp, n), lambda i: (0, 0)),                # conv1 w
            pl.BlockSpec((1, n), lambda i: (0, 0)),                 # conv1 b
            pl.BlockSpec((K2 * K2, n, n), lambda i: (0, 0, 0)),     # conv2 w
            pl.BlockSpec((1, n), lambda i: (0, 0)),                 # conv2 b
        ],
        out_specs=pl.BlockSpec((rows, n), lambda i: (i, 0)),
        compiler_params=_COMPILER_PARAMS,
        cost_estimate=pl.CostEstimate(flops=int(flops), transcendentals=0,
                                      bytes_accessed=int(bytes_accessed)),
    )(patches, w1, b1, w2, b2)


def fc_fused(x, w1, b1, w2, b2, *, num_classes):
    """x: (M, K1pad) bf16 -> log_softmax(relu(x@w1+b1)@w2+b2): (M, N2) f32."""
    m, k1 = x.shape
    n1 = w1.shape[1]
    n2 = w2.shape[1]
    tm, m_pad = _row_tiles(m)
    if m_pad != m:
        x = jnp.pad(x, ((0, m_pad - m), (0, 0)))
    flops = 2 * m_pad * (k1 * n1 + n1 * n2)
    bytes_accessed = (x.size * x.dtype.itemsize
                      + w1.size * w1.dtype.itemsize
                      + w2.size * w2.dtype.itemsize
                      + m_pad * n2 * 4)
    out = pl.pallas_call(
        functools.partial(fc_fused_kernel, num_classes=num_classes),
        out_shape=jax.ShapeDtypeStruct((m_pad, n2), jnp.float32),
        grid=(m_pad // tm,),
        in_specs=[
            pl.BlockSpec((tm, k1), lambda i: (i, 0)),
            pl.BlockSpec((k1, n1), lambda i: (0, 0)),
            pl.BlockSpec((1, n1), lambda i: (0, 0)),
            pl.BlockSpec((n1, n2), lambda i: (0, 0)),
            pl.BlockSpec((1, n2), lambda i: (0, 0)),
        ],
        out_specs=pl.BlockSpec((tm, n2), lambda i: (i, 0)),
        compiler_params=_COMPILER_PARAMS,
        cost_estimate=pl.CostEstimate(flops=int(flops),
                                      transcendentals=int(m_pad * n2),
                                      bytes_accessed=int(bytes_accessed)),
    )(x, w1, b1, w2, b2)
    return out[:m]


# ---------------------------------------------------------------------------
# Plain-JAX glue: conv1 im2col (layout only, no compute; runs on bf16 input)
# ---------------------------------------------------------------------------
def _conv1_pool_patches(x, kh, kw):
    """x: (B, C, H, W) -> (4, B*PH*PW, kh*kw*C) tap-major im2col patches.

    Tap t = hr*2 + wr selects the (hr, wr) element of each 2x2 pooling window
    of the (stride-1, valid) conv output.  Rows within a tap are NHWC-flat
    pooled positions (b, ph, pw); K column order is (dy, dx, c)."""
    B, C, H, W = x.shape
    OH, OW = H - kh + 1, W - kw + 1
    PH, PW = OH // 2, OW // 2
    taps = []
    for hr in range(2):
        for wr in range(2):
            cols = []
            for dy in range(kh):
                for dx in range(kw):
                    cols.append(x[:, :, hr + dy: hr + dy + 2 * PH: 2,
                                        wr + dx: wr + dx + 2 * PW: 2])  # (B,C,PH,PW)
            t = jnp.stack(cols, axis=-1)          # (B, C, PH, PW, kh*kw)
            t = t.transpose(0, 2, 3, 4, 1)        # (B, PH, PW, kh*kw, C)
            taps.append(t.reshape(B * PH * PW, kh * kw * C))
    return jnp.stack(taps, axis=0)


# ---------------------------------------------------------------------------
# Parameters: PyTorch layout + one-time conversion to kernel layout
# ---------------------------------------------------------------------------
def init_params(key):
    """PyTorch-layout params, uniform +/- 1/sqrt(fan_in) like torch defaults."""
    ks = jax.random.split(key, 8)

    def u(k, shape, fan_in):
        bound = 1.0 / jnp.sqrt(float(fan_in))
        return jax.random.uniform(k, shape, jnp.float32, -bound, bound)

    return {
        "conv1_w": u(ks[0], (C1_OUT, IN_CH, K1, K1), IN_CH * K1 * K1),
        "conv1_b": u(ks[1], (C1_OUT,), IN_CH * K1 * K1),
        "conv2_w": u(ks[2], (C2_OUT, C1_OUT, K2, K2), C1_OUT * K2 * K2),
        "conv2_b": u(ks[3], (C2_OUT,), C1_OUT * K2 * K2),
        "fc1_w": u(ks[4], (FC1_OUT, FC1_IN), FC1_IN),     # torch (out, in)
        "fc1_b": u(ks[5], (FC1_OUT,), FC1_IN),
        "fc2_w": u(ks[6], (N_CLASSES, FC1_OUT), FC1_OUT),
        "fc2_b": u(ks[7], (N_CLASSES,), FC1_OUT),
    }


def prepare_params(params, dtype=jnp.bfloat16):
    """Convert PyTorch-layout params to padded, bf16, matmul-ready operands."""
    def pad2(a, rows, cols):
        return jnp.pad(a, ((0, rows - a.shape[0]), (0, cols - a.shape[1])))

    def pad_bias(b, n):
        return jnp.pad(b, (0, n - b.shape[0])).astype(jnp.float32).reshape(1, n)

    # conv1 -> (K_pad, 128); K row order (dy, dx, c) matches the im2col.
    c1 = params["conv1_w"].transpose(2, 3, 1, 0).reshape(K1 * K1 * IN_CH, C1_OUT)
    c1 = pad2(c1, _round_up(K1 * K1 * IN_CH, 32), LANE).astype(dtype)        # (32, 128)

    # conv2 -> (9, 128, 128): one (ci, co) slab per tap t = dy*3 + dx.
    c2 = params["conv2_w"].transpose(2, 3, 1, 0).reshape(K2 * K2, C1_OUT, C2_OUT)
    c2 = jnp.pad(c2, ((0, 0), (0, LANE - C1_OUT), (0, LANE - C2_OUT))).astype(dtype)

    # fc1: torch rows are indexed (c, h, w) due to .view on NCHW; permute to
    # the NHWC-flat order (h, w, c) produced by the conv glue, then pad.
    f1 = params["fc1_w"].reshape(FC1_OUT, C2_OUT, H2, H2)
    f1 = f1.transpose(2, 3, 1, 0).reshape(FC1_IN, FC1_OUT)
    f1 = pad2(f1, _round_up(FC1_IN, LANE), _round_up(FC1_OUT, LANE)).astype(dtype)  # (2048, 512)

    # fc2: torch (10, 500) -> (512, 128); padded class lanes masked in-kernel.
    f2 = pad2(params["fc2_w"].T, _round_up(FC1_OUT, LANE), LANE).astype(dtype)

    return {
        "conv1_w": c1, "conv1_b": pad_bias(params["conv1_b"], LANE),
        "conv2_w": c2, "conv2_b": pad_bias(params["conv2_b"], LANE),
        "fc1_w": f1, "fc1_b": pad_bias(params["fc1_b"], _round_up(FC1_OUT, LANE)),
        "fc2_w": f2, "fc2_b": pad_bias(params["fc2_b"], LANE),
    }


# ---------------------------------------------------------------------------
# ConvNet forward
# ---------------------------------------------------------------------------
def convnet_forward(prepared, x):
    """x: (B, 1, 28, 28) f32 NCHW -> log-probabilities (B, 10) f32."""
    B = x.shape[0]
    p = prepared

    tb, n_tiles = _image_tiles(B)
    bp = tb * n_tiles
    if bp != B:
        x = jnp.pad(x, ((0, bp - B), (0, 0), (0, 0), (0, 0)))

    # bf16 BEFORE im2col so the patch slab is built once, in bf16.
    xb = x.astype(p["conv1_w"].dtype)
    patches = _conv1_pool_patches(xb, K1, K1)                          # (4, bp*144, 25)
    kp = p["conv1_w"].shape[0]
    patches = jnp.pad(patches, ((0, 0), (0, 0), (0, kp - patches.shape[-1])))

    # conv1 + ReLU + pool + conv2 + ReLU -- one fused Pallas kernel.
    act2 = convs_fused(patches, p["conv1_w"], p["conv1_b"],
                       p["conv2_w"], p["conv2_b"], tb=tb, n_tiles=n_tiles)  # (bp*144, 128)

    # Drop the over-computed conv2 positions / padded channels and flatten
    # NHWC (small layout-only XLA glue between the two kernels).
    feat = act2.reshape(bp, HP, HP, LANE)[:, :H2, :H2, :C2_OUT]        # (bp, 10, 10, 20)
    feat = feat.reshape(bp, H2 * H2 * C2_OUT)                          # (bp, 2000) bf16
    kf = p["fc1_w"].shape[0]
    feat = jnp.pad(feat, ((0, 0), (0, kf - feat.shape[-1])))           # (bp, 2048)

    # fc1 + ReLU + fc2 + log_softmax -- one fused Pallas kernel.
    logp = fc_fused(feat, p["fc1_w"], p["fc1_b"], p["fc2_w"], p["fc2_b"],
                    num_classes=N_CLASSES)                             # (bp, 128) f32
    return logp[:B, :N_CLASSES]


# ---------------------------------------------------------------------------
# Pure-JAX f32 reference of the PyTorch module (for correctness check)
# ---------------------------------------------------------------------------
def reference_forward(params, x):
    out = jax.lax.conv_general_dilated(
        x, params["conv1_w"], (1, 1), "VALID",
        dimension_numbers=("NCHW", "OIHW", "NCHW"))
    out = jnp.maximum(out + params["conv1_b"][None, :, None, None], 0.0)
    out = jax.lax.reduce_window(out, -jnp.inf, jax.lax.max,
                                (1, 1, 2, 2), (1, 1, 2, 2), "VALID")
    out = jax.lax.conv_general_dilated(
        out, params["conv2_w"], (1, 1), "VALID",
        dimension_numbers=("NCHW", "OIHW", "NCHW"))
    out = jnp.maximum(out + params["conv2_b"][None, :, None, None], 0.0)
    out = out.reshape(x.shape[0], -1)
    out = jnp.maximum(out @ params["fc1_w"].T + params["fc1_b"], 0.0)
    out = out @ params["fc2_w"].T + params["fc2_b"]
    return jax.nn.log_softmax(out, axis=1)


if __name__ == "__main__":
    key = jax.random.PRNGKey(0)
    pkey, xkey = jax.random.split(key)
    params = init_params(pkey)
    prepared = prepare_params(params)

    B = 2
    x = jax.random.normal(xkey, (B, IN_CH, IMG, IMG), dtype=jnp.float32)

    fwd = jax.jit(convnet_forward)
    logp = jax.block_until_ready(fwd(prepared, x))

    assert logp.shape == (B, N_CLASSES)
    assert bool(jnp.all(jnp.isfinite(logp)))
    row_sums = jnp.sum(jnp.exp(logp), axis=1)
    assert bool(jnp.allclose(row_sums, 1.0, atol=1e-4))

    # Cross-check against the plain-JAX f32 reference (bf16 MXU tolerance).
    ref = jax.jit(reference_forward)(params, x)
    max_diff = float(jnp.max(jnp.abs(logp - ref)))
    assert max_diff < 2e-1, f"mismatch vs reference: max |diff| = {max_diff}"

    print("KERNEL_OK")
</pallas_src>

<mosaic_0001>
module attributes {stable_mosaic.version = 11 : i64} {
  func.func @convs_kernel(%arg0: i32, %arg1: memref<4x144x32xbf16, #tpu.memory_space<vmem>>, %arg2: memref<32x128xbf16, #tpu.memory_space<vmem>>, %arg3: memref<1x128xf32, #tpu.memory_space<vmem>>, %arg4: memref<9x128x128xbf16, #tpu.memory_space<vmem>>, %arg5: memref<1x128xf32, #tpu.memory_space<vmem>>, %arg6: memref<144x128xbf16, #tpu.memory_space<vmem>>) attributes {dimension_semantics = [#tpu.dimension_semantics<parallel>], iteration_bounds = array<i64: 2>, scalar_prefetch = 0 : i64, scratch_operands = 0 : i64, tpu.core_type = #tpu.core_type<tc>, window_params = [{transform_indices = @transform_0, window_bounds = array<i64: 4, 144, 32>}, {pipeline_mode = #tpu.pipeline_mode<synchronous>, transform_indices = @transform_1, window_bounds = array<i64: 32, 128>}, {pipeline_mode = #tpu.pipeline_mode<synchronous>, transform_indices = @transform_2, window_bounds = array<i64: 1, 128>}, {pipeline_mode = #tpu.pipeline_mode<synchronous>, transform_indices = @transform_3, window_bounds = array<i64: 9, 128, 128>}, {pipeline_mode = #tpu.pipeline_mode<synchronous>, transform_indices = @transform_4, window_bounds = array<i64: 1, 128>}, {transform_indices = @transform_5, window_bounds = array<i64: 144, 128>}]} {
    %c0 = arith.constant 0 : index
    %c0_0 = arith.constant 0 : index
    %c0_1 = arith.constant 0 : index
    %0 = vector.load %arg1[%c0, %c0_0, %c0_1] : memref<4x144x32xbf16, #tpu.memory_space<vmem>>, vector<1x144x32xbf16>
    %1 = vector.shape_cast %0 : vector<1x144x32xbf16> to vector<144x32xbf16>
    %c0_2 = arith.constant 0 : index
    %c0_3 = arith.constant 0 : index
    %2 = vector.load %arg2[%c0_2, %c0_3] : memref<32x128xbf16, #tpu.memory_space<vmem>>, vector<32x128xbf16>
    %cst = arith.constant dense<0.000000e+00> : vector<144x128xf32>
    %3 = tpu.matmul %1, %2, %cst {dimension_numbers = #tpu.dot_dimension_numbers<[1], [0], [0], [1], [0, 0, 1, 1], [], []>} : vector<144x32xbf16>, vector<32x128xbf16>, vector<144x128xf32> -> vector<144x128xf32>
    %c1 = arith.constant 1 : index
    %c0_4 = arith.constant 0 : index
    %c0_5 = arith.constant 0 : index
    %4 = vector.load %arg1[%c1, %c0_4, %c0_5] : memref<4x144x32xbf16, #tpu.memory_space<vmem>>, vector<1x144x32xbf16>
    %5 = vector.shape_cast %4 : vector<1x144x32xbf16> to vector<144x32xbf16>
    %c0_6 = arith.constant 0 : index
    %c0_7 = arith.constant 0 : index
    %6 = vector.load %arg2[%c0_6, %c0_7] : memref<32x128xbf16, #tpu.memory_space<vmem>>, vector<32x128xbf16>
    %cst_8 = arith.constant dense<0.000000e+00> : vector<144x128xf32>
    %7 = tpu.matmul %5, %6, %cst_8 {dimension_numbers = #tpu.dot_dimension_numbers<[1], [0], [0], [1], [0, 0, 1, 1], [], []>} : vector<144x32xbf16>, vector<32x128xbf16>, vector<144x128xf32> -> vector<144x128xf32>
    %8 = arith.maximumf %3, %7 : vector<144x128xf32>
    %c2 = arith.constant 2 : index
    %c0_9 = arith.constant 0 : index
    %c0_10 = arith.constant 0 : index
    %9 = vector.load %arg1[%c2, %c0_9, %c0_10] : memref<4x144x32xbf16, #tpu.memory_space<vmem>>, vector<1x144x32xbf16>
    %10 = vector.shape_cast %9 : vector<1x144x32xbf16> to vector<144x32xbf16>
    %c0_11 = arith.constant 0 : index
    %c0_12 = arith.constant 0 : index
    %11 = vector.load %arg2[%c0_11, %c0_12] : memref<32x128xbf16, #tpu.memory_space<vmem>>, vector<32x128xbf16>
    %cst_13 = arith.constant dense<0.000000e+00> : vector<144x128xf32>
    %12 = tpu.matmul %10, %11, %cst_13 {dimension_numbers = #tpu.dot_dimension_numbers<[1], [0], [0], [1], [0, 0, 1, 1], [], []>} : vector<144x32xbf16>, vector<32x128xbf16>, vector<144x128xf32> -> vector<144x128xf32>
    %13 = arith.maximumf %8, %12 : vector<144x128xf32>
    %c3 = arith.constant 3 : index
    %c0_14 = arith.constant 0 : index
    %c0_15 = arith.constant 0 : index
    %14 = vector.load %arg1[%c3, %c0_14, %c0_15] : memref<4x144x32xbf16, #tpu.memory_space<vmem>>, vector<1x144x32xbf16>
    %15 = vector.shape_cast %14 : vector<1x144x32xbf16> to vector<144x32xbf16>
    %c0_16 = arith.constant 0 : index
    %c0_17 = arith.constant 0 : index
    %16 = vector.load %arg2[%c0_16, %c0_17] : memref<32x128xbf16, #tpu.memory_space<vmem>>, vector<32x128xbf16>
    %cst_18 = arith.constant dense<0.000000e+00> : vector<144x128xf32>
    %17 = tpu.matmul %15, %16, %cst_18 {dimension_numbers = #tpu.dot_dimension_numbers<[1], [0], [0], [1], [0, 0, 1, 1], [], []>} : vector<144x32xbf16>, vector<32x128xbf16>, vector<144x128xf32> -> vector<144x128xf32>
    %18 = arith.maximumf %13, %17 : vector<144x128xf32>
    %c0_19 = arith.constant 0 : index
    %c0_20 = arith.constant 0 : index
    %19 = vector.load %arg3[%c0_19, %c0_20] : memref<1x128xf32, #tpu.memory_space<vmem>>, vector<1x128xf32>
    %20 = vector.broadcast %19 : vector<1x128xf32> to vector<144x128xf32>
    %21 = arith.addf %18, %20 : vector<144x128xf32>
    %cst_21 = arith.constant 0.000000e+00 : f32
    %22 = vector.broadcast %cst_21 : f32 to vector<144x128xf32>
    %23 = arith.maximumf %21, %22 : vector<144x128xf32>
    %cst_22 = arith.constant 0.000000e+00 : f32
    %24 = vector.broadcast %cst_22 : f32 to vector<32x128xf32>
    %25 = tpu.concatenate %23, %24 in 0 : vector<144x128xf32>, vector<32x128xf32> -> vector<176x128xf32>
    %26 = vector.extract_strided_slice %25 {offsets = [0, 0], sizes = [144, 128], strides = [1, 1]} : vector<176x128xf32> to vector<144x128xf32>
    %27 = arith.truncf %26 : vector<144x128xf32> to vector<144x128xbf16>
    %c0_23 = arith.constant 0 : index
    %c0_24 = arith.constant 0 : index
    %c0_25 = arith.constant 0 : index
    %28 = vector.load %arg4[%c0_23, %c0_24, %c0_25] : memref<9x128x128xbf16, #tpu.memory_space<vmem>>, vector<1x128x128xbf16>
    %29 = vector.shape_cast %28 : vector<1x128x128xbf16> to vector<128x128xbf16>
    %cst_26 = arith.constant dense<0.000000e+00> : vector<144x128xf32>
    %30 = tpu.matmul %27, %29, %cst_26 {dimension_numbers = #tpu.dot_dimension_numbers<[1], [0], [0], [1], [0, 0, 1, 1], [], []>} : vector<144x128xbf16>, vector<128x128xbf16>, vector<144x128xf32> -> vector<144x128xf32>
    %31 = vector.extract_strided_slice %25 {offsets = [1, 0], sizes = [144, 128], strides = [1, 1]} : vector<176x128xf32> to vector<144x128xf32>
    %32 = arith.truncf %31 : vector<144x128xf32> to vector<144x128xbf16>
    %c1_27 = arith.constant 1 : index
    %c0_28 = arith.constant 0 : index
    %c0_29 = arith.constant 0 : index
    %33 = vector.load %arg4[%c1_27, %c0_28, %c0_29] : memref<9x128x128xbf16, #tpu.memory_space<vmem>>, vector<1x128x128xbf16>
    %34 = vector.shape_cast %33 : vector<1x128x128xbf16> to vector<128x128xbf16>
    %cst_30 = arith.constant dense<0.000000e+00> : vector<144x128xf32>
    %35 = tpu.matmul %32, %34, %cst_30 {dimension_numbers = #tpu.dot_dimension_numbers<[1], [0], [0], [1], [0, 0, 1, 1], [], []>} : vector<144x128xbf16>, vector<128x128xbf16>, vector<144x128xf32> -> vector<144x128xf32>
    %36 = arith.addf %30, %35 : vector<144x128xf32>
    %37 = vector.extract_strided_slice %25 {offsets = [2, 0], sizes = [144, 128], strides = [1, 1]} : vector<176x128xf32> to vector<144x128xf32>
    %38 = arith.truncf %37 : vector<144x128xf32> to vector<144x128xbf16>
    %c2_31 = arith.constant 2 : index
    %c0_32 = arith.constant 0 : index
    %c0_33 = arith.constant 0 : index
    %39 = vector.load %arg4[%c2_31, %c0_32, %c0_33] : memref<9x128x128xbf16, #tpu.memory_space<vmem>>, vector<1x128x128xbf16>
    %40 = vector.shape_cast %39 : vector<1x128x128xbf16> to vector<128x128xbf16>
    %cst_34 = arith.constant dense<0.000000e+00> : vector<144x128xf32>
    %41 = tpu.matmul %38, %40, %cst_34 {dimension_numbers = #tpu.dot_dimension_numbers<[1], [0], [0], [1], [0, 0, 1, 1], [], []>} : vector<144x128xbf16>, vector<128x128xbf16>, vector<144x128xf32> -> vector<144x128xf32>
    %42 = arith.addf %36, %41 : vector<144x128xf32>
    %43 = vector.extract_strided_slice %25 {offsets = [12, 0], sizes = [144, 128], strides = [1, 1]} : vector<176x128xf32> to vector<144x128xf32>
    %44 = arith.truncf %43 : vector<144x128xf32> to vector<144x128xbf16>
    %c3_35 = arith.constant 3 : index
    %c0_36 = arith.constant 0 : index
    %c0_37 = arith.constant 0 : index
    %45 = vector.load %arg4[%c3_35, %c0_36, %c0_37] : memref<9x128x128xbf16, #tpu.memory_space<vmem>>, vector<1x128x128xbf16>
    %46 = vector.shape_cast %45 : vector<1x128x128xbf16> to vector<128x128xbf16>
    %cst_38 = arith.constant dense<0.000000e+00> : vector<144x128xf32>
    %47 = tpu.matmul %44, %46, %cst_38 {dimension_numbers = #tpu.dot_dimension_numbers<[1], [0], [0], [1], [0, 0, 1, 1], [], []>} : vector<144x128xbf16>, vector<128x128xbf16>, vector<144x128xf32> -> vector<144x128xf32>
    %48 = arith.addf %42, %47 : vector<144x128xf32>
    %49 = vector.extract_strided_slice %25 {offsets = [13, 0], sizes = [144, 128], strides = [1, 1]} : vector<176x128xf32> to vector<144x128xf32>
    %50 = arith.truncf %49 : vector<144x128xf32> to vector<144x128xbf16>
    %c4 = arith.constant 4 : index
    %c0_39 = arith.constant 0 : index
    %c0_40 = arith.constant 0 : index
    %51 = vector.load %arg4[%c4, %c0_39, %c0_40] : memref<9x128x128xbf16, #tpu.memory_space<vmem>>, vector<1x128x128xbf16>
    %52 = vector.shape_cast %51 : vector<1x128x128xbf16> to vector<128x128xbf16>
    %cst_41 = arith.constant dense<0.000000e+00> : vector<144x128xf32>
    %53 = tpu.matmul %50, %52, %cst_41 {dimension_numbers = #tpu.dot_dimension_numbers<[1], [0], [0], [1], [0, 0, 1, 1], [], []>} : vector<144x128xbf16>, vector<128x128xbf16>, vector<144x128xf32> -> vector<144x128xf32>
    %54 = arith.addf %48, %53 : vector<144x128xf32>
    %55 = vector.extract_strided_slice %25 {offsets = [14, 0], sizes = [144, 128], strides = [1, 1]} : vector<176x128xf32> to vector<144x128xf32>
    %56 = arith.truncf %55 : vector<144x128xf32> to vector<144x128xbf16>
    %c5 = arith.constant 5 : index
    %c0_42 = arith.constant 0 : index
    %c0_43 = arith.constant 0 : index
    %57 = vector.load %arg4[%c5, %c0_42, %c0_43] : memref<9x128x128xbf16, #tpu.memory_space<vmem>>, vector<1x128x128xbf16>
    %58 = vector.shape_cast %57 : vector<1x128x128xbf16> to vector<128x128xbf16>
    %cst_44 = arith.constant dense<0.000000e+00> : vector<144x128xf32>
    %59 = tpu.matmul %56, %58, %cst_44 {dimension_numbers = #tpu.dot_dimension_numbers<[1], [0], [0], [1], [0, 0, 1, 1], [], []>} : vector<144x128xbf16>, vector<128x128xbf16>, vector<144x128xf32> -> vector<144x128xf32>
    %60 = arith.addf %54, %59 : vector<144x128xf32>
    %61 = vector.extract_strided_slice %25 {offsets = [24, 0], sizes = [144, 128], strides = [1, 1]} : vector<176x128xf32> to vector<144x128xf32>
    %62 = arith.truncf %61 : vector<144x128xf32> to vector<144x128xbf16>
    %c6 = arith.constant 6 : index
    %c0_45 = arith.constant 0 : index
    %c0_46 = arith.constant 0 : index
    %63 = vector.load %arg4[%c6, %c0_45, %c0_46] : memref<9x128x128xbf16, #tpu.memory_space<vmem>>, vector<1x128x128xbf16>
    %64 = vector.shape_cast %63 : vector<1x128x128xbf16> to vector<128x128xbf16>
    %cst_47 = arith.constant dense<0.000000e+00> : vector<144x128xf32>
    %65 = tpu.matmul %62, %64, %cst_47 {dimension_numbers = #tpu.dot_dimension_numbers<[1], [0], [0], [1], [0, 0, 1, 1], [], []>} : vector<144x128xbf16>, vector<128x128xbf16>, vector<144x128xf32> -> vector<144x128xf32>
    %66 = arith.addf %60, %65 : vector<144x128xf32>
    %67 = vector.extract_strided_slice %25 {offsets = [25, 0], sizes = [144, 128], strides = [1, 1]} : vector<176x128xf32> to vector<144x128xf32>
    %68 = arith.truncf %67 : vector<144x128xf32> to vector<144x128xbf16>
    %c7 = arith.constant 7 : index
    %c0_48 = arith.constant 0 : index
    %c0_49 = arith.constant 0 : index
    %69 = vector.load %arg4[%c7, %c0_48, %c0_49] : memref<9x128x128xbf16, #tpu.memory_space<vmem>>, vector<1x128x128xbf16>
    %70 = vector.shape_cast %69 : vector<1x128x128xbf16> to vector<128x128xbf16>
    %cst_50 = arith.constant dense<0.000000e+00> : vector<144x128xf32>
    %71 = tpu.matmul %68, %70, %cst_50 {dimension_numbers = #tpu.dot_dimension_numbers<[1], [0], [0], [1], [0, 0, 1, 1], [], []>} : vector<144x128xbf16>, vector<128x128xbf16>, vector<144x128xf32> -> vector<144x128xf32>
    %72 = arith.addf %66, %71 : vector<144x128xf32>
    %73 = vector.extract_strided_slice %25 {offsets = [26, 0], sizes = [144, 128], strides = [1, 1]} : vector<176x128xf32> to vector<144x128xf32>
    %74 = arith.truncf %73 : vector<144x128xf32> to vector<144x128xbf16>
    %c8 = arith.constant 8 : index
    %c0_51 = arith.constant 0 : index
    %c0_52 = arith.constant 0 : index
    %75 = vector.load %arg4[%c8, %c0_51, %c0_52] : memref<9x128x128xbf16, #tpu.memory_space<vmem>>, vector<1x128x128xbf16>
    %76 = vector.shape_cast %75 : vector<1x128x128xbf16> to vector<128x128xbf16>
    %cst_53 = arith.constant dense<0.000000e+00> : vector<144x128xf32>
    %77 = tpu.matmul %74, %76, %cst_53 {dimension_numbers = #tpu.dot_dimension_numbers<[1], [0], [0], [1], [0, 0, 1, 1], [], []>} : vector<144x128xbf16>, vector<128x128xbf16>, vector<144x128xf32> -> vector<144x128xf32>
    %78 = arith.addf %72, %77 : vector<144x128xf32>
    %c0_54 = arith.constant 0 : index
    %c0_55 = arith.constant 0 : index
    %79 = vector.load %arg5[%c0_54, %c0_55] : memref<1x128xf32, #tpu.memory_space<vmem>>, vector<1x128xf32>
    %80 = vector.broadcast %79 : vector<1x128xf32> to vector<144x128xf32>
    %81 = arith.addf %78, %80 : vector<144x128xf32>
    %cst_56 = arith.constant 0.000000e+00 : f32
    %82 = vector.broadcast %cst_56 : f32 to vector<144x128xf32>
    %83 = arith.maximumf %81, %82 : vector<144x128xf32>
    %84 = arith.truncf %83 : vector<144x128xf32> to vector<144x128xbf16>
    %c0_57 = arith.constant 0 : index
    %c0_58 = arith.constant 0 : index
    %85 = vector.load %arg6[%c0_57, %c0_58] : memref<144x128xbf16, #tpu.memory_space<vmem>>, vector<144x128xbf16>
    tpu.vector_store %arg6[%c0_57, %c0_58], %84 {strides = array<i32>} : memref<144x128xbf16, #tpu.memory_space<vmem>>, vector<144x128xbf16>,
    return
  }
  func.func @transform_0(%arg0: i32) -> (i32, i32, i32) {
    %c0_i32 = arith.constant 0 : i32
    %c0_i32_0 = arith.constant 0 : i32
    %c0_i32_1 = arith.constant 0 : i32
    return %c0_i32, %arg0, %c0_i32_0 : i32, i32, i32
  }
  func.func @transform_1(%arg0: i32) -> (i32, i32) {
    %c0_i32 = arith.constant 0 : i32
    %c0_i32_0 = arith.constant 0 : i32
    %c0_i32_1 = arith.constant 0 : i32
    return %c0_i32, %c0_i32_0 : i32, i32
  }
  func.func @transform_2(%arg0: i32) -> (i32, i32) {
    %c0_i32 = arith.constant 0 : i32
    %c0_i32_0 = arith.constant 0 : i32
    %c0_i32_1 = arith.constant 0 : i32
    return %c0_i32, %c0_i32_0 : i32, i32
  }
  func.func @transform_3(%arg0: i32) -> (i32, i32, i32) {
    %c0_i32 = arith.constant 0 : i32
    %c0_i32_0 = arith.constant 0 : i32
    %c0_i32_1 = arith.constant 0 : i32
    %c0_i32_2 = arith.constant 0 : i32
    return %c0_i32, %c0_i32_0, %c0_i32_1 : i32, i32, i32
  }
  func.func @transform_4(%arg0: i32) -> (i32, i32) {
    %c0_i32 = arith.constant 0 : i32
    %c0_i32_0 = arith.constant 0 : i32
    %c0_i32_1 = arith.constant 0 : i32
    return %c0_i32, %c0_i32_0 : i32, i32
  }
  func.func @transform_5(%arg0: i32) -> (i32, i32) {
    %c0_i32 = arith.constant 0 : i32
    %c0_i32_0 = arith.constant 0 : i32
    return %arg0, %c0_i32 : i32, i32
  }
}

module attributes {stable_mosaic.version = 11 : i64} {
  func.func @fc_fused_kernel(%arg0: i32, %arg1: memref<8x2048xbf16, #tpu.memory_space<vmem>>, %arg2: memref<2048x512xbf16, #tpu.memory_space<vmem>>, %arg3: memref<1x512xf32, #tpu.memory_space<vmem>>, %arg4: memref<512x128xbf16, #tpu.memory_space<vmem>>, %arg5: memref<1x128xf32, #tpu.memory_space<vmem>>, %arg6: memref<8x128xf32, #tpu.memory_space<vmem>>) attributes {dimension_semantics = [#tpu.dimension_semantics<parallel>], iteration_bounds = array<i64: 1>, scalar_prefetch = 0 : i64, scratch_operands = 0 : i64, tpu.core_type = #tpu.core_type<tc>, window_params = [{transform_indices = @transform_0, window_bounds = array<i64: 8, 2048>}, {pipeline_mode = #tpu.pipeline_mode<synchronous>, transform_indices = @transform_1, window_bounds = array<i64: 2048, 512>}, {pipeline_mode = #tpu.pipeline_mode<synchronous>, transform_indices = @transform_2, window_bounds = array<i64: 1, 512>}, {pipeline_mode = #tpu.pipeline_mode<synchronous>, transform_indices = @transform_3, window_bounds = array<i64: 512, 128>}, {pipeline_mode = #tpu.pipeline_mode<synchronous>, transform_indices = @transform_4, window_bounds = array<i64: 1, 128>}, {transform_indices = @transform_5, window_bounds = array<i64: 8, 128>}]} {
    %c0 = arith.constant 0 : index
    %c0_0 = arith.constant 0 : index
    %0 = vector.load %arg1[%c0, %c0_0] : memref<8x2048xbf16, #tpu.memory_space<vmem>>, vector<8x2048xbf16>
    %c0_1 = arith.constant 0 : index
    %c0_2 = arith.constant 0 : index
    %1 = vector.load %arg2[%c0_1, %c0_2] : memref<2048x512xbf16, #tpu.memory_space<vmem>>, vector<2048x512xbf16>
    %cst = arith.constant dense<0.000000e+00> : vector<8x512xf32>
    %2 = tpu.matmul %0, %1, %cst {dimension_numbers = #tpu.dot_dimension_numbers<[1], [0], [0], [1], [0, 0, 1, 1], [], []>} : vector<8x2048xbf16>, vector<2048x512xbf16>, vector<8x512xf32> -> vector<8x512xf32>
    %c0_3 = arith.constant 0 : index
    %c0_4 = arith.constant 0 : index
    %3 = vector.load %arg3[%c0_3, %c0_4] : memref<1x512xf32, #tpu.memory_space<vmem>>, vector<1x512xf32>
    %4 = vector.broadcast %3 : vector<1x512xf32> to vector<8x512xf32>
    %5 = arith.addf %2, %4 : vector<8x512xf32>
    %cst_5 = arith.constant 0.000000e+00 : f32
    %6 = vector.broadcast %cst_5 : f32 to vector<8x512xf32>
    %7 = arith.maximumf %5, %6 : vector<8x512xf32>
    %8 = arith.truncf %7 : vector<8x512xf32> to vector<8x512xbf16>
    %c0_6 = arith.constant 0 : index
    %c0_7 = arith.constant 0 : index
    %9 = vector.load %arg4[%c0_6, %c0_7] : memref<512x128xbf16, #tpu.memory_space<vmem>>, vector<512x128xbf16>
    %cst_8 = arith.constant dense<0.000000e+00> : vector<8x128xf32>
    %10 = tpu.matmul %8, %9, %cst_8 {dimension_numbers = #tpu.dot_dimension_numbers<[1], [0], [0], [1], [0, 0, 1, 1], [], []>} : vector<8x512xbf16>, vector<512x128xbf16>, vector<8x128xf32> -> vector<8x128xf32>
    %c0_9 = arith.constant 0 : index
    %c0_10 = arith.constant 0 : index
    %11 = vector.load %arg5[%c0_9, %c0_10] : memref<1x128xf32, #tpu.memory_space<vmem>>, vector<1x128xf32>
    %12 = vector.broadcast %11 : vector<1x128xf32> to vector<8x128xf32>
    %13 = arith.addf %10, %12 : vector<8x128xf32>
    %14 = tpu.iota {dimensions = array<i32: 1>} : vector<8x128xi32>
    %c10_i32 = arith.constant 10 : i32
    %15 = vector.broadcast %c10_i32 : i32 to vector<8x128xi32>
    %16 = arith.cmpi slt, %14, %15 : vector<8x128xi32>
    %cst_11 = arith.constant -1.000000e+30 : f32
    %17 = vector.broadcast %cst_11 : f32 to vector<8x128xf32>
    %18 = arith.select %16, %13, %17 : vector<8x128xi1>, vector<8x128xf32>
    %cst_12 = arith.constant dense<0xFF800000> : vector<8xf32>
    %19 = vector.multi_reduction <maximumf>, %18, %cst_12 [1] : vector<8x128xf32> to vector<8xf32>
    %20 = vector.shape_cast %19 : vector<8xf32> to vector<8x1xf32>
    %21 = vector.broadcast %20 : vector<8x1xf32> to vector<8x128xf32>
    %22 = arith.subf %18, %21 : vector<8x128xf32>
    %23 = math.exp %22 : vector<8x128xf32>
    %cst_13 = arith.constant dense<0.000000e+00> : vector<8xf32>
    %24 = vector.multi_reduction <add>, %23, %cst_13 [1] : vector<8x128xf32> to vector<8xf32>
    %25 = vector.shape_cast %24 : vector<8xf32> to vector<8x1xf32>
    %26 = math.log %25 : vector<8x1xf32>
    %27 = vector.broadcast %26 : vector<8x1xf32> to vector<8x128xf32>
    %28 = arith.subf %22, %27 : vector<8x128xf32>
    %c0_14 = arith.constant 0 : index
    %c0_15 = arith.constant 0 : index
    %29 = vector.load %arg6[%c0_14, %c0_15] : memref<8x128xf32, #tpu.memory_space<vmem>>, vector<8x128xf32>
    tpu.vector_store %arg6[%c0_14, %c0_15], %28 {strides = array<i32>} : memref<8x128xf32, #tpu.memory_space<vmem>>, vector<8x128xf32>,
    return
  }
  func.func @transform_0(%arg0: i32) -> (i32, i32) {
    %c0_i32 = arith.constant 0 : i32
    %c0_i32_0 = arith.constant 0 : i32
    return %arg0, %c0_i32 : i32, i32
  }
  func.func @transform_1(%arg0: i32) -> (i32, i32) {
    %c0_i32 = arith.constant 0 : i32
    %c0_i32_0 = arith.constant 0 : i32
    %c0_i32_1 = arith.constant 0 : i32
    return %c0_i32, %c0_i32_0 : i32, i32
  }
  func.func @transform_2(%arg0: i32) -> (i32, i32) {
    %c0_i32 = arith.constant 0 : i32
    %c0_i32_0 = arith.constant 0 : i32
    %c0_i32_1 = arith.constant 0 : i32
    return %c0_i32, %c0_i32_0 : i32, i32
  }
  func.func @transform_3(%arg0: i32) -> (i32, i32) {
    %c0_i32 = arith.constant 0 : i32
    %c0_i32_0 = arith.constant 0 : i32
    %c0_i32_1 = arith.constant 0 : i32
    return %c0_i32, %c0_i32_0 : i32, i32
  }
  func.func @transform_4(%arg0: i32) -> (i32, i32) {
    %c0_i32 = arith.constant 0 : i32
    %c0_i32_0 = arith.constant 0 : i32
    %c0_i32_1 = arith.constant 0 : i32
    return %c0_i32, %c0_i32_0 : i32, i32
  }
  func.func @transform_5(%arg0: i32) -> (i32, i32) {
    %c0_i32 = arith.constant 0 : i32
    %c0_i32_0 = arith.constant 0 : i32
    return %arg0, %c0_i32 : i32, i32
  }
}

</mosaic_0001>

<llo_original>
// kernel: convnet_forward.2
$region0: #{convnet_forward.2}
  #allocation0 [shape = 'u32[]', space=smem, size = 0x4, offset = 0x4, fixed_abs, tag = 'smem constant byte address 0x4 - core index']
  #allocation1 [shape = 'u32[144,128]{1,0:T(1,128)}', space=vmem, size = 0x12000, scoped, tag = 'internal scratch']
  %s0 = inlined_call_operand.vmem [shape: bf16[4,288,32], index: 0, kind: input, shape index: {}]
  %s1 = inlined_call_operand.vmem [shape: bf16[32,128], index: 1, kind: input, shape index: {}]
  %s2 = inlined_call_operand.vmem [shape: f32[1,128], index: 2, kind: input, shape index: {}]
  %s3 = inlined_call_operand.vmem [shape: bf16[9,128,128], index: 3, kind: input, shape index: {}]
  %s4 = inlined_call_operand.vmem [shape: f32[1,128], index: 4, kind: input, shape index: {}]
  %s5 = inlined_call_operand.vmem [shape: bf16[288,128], index: 5, kind: output, shape index: {}]
  %s6 = sld [smem:[#allocation0]]
  $region94: #{convnet_forward.2} parent=0
    _
  %s8 = ssub.s32 1, %s6
  %s9 = scalar_select 0, %s8, %s6
  $region1: #{convnet_forward.2} parent=0
    #allocation2 [shape = 'u8[294912]{0}', space=vmem, size = 0x48000, scoped, tag = 'input window, operand 0']
    loop: start=0, step=1, limit=4
    $region2: #{convnet_forward.2} parent=1 // loop_pre_header
      _
    $region3: #{convnet_forward.2} parent=1 // loop_header
      %s11 = sphi 0, %s15
      %p12 = scmp.ge.s32.totalorder %s11, 4
      %s21 = sphi 0, %s23
      %s24 = sphi 0, %s21
      %s25 = sphi 0, %s24
      %s41 = sphi 0, %s25
      %s45 = sphi 0, %s45
      %s47 = sphi 0, %s45
      %s48 = sphi 0, %s47
      %s62 = sphi 0, %s48
      %s66 = sphi 0, %s66
      %s68 = sphi 0, %s66
      %s69 = sphi 0, %s68
      %s83 = sphi 0, %s69
      %s87 = sphi 0, %s87
      %s89 = sphi 0, %s87
      %s90 = sphi 0, %s89
      %s104 = sphi 0, %s90
      %s108 = sphi 0, %s108
      %s110 = sphi 0, %s108
      %s111 = sphi 0, %s110
      %s125 = sphi 0, %s111
      %s131 = sphi 0, %s133
      %s134 = sphi 0, %s131
      %s135 = sphi 0, %s134
      %s151 = sphi 0, %s135
    $region4: #{convnet_forward.2} parent=1 // loop_header_branch
      %14 = sbr.rel (%p12) target = $region8
    $region5: #{convnet_forward.2} parent=1 // loop_body
      %s16 = ssub.s32 %s11, 1
      %s17 = ssub.s32 %s11, 2
      %s18 = sadd.s32 %s11, 1
      %s19 = ssub.s32 %s11, %s18
      %p20 = scmp.eq.s32.totalorder %s19, 0
      %s22 = sadd.s32 %s21, 1
      %s23 = scalar_select %p20, %s21, %s22
      %p26 = pneg %p20
      %p27 = scmp.eq.s32.totalorder %s11, 1
      %p28 = por %p26, %p27
      %p29 = scmp.ne.s32.totalorder %s21, %s24
      %p30 = scmp.eq.s32.totalorder %s11, 0
      %p31 = por %p29, %p30
      %p32 = scmp.ne.s32.totalorder %s21, %s24
      %p33 = scmp.eq.s32.totalorder %s16, 1
      %p34 = por %p32, %p33
      %p35 = scmp.ne.s32.totalorder %s24, %s25
      %p36 = scmp.eq.s32.totalorder %s16, 0
      %p37 = por %p35, %p36
      %p38 = scmp.ne.s32.totalorder %s24, %s25
      %p39 = scmp.eq.s32.totalorder %s17, 1
      %p40 = por %p38, %p39
      %p42 = scmp.ne.s32.totalorder %s25, %s41
      %p43 = scmp.eq.s32.totalorder %s17, 0
      %p44 = por %p42, %p43
      %s46 = sadd.s32 %s45, 1
      %p49 = scmp.eq.s32.totalorder %s11, 1
      %p50 = scmp.ne.s32.totalorder %s45, %s47
      %p51 = scmp.eq.s32.totalorder %s11, 0
      %p52 = por %p50, %p51
      %p53 = scmp.ne.s32.totalorder %s45, %s47
      %p54 = scmp.eq.s32.totalorder %s16, 1
      %p55 = por %p53, %p54
      %p56 = scmp.ne.s32.totalorder %s47, %s48
      %p57 = scmp.eq.s32.totalorder %s16, 0
      %p58 = por %p56, %p57
      %p59 = scmp.ne.s32.totalorder %s47, %s48
      %p60 = scmp.eq.s32.totalorder %s17, 1
      %p61 = por %p59, %p60
      %p63 = scmp.ne.s32.totalorder %s48, %s62
      %p64 = scmp.eq.s32.totalorder %s17, 0
      %p65 = por %p63, %p64
      %s67 = sadd.s32 %s66, 1
      %p70 = scmp.eq.s32.totalorder %s11, 1
      %p71 = scmp.ne.s32.totalorder %s66, %s68
      %p72 = scmp.eq.s32.totalorder %s11, 0
      %p73 = por %p71, %p72
      %p74 = scmp.ne.s32.totalorder %s66, %s68
      %p75 = scmp.eq.s32.totalorder %s16, 1
      %p76 = por %p74, %p75
      %p77 = scmp.ne.s32.totalorder %s68, %s69
      %p78 = scmp.eq.s32.totalorder %s16, 0
      %p79 = por %p77, %p78
      %p80 = scmp.ne.s32.totalorder %s68, %s69
      %p81 = scmp.eq.s32.totalorder %s17, 1
      %p82 = por %p80, %p81
      %p84 = scmp.ne.s32.totalorder %s69, %s83
      %p85 = scmp.eq.s32.totalorder %s17, 0
      %p86 = por %p84, %p85
      %s88 = sadd.s32 %s87, 1
      %p91 = scmp.eq.s32.totalorder %s11, 1
      %p92 = scmp.ne.s32.totalorder %s87, %s89
      %p93 = scmp.eq.s32.totalorder %s11, 0
      %p94 = por %p92, %p93
      %p95 = scmp.ne.s32.totalorder %s87, %s89
      %p96 = scmp.eq.s32.totalorder %s16, 1
      %p97 = por %p95, %p96
      %p98 = scmp.ne.s32.totalorder %s89, %s90
      %p99 = scmp.eq.s32.totalorder %s16, 0
      %p100 = por %p98, %p99
      %p101 = scmp.ne.s32.totalorder %s89, %s90
      %p102 = scmp.eq.s32.totalorder %s17, 1
      %p103 = por %p101, %p102
      %p105 = scmp.ne.s32.totalorder %s90, %s104
      %p106 = scmp.eq.s32.totalorder %s17, 0
      %p107 = por %p105, %p106
      %s109 = sadd.s32 %s108, 1
      %p112 = scmp.eq.s32.totalorder %s11, 1
      %p113 = scmp.ne.s32.totalorder %s108, %s110
      %p114 = scmp.eq.s32.totalorder %s11, 0
      %p115 = por %p113, %p114
      %p116 = scmp.ne.s32.totalorder %s108, %s110
      %p117 = scmp.eq.s32.totalorder %s16, 1
      %p118 = por %p116, %p117
      %p119 = scmp.ne.s32.totalorder %s110, %s111
      %p120 = scmp.eq.s32.totalorder %s16, 0
      %p121 = por %p119, %p120
      %p122 = scmp.ne.s32.totalorder %s110, %s111
      %p123 = scmp.eq.s32.totalorder %s17, 1
      %p124 = por %p122, %p123
      %p126 = scmp.ne.s32.totalorder %s111, %s125
      %p127 = scmp.eq.s32.totalorder %s17, 0
      %p128 = por %p126, %p127
      %s129 = ssub.s32 %s11, %s18
      %p130 = scmp.eq.s32.totalorder %s129, 0
      %s132 = sadd.s32 %s131, 1
      %s133 = scalar_select %p130, %s131, %s132
      %p136 = pneg %p130
      %p137 = scmp.eq.s32.totalorder %s11, 1
      %p138 = por %p136, %p137
      %p139 = scmp.ne.s32.totalorder %s131, %s134
      %p140 = scmp.eq.s32.totalorder %s11, 0
      %p141 = por %p139, %p140
      %p142 = scmp.ne.s32.totalorder %s131, %s134
      %p143 = scmp.eq.s32.totalorder %s16, 1
      %p144 = por %p142, %p143
      %p145 = scmp.ne.s32.totalorder %s134, %s135
      %p146 = scmp.eq.s32.totalorder %s16, 0
      %p147 = por %p145, %p146
      %p148 = scmp.ne.s32.totalorder %s134, %s135
      %p149 = scmp.eq.s32.totalorder %s17, 1
      %p150 = por %p148, %p149
      %p152 = scmp.ne.s32.totalorder %s135, %s151
      %p153 = scmp.eq.s32.totalorder %s17, 0
      %p154 = por %p152, %p153
      %p155 = scmp.le.s32.totalorder 1, %s11
      %p156 = scmp.lt.s32.totalorder %s11, 3
      %p157 = pnand %p155, %p156
      %p158 = pneg %p157
      // Predicated region
      $region9: #{convnet_forward.2} parent=5 // pred_check
        _
      $region10: #{convnet_forward.2} parent=5 // pred_check_branch
        %160 = sbr.rel (%p157) target = $region12
      $region11: #{convnet_forward.2} parent=5 // pred_region
        %s161 = ssub.s32 %s11, 1
        // Predicated region
        $region13: #{convnet_forward.2} parent=11 // pred_check
          %p162 = pneg %p58
        $region14: #{convnet_forward.2} parent=11 // pred_check_branch
          %164 = sbr.rel (%p162) target = $region16
        $region15: #{convnet_forward.2} parent=11 // pred_region
          _
        $region16: #{convnet_forward.2} parent=11 // pred_fallthru
          _
        // Predicated region
        $region17: #{convnet_forward.2} parent=11 // pred_check
          %p165 = pneg %p79
        $region18: #{convnet_forward.2} parent=11 // pred_check_branch
          %167 = sbr.rel (%p165) target = $region20
        $region19: #{convnet_forward.2} parent=11 // pred_region
          _
        $region20: #{convnet_forward.2} parent=11 // pred_fallthru
          _
        // Predicated region
        $region21: #{convnet_forward.2} parent=11 // pred_check
          %p168 = pneg %p100
        $region22: #{convnet_forward.2} parent=11 // pred_check_branch
          %170 = sbr.rel (%p168) target = $region24
        $region23: #{convnet_forward.2} parent=11 // pred_region
          _
        $region24: #{convnet_forward.2} parent=11 // pred_fallthru
          _
        // Predicated region
        $region25: #{convnet_forward.2} parent=11 // pred_check
          %p171 = pneg %p121
        $region26: #{convnet_forward.2} parent=11 // pred_check_branch
          %173 = sbr.rel (%p171) target = $region28
        $region27: #{convnet_forward.2} parent=11 // pred_region
          _
        $region28: #{convnet_forward.2} parent=11 // pred_fallthru
          _
      $region12: #{convnet_forward.2} parent=5 // pred_fallthru
        _
      %p174 = scmp.lt.s32.totalorder %s11, 2
      // Predicated region
      $region29: #{convnet_forward.2} parent=5 // pred_check
        %p175 = pneg %p174
      $region30: #{convnet_forward.2} parent=5 // pred_check_branch
        %177 = sbr.rel (%p175) target = $region32
      $region31: #{convnet_forward.2} parent=5 // pred_region
        // Predicated region
        $region33: #{convnet_forward.2} parent=31 // pred_check
          %p178 = pneg %p31
        $region34: #{convnet_forward.2} parent=31 // pred_check_branch
          %180 = sbr.rel (%p178) target = $region36
        $region35: #{convnet_forward.2} parent=31 // pred_region
          %s181 = sand.u32 %s21, 1
          %s182 = sand.u32 %s21, 1
          %s183 = smul.addr %s182, 288
          %s184 = scalar_lea.vmem [#allocation2], %s183
          %s185 = smul.u32 18, %s11
          %s186 = smul.addr %s185, 4
          %s187 = scalar_lea.vmem %s0, %s186
          // Predicated region
          $region37: #{convnet_forward.2} parent=35 // pred_check
            _
          $region38: #{convnet_forward.2} parent=35 // pred_check_branch
            %189 = sbr.rel (0) target = $region40
          $region39: #{convnet_forward.2} parent=35 // pred_region
            // Predicated region
            $region41: #{convnet_forward.2} parent=39 // pred_check
              _
            $region42: #{convnet_forward.2} parent=39 // pred_check_branch
              %191 = sbr.rel target = $region44
            $region43: #{convnet_forward.2} parent=39 // pred_region
              // Predicated region
              $region56: #{convnet_forward.2} parent=43 // pred_check
                _
              $region57: #{convnet_forward.2} parent=43 // pred_check_branch
                %349 = sbr.rel (0) target = $region59
              $region58: #{convnet_forward.2} parent=43 // pred_region
                loop: start=0, step=1, limit=1
                $region60: #{convnet_forward.2} parent=58 // loop_pre_header
                  _
                $region61: #{convnet_forward.2} parent=58 // loop_header
                  %s351 = sphi 0, %s355
                  %p352 = scmp.ge.s32.totalorder %s351, 1
                  %s356 = sphi %s187, %s187
                  %s357 = sphi %s184, %s184
                $region62: #{convnet_forward.2} parent=58 // loop_header_branch
                  %354 = sbr.rel (%p352) target = $region66
                $region63: #{convnet_forward.2} parent=58 // loop_body
                  _
                $region64: #{convnet_forward.2} parent=58 // loop_footer
                  %s355 = sadd.s32 1, %s351
                $region65: #{convnet_forward.2} parent=58 // loop_footer_branch
                  %350 = sbr.rel target = $region61
                $region66: #{convnet_forward.2} parent=58 // loop_exit
                  _
                %s359 = ssub.s32 16, 1
                loop: start=0, step=1, limit=1
                $region67: #{convnet_forward.2} parent=58 // loop_pre_header
                  _
                $region68: #{convnet_forward.2} parent=58 // loop_header
                  %s361 = sphi 0, %s365
                  %p362 = scmp.ge.s32.totalorder %s361, 1
                  %s366 = sphi %s187, %s187
                  %s367 = sphi %s184, %s184
                $region69: #{convnet_forward.2} parent=58 // loop_header_branch
                  %364 = sbr.rel (%p362) target = $region73
                $region70: #{convnet_forward.2} parent=58 // loop_body
                  %v368 = vld [vmem:[%s366] sm:%s359]
                  %369 = vst [vmem:[%s367] sm:%s359] %v368
                  %v370 = vld [vmem:[%s366 + $0x4] sm:%s359]
                  %371 = vst [vmem:[%s367 + $0x4] sm:%s359] %v370
                  %v372 = vld [vmem:[%s366 + $0x8] sm:%s359]
                  %373 = vst [vmem:[%s367 + $0x8] sm:%s359] %v372
                  %v374 = vld [vmem:[%s366 + $0xc] sm:%s359]
                  %375 = vst [vmem:[%s367 + $0xc] sm:%s359] %v374
                  %v376 = vld [vmem:[%s366 + $0x10] sm:%s359]
                  %377 = vst [vmem:[%s367 + $0x10] sm:%s359] %v376
                  %v378 = vld [vmem:[%s366 + $0x14] sm:%s359]
                  %379 = vst [vmem:[%s367 + $0x14] sm:%s359] %v378
                  %v380 = vld [vmem:[%s366 + $0x18] sm:%s359]
                  %381 = vst [vmem:[%s367 + $0x18] sm:%s359] %v380
                  %v382 = vld [vmem:[%s366 + $0x1c] sm:%s359]
                  %383 = vst [vmem:[%s367 + $0x1c] sm:%s359] %v382
                  %v384 = vld [vmem:[%s366 + $0x20] sm:%s359]
                  %385 = vst [vmem:[%s367 + $0x20] sm:%s359] %v384
                  %v386 = vld [vmem:[%s366 + $0x24] sm:%s359]
                  %387 = vst [vmem:[%s367 + $0x24] sm:%s359] %v386
                  %v388 = vld [vmem:[%s366 + $0x28] sm:%s359]
                  %389 = vst [vmem:[%s367 + $0x28] sm:%s359] %v388
                  %v390 = vld [vmem:[%s366 + $0x2c] sm:%s359]
                  %391 = vst [vmem:[%s367 + $0x2c] sm:%s359] %v390
                  %v392 = vld [vmem:[%s366 + $0x30] sm:%s359]
                  %393 = vst [vmem:[%s367 + $0x30] sm:%s359] %v392
                  %v394 = vld [vmem:[%s366 + $0x34] sm:%s359]
                  %395 = vst [vmem:[%s367 + $0x34] sm:%s359] %v394
                  %v396 = vld [vmem:[%s366 + $0x38] sm:%s359]
                  %397 = vst [vmem:[%s367 + $0x38] sm:%s359] %v396
                  %v398 = vld [vmem:[%s366 + $0x3c] sm:%s359]
                  %399 = vst [vmem:[%s367 + $0x3c] sm:%s359] %v398
                  %v400 = vld [vmem:[%s366 + $0x40] sm:%s359]
                  %401 = vst [vmem:[%s367 + $0x40] sm:%s359] %v400
                  %v402 = vld [vmem:[%s366 + $0x44] sm:%s359]
                  %403 = vst [vmem:[%s367 + $0x44] sm:%s359] %v402
                  %v404 = vld [vmem:[%s366 + $0x90] sm:%s359]
                  %405 = vst [vmem:[%s367 + $0x48] sm:%s359] %v404
                  %v406 = vld [vmem:[%s366 + $0x94] sm:%s359]
                  %407 = vst [vmem:[%s367 + $0x4c] sm:%s359] %v406
                  %v408 = vld [vmem:[%s366 + $0x98] sm:%s359]
                  %409 = vst [vmem:[%s367 + $0x50] sm:%s359] %v408
                  %v410 = vld [vmem:[%s366 + $0x9c] sm:%s359]
                  %411 = vst [vmem:[%s367 + $0x54] sm:%s359] %v410
                  %v412 = vld [vmem:[%s366 + $0xa0] sm:%s359]
                  %413 = vst [vmem:[%s367 + $0x58] sm:%s359] %v412
                  %v414 = vld [vmem:[%s366 + $0xa4] sm:%s359]
                  %415 = vst [vmem:[%s367 + $0x5c] sm:%s359] %v414
                  %v416 = vld [vmem:[%s366 + $0xa8] sm:%s359]
                  %417 = vst [vmem:[%s367 + $0x60] sm:%s359] %v416
                  %v418 = vld [vmem:[%s366 + $0xac] sm:%s359]
                  %419 = vst [vmem:[%s367 + $0x64] sm:%s359] %v418
                  %v420 = vld [vmem:[%s366 + $0xb0] sm:%s359]
                  %421 = vst [vmem:[%s367 + $0x68] sm:%s359] %v420
                  %v422 = vld [vmem:[%s366 + $0xb4] sm:%s359]
                  %423 = vst [vmem:[%s367 + $0x6c] sm:%s359] %v422
                  %v424 = vld [vmem:[%s366 + $0xb8] sm:%s359]
                  %425 = vst [vmem:[%s367 + $0x70] sm:%s359] %v424
                  %v426 = vld [vmem:[%s366 + $0xbc] sm:%s359]
                  %427 = vst [vmem:[%s367 + $0x74] sm:%s359] %v426
                  %v428 = vld [vmem:[%s366 + $0xc0] sm:%s359]
                  %429 = vst [vmem:[%s367 + $0x78] sm:%s359] %v428
                  %v430 = vld [vmem:[%s366 + $0xc4] sm:%s359]
                  %431 = vst [vmem:[%s367 + $0x7c] sm:%s359] %v430
                  %v432 = vld [vmem:[%s366 + $0xc8] sm:%s359]
                  %433 = vst [vmem:[%s367 + $0x80] sm:%s359] %v432
                  %v434 = vld [vmem:[%s366 + $0xcc] sm:%s359]
                  %435 = vst [vmem:[%s367 + $0x84] sm:%s359] %v434
                  %v436 = vld [vmem:[%s366 + $0xd0] sm:%s359]
                  %437 = vst [vmem:[%s367 + $0x88] sm:%s359] %v436
                  %v438 = vld [vmem:[%s366 + $0xd4] sm:%s359]
                  %439 = vst [vmem:[%s367 + $0x8c] sm:%s359] %v438
                  %v440 = vld [vmem:[%s366 + $0x120] sm:%s359]
                  %441 = vst [vmem:[%s367 + $0x90] sm:%s359] %v440
                  %v442 = vld [vmem:[%s366 + $0x124] sm:%s359]
                  %443 = vst [vmem:[%s367 + $0x94] sm:%s359] %v442
                  %v444 = vld [vmem:[%s366 + $0x128] sm:%s359]
                  %445 = vst [vmem:[%s367 + $0x98] sm:%s359] %v444
                  %v446 = vld [vmem:[%s366 + $0x12c] sm:%s359]
                  %447 = vst [vmem:[%s367 + $0x9c] sm:%s359] %v446
                  %v448 = vld [vmem:[%s366 + $0x130] sm:%s359]
                  %449 = vst [vmem:[%s367 + $0xa0] sm:%s359] %v448
                  %v450 = vld [vmem:[%s366 + $0x134] sm:%s359]
                  %451 = vst [vmem:[%s367 + $0xa4] sm:%s359] %v450
                  %v452 = vld [vmem:[%s366 + $0x138] sm:%s359]
                  %453 = vst [vmem:[%s367 + $0xa8] sm:%s359] %v452
                  %v454 = vld [vmem:[%s366 + $0x13c] sm:%s359]
                  %455 = vst [vmem:[%s367 + $0xac] sm:%s359] %v454
                  %v456 = vld [vmem:[%s366 + $0x140] sm:%s359]
                  %457 = vst [vmem:[%s367 + $0xb0] sm:%s359] %v456
                  %v458 = vld [vmem:[%s366 + $0x144] sm:%s359]
                  %459 = vst [vmem:[%s367 + $0xb4] sm:%s359] %v458
                  %v460 = vld [vmem:[%s366 + $0x148] sm:%s359]
                  %461 = vst [vmem:[%s367 + $0xb8] sm:%s359] %v460
                  %v462 = vld [vmem:[%s366 + $0x14c] sm:%s359]
                  %463 = vst [vmem:[%s367 + $0xbc] sm:%s359] %v462
                  %v464 = vld [vmem:[%s366 + $0x150] sm:%s359]
                  %465 = vst [vmem:[%s367 + $0xc0] sm:%s359] %v464
                  %v466 = vld [vmem:[%s366 + $0x154] sm:%s359]
                  %467 = vst [vmem:[%s367 + $0xc4] sm:%s359] %v466
                  %v468 = vld [vmem:[%s366 + $0x158] sm:%s359]
                  %469 = vst [vmem:[%s367 + $0xc8] sm:%s359] %v468
                  %v470 = vld [vmem:[%s366 + $0x15c] sm:%s359]
                  %471 = vst [vmem:[%s367 + $0xcc] sm:%s359] %v470
                  %v472 = vld [vmem:[%s366 + $0x160] sm:%s359]
                  %473 = vst [vmem:[%s367 + $0xd0] sm:%s359] %v472
                  %v474 = vld [vmem:[%s366 + $0x164] sm:%s359]
                  %475 = vst [vmem:[%s367 + $0xd4] sm:%s359] %v474
                  %v476 = vld [vmem:[%s366 + $0x1b0] sm:%s359]
                  %477 = vst [vmem:[%s367 + $0xd8] sm:%s359] %v476
                  %v478 = vld [vmem:[%s366 + $0x1b4] sm:%s359]
                  %479 = vst [vmem:[%s367 + $0xdc] sm:%s359] %v478
                  %v480 = vld [vmem:[%s366 + $0x1b8] sm:%s359]
                  %481 = vst [vmem:[%s367 + $0xe0] sm:%s359] %v480
                  %v482 = vld [vmem:[%s366 + $0x1bc] sm:%s359]
                  %483 = vst [vmem:[%s367 + $0xe4] sm:%s359] %v482
                  %v484 = vld [vmem:[%s366 + $0x1c0] sm:%s359]
                  %485 = vst [vmem:[%s367 + $0xe8] sm:%s359] %v484
                  %v486 = vld [vmem:[%s366 + $0x1c4] sm:%s359]
                  %487 = vst [vmem:[%s367 + $0xec] sm:%s359] %v486
                  %v488 = vld [vmem:[%s366 + $0x1c8] sm:%s359]
                  %489 = vst [vmem:[%s367 + $0xf0] sm:%s359] %v488
                  %v490 = vld [vmem:[%s366 + $0x1cc] sm:%s359]
                  %491 = vst [vmem:[%s367 + $0xf4] sm:%s359] %v490
                  %v492 = vld [vmem:[%s366 + $0x1d0] sm:%s359]
                  %493 = vst [vmem:[%s367 + $0xf8] sm:%s359] %v492
                  %v494 = vld [vmem:[%s366 + $0x1d4] sm:%s359]
                  %495 = vst [vmem:[%s367 + $0xfc] sm:%s359] %v494
                  %v496 = vld [vmem:[%s366 + $0x1d8] sm:%s359]
                  %497 = vst [vmem:[%s367 + $0x100] sm:%s359] %v496
                  %v498 = vld [vmem:[%s366 + $0x1dc] sm:%s359]
                  %499 = vst [vmem:[%s367 + $0x104] sm:%s359] %v498
                  %v500 = vld [vmem:[%s366 + $0x1e0] sm:%s359]
                  %501 = vst [vmem:[%s367 + $0x108] sm:%s359] %v500
                  %v502 = vld [vmem:[%s366 + $0x1e4] sm:%s359]
                  %503 = vst [vmem:[%s367 + $0x10c] sm:%s359] %v502
                  %v504 = vld [vmem:[%s366 + $0x1e8] sm:%s359]
                  %505 = vst [vmem:[%s367 + $0x110] sm:%s359] %v504
                  %v506 = vld [vmem:[%s366 + $0x1ec] sm:%s359]
                  %507 = vst [vmem:[%s367 + $0x114] sm:%s359] %v506
                  %v508 = vld [vmem:[%s366 + $0x1f0] sm:%s359]
                  %509 = vst [vmem:[%s367 + $0x118] sm:%s359] %v508
                  %v510 = vld [vmem:[%s366 + $0x1f4] sm:%s359]
                  %511 = vst [vmem:[%s367 + $0x11c] sm:%s359] %v510
                $region71: #{convnet_forward.2} parent=58 // loop_footer
                  %s365 = sadd.s32 1, %s361
                $region72: #{convnet_forward.2} parent=58 // loop_footer_branch
                  %360 = sbr.rel target = $region68
                $region73: #{convnet_forward.2} parent=58 // loop_exit
                  _
              $region59: #{convnet_forward.2} parent=43 // pred_fallthru
                _
            $region44: #{convnet_forward.2} parent=39 // pred_fallthru
              _
            // Predicated region
            $region45: #{convnet_forward.2} parent=39 // pred_check
              _
            $region46: #{convnet_forward.2} parent=39 // pred_check_branch
              %193 = sbr.rel (0) target = $region48
            $region47: #{convnet_forward.2} parent=39 // pred_region
              %s195 = ssub.s32 16, 1
              loop: start=0, step=1, limit=1
              $region49: #{convnet_forward.2} parent=47 // loop_pre_header
                _
              $region50: #{convnet_forward.2} parent=47 // loop_header
                %s197 = sphi 0, %s201
                %p198 = scmp.ge.s32.totalorder %s197, 1
                %s202 = sphi %s187, %s187
                %s203 = sphi %s184, %s184
              $region51: #{convnet_forward.2} parent=47 // loop_header_branch
                %200 = sbr.rel (%p198) target = $region55
              $region52: #{convnet_forward.2} parent=47 // loop_body
                %v204 = vld [vmem:[%s202] sm:%s195]
                %205 = vst [vmem:[%s203] sm:%s195] %v204
                %v206 = vld [vmem:[%s202 + $0x4] sm:%s195]
                %207 = vst [vmem:[%s203 + $0x4] sm:%s195] %v206
                %v208 = vld [vmem:[%s202 + $0x8] sm:%s195]
                %209 = vst [vmem:[%s203 + $0x8] sm:%s195] %v208
                %v210 = vld [vmem:[%s202 + $0xc] sm:%s195]
                %211 = vst [vmem:[%s203 + $0xc] sm:%s195] %v210
                %v212 = vld [vmem:[%s202 + $0x10] sm:%s195]
                %213 = vst [vmem:[%s203 + $0x10] sm:%s195] %v212
                %v214 = vld [vmem:[%s202 + $0x14] sm:%s195]
                %215 = vst [vmem:[%s203 + $0x14] sm:%s195] %v214
                %v216 = vld [vmem:[%s202 + $0x18] sm:%s195]
                %217 = vst [vmem:[%s203 + $0x18] sm:%s195] %v216
                %v218 = vld [vmem:[%s202 + $0x1c] sm:%s195]
                %219 = vst [vmem:[%s203 + $0x1c] sm:%s195] %v218
                %v220 = vld [vmem:[%s202 + $0x20] sm:%s195]
                %221 = vst [vmem:[%s203 + $0x20] sm:%s195] %v220
                %v222 = vld [vmem:[%s202 + $0x24] sm:%s195]
                %223 = vst [vmem:[%s203 + $0x24] sm:%s195] %v222
                %v224 = vld [vmem:[%s202 + $0x28] sm:%s195]
                %225 = vst [vmem:[%s203 + $0x28] sm:%s195] %v224
                %v226 = vld [vmem:[%s202 + $0x2c] sm:%s195]
                %227 = vst [vmem:[%s203 + $0x2c] sm:%s195] %v226
                %v228 = vld [vmem:[%s202 + $0x30] sm:%s195]
                %229 = vst [vmem:[%s203 + $0x30] sm:%s195] %v228
                %v230 = vld [vmem:[%s202 + $0x34] sm:%s195]
                %231 = vst [vmem:[%s203 + $0x34] sm:%s195] %v230
                %v232 = vld [vmem:[%s202 + $0x38] sm:%s195]
                %233 = vst [vmem:[%s203 + $0x38] sm:%s195] %v232
                %v234 = vld [vmem:[%s202 + $0x3c] sm:%s195]
                %235 = vst [vmem:[%s203 + $0x3c] sm:%s195] %v234
                %v236 = vld [vmem:[%s202 + $0x40] sm:%s195]
                %237 = vst [vmem:[%s203 + $0x40] sm:%s195] %v236
                %v238 = vld [vmem:[%s202 + $0x44] sm:%s195]
                %239 = vst [vmem:[%s203 + $0x44] sm:%s195] %v238
                %v240 = vld [vmem:[%s202 + $0x90] sm:%s195]
                %241 = vst [vmem:[%s203 + $0x48] sm:%s195] %v240
                %v242 = vld [vmem:[%s202 + $0x94] sm:%s195]
                %243 = vst [vmem:[%s203 + $0x4c] sm:%s195] %v242
                %v244 = vld [vmem:[%s202 + $0x98] sm:%s195]
                %245 = vst [vmem:[%s203 + $0x50] sm:%s195] %v244
                %v246 = vld [vmem:[%s202 + $0x9c] sm:%s195]
                %247 = vst [vmem:[%s203 + $0x54] sm:%s195] %v246
                %v248 = vld [vmem:[%s202 + $0xa0] sm:%s195]
                %249 = vst [vmem:[%s203 + $0x58] sm:%s195] %v248
                %v250 = vld [vmem:[%s202 + $0xa4] sm:%s195]
                %251 = vst [vmem:[%s203 + $0x5c] sm:%s195] %v250
                %v252 = vld [vmem:[%s202 + $0xa8] sm:%s195]
                %253 = vst [vmem:[%s203 + $0x60] sm:%s195] %v252
                %v254 = vld [vmem:[%s202 + $0xac] sm:%s195]
                %255 = vst [vmem:[%s203 + $0x64] sm:%s195] %v254
                %v256 = vld [vmem:[%s202 + $0xb0] sm:%s195]
                %257 = vst [vmem:[%s203 + $0x68] sm:%s195] %v256
                %v258 = vld [vmem:[%s202 + $0xb4] sm:%s195]
                %259 = vst [vmem:[%s203 + $0x6c] sm:%s195] %v258
                %v260 = vld [vmem:[%s202 + $0xb8] sm:%s195]
                %261 = vst [vmem:[%s203 + $0x70] sm:%s195] %v260
                %v262 = vld [vmem:[%s202 + $0xbc] sm:%s195]
                %263 = vst [vmem:[%s203 + $0x74] sm:%s195] %v262
                %v264 = vld [vmem:[%s202 + $0xc0] sm:%s195]
                %265 = vst [vmem:[%s203 + $0x78] sm:%s195] %v264
                %v266 = vld [vmem:[%s202 + $0xc4] sm:%s195]
                %267 = vst [vmem:[%s203 + $0x7c] sm:%s195] %v266
                %v268 = vld [vmem:[%s202 + $0xc8] sm:%s195]
                %269 = vst [vmem:[%s203 + $0x80] sm:%s195] %v268
                %v270 = vld [vmem:[%s202 + $0xcc] sm:%s195]
                %271 = vst [vmem:[%s203 + $0x84] sm:%s195] %v270
                %v272 = vld [vmem:[%s202 + $0xd0] sm:%s195]
                %273 = vst [vmem:[%s203 + $0x88] sm:%s195] %v272
                %v274 = vld [vmem:[%s202 + $0xd4] sm:%s195]
                %275 = vst [vmem:[%s203 + $0x8c] sm:%s195] %v274
                %v276 = vld [vmem:[%s202 + $0x120] sm:%s195]
                %277 = vst [vmem:[%s203 + $0x90] sm:%s195] %v276
                %v278 = vld [vmem:[%s202 + $0x124] sm:%s195]
                %279 = vst [vmem:[%s203 + $0x94] sm:%s195] %v278
                %v280 = vld [vmem:[%s202 + $0x128] sm:%s195]
                %281 = vst [vmem:[%s203 + $0x98] sm:%s195] %v280
                %v282 = vld [vmem:[%s202 + $0x12c] sm:%s195]
                %283 = vst [vmem:[%s203 + $0x9c] sm:%s195] %v282
                %v284 = vld [vmem:[%s202 + $0x130] sm:%s195]
                %285 = vst [vmem:[%s203 + $0xa0] sm:%s195] %v284
                %v286 = vld [vmem:[%s202 + $0x134] sm:%s195]
                %287 = vst [vmem:[%s203 + $0xa4] sm:%s195] %v286
                %v288 = vld [vmem:[%s202 + $0x138] sm:%s195]
                %289 = vst [vmem:[%s203 + $0xa8] sm:%s195] %v288
                %v290 = vld [vmem:[%s202 + $0x13c] sm:%s195]
                %291 = vst [vmem:[%s203 + $0xac] sm:%s195] %v290
                %v292 = vld [vmem:[%s202 + $0x140] sm:%s195]
                %293 = vst [vmem:[%s203 + $0xb0] sm:%s195] %v292
                %v294 = vld [vmem:[%s202 + $0x144] sm:%s195]
                %295 = vst [vmem:[%s203 + $0xb4] sm:%s195] %v294
                %v296 = vld [vmem:[%s202 + $0x148] sm:%s195]
                %297 = vst [vmem:[%s203 + $0xb8] sm:%s195] %v296
                %v298 = vld [vmem:[%s202 + $0x14c] sm:%s195]
                %299 = vst [vmem:[%s203 + $0xbc] sm:%s195] %v298
                %v300 = vld [vmem:[%s202 + $0x150] sm:%s195]
                %301 = vst [vmem:[%s203 + $0xc0] sm:%s195] %v300
                %v302 = vld [vmem:[%s202 + $0x154] sm:%s195]
                %303 = vst [vmem:[%s203 + $0xc4] sm:%s195] %v302
                %v304 = vld [vmem:[%s202 + $0x158] sm:%s195]
                %305 = vst [vmem:[%s203 + $0xc8] sm:%s195] %v304
                %v306 = vld [vmem:[%s202 + $0x15c] sm:%s195]
                %307 = vst [vmem:[%s203 + $0xcc] sm:%s195] %v306
                %v308 = vld [vmem:[%s202 + $0x160] sm:%s195]
                %309 = vst [vmem:[%s203 + $0xd0] sm:%s195] %v308
                %v310 = vld [vmem:[%s202 + $0x164] sm:%s195]
                %311 = vst [vmem:[%s203 + $0xd4] sm:%s195] %v310
                %v312 = vld [vmem:[%s202 + $0x1b0] sm:%s195]
                %313 = vst [vmem:[%s203 + $0xd8] sm:%s195] %v312
                %v314 = vld [vmem:[%s202 + $0x1b4] sm:%s195]
                %315 = vst [vmem:[%s203 + $0xdc] sm:%s195] %v314
                %v316 = vld [vmem:[%s202 + $0x1b8] sm:%s195]
                %317 = vst [vmem:[%s203 + $0xe0] sm:%s195] %v316
                %v318 = vld [vmem:[%s202 + $0x1bc] sm:%s195]
                %319 = vst [vmem:[%s203 + $0xe4] sm:%s195] %v318
                %v320 = vld [vmem:[%s202 + $0x1c0] sm:%s195]
                %321 = vst [vmem:[%s203 + $0xe8] sm:%s195] %v320
                %v322 = vld [vmem:[%s202 + $0x1c4] sm:%s195]
                %323 = vst [vmem:[%s203 + $0xec] sm:%s195] %v322
                %v324 = vld [vmem:[%s202 + $0x1c8] sm:%s195]
                %325 = vst [vmem:[%s203 + $0xf0] sm:%s195] %v324
                %v326 = vld [vmem:[%s202 + $0x1cc] sm:%s195]
                %327 = vst [vmem:[%s203 + $0xf4] sm:%s195] %v326
                %v328 = vld [vmem:[%s202 + $0x1d0] sm:%s195]
                %329 = vst [vmem:[%s203 + $0xf8] sm:%s195] %v328
                %v330 = vld [vmem:[%s202 + $0x1d4] sm:%s195]
                %331 = vst [vmem:[%s203 + $0xfc] sm:%s195] %v330
                %v332 = vld [vmem:[%s202 + $0x1d8] sm:%s195]
                %333 = vst [vmem:[%s203 + $0x100] sm:%s195] %v332
                %v334 = vld [vmem:[%s202 + $0x1dc] sm:%s195]
                %335 = vst [vmem:[%s203 + $0x104] sm:%s195] %v334
                %v336 = vld [vmem:[%s202 + $0x1e0] sm:%s195]
                %337 = vst [vmem:[%s203 + $0x108] sm:%s195] %v336
                %v338 = vld [vmem:[%s202 + $0x1e4] sm:%s195]
                %339 = vst [vmem:[%s203 + $0x10c] sm:%s195] %v338
                %v340 = vld [vmem:[%s202 + $0x1e8] sm:%s195]
                %341 = vst [vmem:[%s203 + $0x110] sm:%s195] %v340
                %v342 = vld [vmem:[%s202 + $0x1ec] sm:%s195]
                %343 = vst [vmem:[%s203 + $0x114] sm:%s195] %v342
                %v344 = vld [vmem:[%s202 + $0x1f0] sm:%s195]
                %345 = vst [vmem:[%s203 + $0x118] sm:%s195] %v344
                %v346 = vld [vmem:[%s202 + $0x1f4] sm:%s195]
                %347 = vst [vmem:[%s203 + $0x11c] sm:%s195] %v346
              $region53: #{convnet_forward.2} parent=47 // loop_footer
                %s201 = sadd.s32 1, %s197
              $region54: #{convnet_forward.2} parent=47 // loop_footer_branch
                %196 = sbr.rel target = $region50
              $region55: #{convnet_forward.2} parent=47 // loop_exit
                _
            $region48: #{convnet_forward.2} parent=39 // pred_fallthru
              _
          $region40: #{convnet_forward.2} parent=35 // pred_fallthru
            _
          %512 = vnop
        $region36: #{convnet_forward.2} parent=31 // pred_fallthru
          _
      $region32: #{convnet_forward.2} parent=5 // pred_fallthru
        _
      %p513 = scmp.le.s32.totalorder 1, %s11
      %p514 = scmp.lt.s32.totalorder %s11, 3
      %p515 = pnand %p513, %p514
      %p516 = pneg %p515
      // Predicated region
      $region74: #{convnet_forward.2} parent=5 // pred_check
        _
      $region75: #{convnet_forward.2} parent=5 // pred_check_branch
        %518 = sbr.rel (%p515) target = $region77
      $region76: #{convnet_forward.2} parent=5 // pred_region
        %s519 = ssub.s32 %s11, 1
        %s520 = sand.u32 %s24, 1
        %s521 = sand.u32 %s24, 1
        %s522 = smul.addr %s521, 288
        %s523 = scalar_lea.vmem [#allocation2], %s522
        // Predicated region
        $region78: #{convnet_forward.2} parent=76 // pred_check
          %p524 = pneg %p37
        $region79: #{convnet_forward.2} parent=76 // pred_check_branch
          %526 = sbr.rel (%p524) target = $region81
        $region80: #{convnet_forward.2} parent=76 // pred_region
          _
        $region81: #{convnet_forward.2} parent=76 // pred_fallthru
          _
        %s527 = sand.u32 %s24, 1
        %s528 = sand.u32 %s24, 1
        %s529 = smul.addr %s528, 288
        %s530 = scalar_lea.vmem [#allocation2], %s529
        %p531 = pneg %p37
        %p532 = pneg %p34
        %p533 = pneg %p58
        %p534 = pneg %p55
        %p535 = pneg %p79
        %p536 = pneg %p76
        %p537 = pneg %p100
        %p538 = pneg %p97
        %p539 = pneg %p121
        %p540 = pneg %p118
        %p541 = pneg %p147
        %p542 = pneg %p144
        %s543 = smul.u32 18, %s16
        %p544 = scmp.lt.s32.totalorder %s543, 35
        %s545 = scalar_select %p544, %s543, 35
        %s546 = smul.addr %s545, 4
        %s547 = scalar_lea.vmem %s5, %s546
        %s548 = smul.u32 18, %s16
        %s549 = smul.u32 18, %s16
        %p550 = scmp.lt.s32.totalorder %s549, 35
        %s551 = scalar_select %p550, %s549, 35
        %s552 = smul.addr %s551, 4
        %s553 = scalar_lea.vmem %s5, %s552
        %s554 = smul.u32 18, %s16
        %v556 = vld [vmem:[%s523] sm:$0xf]
        %v557 = vld [vmem:[%s523 + $0x4] sm:$0xf]
        %v558 = vld [vmem:[%s523 + $0x8] sm:$0xf]
        %v559 = vld [vmem:[%s523 + $0xc] sm:$0xf]
        %v560 = vld [vmem:[%s523 + $0x10] sm:$0xf]
        %v561 = vld [vmem:[%s523 + $0x14] sm:$0xf]
        %v562 = vld [vmem:[%s523 + $0x18] sm:$0xf]
        %v563 = vld [vmem:[%s523 + $0x1c] sm:$0xf]
        %v564 = vld [vmem:[%s523 + $0x20] sm:$0xf]
        %v565 = vld [vmem:[%s523 + $0x24] sm:$0xf]
        %v566 = vld [vmem:[%s523 + $0x28] sm:$0xf]
        %v567 = vld [vmem:[%s523 + $0x2c] sm:$0xf]
        %v568 = vld [vmem:[%s523 + $0x30] sm:$0xf]
        %v569 = vld [vmem:[%s523 + $0x34] sm:$0xf]
        %v570 = vld [vmem:[%s523 + $0x38] sm:$0xf]
        %v571 = vld [vmem:[%s523 + $0x3c] sm:$0xf]
        %v572 = vld [vmem:[%s523 + $0x40] sm:$0xf]
        %v573 = vld [vmem:[%s523 + $0x44] sm:$0xf]
        %v574 = vld [vmem:[%s1] sm:$0xf]
        %v575 = vld [vmem:[%s1 + $0x4] sm:$0xf]
        %v576 = vld [vmem:[%s1 + $0x8] sm:$0xf]
        %v577 = vld [vmem:[%s1 + $0xc] sm:$0xf]
        %v596 = vunpack.c.l.b16 %v556
        %v597 = vunpack.c.l.b16 %v557
        %v598 = vunpack.c.l.b16 %v558
        %v599 = vunpack.c.l.b16 %v559
        %v600 = vunpack.c.l.b16 %v560
        %v601 = vunpack.c.l.b16 %v561
        %v602 = vunpack.c.l.b16 %v562
        %v603 = vunpack.c.l.b16 %v563
        %v604 = vunpack.c.l.b16 %v564
        %v605 = vunpack.c.l.b16 %v565
        %v606 = vunpack.c.l.b16 %v566
        %v607 = vunpack.c.l.b16 %v567
        %v608 = vunpack.c.l.b16 %v568
        %v609 = vunpack.c.l.b16 %v569
        %v610 = vunpack.c.l.b16 %v570
        %v611 = vunpack.c.l.b16 %v571
        %v612 = vunpack.c.l.b16 %v572
        %v613 = vunpack.c.l.b16 %v573
        %v614 = vpack.c.b16 %v597, %v596
        %v615 = vpack.c.b16 %v599, %v598
        %v616 = vpack.c.b16 %v601, %v600
        %v617 = vpack.c.b16 %v603, %v602
        %v618 = vpack.c.b16 %v605, %v604
        %v619 = vpack.c.b16 %v607, %v606
        %v620 = vpack.c.b16 %v609, %v608
        %v621 = vpack.c.b16 %v611, %v610
        %v622 = vpack.c.b16 %v613, %v612
        %v627 = vunpack.c.l.b16 %v574
        %v628 = vunpack.c.l.b16 %v575
        %v629 = vunpack.c.l.b16 %v576
        %v630 = vunpack.c.l.b16 %v577
        %v631 = vpack.c.b16 %v628, %v627
        %v632 = vpack.c.b16 %v630, %v629
        %vm635 = vcmask 261120
        %v637 = vsel %vm635, %v614, 0
        %v640 = vsel %vm635, %v615, 0
        %v643 = vsel %vm635, %v616, 0
        %v646 = vsel %vm635, %v617, 0
        %v649 = vsel %vm635, %v618, 0
        %v652 = vsel %vm635, %v619, 0
        %v655 = vsel %vm635, %v620, 0
        %v658 = vsel %vm635, %v621, 0
        %v661 = vsel %vm635, %v622, 0
        %663 = vmatprep.subr.bf16.mxu0 0
        %664 = vmatpush1.bf16.msra.mxu0 0
        %665 = vmatprep.subr.bf16.mxu0 0
        %666 = vmatpush1.bf16.msra.mxu0 0
        %667 = vmatprep.subr.bf16.mxu0 0
        %668 = vmatpush1.bf16.msra.mxu0 0
        %669 = vmatprep.subr.bf16.mxu0 0
        %670 = vmatpush1.bf16.msra.mxu0 0
        %671 = vmatprep.subr.bf16.mxu0 0
        %672 = vmatpush1.bf16.msra.mxu0 0
        %673 = vmatprep.subr.bf16.mxu0 0
        %674 = vmatpush1.bf16.msra.mxu0 0
        %675 = vmatprep.subr.bf16.mxu0 0
        %676 = vmatpush1.bf16.msra.mxu0 %v632
        %677 = vmatprep.subr.bf16.mxu0 0
        %678 = vmatpush1.bf16.msra.mxu0 %v631
        %679 = vmatprep.subr.bf16.mxu0 0
        %680 = vmatpush2.bf16.msra.mxu0 0
        %681 = vmatprep.subr.bf16.mxu0 0
        %682 = vmatpush2.bf16.msra.mxu0 0
        %683 = vmatprep.subr.bf16.mxu0 0
        %684 = vmatpush2.bf16.msra.mxu0 0
        %685 = vmatprep.subr.bf16.mxu0 0
        %686 = vmatpush2.bf16.msra.mxu0 0
        %687 = vmatprep.subr.bf16.mxu0 0
        %688 = vmatpush2.bf16.msra.mxu0 0
        %689 = vmatprep.subr.bf16.mxu0 0
        %690 = vmatpush2.bf16.msra.mxu0 0
        %691 = vmatprep.subr.bf16.mxu0 0
        %692 = vmatpush2.bf16.msra.mxu0 0
        %693 = vmatprep.subr.bf16.mxu0 0
        %694 = vmatpush2.bf16.msra.mxu0 0
        %695 = vmatprep.mubr.bf16.mxu0 0
        %696 = vmatmul.mubr.bf16.gmra.mxu0 %v637
        %v697 = vpop.f32.mrf.mxu0
        %v698 = vadd.f32 0.0, %v697
        %v699 = vpop.f32.mrf.mxu0
        %v700 = vpop.f32.mrf.mxu0
        %v701 = vadd.f32 0.0, %v700
        %v702 = vpop.f32.mrf.mxu0
        %703 = vmatprep.mubr.bf16.mxu0 0
        %704 = vmatmul.mubr.bf16.gmra.mxu0 %v640
        %v705 = vpop.f32.mrf.mxu0
        %v706 = vadd.f32 0.0, %v705
        %v707 = vpop.f32.mrf.mxu0
        %v708 = vpop.f32.mrf.mxu0
        %v709 = vadd.f32 0.0, %v708
        %v710 = vpop.f32.mrf.mxu0
        %711 = vmatprep.mubr.bf16.mxu0 0
        %712 = vmatmul.mubr.bf16.gmra.mxu0 %v643
        %v713 = vpop.f32.mrf.mxu0
        %v714 = vadd.f32 0.0, %v713
        %v715 = vpop.f32.mrf.mxu0
        %v716 = vpop.f32.mrf.mxu0
        %v717 = vadd.f32 0.0, %v716
        %v718 = vpop.f32.mrf.mxu0
        %719 = vmatprep.mubr.bf16.mxu0 0
        %720 = vmatmul.mubr.bf16.gmra.mxu0 %v646
        %v721 = vpop.f32.mrf.mxu0
        %v722 = vadd.f32 0.0, %v721
        %v723 = vpop.f32.mrf.mxu0
        %v724 = vpop.f32.mrf.mxu0
        %v725 = vadd.f32 0.0, %v724
        %v726 = vpop.f32.mrf.mxu0
        %727 = vmatprep.mubr.bf16.mxu0 0
        %728 = vmatmul.mubr.bf16.gmra.mxu0 %v649
        %v729 = vpop.f32.mrf.mxu0
        %v730 = vadd.f32 0.0, %v729
        %v731 = vpop.f32.mrf.mxu0
        %v732 = vpop.f32.mrf.mxu0
        %v733 = vadd.f32 0.0, %v732
        %v734 = vpop.f32.mrf.mxu0
        %735 = vmatprep.mubr.bf16.mxu0 0
        %736 = vmatmul.mubr.bf16.gmra.mxu0 %v652
        %v737 = vpop.f32.mrf.mxu0
        %v738 = vadd.f32 0.0, %v737
        %v739 = vpop.f32.mrf.mxu0
        %v740 = vpop.f32.mrf.mxu0
        %v741 = vadd.f32 0.0, %v740
        %v742 = vpop.f32.mrf.mxu0
        %743 = vmatprep.mubr.bf16.mxu0 0
        %744 = vmatmul.mubr.bf16.gmra.mxu0 %v655
        %v745 = vpop.f32.mrf.mxu0
        %v746 = vadd.f32 0.0, %v745
        %v747 = vpop.f32.mrf.mxu0
        %v748 = vpop.f32.mrf.mxu0
        %v749 = vadd.f32 0.0, %v748
        %v750 = vpop.f32.mrf.mxu0
        %751 = vmatprep.mubr.bf16.mxu0 0
        %752 = vmatmul.mubr.bf16.gmra.mxu0 %v658
        %v753 = vpop.f32.mrf.mxu0
        %v754 = vadd.f32 0.0, %v753
        %v755 = vpop.f32.mrf.mxu0
        %v756 = vpop.f32.mrf.mxu0
        %v757 = vadd.f32 0.0, %v756
        %v758 = vpop.f32.mrf.mxu0
        %759 = vmatprep.mubr.bf16.mxu0 0
        %760 = vmatmul.mubr.bf16.gmra.mxu0 %v661
        %v761 = vpop.f32.mrf.mxu0
        %v762 = vadd.f32 0.0, %v761
        %v763 = vpop.f32.mrf.mxu0
        %v764 = vpop.f32.mrf.mxu0
        %v765 = vadd.f32 0.0, %v764
        %v766 = vpop.f32.mrf.mxu0
        %767 = vdwg.mxu0
        %s768 = scalar_lea.vmem %s523, 72 [#allocation2]
        %v769 = vld [vmem:[%s768] sm:$0xf]
        %v770 = vld [vmem:[%s768 + $0x4] sm:$0xf]
        %v771 = vld [vmem:[%s768 + $0x8] sm:$0xf]
        %v772 = vld [vmem:[%s768 + $0xc] sm:$0xf]
        %v773 = vld [vmem:[%s768 + $0x10] sm:$0xf]
        %v774 = vld [vmem:[%s768 + $0x14] sm:$0xf]
        %v775 = vld [vmem:[%s768 + $0x18] sm:$0xf]
        %v776 = vld [vmem:[%s768 + $0x1c] sm:$0xf]
        %v777 = vld [vmem:[%s768 + $0x20] sm:$0xf]
        %v778 = vld [vmem:[%s768 + $0x24] sm:$0xf]
        %v779 = vld [vmem:[%s768 + $0x28] sm:$0xf]
        %v780 = vld [vmem:[%s768 + $0x2c] sm:$0xf]
        %v781 = vld [vmem:[%s768 + $0x30] sm:$0xf]
        %v782 = vld [vmem:[%s768 + $0x34] sm:$0xf]
        %v783 = vld [vmem:[%s768 + $0x38] sm:$0xf]
        %v784 = vld [vmem:[%s768 + $0x3c] sm:$0xf]
        %v785 = vld [vmem:[%s768 + $0x40] sm:$0xf]
        %v786 = vld [vmem:[%s768 + $0x44] sm:$0xf]
        %v805 = vunpack.c.l.b16 %v769
        %v806 = vunpack.c.l.b16 %v770
        %v807 = vunpack.c.l.b16 %v771
        %v808 = vunpack.c.l.b16 %v772
        %v809 = vunpack.c.l.b16 %v773
        %v810 = vunpack.c.l.b16 %v774
        %v811 = vunpack.c.l.b16 %v775
        %v812 = vunpack.c.l.b16 %v776
        %v813 = vunpack.c.l.b16 %v777
        %v814 = vunpack.c.l.b16 %v778
        %v815 = vunpack.c.l.b16 %v779
        %v816 = vunpack.c.l.b16 %v780
        %v817 = vunpack.c.l.b16 %v781
        %v818 = vunpack.c.l.b16 %v782
        %v819 = vunpack.c.l.b16 %v783
        %v820 = vunpack.c.l.b16 %v784
        %v821 = vunpack.c.l.b16 %v785
        %v822 = vunpack.c.l.b16 %v786
        %v823 = vpack.c.b16 %v806, %v805
        %v824 = vpack.c.b16 %v808, %v807
        %v825 = vpack.c.b16 %v810, %v809
        %v826 = vpack.c.b16 %v812, %v811
        %v827 = vpack.c.b16 %v814, %v813
        %v828 = vpack.c.b16 %v816, %v815
        %v829 = vpack.c.b16 %v818, %v817
        %v830 = vpack.c.b16 %v820, %v819
        %v831 = vpack.c.b16 %v822, %v821
        %v833 = vsel %vm635, %v823, 0
        %v836 = vsel %vm635, %v824, 0
        %v839 = vsel %vm635, %v825, 0
        %v842 = vsel %vm635, %v826, 0
        %v845 = vsel %vm635, %v827, 0
        %v848 = vsel %vm635, %v828, 0
        %v851 = vsel %vm635, %v829, 0
        %v854 = vsel %vm635, %v830, 0
        %v857 = vsel %vm635, %v831, 0
        %859 = vmatprep.subr.bf16.mxu0 0
        %860 = vmatpush1.bf16.msra.mxu0 0
        %861 = vmatprep.subr.bf16.mxu0 0
        %862 = vmatpush1.bf16.msra.mxu0 0
        %863 = vmatprep.subr.bf16.mxu0 0
        %864 = vmatpush1.bf16.msra.mxu0 0
        %865 = vmatprep.subr.bf16.mxu0 0
        %866 = vmatpush1.bf16.msra.mxu0 0
        %867 = vmatprep.subr.bf16.mxu0 0
        %868 = vmatpush1.bf16.msra.mxu0 0
        %869 = vmatprep.subr.bf16.mxu0 0
        %870 = vmatpush1.bf16.msra.mxu0 0
        %871 = vmatprep.subr.bf16.mxu0 0
        %872 = vmatpush1.bf16.msra.mxu0 %v632
        %873 = vmatprep.subr.bf16.mxu0 0
        %874 = vmatpush1.bf16.msra.mxu0 %v631
        %875 = vmatprep.subr.bf16.mxu0 0
        %876 = vmatpush2.bf16.msra.mxu0 0
        %877 = vmatprep.subr.bf16.mxu0 0
        %878 = vmatpush2.bf16.msra.mxu0 0
        %879 = vmatprep.subr.bf16.mxu0 0
        %880 = vmatpush2.bf16.msra.mxu0 0
        %881 = vmatprep.subr.bf16.mxu0 0
        %882 = vmatpush2.bf16.msra.mxu0 0
        %883 = vmatprep.subr.bf16.mxu0 0
        %884 = vmatpush2.bf16.msra.mxu0 0
        %885 = vmatprep.subr.bf16.mxu0 0
        %886 = vmatpush2.bf16.msra.mxu0 0
        %887 = vmatprep.subr.bf16.mxu0 0
        %888 = vmatpush2.bf16.msra.mxu0 0
        %889 = vmatprep.subr.bf16.mxu0 0
        %890 = vmatpush2.bf16.msra.mxu0 0
        %891 = vmatprep.mubr.bf16.mxu0 0
        %892 = vmatmul.mubr.bf16.gmra.mxu0 %v833
        %v893 = vpop.f32.mrf.mxu0
        %v894 = vadd.f32 0.0, %v893
        %v895 = vpop.f32.mrf.mxu0
        %v896 = vpop.f32.mrf.mxu0
        %v897 = vadd.f32 0.0, %v896
        %v898 = vpop.f32.mrf.mxu0
        %899 = vmatprep.mubr.bf16.mxu0 0
        %900 = vmatmul.mubr.bf16.gmra.mxu0 %v836
        %v901 = vpop.f32.mrf.mxu0
        %v902 = vadd.f32 0.0, %v901
        %v903 = vpop.f32.mrf.mxu0
        %v904 = vpop.f32.mrf.mxu0
        %v905 = vadd.f32 0.0, %v904
        %v906 = vpop.f32.mrf.mxu0
        %907 = vmatprep.mubr.bf16.mxu0 0
        %908 = vmatmul.mubr.bf16.gmra.mxu0 %v839
        %v909 = vpop.f32.mrf.mxu0
        %v910 = vadd.f32 0.0, %v909
        %v911 = vpop.f32.mrf.mxu0
        %v912 = vpop.f32.mrf.mxu0
        %v913 = vadd.f32 0.0, %v912
        %v914 = vpop.f32.mrf.mxu0
        %915 = vmatprep.mubr.bf16.mxu0 0
        %916 = vmatmul.mubr.bf16.gmra.mxu0 %v842
        %v917 = vpop.f32.mrf.mxu0
        %v918 = vadd.f32 0.0, %v917
        %v919 = vpop.f32.mrf.mxu0
        %v920 = vpop.f32.mrf.mxu0
        %v921 = vadd.f32 0.0, %v920
        %v922 = vpop.f32.mrf.mxu0
        %923 = vmatprep.mubr.bf16.mxu0 0
        %924 = vmatmul.mubr.bf16.gmra.mxu0 %v845
        %v925 = vpop.f32.mrf.mxu0
        %v926 = vadd.f32 0.0, %v925
        %v927 = vpop.f32.mrf.mxu0
        %v928 = vpop.f32.mrf.mxu0
        %v929 = vadd.f32 0.0, %v928
        %v930 = vpop.f32.mrf.mxu0
        %931 = vmatprep.mubr.bf16.mxu0 0
        %932 = vmatmul.mubr.bf16.gmra.mxu0 %v848
        %v933 = vpop.f32.mrf.mxu0
        %v934 = vadd.f32 0.0, %v933
        %v935 = vpop.f32.mrf.mxu0
        %v936 = vpop.f32.mrf.mxu0
        %v937 = vadd.f32 0.0, %v936
        %v938 = vpop.f32.mrf.mxu0
        %939 = vmatprep.mubr.bf16.mxu0 0
        %940 = vmatmul.mubr.bf16.gmra.mxu0 %v851
        %v941 = vpop.f32.mrf.mxu0
        %v942 = vadd.f32 0.0, %v941
        %v943 = vpop.f32.mrf.mxu0
        %v944 = vpop.f32.mrf.mxu0
        %v945 = vadd.f32 0.0, %v944
        %v946 = vpop.f32.mrf.mxu0
        %947 = vmatprep.mubr.bf16.mxu0 0
        %948 = vmatmul.mubr.bf16.gmra.mxu0 %v854
        %v949 = vpop.f32.mrf.mxu0
        %v950 = vadd.f32 0.0, %v949
        %v951 = vpop.f32.mrf.mxu0
        %v952 = vpop.f32.mrf.mxu0
        %v953 = vadd.f32 0.0, %v952
        %v954 = vpop.f32.mrf.mxu0
        %955 = vmatprep.mubr.bf16.mxu0 0
        %956 = vmatmul.mubr.bf16.gmra.mxu0 %v857
        %v957 = vpop.f32.mrf.mxu0
        %v958 = vadd.f32 0.0, %v957
        %v959 = vpop.f32.mrf.mxu0
        %v960 = vpop.f32.mrf.mxu0
        %v961 = vadd.f32 0.0, %v960
        %v962 = vpop.f32.mrf.mxu0
        %963 = vdwg.mxu0
        %v964 = vmax.f32 %v698, %v894
        %v965 = vmax.f32 %v701, %v897
        %v966 = vmax.f32 %v706, %v902
        %v967 = vmax.f32 %v709, %v905
        %v968 = vmax.f32 %v714, %v910
        %v969 = vmax.f32 %v717, %v913
        %v970 = vmax.f32 %v722, %v918
        %v971 = vmax.f32 %v725, %v921
        %v972 = vmax.f32 %v730, %v926
        %v973 = vmax.f32 %v733, %v929
        %v974 = vmax.f32 %v738, %v934
        %v975 = vmax.f32 %v741, %v937
        %v976 = vmax.f32 %v746, %v942
        %v977 = vmax.f32 %v749, %v945
        %v978 = vmax.f32 %v754, %v950
        %v979 = vmax.f32 %v757, %v953
        %v980 = vmax.f32 %v762, %v958
        %v981 = vmax.f32 %v765, %v961
        %s982 = scalar_lea.vmem %s523, 144 [#allocation2]
        %v983 = vld [vmem:[%s982] sm:$0xf]
        %v984 = vld [vmem:[%s982 + $0x4] sm:$0xf]
        %v985 = vld [vmem:[%s982 + $0x8] sm:$0xf]
        %v986 = vld [vmem:[%s982 + $0xc] sm:$0xf]
        %v987 = vld [vmem:[%s982 + $0x10] sm:$0xf]
        %v988 = vld [vmem:[%s982 + $0x14] sm:$0xf]
        %v989 = vld [vmem:[%s982 + $0x18] sm:$0xf]
        %v990 = vld [vmem:[%s982 + $0x1c] sm:$0xf]
        %v991 = vld [vmem:[%s982 + $0x20] sm:$0xf]
        %v992 = vld [vmem:[%s982 + $0x24] sm:$0xf]
        %v993 = vld [vmem:[%s982 + $0x28] sm:$0xf]
        %v994 = vld [vmem:[%s982 + $0x2c] sm:$0xf]
        %v995 = vld [vmem:[%s982 + $0x30] sm:$0xf]
        %v996 = vld [vmem:[%s982 + $0x34] sm:$0xf]
        %v997 = vld [vmem:[%s982 + $0x38] sm:$0xf]
        %v998 = vld [vmem:[%s982 + $0x3c] sm:$0xf]
        %v999 = vld [vmem:[%s982 + $0x40] sm:$0xf]
        %v1000 = vld [vmem:[%s982 + $0x44] sm:$0xf]
        %v1019 = vunpack.c.l.b16 %v983
        %v1020 = vunpack.c.l.b16 %v984
        %v1021 = vunpack.c.l.b16 %v985
        %v1022 = vunpack.c.l.b16 %v986
        %v1023 = vunpack.c.l.b16 %v987
        %v1024 = vunpack.c.l.b16 %v988
        %v1025 = vunpack.c.l.b16 %v989
        %v1026 = vunpack.c.l.b16 %v990
        %v1027 = vunpack.c.l.b16 %v991
        %v1028 = vunpack.c.l.b16 %v992
        %v1029 = vunpack.c.l.b16 %v993
        %v1030 = vunpack.c.l.b16 %v994
        %v1031 = vunpack.c.l.b16 %v995
        %v1032 = vunpack.c.l.b16 %v996
        %v1033 = vunpack.c.l.b16 %v997
        %v1034 = vunpack.c.l.b16 %v998
        %v1035 = vunpack.c.l.b16 %v999
        %v1036 = vunpack.c.l.b16 %v1000
        %v1037 = vpack.c.b16 %v1020, %v1019
        %v1038 = vpack.c.b16 %v1022, %v1021
        %v1039 = vpack.c.b16 %v1024, %v1023
        %v1040 = vpack.c.b16 %v1026, %v1025
        %v1041 = vpack.c.b16 %v1028, %v1027
        %v1042 = vpack.c.b16 %v1030, %v1029
        %v1043 = vpack.c.b16 %v1032, %v1031
        %v1044 = vpack.c.b16 %v1034, %v1033
        %v1045 = vpack.c.b16 %v1036, %v1035
        %v1047 = vsel %vm635, %v1037, 0
        %v1050 = vsel %vm635, %v1038, 0
        %v1053 = vsel %vm635, %v1039, 0
        %v1056 = vsel %vm635, %v1040, 0
        %v1059 = vsel %vm635, %v1041, 0
        %v1062 = vsel %vm635, %v1042, 0
        %v1065 = vsel %vm635, %v1043, 0
        %v1068 = vsel %vm635, %v1044, 0
        %v1071 = vsel %vm635, %v1045, 0
        %1073 = vmatprep.subr.bf16.mxu0 0
        %1074 = vmatpush1.bf16.msra.mxu0 0
        %1075 = vmatprep.subr.bf16.mxu0 0
        %1076 = vmatpush1.bf16.msra.mxu0 0
        %1077 = vmatprep.subr.bf16.mxu0 0
        %1078 = vmatpush1.bf16.msra.mxu0 0
        %1079 = vmatprep.subr.bf16.mxu0 0
        %1080 = vmatpush1.bf16.msra.mxu0 0
        %1081 = vmatprep.subr.bf16.mxu0 0
        %1082 = vmatpush1.bf16.msra.mxu0 0
        %1083 = vmatprep.subr.bf16.mxu0 0
        %1084 = vmatpush1.bf16.msra.mxu0 0
        %1085 = vmatprep.subr.bf16.mxu0 0
        %1086 = vmatpush1.bf16.msra.mxu0 %v632
        %1087 = vmatprep.subr.bf16.mxu0 0
        %1088 = vmatpush1.bf16.msra.mxu0 %v631
        %1089 = vmatprep.subr.bf16.mxu0 0
        %1090 = vmatpush2.bf16.msra.mxu0 0
        %1091 = vmatprep.subr.bf16.mxu0 0
        %1092 = vmatpush2.bf16.msra.mxu0 0
        %1093 = vmatprep.subr.bf16.mxu0 0
        %1094 = vmatpush2.bf16.msra.mxu0 0
        %1095 = vmatprep.subr.bf16.mxu0 0
        %1096 = vmatpush2.bf16.msra.mxu0 0
        %1097 = vmatprep.subr.bf16.mxu0 0
        %1098 = vmatpush2.bf16.msra.mxu0 0
        %1099 = vmatprep.subr.bf16.mxu0 0
        %1100 = vmatpush2.bf16.msra.mxu0 0
        %1101 = vmatprep.subr.bf16.mxu0 0
        %1102 = vmatpush2.bf16.msra.mxu0 0
        %1103 = vmatprep.subr.bf16.mxu0 0
        %1104 = vmatpush2.bf16.msra.mxu0 0
        %1105 = vmatprep.mubr.bf16.mxu0 0
        %1106 = vmatmul.mubr.bf16.gmra.mxu0 %v1047
        %v1107 = vpop.f32.mrf.mxu0
        %v1108 = vadd.f32 0.0, %v1107
        %v1109 = vpop.f32.mrf.mxu0
        %v1110 = vpop.f32.mrf.mxu0
        %v1111 = vadd.f32 0.0, %v1110
        %v1112 = vpop.f32.mrf.mxu0
        %1113 = vmatprep.mubr.bf16.mxu0 0
        %1114 = vmatmul.mubr.bf16.gmra.mxu0 %v1050
        %v1115 = vpop.f32.mrf.mxu0
        %v1116 = vadd.f32 0.0, %v1115
        %v1117 = vpop.f32.mrf.mxu0
        %v1118 = vpop.f32.mrf.mxu0
        %v1119 = vadd.f32 0.0, %v1118
        %v1120 = vpop.f32.mrf.mxu0
        %1121 = vmatprep.mubr.bf16.mxu0 0
        %1122 = vmatmul.mubr.bf16.gmra.mxu0 %v1053
        %v1123 = vpop.f32.mrf.mxu0
        %v1124 = vadd.f32 0.0, %v1123
        %v1125 = vpop.f32.mrf.mxu0
        %v1126 = vpop.f32.mrf.mxu0
        %v1127 = vadd.f32 0.0, %v1126
        %v1128 = vpop.f32.mrf.mxu0
        %1129 = vmatprep.mubr.bf16.mxu0 0
        %1130 = vmatmul.mubr.bf16.gmra.mxu0 %v1056
        %v1131 = vpop.f32.mrf.mxu0
        %v1132 = vadd.f32 0.0, %v1131
        %v1133 = vpop.f32.mrf.mxu0
        %v1134 = vpop.f32.mrf.mxu0
        %v1135 = vadd.f32 0.0, %v1134
        %v1136 = vpop.f32.mrf.mxu0
        %1137 = vmatprep.mubr.bf16.mxu0 0
        %1138 = vmatmul.mubr.bf16.gmra.mxu0 %v1059
        %v1139 = vpop.f32.mrf.mxu0
        %v1140 = vadd.f32 0.0, %v1139
        %v1141 = vpop.f32.mrf.mxu0
        %v1142 = vpop.f32.mrf.mxu0
        %v1143 = vadd.f32 0.0, %v1142
        %v1144 = vpop.f32.mrf.mxu0
        %1145 = vmatprep.mubr.bf16.mxu0 0
        %1146 = vmatmul.mubr.bf16.gmra.mxu0 %v1062
        %v1147 = vpop.f32.mrf.mxu0
        %v1148 = vadd.f32 0.0, %v1147
        %v1149 = vpop.f32.mrf.mxu0
        %v1150 = vpop.f32.mrf.mxu0
        %v1151 = vadd.f32 0.0, %v1150
        %v1152 = vpop.f32.mrf.mxu0
        %1153 = vmatprep.mubr.bf16.mxu0 0
        %1154 = vmatmul.mubr.bf16.gmra.mxu0 %v1065
        %v1155 = vpop.f32.mrf.mxu0
        %v1156 = vadd.f32 0.0, %v1155
        %v1157 = vpop.f32.mrf.mxu0
        %v1158 = vpop.f32.mrf.mxu0
        %v1159 = vadd.f32 0.0, %v1158
        %v1160 = vpop.f32.mrf.mxu0
        %1161 = vmatprep.mubr.bf16.mxu0 0
        %1162 = vmatmul.mubr.bf16.gmra.mxu0 %v1068
        %v1163 = vpop.f32.mrf.mxu0
        %v1164 = vadd.f32 0.0, %v1163
        %v1165 = vpop.f32.mrf.mxu0
        %v1166 = vpop.f32.mrf.mxu0
        %v1167 = vadd.f32 0.0, %v1166
        %v1168 = vpop.f32.mrf.mxu0
        %1169 = vmatprep.mubr.bf16.mxu0 0
        %1170 = vmatmul.mubr.bf16.gmra.mxu0 %v1071
        %v1171 = vpop.f32.mrf.mxu0
        %v1172 = vadd.f32 0.0, %v1171
        %v1173 = vpop.f32.mrf.mxu0
        %v1174 = vpop.f32.mrf.mxu0
        %v1175 = vadd.f32 0.0, %v1174
        %v1176 = vpop.f32.mrf.mxu0
        %1177 = vdwg.mxu0
        %v1178 = vmax.f32 %v964, %v1108
        %v1179 = vmax.f32 %v965, %v1111
        %v1180 = vmax.f32 %v966, %v1116
        %v1181 = vmax.f32 %v967, %v1119
        %v1182 = vmax.f32 %v968, %v1124
        %v1183 = vmax.f32 %v969, %v1127
        %v1184 = vmax.f32 %v970, %v1132
        %v1185 = vmax.f32 %v971, %v1135
        %v1186 = vmax.f32 %v972, %v1140
        %v1187 = vmax.f32 %v973, %v1143
        %v1188 = vmax.f32 %v974, %v1148
        %v1189 = vmax.f32 %v975, %v1151
        %v1190 = vmax.f32 %v976, %v1156
        %v1191 = vmax.f32 %v977, %v1159
        %v1192 = vmax.f32 %v978, %v1164
        %v1193 = vmax.f32 %v979, %v1167
        %v1194 = vmax.f32 %v980, %v1172
        %v1195 = vmax.f32 %v981, %v1175
        %s1196 = scalar_lea.vmem %s523, 216 [#allocation2]
        %v1197 = vld [vmem:[%s1196] sm:$0xf]
        %v1198 = vld [vmem:[%s1196 + $0x4] sm:$0xf]
        %v1199 = vld [vmem:[%s1196 + $0x8] sm:$0xf]
        %v1200 = vld [vmem:[%s1196 + $0xc] sm:$0xf]
        %v1201 = vld [vmem:[%s1196 + $0x10] sm:$0xf]
        %v1202 = vld [vmem:[%s1196 + $0x14] sm:$0xf]
        %v1203 = vld [vmem:[%s1196 + $0x18] sm:$0xf]
        %v1204 = vld [vmem:[%s1196 + $0x1c] sm:$0xf]
        %v1205 = vld [vmem:[%s1196 + $0x20] sm:$0xf]
        %v1206 = vld [vmem:[%s1196 + $0x24] sm:$0xf]
        %v1207 = vld [vmem:[%s1196 + $0x28] sm:$0xf]
        %v1208 = vld [vmem:[%s1196 + $0x2c] sm:$0xf]
        %v1209 = vld [vmem:[%s1196 + $0x30] sm:$0xf]
        %v1210 = vld [vmem:[%s1196 + $0x34] sm:$0xf]
        %v1211 = vld [vmem:[%s1196 + $0x38] sm:$0xf]
        %v1212 = vld [vmem:[%s1196 + $0x3c] sm:$0xf]
        %v1213 = vld [vmem:[%s1196 + $0x40] sm:$0xf]
        %v1214 = vld [vmem:[%s1196 + $0x44] sm:$0xf]
        %v1233 = vunpack.c.l.b16 %v1197
        %v1234 = vunpack.c.l.b16 %v1198
        %v1235 = vunpack.c.l.b16 %v1199
        %v1236 = vunpack.c.l.b16 %v1200
        %v1237 = vunpack.c.l.b16 %v1201
        %v1238 = vunpack.c.l.b16 %v1202
        %v1239 = vunpack.c.l.b16 %v1203
        %v1240 = vunpack.c.l.b16 %v1204
        %v1241 = vunpack.c.l.b16 %v1205
        %v1242 = vunpack.c.l.b16 %v1206
        %v1243 = vunpack.c.l.b16 %v1207
        %v1244 = vunpack.c.l.b16 %v1208
        %v1245 = vunpack.c.l.b16 %v1209
        %v1246 = vunpack.c.l.b16 %v1210
        %v1247 = vunpack.c.l.b16 %v1211
        %v1248 = vunpack.c.l.b16 %v1212
        %v1249 = vunpack.c.l.b16 %v1213
        %v1250 = vunpack.c.l.b16 %v1214
        %v1251 = vpack.c.b16 %v1234, %v1233
        %v1252 = vpack.c.b16 %v1236, %v1235
        %v1253 = vpack.c.b16 %v1238, %v1237
        %v1254 = vpack.c.b16 %v1240, %v1239
        %v1255 = vpack.c.b16 %v1242, %v1241
        %v1256 = vpack.c.b16 %v1244, %v1243
        %v1257 = vpack.c.b16 %v1246, %v1245
        %v1258 = vpack.c.b16 %v1248, %v1247
        %v1259 = vpack.c.b16 %v1250, %v1249
        %v1261 = vsel %vm635, %v1251, 0
        %v1264 = vsel %vm635, %v1252, 0
        %v1267 = vsel %vm635, %v1253, 0
        %v1270 = vsel %vm635, %v1254, 0
        %v1273 = vsel %vm635, %v1255, 0
        %v1276 = vsel %vm635, %v1256, 0
        %v1279 = vsel %vm635, %v1257, 0
        %v1282 = vsel %vm635, %v1258, 0
        %v1285 = vsel %vm635, %v1259, 0
        %1287 = vmatprep.subr.bf16.mxu0 0
        %1288 = vmatpush1.bf16.msra.mxu0 0
        %1289 = vmatprep.subr.bf16.mxu0 0
        %1290 = vmatpush1.bf16.msra.mxu0 0
        %1291 = vmatprep.subr.bf16.mxu0 0
        %1292 = vmatpush1.bf16.msra.mxu0 0
        %1293 = vmatprep.subr.bf16.mxu0 0
        %1294 = vmatpush1.bf16.msra.mxu0 0
        %1295 = vmatprep.subr.bf16.mxu0 0
        %1296 = vmatpush1.bf16.msra.mxu0 0
        %1297 = vmatprep.subr.bf16.mxu0 0
        %1298 = vmatpush1.bf16.msra.mxu0 0
        %1299 = vmatprep.subr.bf16.mxu0 0
        %1300 = vmatpush1.bf16.msra.mxu0 %v632
        %1301 = vmatprep.subr.bf16.mxu0 0
        %1302 = vmatpush1.bf16.msra.mxu0 %v631
        %1303 = vmatprep.subr.bf16.mxu0 0
        %1304 = vmatpush2.bf16.msra.mxu0 0
        %1305 = vmatprep.subr.bf16.mxu0 0
        %1306 = vmatpush2.bf16.msra.mxu0 0
        %1307 = vmatprep.subr.bf16.mxu0 0
        %1308 = vmatpush2.bf16.msra.mxu0 0
        %1309 = vmatprep.subr.bf16.mxu0 0
        %1310 = vmatpush2.bf16.msra.mxu0 0
        %1311 = vmatprep.subr.bf16.mxu0 0
        %1312 = vmatpush2.bf16.msra.mxu0 0
        %1313 = vmatprep.subr.bf16.mxu0 0
        %1314 = vmatpush2.bf16.msra.mxu0 0
        %1315 = vmatprep.subr.bf16.mxu0 0
        %1316 = vmatpush2.bf16.msra.mxu0 0
        %1317 = vmatprep.subr.bf16.mxu0 0
        %1318 = vmatpush2.bf16.msra.mxu0 0
        %1319 = vmatprep.mubr.bf16.mxu0 0
        %1320 = vmatmul.mubr.bf16.gmra.mxu0 %v1261
        %v1321 = vpop.f32.mrf.mxu0
        %v1322 = vadd.f32 0.0, %v1321
        %v1323 = vpop.f32.mrf.mxu0
        %v1324 = vpop.f32.mrf.mxu0
        %v1325 = vadd.f32 0.0, %v1324
        %v1326 = vpop.f32.mrf.mxu0
        %1327 = vmatprep.mubr.bf16.mxu0 0
        %1328 = vmatmul.mubr.bf16.gmra.mxu0 %v1264
        %v1329 = vpop.f32.mrf.mxu0
        %v1330 = vadd.f32 0.0, %v1329
        %v1331 = vpop.f32.mrf.mxu0
        %v1332 = vpop.f32.mrf.mxu0
        %v1333 = vadd.f32 0.0, %v1332
        %v1334 = vpop.f32.mrf.mxu0
        %1335 = vmatprep.mubr.bf16.mxu0 0
        %1336 = vmatmul.mubr.bf16.gmra.mxu0 %v1267
        %v1337 = vpop.f32.mrf.mxu0
        %v1338 = vadd.f32 0.0, %v1337
        %v1339 = vpop.f32.mrf.mxu0
        %v1340 = vpop.f32.mrf.mxu0
        %v1341 = vadd.f32 0.0, %v1340
        %v1342 = vpop.f32.mrf.mxu0
        %1343 = vmatprep.mubr.bf16.mxu0 0
        %1344 = vmatmul.mubr.bf16.gmra.mxu0 %v1270
        %v1345 = vpop.f32.mrf.mxu0
        %v1346 = vadd.f32 0.0, %v1345
        %v1347 = vpop.f32.mrf.mxu0
        %v1348 = vpop.f32.mrf.mxu0
        %v1349 = vadd.f32 0.0, %v1348
        %v1350 = vpop.f32.mrf.mxu0
        %1351 = vmatprep.mubr.bf16.mxu0 0
        %1352 = vmatmul.mubr.bf16.gmra.mxu0 %v1273
        %v1353 = vpop.f32.mrf.mxu0
        %v1354 = vadd.f32 0.0, %v1353
        %v1355 = vpop.f32.mrf.mxu0
        %v1356 = vpop.f32.mrf.mxu0
        %v1357 = vadd.f32 0.0, %v1356
        %v1358 = vpop.f32.mrf.mxu0
        %1359 = vmatprep.mubr.bf16.mxu0 0
        %1360 = vmatmul.mubr.bf16.gmra.mxu0 %v1276
        %v1361 = vpop.f32.mrf.mxu0
        %v1362 = vadd.f32 0.0, %v1361
        %v1363 = vpop.f32.mrf.mxu0
        %v1364 = vpop.f32.mrf.mxu0
        %v1365 = vadd.f32 0.0, %v1364
        %v1366 = vpop.f32.mrf.mxu0
        %1367 = vmatprep.mubr.bf16.mxu0 0
        %1368 = vmatmul.mubr.bf16.gmra.mxu0 %v1279
        %v1369 = vpop.f32.mrf.mxu0
        %v1370 = vadd.f32 0.0, %v1369
        %v1371 = vpop.f32.mrf.mxu0
        %v1372 = vpop.f32.mrf.mxu0
        %v1373 = vadd.f32 0.0, %v1372
        %v1374 = vpop.f32.mrf.mxu0
        %1375 = vmatprep.mubr.bf16.mxu0 0
        %1376 = vmatmul.mubr.bf16.gmra.mxu0 %v1282
        %v1377 = vpop.f32.mrf.mxu0
        %v1378 = vadd.f32 0.0, %v1377
        %v1379 = vpop.f32.mrf.mxu0
        %v1380 = vpop.f32.mrf.mxu0
        %v1381 = vadd.f32 0.0, %v1380
        %v1382 = vpop.f32.mrf.mxu0
        %1383 = vmatprep.mubr.bf16.mxu0 0
        %1384 = vmatmul.mubr.bf16.gmra.mxu0 %v1285
        %v1385 = vpop.f32.mrf.mxu0
        %v1386 = vadd.f32 0.0, %v1385
        %v1387 = vpop.f32.mrf.mxu0
        %v1388 = vpop.f32.mrf.mxu0
        %v1389 = vadd.f32 0.0, %v1388
        %v1390 = vpop.f32.mrf.mxu0
        %1391 = vdwg.mxu0
        %v1392 = vmax.f32 %v1178, %v1322
        %v1393 = vmax.f32 %v1179, %v1325
        %v1394 = vmax.f32 %v1180, %v1330
        %v1395 = vmax.f32 %v1181, %v1333
        %v1396 = vmax.f32 %v1182, %v1338
        %v1397 = vmax.f32 %v1183, %v1341
        %v1398 = vmax.f32 %v1184, %v1346
        %v1399 = vmax.f32 %v1185, %v1349
        %v1400 = vmax.f32 %v1186, %v1354
        %v1401 = vmax.f32 %v1187, %v1357
        %v1402 = vmax.f32 %v1188, %v1362
        %v1403 = vmax.f32 %v1189, %v1365
        %v1404 = vmax.f32 %v1190, %v1370
        %v1405 = vmax.f32 %v1191, %v1373
        %v1406 = vmax.f32 %v1192, %v1378
        %v1407 = vmax.f32 %v1193, %v1381
        %v1408 = vmax.f32 %v1194, %v1386
        %v1409 = vmax.f32 %v1195, %v1389
        %v1410 = vld [vmem:[%s2] sm:$0x1]
        %v1412 = vlaneseq
        %v1413 = vshrl.u32 %v1412, 7
        %v1414 = vsub.s32 0, %v1413
        %v1415 = vrot.slane %v1410, %v1414
        %v1417 = vadd.f32 %v1392, %v1415
        %v1418 = vadd.f32 %v1393, %v1415
        %v1419 = vadd.f32 %v1394, %v1415
        %v1420 = vadd.f32 %v1395, %v1415
        %v1421 = vadd.f32 %v1396, %v1415
        %v1422 = vadd.f32 %v1397, %v1415
        %v1423 = vadd.f32 %v1398, %v1415
        %v1424 = vadd.f32 %v1399, %v1415
        %v1425 = vadd.f32 %v1400, %v1415
        %v1426 = vadd.f32 %v1401, %v1415
        %v1427 = vadd.f32 %v1402, %v1415
        %v1428 = vadd.f32 %v1403, %v1415
        %v1429 = vadd.f32 %v1404, %v1415
        %v1430 = vadd.f32 %v1405, %v1415
        %v1431 = vadd.f32 %v1406, %v1415
        %v1432 = vadd.f32 %v1407, %v1415
        %v1433 = vadd.f32 %v1408, %v1415
        %v1434 = vadd.f32 %v1409, %v1415
        %v1435 = vmax.f32 %v1417, 0.0
        %v1436 = vmax.f32 %v1418, 0.0
        %v1437 = vmax.f32 %v1419, 0.0
        %v1438 = vmax.f32 %v1420, 0.0
        %v1439 = vmax.f32 %v1421, 0.0
        %v1440 = vmax.f32 %v1422, 0.0
        %v1441 = vmax.f32 %v1423, 0.0
        %v1442 = vmax.f32 %v1424, 0.0
        %v1443 = vmax.f32 %v1425, 0.0
        %v1444 = vmax.f32 %v1426, 0.0
        %v1445 = vmax.f32 %v1427, 0.0
        %v1446 = vmax.f32 %v1428, 0.0
        %v1447 = vmax.f32 %v1429, 0.0
        %v1448 = vmax.f32 %v1430, 0.0
        %v1449 = vmax.f32 %v1431, 0.0
        %v1450 = vmax.f32 %v1432, 0.0
        %v1451 = vmax.f32 %v1433, 0.0
        %v1452 = vmax.f32 %v1434, 0.0
        %v1453 = vpack.c.bf16 %v1436, %v1435
        %v1454 = vpack.c.bf16 %v1438, %v1437
        %v1455 = vpack.c.bf16 %v1440, %v1439
        %v1456 = vpack.c.bf16 %v1442, %v1441
        %v1457 = vpack.c.bf16 %v1444, %v1443
        %v1458 = vpack.c.bf16 %v1446, %v1445
        %v1459 = vpack.c.bf16 %v1448, %v1447
        %v1460 = vpack.c.bf16 %v1450, %v1449
        %v1461 = vpack.c.bf16 %v1452, %v1451
        %v1462 = vld [vmem:[%s3] sm:$0xf]
        %v1463 = vld [vmem:[%s3 + $0x4] sm:$0xf]
        %v1464 = vld [vmem:[%s3 + $0x8] sm:$0xf]
        %v1465 = vld [vmem:[%s3 + $0xc] sm:$0xf]
        %v1466 = vld [vmem:[%s3 + $0x10] sm:$0xf]
        %v1467 = vld [vmem:[%s3 + $0x14] sm:$0xf]
        %v1468 = vld [vmem:[%s3 + $0x18] sm:$0xf]
        %v1469 = vld [vmem:[%s3 + $0x1c] sm:$0xf]
        %v1470 = vld [vmem:[%s3 + $0x20] sm:$0xf]
        %v1471 = vld [vmem:[%s3 + $0x24] sm:$0xf]
        %v1472 = vld [vmem:[%s3 + $0x28] sm:$0xf]
        %v1473 = vld [vmem:[%s3 + $0x2c] sm:$0xf]
        %v1474 = vld [vmem:[%s3 + $0x30] sm:$0xf]
        %v1475 = vld [vmem:[%s3 + $0x34] sm:$0xf]
        %v1476 = vld [vmem:[%s3 + $0x38] sm:$0xf]
        %v1477 = vld [vmem:[%s3 + $0x3c] sm:$0xf]
        %v1478 = vpack.c.bf16 0.0, 0.0
        %s1479 = scalar_lea.vmem %s3, 64
        %v1480 = vld [vmem:[%s1479] sm:$0xf]
        %v1481 = vld [vmem:[%s1479 + $0x4] sm:$0xf]
        %v1482 = vld [vmem:[%s1479 + $0x8] sm:$0xf]
        %v1483 = vld [vmem:[%s1479 + $0xc] sm:$0xf]
        %v1484 = vld [vmem:[%s1479 + $0x10] sm:$0xf]
        %v1485 = vld [vmem:[%s1479 + $0x14] sm:$0xf]
        %v1486 = vld [vmem:[%s1479 + $0x18] sm:$0xf]
        %v1487 = vld [vmem:[%s1479 + $0x1c] sm:$0xf]
        %v1488 = vld [vmem:[%s1479 + $0x20] sm:$0xf]
        %v1489 = vld [vmem:[%s1479 + $0x24] sm:$0xf]
        %v1490 = vld [vmem:[%s1479 + $0x28] sm:$0xf]
        %v1491 = vld [vmem:[%s1479 + $0x2c] sm:$0xf]
        %v1492 = vld [vmem:[%s1479 + $0x30] sm:$0xf]
        %v1493 = vld [vmem:[%s1479 + $0x34] sm:$0xf]
        %v1494 = vld [vmem:[%s1479 + $0x38] sm:$0xf]
        %v1495 = vld [vmem:[%s1479 + $0x3c] sm:$0xf]
        %vm1496 = vsmask.f32 7424
        %v1498 = vshrl.u32 %v1453, 16
        %v1500 = vshll.u32 %v1453, 16
        %v1502 = vrot.slane %v1500, 1
        %v1503 = vor.u32 %v1498, %v1502
        %v1505 = vshll.u32 %v1454, 16
        %v1507 = vrot.slane %v1505, 1
        %v1508 = vsel %vm1496, %v1503, %v1507
        %v1509 = vshrl.u32 %v1454, 16
        %v1511 = vor.u32 %v1509, %v1507
        %v1513 = vshll.u32 %v1455, 16
        %v1515 = vrot.slane %v1513, 1
        %v1516 = vsel %vm1496, %v1511, %v1515
        %v1517 = vshrl.u32 %v1455, 16
        %v1519 = vor.u32 %v1517, %v1515
        %v1521 = vshll.u32 %v1456, 16
        %v1523 = vrot.slane %v1521, 1
        %v1524 = vsel %vm1496, %v1519, %v1523
        %v1525 = vshrl.u32 %v1456, 16
        %v1527 = vor.u32 %v1525, %v1523
        %v1529 = vshll.u32 %v1457, 16
        %v1531 = vrot.slane %v1529, 1
        %v1532 = vsel %vm1496, %v1527, %v1531
        %v1533 = vshrl.u32 %v1457, 16
        %v1535 = vor.u32 %v1533, %v1531
        %v1537 = vshll.u32 %v1458, 16
        %v1539 = vrot.slane %v1537, 1
        %v1540 = vsel %vm1496, %v1535, %v1539
        %v1541 = vshrl.u32 %v1458, 16
        %v1543 = vor.u32 %v1541, %v1539
        %v1545 = vshll.u32 %v1459, 16
        %v1547 = vrot.slane %v1545, 1
        %v1548 = vsel %vm1496, %v1543, %v1547
        %v1549 = vshrl.u32 %v1459, 16
        %v1551 = vor.u32 %v1549, %v1547
        %v1553 = vshll.u32 %v1460, 16
        %v1555 = vrot.slane %v1553, 1
        %v1556 = vsel %vm1496, %v1551, %v1555
        %v1557 = vshrl.u32 %v1460, 16
        %v1559 = vor.u32 %v1557, %v1555
        %v1561 = vshll.u32 %v1461, 16
        %v1563 = vrot.slane %v1561, 1
        %v1564 = vsel %vm1496, %v1559, %v1563
        %v1565 = vshrl.u32 %v1461, 16
        %v1567 = vor.u32 %v1565, %v1563
        %v1569 = vshll.u32 %v1478, 16
        %v1571 = vrot.slane %v1569, 1
        %v1572 = vsel %vm1496, %v1567, %v1571
        %v1598 = vunpack.c.l.b16 %v1480
        %v1599 = vunpack.c.l.b16 %v1481
        %v1600 = vunpack.c.l.b16 %v1482
        %v1601 = vunpack.c.l.b16 %v1483
        %v1602 = vunpack.c.l.b16 %v1484
        %v1603 = vunpack.c.l.b16 %v1485
        %v1604 = vunpack.c.l.b16 %v1486
        %v1605 = vunpack.c.l.b16 %v1487
        %v1606 = vunpack.c.l.b16 %v1488
        %v1607 = vunpack.c.l.b16 %v1489
        %v1608 = vunpack.c.l.b16 %v1490
        %v1609 = vunpack.c.l.b16 %v1491
        %v1610 = vunpack.c.l.b16 %v1492
        %v1611 = vunpack.c.l.b16 %v1493
        %v1612 = vunpack.c.l.b16 %v1494
        %v1613 = vunpack.c.l.b16 %v1495
        %v1614 = vpack.c.b16 %v1599, %v1598
        %v1615 = vpack.c.b16 %v1601, %v1600
        %v1616 = vpack.c.b16 %v1603, %v1602
        %v1617 = vpack.c.b16 %v1605, %v1604
        %v1618 = vpack.c.b16 %v1607, %v1606
        %v1619 = vpack.c.b16 %v1609, %v1608
        %v1620 = vpack.c.b16 %v1611, %v1610
        %v1621 = vpack.c.b16 %v1613, %v1612
        %1630 = vmatprep.subr.bf16.mxu0 0
        %1631 = vmatpush1.bf16.msra.mxu0 %v1621
        %1632 = vmatprep.subr.bf16.mxu0 0
        %1633 = vmatpush1.bf16.msra.mxu0 %v1620
        %1634 = vmatprep.subr.bf16.mxu0 0
        %1635 = vmatpush1.bf16.msra.mxu0 %v1619
        %1636 = vmatprep.subr.bf16.mxu0 0
        %1637 = vmatpush1.bf16.msra.mxu0 %v1618
        %1638 = vmatprep.subr.bf16.mxu0 0
        %1639 = vmatpush1.bf16.msra.mxu0 %v1617
        %1640 = vmatprep.subr.bf16.mxu0 0
        %1641 = vmatpush1.bf16.msra.mxu0 %v1616
        %1642 = vmatprep.subr.bf16.mxu0 0
        %1643 = vmatpush1.bf16.msra.mxu0 %v1615
        %1644 = vmatprep.subr.bf16.mxu0 0
        %1645 = vmatpush1.bf16.msra.mxu0 %v1614
        %1646 = vmatprep.subr.bf16.mxu0 0
        %1647 = vmatpush2.bf16.msra.mxu0 0
        %1648 = vmatprep.subr.bf16.mxu0 0
        %1649 = vmatpush2.bf16.msra.mxu0 0
        %1650 = vmatprep.subr.bf16.mxu0 0
        %1651 = vmatpush2.bf16.msra.mxu0 0
        %1652 = vmatprep.subr.bf16.mxu0 0
        %1653 = vmatpush2.bf16.msra.mxu0 0
        %1654 = vmatprep.subr.bf16.mxu0 0
        %1655 = vmatpush2.bf16.msra.mxu0 0
        %1656 = vmatprep.subr.bf16.mxu0 0
        %1657 = vmatpush2.bf16.msra.mxu0 0
        %1658 = vmatprep.subr.bf16.mxu0 0
        %1659 = vmatpush2.bf16.msra.mxu0 0
        %1660 = vmatprep.subr.bf16.mxu0 0
        %1661 = vmatpush2.bf16.msra.mxu0 0
        %1662 = vmatprep.mubr.bf16.mxu0 0
        %1663 = vmatmul.mubr.bf16.gmra.mxu0 %v1508
        %v1664 = vpop.f32.mrf.mxu0
        %v1665 = vadd.f32 0.0, %v1664
        %v1666 = vpop.f32.mrf.mxu0
        %v1667 = vpop.f32.mrf.mxu0
        %v1668 = vadd.f32 0.0, %v1667
        %v1669 = vpop.f32.mrf.mxu0
        %1670 = vmatprep.mubr.bf16.mxu0 0
        %1671 = vmatmul.mubr.bf16.gmra.mxu0 %v1516
        %v1672 = vpop.f32.mrf.mxu0
        %v1673 = vadd.f32 0.0, %v1672
        %v1674 = vpop.f32.mrf.mxu0
        %v1675 = vpop.f32.mrf.mxu0
        %v1676 = vadd.f32 0.0, %v1675
        %v1677 = vpop.f32.mrf.mxu0
        %1678 = vmatprep.mubr.bf16.mxu0 0
        %1679 = vmatmul.mubr.bf16.gmra.mxu0 %v1524
        %v1680 = vpop.f32.mrf.mxu0
        %v1681 = vadd.f32 0.0, %v1680
        %v1682 = vpop.f32.mrf.mxu0
        %v1683 = vpop.f32.mrf.mxu0
        %v1684 = vadd.f32 0.0, %v1683
        %v1685 = vpop.f32.mrf.mxu0
        %1686 = vmatprep.mubr.bf16.mxu0 0
        %1687 = vmatmul.mubr.bf16.gmra.mxu0 %v1532
        %v1688 = vpop.f32.mrf.mxu0
        %v1689 = vadd.f32 0.0, %v1688
        %v1690 = vpop.f32.mrf.mxu0
        %v1691 = vpop.f32.mrf.mxu0
        %v1692 = vadd.f32 0.0, %v1691
        %v1693 = vpop.f32.mrf.mxu0
        %1694 = vmatprep.mubr.bf16.mxu0 0
        %1695 = vmatmul.mubr.bf16.gmra.mxu0 %v1540
        %v1696 = vpop.f32.mrf.mxu0
        %v1697 = vadd.f32 0.0, %v1696
        %v1698 = vpop.f32.mrf.mxu0
        %v1699 = vpop.f32.mrf.mxu0
        %v1700 = vadd.f32 0.0, %v1699
        %v1701 = vpop.f32.mrf.mxu0
        %1702 = vmatprep.mubr.bf16.mxu0 0
        %1703 = vmatmul.mubr.bf16.gmra.mxu0 %v1548
        %v1704 = vpop.f32.mrf.mxu0
        %v1705 = vadd.f32 0.0, %v1704
        %v1706 = vpop.f32.mrf.mxu0
        %v1707 = vpop.f32.mrf.mxu0
        %v1708 = vadd.f32 0.0, %v1707
        %v1709 = vpop.f32.mrf.mxu0
        %1710 = vmatprep.mubr.bf16.mxu0 0
        %1711 = vmatmul.mubr.bf16.gmra.mxu0 %v1556
        %v1712 = vpop.f32.mrf.mxu0
        %v1713 = vadd.f32 0.0, %v1712
        %v1714 = vpop.f32.mrf.mxu0
        %v1715 = vpop.f32.mrf.mxu0
        %v1716 = vadd.f32 0.0, %v1715
        %v1717 = vpop.f32.mrf.mxu0
        %1718 = vmatprep.mubr.bf16.mxu0 0
        %1719 = vmatmul.mubr.bf16.gmra.mxu0 %v1564
        %v1720 = vpop.f32.mrf.mxu0
        %v1721 = vadd.f32 0.0, %v1720
        %v1722 = vpop.f32.mrf.mxu0
        %v1723 = vpop.f32.mrf.mxu0
        %v1724 = vadd.f32 0.0, %v1723
        %v1725 = vpop.f32.mrf.mxu0
        %1726 = vmatprep.mubr.bf16.mxu0 0
        %1727 = vmatmul.mubr.bf16.gmra.mxu0 %v1572
        %v1728 = vpop.f32.mrf.mxu0
        %v1729 = vadd.f32 0.0, %v1728
        %v1730 = vpop.f32.mrf.mxu0
        %v1731 = vpop.f32.mrf.mxu0
        %v1732 = vadd.f32 0.0, %v1731
        %v1733 = vpop.f32.mrf.mxu0
        %1734 = vdwg.mxu0
        %v1751 = vunpack.c.l.b16 %v1462
        %v1752 = vunpack.c.l.b16 %v1463
        %v1753 = vunpack.c.l.b16 %v1464
        %v1754 = vunpack.c.l.b16 %v1465
        %v1755 = vunpack.c.l.b16 %v1466
        %v1756 = vunpack.c.l.b16 %v1467
        %v1757 = vunpack.c.l.b16 %v1468
        %v1758 = vunpack.c.l.b16 %v1469
        %v1759 = vunpack.c.l.b16 %v1470
        %v1760 = vunpack.c.l.b16 %v1471
        %v1761 = vunpack.c.l.b16 %v1472
        %v1762 = vunpack.c.l.b16 %v1473
        %v1763 = vunpack.c.l.b16 %v1474
        %v1764 = vunpack.c.l.b16 %v1475
        %v1765 = vunpack.c.l.b16 %v1476
        %v1766 = vunpack.c.l.b16 %v1477
        %v1767 = vpack.c.b16 %v1752, %v1751
        %v1768 = vpack.c.b16 %v1754, %v1753
        %v1769 = vpack.c.b16 %v1756, %v1755
        %v1770 = vpack.c.b16 %v1758, %v1757
        %v1771 = vpack.c.b16 %v1760, %v1759
        %v1772 = vpack.c.b16 %v1762, %v1761
        %v1773 = vpack.c.b16 %v1764, %v1763
        %v1774 = vpack.c.b16 %v1766, %v1765
        %1783 = vmatprep.subr.bf16.mxu0 0
        %1784 = vmatpush1.bf16.msra.mxu0 %v1774
        %1785 = vmatprep.subr.bf16.mxu0 0
        %1786 = vmatpush1.bf16.msra.mxu0 %v1773
        %1787 = vmatprep.subr.bf16.mxu0 0
        %1788 = vmatpush1.bf16.msra.mxu0 %v1772
        %1789 = vmatprep.subr.bf16.mxu0 0
        %1790 = vmatpush1.bf16.msra.mxu0 %v1771
        %1791 = vmatprep.subr.bf16.mxu0 0
        %1792 = vmatpush1.bf16.msra.mxu0 %v1770
        %1793 = vmatprep.subr.bf16.mxu0 0
        %1794 = vmatpush1.bf16.msra.mxu0 %v1769
        %1795 = vmatprep.subr.bf16.mxu0 0
        %1796 = vmatpush1.bf16.msra.mxu0 %v1768
        %1797 = vmatprep.subr.bf16.mxu0 0
        %1798 = vmatpush1.bf16.msra.mxu0 %v1767
        %1799 = vmatprep.subr.bf16.mxu0 0
        %1800 = vmatpush2.bf16.msra.mxu0 0
        %1801 = vmatprep.subr.bf16.mxu0 0
        %1802 = vmatpush2.bf16.msra.mxu0 0
        %1803 = vmatprep.subr.bf16.mxu0 0
        %1804 = vmatpush2.bf16.msra.mxu0 0
        %1805 = vmatprep.subr.bf16.mxu0 0
        %1806 = vmatpush2.bf16.msra.mxu0 0
        %1807 = vmatprep.subr.bf16.mxu0 0
        %1808 = vmatpush2.bf16.msra.mxu0 0
        %1809 = vmatprep.subr.bf16.mxu0 0
        %1810 = vmatpush2.bf16.msra.mxu0 0
        %1811 = vmatprep.subr.bf16.mxu0 0
        %1812 = vmatpush2.bf16.msra.mxu0 0
        %1813 = vmatprep.subr.bf16.mxu0 0
        %1814 = vmatpush2.bf16.msra.mxu0 0
        %1815 = vmatprep.mubr.bf16.mxu0 0
        %1816 = vmatmul.mubr.bf16.gmra.mxu0 %v1453
        %v1817 = vpop.f32.mrf.mxu0
        %v1818 = vadd.f32 %v1665, %v1817
        %v1819 = vpop.f32.mrf.mxu0
        %v1820 = vpop.f32.mrf.mxu0
        %v1821 = vadd.f32 %v1668, %v1820
        %v1822 = vpop.f32.mrf.mxu0
        %1823 = vmatprep.mubr.bf16.mxu0 0
        %1824 = vmatmul.mubr.bf16.gmra.mxu0 %v1454
        %v1825 = vpop.f32.mrf.mxu0
        %v1826 = vadd.f32 %v1673, %v1825
        %v1827 = vpop.f32.mrf.mxu0
        %v1828 = vpop.f32.mrf.mxu0
        %v1829 = vadd.f32 %v1676, %v1828
        %v1830 = vpop.f32.mrf.mxu0
        %1831 = vmatprep.mubr.bf16.mxu0 0
        %1832 = vmatmul.mubr.bf16.gmra.mxu0 %v1455
        %v1833 = vpop.f32.mrf.mxu0
        %v1834 = vadd.f32 %v1681, %v1833
        %v1835 = vpop.f32.mrf.mxu0
        %v1836 = vpop.f32.mrf.mxu0
        %v1837 = vadd.f32 %v1684, %v1836
        %v1838 = vpop.f32.mrf.mxu0
        %1839 = vmatprep.mubr.bf16.mxu0 0
        %1840 = vmatmul.mubr.bf16.gmra.mxu0 %v1456
        %v1841 = vpop.f32.mrf.mxu0
        %v1842 = vadd.f32 %v1689, %v1841
        %v1843 = vpop.f32.mrf.mxu0
        %v1844 = vpop.f32.mrf.mxu0
        %v1845 = vadd.f32 %v1692, %v1844
        %v1846 = vpop.f32.mrf.mxu0
        %1847 = vmatprep.mubr.bf16.mxu0 0
        %1848 = vmatmul.mubr.bf16.gmra.mxu0 %v1457
        %v1849 = vpop.f32.mrf.mxu0
        %v1850 = vadd.f32 %v1697, %v1849
        %v1851 = vpop.f32.mrf.mxu0
        %v1852 = vpop.f32.mrf.mxu0
        %v1853 = vadd.f32 %v1700, %v1852
        %v1854 = vpop.f32.mrf.mxu0
        %1855 = vmatprep.mubr.bf16.mxu0 0
        %1856 = vmatmul.mubr.bf16.gmra.mxu0 %v1458
        %v1857 = vpop.f32.mrf.mxu0
        %v1858 = vadd.f32 %v1705, %v1857
        %v1859 = vpop.f32.mrf.mxu0
        %v1860 = vpop.f32.mrf.mxu0
        %v1861 = vadd.f32 %v1708, %v1860
        %v1862 = vpop.f32.mrf.mxu0
        %1863 = vmatprep.mubr.bf16.mxu0 0
        %1864 = vmatmul.mubr.bf16.gmra.mxu0 %v1459
        %v1865 = vpop.f32.mrf.mxu0
        %v1866 = vadd.f32 %v1713, %v1865
        %v1867 = vpop.f32.mrf.mxu0
        %v1868 = vpop.f32.mrf.mxu0
        %v1869 = vadd.f32 %v1716, %v1868
        %v1870 = vpop.f32.mrf.mxu0
        %1871 = vmatprep.mubr.bf16.mxu0 0
        %1872 = vmatmul.mubr.bf16.gmra.mxu0 %v1460
        %v1873 = vpop.f32.mrf.mxu0
        %v1874 = vadd.f32 %v1721, %v1873
        %v1875 = vpop.f32.mrf.mxu0
        %v1876 = vpop.f32.mrf.mxu0
        %v1877 = vadd.f32 %v1724, %v1876
        %v1878 = vpop.f32.mrf.mxu0
        %1879 = vmatprep.mubr.bf16.mxu0 0
        %1880 = vmatmul.mubr.bf16.gmra.mxu0 %v1461
        %v1881 = vpop.f32.mrf.mxu0
        %v1882 = vadd.f32 %v1729, %v1881
        %v1883 = vpop.f32.mrf.mxu0
        %v1884 = vpop.f32.mrf.mxu0
        %v1885 = vadd.f32 %v1732, %v1884
        %v1886 = vpop.f32.mrf.mxu0
        %1887 = vdwg.mxu0
        %s1888 = scalar_lea.vmem %s3, 128
        %v1889 = vld [vmem:[%s1888] sm:$0xf]
        %v1890 = vld [vmem:[%s1888 + $0x4] sm:$0xf]
        %v1891 = vld [vmem:[%s1888 + $0x8] sm:$0xf]
        %v1892 = vld [vmem:[%s1888 + $0xc] sm:$0xf]
        %v1893 = vld [vmem:[%s1888 + $0x10] sm:$0xf]
        %v1894 = vld [vmem:[%s1888 + $0x14] sm:$0xf]
        %v1895 = vld [vmem:[%s1888 + $0x18] sm:$0xf]
        %v1896 = vld [vmem:[%s1888 + $0x1c] sm:$0xf]
        %v1897 = vld [vmem:[%s1888 + $0x20] sm:$0xf]
        %v1898 = vld [vmem:[%s1888 + $0x24] sm:$0xf]
        %v1899 = vld [vmem:[%s1888 + $0x28] sm:$0xf]
        %v1900 = vld [vmem:[%s1888 + $0x2c] sm:$0xf]
        %v1901 = vld [vmem:[%s1888 + $0x30] sm:$0xf]
        %v1902 = vld [vmem:[%s1888 + $0x34] sm:$0xf]
        %v1903 = vld [vmem:[%s1888 + $0x38] sm:$0xf]
        %v1904 = vld [vmem:[%s1888 + $0x3c] sm:$0xf]
        %vm1915 = vcmask 1046528
        %v1916 = vrot.slane %v1453, 1
        %v1917 = vrot.slane %v1454, 1
        %v1918 = vsel %vm1915, %v1916, %v1917
        %v1919 = vrot.slane %v1455, 1
        %v1920 = vsel %vm1915, %v1917, %v1919
        %v1921 = vrot.slane %v1456, 1
        %v1922 = vsel %vm1915, %v1919, %v1921
        %v1923 = vrot.slane %v1457, 1
        %v1924 = vsel %vm1915, %v1921, %v1923
        %v1925 = vrot.slane %v1458, 1
        %v1926 = vsel %vm1915, %v1923, %v1925
        %v1927 = vrot.slane %v1459, 1
        %v1928 = vsel %vm1915, %v1925, %v1927
        %v1929 = vrot.slane %v1460, 1
        %v1930 = vsel %vm1915, %v1927, %v1929
        %v1931 = vrot.slane %v1461, 1
        %v1932 = vsel %vm1915, %v1929, %v1931
        %v1933 = vrot.slane %v1478, 1
        %v1934 = vsel %vm1915, %v1931, %v1933
        %v1960 = vunpack.c.l.b16 %v1889
        %v1961 = vunpack.c.l.b16 %v1890
        %v1962 = vunpack.c.l.b16 %v1891
        %v1963 = vunpack.c.l.b16 %v1892
        %v1964 = vunpack.c.l.b16 %v1893
        %v1965 = vunpack.c.l.b16 %v1894
        %v1966 = vunpack.c.l.b16 %v1895
        %v1967 = vunpack.c.l.b16 %v1896
        %v1968 = vunpack.c.l.b16 %v1897
        %v1969 = vunpack.c.l.b16 %v1898
        %v1970 = vunpack.c.l.b16 %v1899
        %v1971 = vunpack.c.l.b16 %v1900
        %v1972 = vunpack.c.l.b16 %v1901
        %v1973 = vunpack.c.l.b16 %v1902
        %v1974 = vunpack.c.l.b16 %v1903
        %v1975 = vunpack.c.l.b16 %v1904
        %v1976 = vpack.c.b16 %v1961, %v1960
        %v1977 = vpack.c.b16 %v1963, %v1962
        %v1978 = vpack.c.b16 %v1965, %v1964
        %v1979 = vpack.c.b16 %v1967, %v1966
        %v1980 = vpack.c.b16 %v1969, %v1968
        %v1981 = vpack.c.b16 %v1971, %v1970
        %v1982 = vpack.c.b16 %v1973, %v1972
        %v1983 = vpack.c.b16 %v1975, %v1974
        %1992 = vmatprep.subr.bf16.mxu0 0
        %1993 = vmatpush1.bf16.msra.mxu0 %v1983
        %1994 = vmatprep.subr.bf16.mxu0 0
        %1995 = vmatpush1.bf16.msra.mxu0 %v1982
        %1996 = vmatprep.subr.bf16.mxu0 0
        %1997 = vmatpush1.bf16.msra.mxu0 %v1981
        %1998 = vmatprep.subr.bf16.mxu0 0
        %1999 = vmatpush1.bf16.msra.mxu0 %v1980
        %2000 = vmatprep.subr.bf16.mxu0 0
        %2001 = vmatpush1.bf16.msra.mxu0 %v1979
        %2002 = vmatprep.subr.bf16.mxu0 0
        %2003 = vmatpush1.bf16.msra.mxu0 %v1978
        %2004 = vmatprep.subr.bf16.mxu0 0
        %2005 = vmatpush1.bf16.msra.mxu0 %v1977
        %2006 = vmatprep.subr.bf16.mxu0 0
        %2007 = vmatpush1.bf16.msra.mxu0 %v1976
        %2008 = vmatprep.subr.bf16.mxu0 0
        %2009 = vmatpush2.bf16.msra.mxu0 0
        %2010 = vmatprep.subr.bf16.mxu0 0
        %2011 = vmatpush2.bf16.msra.mxu0 0
        %2012 = vmatprep.subr.bf16.mxu0 0
        %2013 = vmatpush2.bf16.msra.mxu0 0
        %2014 = vmatprep.subr.bf16.mxu0 0
        %2015 = vmatpush2.bf16.msra.mxu0 0
        %2016 = vmatprep.subr.bf16.mxu0 0
        %2017 = vmatpush2.bf16.msra.mxu0 0
        %2018 = vmatprep.subr.bf16.mxu0 0
        %2019 = vmatpush2.bf16.msra.mxu0 0
        %2020 = vmatprep.subr.bf16.mxu0 0
        %2021 = vmatpush2.bf16.msra.mxu0 0
        %2022 = vmatprep.subr.bf16.mxu0 0
        %2023 = vmatpush2.bf16.msra.mxu0 0
        %2024 = vmatprep.mubr.bf16.mxu0 0
        %2025 = vmatmul.mubr.bf16.gmra.mxu0 %v1918
        %v2026 = vpop.f32.mrf.mxu0
        %v2027 = vadd.f32 0.0, %v2026
        %v2028 = vpop.f32.mrf.mxu0
        %v2029 = vpop.f32.mrf.mxu0
        %v2030 = vadd.f32 0.0, %v2029
        %v2031 = vpop.f32.mrf.mxu0
        %2032 = vmatprep.mubr.bf16.mxu0 0
        %2033 = vmatmul.mubr.bf16.gmra.mxu0 %v1920
        %v2034 = vpop.f32.mrf.mxu0
        %v2035 = vadd.f32 0.0, %v2034
        %v2036 = vpop.f32.mrf.mxu0
        %v2037 = vpop.f32.mrf.mxu0
        %v2038 = vadd.f32 0.0, %v2037
        %v2039 = vpop.f32.mrf.mxu0
        %2040 = vmatprep.mubr.bf16.mxu0 0
        %2041 = vmatmul.mubr.bf16.gmra.mxu0 %v1922
        %v2042 = vpop.f32.mrf.mxu0
        %v2043 = vadd.f32 0.0, %v2042
        %v2044 = vpop.f32.mrf.mxu0
        %v2045 = vpop.f32.mrf.mxu0
        %v2046 = vadd.f32 0.0, %v2045
        %v2047 = vpop.f32.mrf.mxu0
        %2048 = vmatprep.mubr.bf16.mxu0 0
        %2049 = vmatmul.mubr.bf16.gmra.mxu0 %v1924
        %v2050 = vpop.f32.mrf.mxu0
        %v2051 = vadd.f32 0.0, %v2050
        %v2052 = vpop.f32.mrf.mxu0
        %v2053 = vpop.f32.mrf.mxu0
        %v2054 = vadd.f32 0.0, %v2053
        %v2055 = vpop.f32.mrf.mxu0
        %2056 = vmatprep.mubr.bf16.mxu0 0
        %2057 = vmatmul.mubr.bf16.gmra.mxu0 %v1926
        %v2058 = vpop.f32.mrf.mxu0
        %v2059 = vadd.f32 0.0, %v2058
        %v2060 = vpop.f32.mrf.mxu0
        %v2061 = vpop.f32.mrf.mxu0
        %v2062 = vadd.f32 0.0, %v2061
        %v2063 = vpop.f32.mrf.mxu0
        %2064 = vmatprep.mubr.bf16.mxu0 0
        %2065 = vmatmul.mubr.bf16.gmra.mxu0 %v1928
        %v2066 = vpop.f32.mrf.mxu0
        %v2067 = vadd.f32 0.0, %v2066
        %v2068 = vpop.f32.mrf.mxu0
        %v2069 = vpop.f32.mrf.mxu0
        %v2070 = vadd.f32 0.0, %v2069
        %v2071 = vpop.f32.mrf.mxu0
        %2072 = vmatprep.mubr.bf16.mxu0 0
        %2073 = vmatmul.mubr.bf16.gmra.mxu0 %v1930
        %v2074 = vpop.f32.mrf.mxu0
        %v2075 = vadd.f32 0.0, %v2074
        %v2076 = vpop.f32.mrf.mxu0
        %v2077 = vpop.f32.mrf.mxu0
        %v2078 = vadd.f32 0.0, %v2077
        %v2079 = vpop.f32.mrf.mxu0
        %2080 = vmatprep.mubr.bf16.mxu0 0
        %2081 = vmatmul.mubr.bf16.gmra.mxu0 %v1932
        %v2082 = vpop.f32.mrf.mxu0
        %v2083 = vadd.f32 0.0, %v2082
        %v2084 = vpop.f32.mrf.mxu0
        %v2085 = vpop.f32.mrf.mxu0
        %v2086 = vadd.f32 0.0, %v2085
        %v2087 = vpop.f32.mrf.mxu0
        %2088 = vmatprep.mubr.bf16.mxu0 0
        %2089 = vmatmul.mubr.bf16.gmra.mxu0 %v1934
        %v2090 = vpop.f32.mrf.mxu0
        %v2091 = vadd.f32 0.0, %v2090
        %v2092 = vpop.f32.mrf.mxu0
        %v2093 = vpop.f32.mrf.mxu0
        %v2094 = vadd.f32 0.0, %v2093
        %v2095 = vpop.f32.mrf.mxu0
        %2096 = vdwg.mxu0
        %v2097 = vadd.f32 %v1818, %v2027
        %v2098 = vadd.f32 %v1821, %v2030
        %v2099 = vadd.f32 %v1826, %v2035
        %v2100 = vadd.f32 %v1829, %v2038
        %v2101 = vadd.f32 %v1834, %v2043
        %v2102 = vadd.f32 %v1837, %v2046
        %v2103 = vadd.f32 %v1842, %v2051
        %v2104 = vadd.f32 %v1845, %v2054
        %v2105 = vadd.f32 %v1850, %v2059
        %v2106 = vadd.f32 %v1853, %v2062
        %v2107 = vadd.f32 %v1858, %v2067
        %v2108 = vadd.f32 %v1861, %v2070
        %v2109 = vadd.f32 %v1866, %v2075
        %v2110 = vadd.f32 %v1869, %v2078
        %v2111 = vadd.f32 %v1874, %v2083
        %v2112 = vadd.f32 %v1877, %v2086
        %v2113 = vadd.f32 %v1882, %v2091
        %v2114 = vadd.f32 %v1885, %v2094
        %v2115 = vpack.c.bf16 %v1437, %v1436
        %v2116 = vpack.c.bf16 %v1439, %v1438
        %v2117 = vpack.c.bf16 %v1441, %v1440
        %v2118 = vpack.c.bf16 %v1443, %v1442
        %v2119 = vpack.c.bf16 %v1445, %v1444
        %v2120 = vpack.c.bf16 %v1447, %v1446
        %v2121 = vpack.c.bf16 %v1449, %v1448
        %v2122 = vpack.c.bf16 %v1451, %v1450
        %v2123 = vpack.c.bf16 0.0, %v1452
        %s2124 = scalar_lea.vmem %s3, 192
        %v2125 = vld [vmem:[%s2124] sm:$0xf]
        %v2126 = vld [vmem:[%s2124 + $0x4] sm:$0xf]
        %v2127 = vld [vmem:[%s2124 + $0x8] sm:$0xf]
        %v2128 = vld [vmem:[%s2124 + $0xc] sm:$0xf]
        %v2129 = vld [vmem:[%s2124 + $0x10] sm:$0xf]
        %v2130 = vld [vmem:[%s2124 + $0x14] sm:$0xf]
        %v2131 = vld [vmem:[%s2124 + $0x18] sm:$0xf]
        %v2132 = vld [vmem:[%s2124 + $0x1c] sm:$0xf]
        %v2133 = vld [vmem:[%s2124 + $0x20] sm:$0xf]
        %v2134 = vld [vmem:[%s2124 + $0x24] sm:$0xf]
        %v2135 = vld [vmem:[%s2124 + $0x28] sm:$0xf]
        %v2136 = vld [vmem:[%s2124 + $0x2c] sm:$0xf]
        %v2137 = vld [vmem:[%s2124 + $0x30] sm:$0xf]
        %v2138 = vld [vmem:[%s2124 + $0x34] sm:$0xf]
        %v2139 = vld [vmem:[%s2124 + $0x38] sm:$0xf]
        %v2140 = vld [vmem:[%s2124 + $0x3c] sm:$0xf]
        %vm2150 = vcmask 1045504
        %v2151 = vrot.slane %v2115, 2
        %v2152 = vrot.slane %v2116, 2
        %v2153 = vsel %vm2150, %v2151, %v2152
        %v2154 = vrot.slane %v2117, 2
        %v2155 = vsel %vm2150, %v2152, %v2154
        %v2156 = vrot.slane %v2118, 2
        %v2157 = vsel %vm2150, %v2154, %v2156
        %v2158 = vrot.slane %v2119, 2
        %v2159 = vsel %vm2150, %v2156, %v2158
        %v2160 = vrot.slane %v2120, 2
        %v2161 = vsel %vm2150, %v2158, %v2160
        %v2162 = vrot.slane %v2121, 2
        %v2163 = vsel %vm2150, %v2160, %v2162
        %v2164 = vrot.slane %v2122, 2
        %v2165 = vsel %vm2150, %v2162, %v2164
        %v2166 = vrot.slane %v2123, 2
        %v2167 = vsel %vm2150, %v2164, %v2166
        %v2168 = vrot.slane %v1478, 2
        %v2169 = vsel %vm2150, %v2166, %v2168
        %v2195 = vunpack.c.l.b16 %v2125
        %v2196 = vunpack.c.l.b16 %v2126
        %v2197 = vunpack.c.l.b16 %v2127
        %v2198 = vunpack.c.l.b16 %v2128
        %v2199 = vunpack.c.l.b16 %v2129
        %v2200 = vunpack.c.l.b16 %v2130
        %v2201 = vunpack.c.l.b16 %v2131
        %v2202 = vunpack.c.l.b16 %v2132
        %v2203 = vunpack.c.l.b16 %v2133
        %v2204 = vunpack.c.l.b16 %v2134
        %v2205 = vunpack.c.l.b16 %v2135
        %v2206 = vunpack.c.l.b16 %v2136
        %v2207 = vunpack.c.l.b16 %v2137
        %v2208 = vunpack.c.l.b16 %v2138
        %v2209 = vunpack.c.l.b16 %v2139
        %v2210 = vunpack.c.l.b16 %v2140
        %v2211 = vpack.c.b16 %v2196, %v2195
        %v2212 = vpack.c.b16 %v2198, %v2197
        %v2213 = vpack.c.b16 %v2200, %v2199
        %v2214 = vpack.c.b16 %v2202, %v2201
        %v2215 = vpack.c.b16 %v2204, %v2203
        %v2216 = vpack.c.b16 %v2206, %v2205
        %v2217 = vpack.c.b16 %v2208, %v2207
        %v2218 = vpack.c.b16 %v2210, %v2209
        %2227 = vmatprep.subr.bf16.mxu0 0
        %2228 = vmatpush1.bf16.msra.mxu0 %v2218
        %2229 = vmatprep.subr.bf16.mxu0 0
        %2230 = vmatpush1.bf16.msra.mxu0 %v2217
        %2231 = vmatprep.subr.bf16.mxu0 0
        %2232 = vmatpush1.bf16.msra.mxu0 %v2216
        %2233 = vmatprep.subr.bf16.mxu0 0
        %2234 = vmatpush1.bf16.msra.mxu0 %v2215
        %2235 = vmatprep.subr.bf16.mxu0 0
        %2236 = vmatpush1.bf16.msra.mxu0 %v2214
        %2237 = vmatprep.subr.bf16.mxu0 0
        %2238 = vmatpush1.bf16.msra.mxu0 %v2213
        %2239 = vmatprep.subr.bf16.mxu0 0
        %2240 = vmatpush1.bf16.msra.mxu0 %v2212
        %2241 = vmatprep.subr.bf16.mxu0 0
        %2242 = vmatpush1.bf16.msra.mxu0 %v2211
        %2243 = vmatprep.subr.bf16.mxu0 0
        %2244 = vmatpush2.bf16.msra.mxu0 0
        %2245 = vmatprep.subr.bf16.mxu0 0
        %2246 = vmatpush2.bf16.msra.mxu0 0
        %2247 = vmatprep.subr.bf16.mxu0 0
        %2248 = vmatpush2.bf16.msra.mxu0 0
        %2249 = vmatprep.subr.bf16.mxu0 0
        %2250 = vmatpush2.bf16.msra.mxu0 0
        %2251 = vmatprep.subr.bf16.mxu0 0
        %2252 = vmatpush2.bf16.msra.mxu0 0
        %2253 = vmatprep.subr.bf16.mxu0 0
        %2254 = vmatpush2.bf16.msra.mxu0 0
        %2255 = vmatprep.subr.bf16.mxu0 0
        %2256 = vmatpush2.bf16.msra.mxu0 0
        %2257 = vmatprep.subr.bf16.mxu0 0
        %2258 = vmatpush2.bf16.msra.mxu0 0
        %2259 = vmatprep.mubr.bf16.mxu0 0
        %2260 = vmatmul.mubr.bf16.gmra.mxu0 %v2153
        %v2261 = vpop.f32.mrf.mxu0
        %v2262 = vadd.f32 0.0, %v2261
        %v2263 = vpop.f32.mrf.mxu0
        %v2264 = vpop.f32.mrf.mxu0
        %v2265 = vadd.f32 0.0, %v2264
        %v2266 = vpop.f32.mrf.mxu0
        %2267 = vmatprep.mubr.bf16.mxu0 0
        %2268 = vmatmul.mubr.bf16.gmra.mxu0 %v2155
        %v2269 = vpop.f32.mrf.mxu0
        %v2270 = vadd.f32 0.0, %v2269
        %v2271 = vpop.f32.mrf.mxu0
        %v2272 = vpop.f32.mrf.mxu0
        %v2273 = vadd.f32 0.0, %v2272
        %v2274 = vpop.f32.mrf.mxu0
        %2275 = vmatprep.mubr.bf16.mxu0 0
        %2276 = vmatmul.mubr.bf16.gmra.mxu0 %v2157
        %v2277 = vpop.f32.mrf.mxu0
        %v2278 = vadd.f32 0.0, %v2277
        %v2279 = vpop.f32.mrf.mxu0
        %v2280 = vpop.f32.mrf.mxu0
        %v2281 = vadd.f32 0.0, %v2280
        %v2282 = vpop.f32.mrf.mxu0
        %2283 = vmatprep.mubr.bf16.mxu0 0
        %2284 = vmatmul.mubr.bf16.gmra.mxu0 %v2159
        %v2285 = vpop.f32.mrf.mxu0
        %v2286 = vadd.f32 0.0, %v2285
        %v2287 = vpop.f32.mrf.mxu0
        %v2288 = vpop.f32.mrf.mxu0
        %v2289 = vadd.f32 0.0, %v2288
        %v2290 = vpop.f32.mrf.mxu0
        %2291 = vmatprep.mubr.bf16.mxu0 0
        %2292 = vmatmul.mubr.bf16.gmra.mxu0 %v2161
        %v2293 = vpop.f32.mrf.mxu0
        %v2294 = vadd.f32 0.0, %v2293
        %v2295 = vpop.f32.mrf.mxu0
        %v2296 = vpop.f32.mrf.mxu0
        %v2297 = vadd.f32 0.0, %v2296
        %v2298 = vpop.f32.mrf.mxu0
        %2299 = vmatprep.mubr.bf16.mxu0 0
        %2300 = vmatmul.mubr.bf16.gmra.mxu0 %v2163
        %v2301 = vpop.f32.mrf.mxu0
        %v2302 = vadd.f32 0.0, %v2301
        %v2303 = vpop.f32.mrf.mxu0
        %v2304 = vpop.f32.mrf.mxu0
        %v2305 = vadd.f32 0.0, %v2304
        %v2306 = vpop.f32.mrf.mxu0
        %2307 = vmatprep.mubr.bf16.mxu0 0
        %2308 = vmatmul.mubr.bf16.gmra.mxu0 %v2165
        %v2309 = vpop.f32.mrf.mxu0
        %v2310 = vadd.f32 0.0, %v2309
        %v2311 = vpop.f32.mrf.mxu0
        %v2312 = vpop.f32.mrf.mxu0
        %v2313 = vadd.f32 0.0, %v2312
        %v2314 = vpop.f32.mrf.mxu0
        %2315 = vmatprep.mubr.bf16.mxu0 0
        %2316 = vmatmul.mubr.bf16.gmra.mxu0 %v2167
        %v2317 = vpop.f32.mrf.mxu0
        %v2318 = vadd.f32 0.0, %v2317
        %v2319 = vpop.f32.mrf.mxu0
        %v2320 = vpop.f32.mrf.mxu0
        %v2321 = vadd.f32 0.0, %v2320
        %v2322 = vpop.f32.mrf.mxu0
        %2323 = vmatprep.mubr.bf16.mxu0 0
        %2324 = vmatmul.mubr.bf16.gmra.mxu0 %v2169
        %v2325 = vpop.f32.mrf.mxu0
        %v2326 = vadd.f32 0.0, %v2325
        %v2327 = vpop.f32.mrf.mxu0
        %v2328 = vpop.f32.mrf.mxu0
        %v2329 = vadd.f32 0.0, %v2328
        %v2330 = vpop.f32.mrf.mxu0
        %2331 = vdwg.mxu0
        %v2332 = vadd.f32 %v2097, %v2262
        %v2333 = vadd.f32 %v2098, %v2265
        %v2334 = vadd.f32 %v2099, %v2270
        %v2335 = vadd.f32 %v2100, %v2273
        %v2336 = vadd.f32 %v2101, %v2278
        %v2337 = vadd.f32 %v2102, %v2281
        %v2338 = vadd.f32 %v2103, %v2286
        %v2339 = vadd.f32 %v2104, %v2289
        %v2340 = vadd.f32 %v2105, %v2294
        %v2341 = vadd.f32 %v2106, %v2297
        %v2342 = vadd.f32 %v2107, %v2302
        %v2343 = vadd.f32 %v2108, %v2305
        %v2344 = vadd.f32 %v2109, %v2310
        %v2345 = vadd.f32 %v2110, %v2313
        %v2346 = vadd.f32 %v2111, %v2318
        %v2347 = vadd.f32 %v2112, %v2321
        %v2348 = vadd.f32 %v2113, %v2326
        %v2349 = vadd.f32 %v2114, %v2329
        %s2350 = scalar_lea.vmem %s3, 256
        %v2351 = vld [vmem:[%s2350] sm:$0xf]
        %v2352 = vld [vmem:[%s2350 + $0x4] sm:$0xf]
        %v2353 = vld [vmem:[%s2350 + $0x8] sm:$0xf]
        %v2354 = vld [vmem:[%s2350 + $0xc] sm:$0xf]
        %v2355 = vld [vmem:[%s2350 + $0x10] sm:$0xf]
        %v2356 = vld [vmem:[%s2350 + $0x14] sm:$0xf]
        %v2357 = vld [vmem:[%s2350 + $0x18] sm:$0xf]
        %v2358 = vld [vmem:[%s2350 + $0x1c] sm:$0xf]
        %v2359 = vld [vmem:[%s2350 + $0x20] sm:$0xf]
        %v2360 = vld [vmem:[%s2350 + $0x24] sm:$0xf]
        %v2361 = vld [vmem:[%s2350 + $0x28] sm:$0xf]
        %v2362 = vld [vmem:[%s2350 + $0x2c] sm:$0xf]
        %v2363 = vld [vmem:[%s2350 + $0x30] sm:$0xf]
        %v2364 = vld [vmem:[%s2350 + $0x34] sm:$0xf]
        %v2365 = vld [vmem:[%s2350 + $0x38] sm:$0xf]
        %v2366 = vld [vmem:[%s2350 + $0x3c] sm:$0xf]
        %vm2367 = vsmask.f32 5376
        %v2369 = vshrl.u32 %v2115, 16
        %v2371 = vrot.slane %v2369, 2
        %v2372 = vshll.u32 %v2115, 16
        %v2374 = vrot.slane %v2372, 3
        %v2375 = vor.u32 %v2371, %v2374
        %v2377 = vshrl.u32 %v2116, 16
        %v2379 = vrot.slane %v2377, 2
        %v2380 = vshll.u32 %v2116, 16
        %v2382 = vrot.slane %v2380, 3
        %v2383 = vor.u32 %v2379, %v2382
        %v2384 = vsel %vm2367, %v2375, %v2383
        %v2386 = vshrl.u32 %v2117, 16
        %v2388 = vrot.slane %v2386, 2
        %v2389 = vshll.u32 %v2117, 16
        %v2391 = vrot.slane %v2389, 3
        %v2392 = vor.u32 %v2388, %v2391
        %v2393 = vsel %vm2367, %v2383, %v2392
        %v2395 = vshrl.u32 %v2118, 16
        %v2397 = vrot.slane %v2395, 2
        %v2398 = vshll.u32 %v2118, 16
        %v2400 = vrot.slane %v2398, 3
        %v2401 = vor.u32 %v2397, %v2400
        %v2402 = vsel %vm2367, %v2392, %v2401
        %v2404 = vshrl.u32 %v2119, 16
        %v2406 = vrot.slane %v2404, 2
        %v2407 = vshll.u32 %v2119, 16
        %v2409 = vrot.slane %v2407, 3
        %v2410 = vor.u32 %v2406, %v2409
        %v2411 = vsel %vm2367, %v2401, %v2410
        %v2413 = vshrl.u32 %v2120, 16
        %v2415 = vrot.slane %v2413, 2
        %v2416 = vshll.u32 %v2120, 16
        %v2418 = vrot.slane %v2416, 3
        %v2419 = vor.u32 %v2415, %v2418
        %v2420 = vsel %vm2367, %v2410, %v2419
        %v2422 = vshrl.u32 %v2121, 16
        %v2424 = vrot.slane %v2422, 2
        %v2425 = vshll.u32 %v2121, 16
        %v2427 = vrot.slane %v2425, 3
        %v2428 = vor.u32 %v2424, %v2427
        %v2429 = vsel %vm2367, %v2419, %v2428
        %v2431 = vshrl.u32 %v2122, 16
        %v2433 = vrot.slane %v2431, 2
        %v2434 = vshll.u32 %v2122, 16
        %v2436 = vrot.slane %v2434, 3
        %v2437 = vor.u32 %v2433, %v2436
        %v2438 = vsel %vm2367, %v2428, %v2437
        %v2440 = vshrl.u32 %v2123, 16
        %v2442 = vrot.slane %v2440, 2
        %v2443 = vshll.u32 %v2123, 16
        %v2445 = vrot.slane %v2443, 3
        %v2446 = vor.u32 %v2442, %v2445
        %v2447 = vsel %vm2367, %v2437, %v2446
        %v2448 = vshrl.u32 %v1478, 16
        %v2450 = vrot.slane %v2448, 2
        %v2451 = vrot.slane %v1569, 3
        %v2452 = vor.u32 %v2450, %v2451
        %v2453 = vsel %vm2367, %v2446, %v2452
        %v2479 = vunpack.c.l.b16 %v2351
        %v2480 = vunpack.c.l.b16 %v2352
        %v2481 = vunpack.c.l.b16 %v2353
        %v2482 = vunpack.c.l.b16 %v2354
        %v2483 = vunpack.c.l.b16 %v2355
        %v2484 = vunpack.c.l.b16 %v2356
        %v2485 = vunpack.c.l.b16 %v2357
        %v2486 = vunpack.c.l.b16 %v2358
        %v2487 = vunpack.c.l.b16 %v2359
        %v2488 = vunpack.c.l.b16 %v2360
        %v2489 = vunpack.c.l.b16 %v2361
        %v2490 = vunpack.c.l.b16 %v2362
        %v2491 = vunpack.c.l.b16 %v2363
        %v2492 = vunpack.c.l.b16 %v2364
        %v2493 = vunpack.c.l.b16 %v2365
        %v2494 = vunpack.c.l.b16 %v2366
        %v2495 = vpack.c.b16 %v2480, %v2479
        %v2496 = vpack.c.b16 %v2482, %v2481
        %v2497 = vpack.c.b16 %v2484, %v2483
        %v2498 = vpack.c.b16 %v2486, %v2485
        %v2499 = vpack.c.b16 %v2488, %v2487
        %v2500 = vpack.c.b16 %v2490, %v2489
        %v2501 = vpack.c.b16 %v2492, %v2491
        %v2502 = vpack.c.b16 %v2494, %v2493
        %2511 = vmatprep.subr.bf16.mxu0 0
        %2512 = vmatpush1.bf16.msra.mxu0 %v2502
        %2513 = vmatprep.subr.bf16.mxu0 0
        %2514 = vmatpush1.bf16.msra.mxu0 %v2501
        %2515 = vmatprep.subr.bf16.mxu0 0
        %2516 = vmatpush1.bf16.msra.mxu0 %v2500
        %2517 = vmatprep.subr.bf16.mxu0 0
        %2518 = vmatpush1.bf16.msra.mxu0 %v2499
        %2519 = vmatprep.subr.bf16.mxu0 0
        %2520 = vmatpush1.bf16.msra.mxu0 %v2498
        %2521 = vmatprep.subr.bf16.mxu0 0
        %2522 = vmatpush1.bf16.msra.mxu0 %v2497
        %2523 = vmatprep.subr.bf16.mxu0 0
        %2524 = vmatpush1.bf16.msra.mxu0 %v2496
        %2525 = vmatprep.subr.bf16.mxu0 0
        %2526 = vmatpush1.bf16.msra.mxu0 %v2495
        %2527 = vmatprep.subr.bf16.mxu0 0
        %2528 = vmatpush2.bf16.msra.mxu0 0
        %2529 = vmatprep.subr.bf16.mxu0 0
        %2530 = vmatpush2.bf16.msra.mxu0 0
        %2531 = vmatprep.subr.bf16.mxu0 0
        %2532 = vmatpush2.bf16.msra.mxu0 0
        %2533 = vmatprep.subr.bf16.mxu0 0
        %2534 = vmatpush2.bf16.msra.mxu0 0
        %2535 = vmatprep.subr.bf16.mxu0 0
        %2536 = vmatpush2.bf16.msra.mxu0 0
        %2537 = vmatprep.subr.bf16.mxu0 0
        %2538 = vmatpush2.bf16.msra.mxu0 0
        %2539 = vmatprep.subr.bf16.mxu0 0
        %2540 = vmatpush2.bf16.msra.mxu0 0
        %2541 = vmatprep.subr.bf16.mxu0 0
        %2542 = vmatpush2.bf16.msra.mxu0 0
        %2543 = vmatprep.mubr.bf16.mxu0 0
        %2544 = vmatmul.mubr.bf16.gmra.mxu0 %v2384
        %v2545 = vpop.f32.mrf.mxu0
        %v2546 = vadd.f32 0.0, %v2545
        %v2547 = vpop.f32.mrf.mxu0
        %v2548 = vpop.f32.mrf.mxu0
        %v2549 = vadd.f32 0.0, %v2548
        %v2550 = vpop.f32.mrf.mxu0
        %2551 = vmatprep.mubr.bf16.mxu0 0
        %2552 = vmatmul.mubr.bf16.gmra.mxu0 %v2393
        %v2553 = vpop.f32.mrf.mxu0
        %v2554 = vadd.f32 0.0, %v2553
        %v2555 = vpop.f32.mrf.mxu0
        %v2556 = vpop.f32.mrf.mxu0
        %v2557 = vadd.f32 0.0, %v2556
        %v2558 = vpop.f32.mrf.mxu0
        %2559 = vmatprep.mubr.bf16.mxu0 0
        %2560 = vmatmul.mubr.bf16.gmra.mxu0 %v2402
        %v2561 = vpop.f32.mrf.mxu0
        %v2562 = vadd.f32 0.0, %v2561
        %v2563 = vpop.f32.mrf.mxu0
        %v2564 = vpop.f32.mrf.mxu0
        %v2565 = vadd.f32 0.0, %v2564
        %v2566 = vpop.f32.mrf.mxu0
        %2567 = vmatprep.mubr.bf16.mxu0 0
        %2568 = vmatmul.mubr.bf16.gmra.mxu0 %v2411
        %v2569 = vpop.f32.mrf.mxu0
        %v2570 = vadd.f32 0.0, %v2569
        %v2571 = vpop.f32.mrf.mxu0
        %v2572 = vpop.f32.mrf.mxu0
        %v2573 = vadd.f32 0.0, %v2572
        %v2574 = vpop.f32.mrf.mxu0
        %2575 = vmatprep.mubr.bf16.mxu0 0
        %2576 = vmatmul.mubr.bf16.gmra.mxu0 %v2420
        %v2577 = vpop.f32.mrf.mxu0
        %v2578 = vadd.f32 0.0, %v2577
        %v2579 = vpop.f32.mrf.mxu0
        %v2580 = vpop.f32.mrf.mxu0
        %v2581 = vadd.f32 0.0, %v2580
        %v2582 = vpop.f32.mrf.mxu0
        %2583 = vmatprep.mubr.bf16.mxu0 0
        %2584 = vmatmul.mubr.bf16.gmra.mxu0 %v2429
        %v2585 = vpop.f32.mrf.mxu0
        %v2586 = vadd.f32 0.0, %v2585
        %v2587 = vpop.f32.mrf.mxu0
        %v2588 = vpop.f32.mrf.mxu0
        %v2589 = vadd.f32 0.0, %v2588
        %v2590 = vpop.f32.mrf.mxu0
        %2591 = vmatprep.mubr.bf16.mxu0 0
        %2592 = vmatmul.mubr.bf16.gmra.mxu0 %v2438
        %v2593 = vpop.f32.mrf.mxu0
        %v2594 = vadd.f32 0.0, %v2593
        %v2595 = vpop.f32.mrf.mxu0
        %v2596 = vpop.f32.mrf.mxu0
        %v2597 = vadd.f32 0.0, %v2596
        %v2598 = vpop.f32.mrf.mxu0
        %2599 = vmatprep.mubr.bf16.mxu0 0
        %2600 = vmatmul.mubr.bf16.gmra.mxu0 %v2447
        %v2601 = vpop.f32.mrf.mxu0
        %v2602 = vadd.f32 0.0, %v2601
        %v2603 = vpop.f32.mrf.mxu0
        %v2604 = vpop.f32.mrf.mxu0
        %v2605 = vadd.f32 0.0, %v2604
        %v2606 = vpop.f32.mrf.mxu0
        %2607 = vmatprep.mubr.bf16.mxu0 0
        %2608 = vmatmul.mubr.bf16.gmra.mxu0 %v2453
        %v2609 = vpop.f32.mrf.mxu0
        %v2610 = vadd.f32 0.0, %v2609
        %v2611 = vpop.f32.mrf.mxu0
        %v2612 = vpop.f32.mrf.mxu0
        %v2613 = vadd.f32 0.0, %v2612
        %v2614 = vpop.f32.mrf.mxu0
        %2615 = vdwg.mxu0
        %v2616 = vadd.f32 %v2332, %v2546
        %v2617 = vadd.f32 %v2333, %v2549
        %v2618 = vadd.f32 %v2334, %v2554
        %v2619 = vadd.f32 %v2335, %v2557
        %v2620 = vadd.f32 %v2336, %v2562
        %v2621 = vadd.f32 %v2337, %v2565
        %v2622 = vadd.f32 %v2338, %v2570
        %v2623 = vadd.f32 %v2339, %v2573
        %v2624 = vadd.f32 %v2340, %v2578
        %v2625 = vadd.f32 %v2341, %v2581
        %v2626 = vadd.f32 %v2342, %v2586
        %v2627 = vadd.f32 %v2343, %v2589
        %v2628 = vadd.f32 %v2344, %v2594
        %v2629 = vadd.f32 %v2345, %v2597
        %v2630 = vadd.f32 %v2346, %v2602
        %v2631 = vadd.f32 %v2347, %v2605
        %v2632 = vadd.f32 %v2348, %v2610
        %v2633 = vadd.f32 %v2349, %v2613
        %s2634 = scalar_lea.vmem %s3, 320
        %v2635 = vld [vmem:[%s2634] sm:$0xf]
        %v2636 = vld [vmem:[%s2634 + $0x4] sm:$0xf]
        %v2637 = vld [vmem:[%s2634 + $0x8] sm:$0xf]
        %v2638 = vld [vmem:[%s2634 + $0xc] sm:$0xf]
        %v2639 = vld [vmem:[%s2634 + $0x10] sm:$0xf]
        %v2640 = vld [vmem:[%s2634 + $0x14] sm:$0xf]
        %v2641 = vld [vmem:[%s2634 + $0x18] sm:$0xf]
        %v2642 = vld [vmem:[%s2634 + $0x1c] sm:$0xf]
        %v2643 = vld [vmem:[%s2634 + $0x20] sm:$0xf]
        %v2644 = vld [vmem:[%s2634 + $0x24] sm:$0xf]
        %v2645 = vld [vmem:[%s2634 + $0x28] sm:$0xf]
        %v2646 = vld [vmem:[%s2634 + $0x2c] sm:$0xf]
        %v2647 = vld [vmem:[%s2634 + $0x30] sm:$0xf]
        %v2648 = vld [vmem:[%s2634 + $0x34] sm:$0xf]
        %v2649 = vld [vmem:[%s2634 + $0x38] sm:$0xf]
        %v2650 = vld [vmem:[%s2634 + $0x3c] sm:$0xf]
        %vm2651 = vcmask 1044480
        %v2652 = vrot.slane %v2115, 3
        %v2653 = vrot.slane %v2116, 3
        %v2654 = vsel %vm2651, %v2652, %v2653
        %v2655 = vrot.slane %v2117, 3
        %v2656 = vsel %vm2651, %v2653, %v2655
        %v2657 = vrot.slane %v2118, 3
        %v2658 = vsel %vm2651, %v2655, %v2657
        %v2659 = vrot.slane %v2119, 3
        %v2660 = vsel %vm2651, %v2657, %v2659
        %v2661 = vrot.slane %v2120, 3
        %v2662 = vsel %vm2651, %v2659, %v2661
        %v2663 = vrot.slane %v2121, 3
        %v2664 = vsel %vm2651, %v2661, %v2663
        %v2665 = vrot.slane %v2122, 3
        %v2666 = vsel %vm2651, %v2663, %v2665
        %v2667 = vrot.slane %v2123, 3
        %v2668 = vsel %vm2651, %v2665, %v2667
        %v2669 = vrot.slane %v1478, 3
        %v2670 = vsel %vm2651, %v2667, %v2669
        %v2696 = vunpack.c.l.b16 %v2635
        %v2697 = vunpack.c.l.b16 %v2636
        %v2698 = vunpack.c.l.b16 %v2637
        %v2699 = vunpack.c.l.b16 %v2638
        %v2700 = vunpack.c.l.b16 %v2639
        %v2701 = vunpack.c.l.b16 %v2640
        %v2702 = vunpack.c.l.b16 %v2641
        %v2703 = vunpack.c.l.b16 %v2642
        %v2704 = vunpack.c.l.b16 %v2643
        %v2705 = vunpack.c.l.b16 %v2644
        %v2706 = vunpack.c.l.b16 %v2645
        %v2707 = vunpack.c.l.b16 %v2646
        %v2708 = vunpack.c.l.b16 %v2647
        %v2709 = vunpack.c.l.b16 %v2648
        %v2710 = vunpack.c.l.b16 %v2649
        %v2711 = vunpack.c.l.b16 %v2650
        %v2712 = vpack.c.b16 %v2697, %v2696
        %v2713 = vpack.c.b16 %v2699, %v2698
        %v2714 = vpack.c.b16 %v2701, %v2700
        %v2715 = vpack.c.b16 %v2703, %v2702
        %v2716 = vpack.c.b16 %v2705, %v2704
        %v2717 = vpack.c.b16 %v2707, %v2706
        %v2718 = vpack.c.b16 %v2709, %v2708
        %v2719 = vpack.c.b16 %v2711, %v2710
        %2728 = vmatprep.subr.bf16.mxu0 0
        %2729 = vmatpush1.bf16.msra.mxu0 %v2719
        %2730 = vmatprep.subr.bf16.mxu0 0
        %2731 = vmatpush1.bf16.msra.mxu0 %v2718
        %2732 = vmatprep.subr.bf16.mxu0 0
        %2733 = vmatpush1.bf16.msra.mxu0 %v2717
        %2734 = vmatprep.subr.bf16.mxu0 0
        %2735 = vmatpush1.bf16.msra.mxu0 %v2716
        %2736 = vmatprep.subr.bf16.mxu0 0
        %2737 = vmatpush1.bf16.msra.mxu0 %v2715
        %2738 = vmatprep.subr.bf16.mxu0 0
        %2739 = vmatpush1.bf16.msra.mxu0 %v2714
        %2740 = vmatprep.subr.bf16.mxu0 0
        %2741 = vmatpush1.bf16.msra.mxu0 %v2713
        %2742 = vmatprep.subr.bf16.mxu0 0
        %2743 = vmatpush1.bf16.msra.mxu0 %v2712
        %2744 = vmatprep.subr.bf16.mxu0 0
        %2745 = vmatpush2.bf16.msra.mxu0 0
        %2746 = vmatprep.subr.bf16.mxu0 0
        %2747 = vmatpush2.bf16.msra.mxu0 0
        %2748 = vmatprep.subr.bf16.mxu0 0
        %2749 = vmatpush2.bf16.msra.mxu0 0
        %2750 = vmatprep.subr.bf16.mxu0 0
        %2751 = vmatpush2.bf16.msra.mxu0 0
        %2752 = vmatprep.subr.bf16.mxu0 0
        %2753 = vmatpush2.bf16.msra.mxu0 0
        %2754 = vmatprep.subr.bf16.mxu0 0
        %2755 = vmatpush2.bf16.msra.mxu0 0
        %2756 = vmatprep.subr.bf16.mxu0 0
        %2757 = vmatpush2.bf16.msra.mxu0 0
        %2758 = vmatprep.subr.bf16.mxu0 0
        %2759 = vmatpush2.bf16.msra.mxu0 0
        %2760 = vmatprep.mubr.bf16.mxu0 0
        %2761 = vmatmul.mubr.bf16.gmra.mxu0 %v2654
        %v2762 = vpop.f32.mrf.mxu0
        %v2763 = vadd.f32 0.0, %v2762
        %v2764 = vpop.f32.mrf.mxu0
        %v2765 = vpop.f32.mrf.mxu0
        %v2766 = vadd.f32 0.0, %v2765
        %v2767 = vpop.f32.mrf.mxu0
        %2768 = vmatprep.mubr.bf16.mxu0 0
        %2769 = vmatmul.mubr.bf16.gmra.mxu0 %v2656
        %v2770 = vpop.f32.mrf.mxu0
        %v2771 = vadd.f32 0.0, %v2770
        %v2772 = vpop.f32.mrf.mxu0
        %v2773 = vpop.f32.mrf.mxu0
        %v2774 = vadd.f32 0.0, %v2773
        %v2775 = vpop.f32.mrf.mxu0
        %2776 = vmatprep.mubr.bf16.mxu0 0
        %2777 = vmatmul.mubr.bf16.gmra.mxu0 %v2658
        %v2778 = vpop.f32.mrf.mxu0
        %v2779 = vadd.f32 0.0, %v2778
        %v2780 = vpop.f32.mrf.mxu0
        %v2781 = vpop.f32.mrf.mxu0
        %v2782 = vadd.f32 0.0, %v2781
        %v2783 = vpop.f32.mrf.mxu0
        %2784 = vmatprep.mubr.bf16.mxu0 0
        %2785 = vmatmul.mubr.bf16.gmra.mxu0 %v2660
        %v2786 = vpop.f32.mrf.mxu0
        %v2787 = vadd.f32 0.0, %v2786
        %v2788 = vpop.f32.mrf.mxu0
        %v2789 = vpop.f32.mrf.mxu0
        %v2790 = vadd.f32 0.0, %v2789
        %v2791 = vpop.f32.mrf.mxu0
        %2792 = vmatprep.mubr.bf16.mxu0 0
        %2793 = vmatmul.mubr.bf16.gmra.mxu0 %v2662
        %v2794 = vpop.f32.mrf.mxu0
        %v2795 = vadd.f32 0.0, %v2794
        %v2796 = vpop.f32.mrf.mxu0
        %v2797 = vpop.f32.mrf.mxu0
        %v2798 = vadd.f32 0.0, %v2797
        %v2799 = vpop.f32.mrf.mxu0
        %2800 = vmatprep.mubr.bf16.mxu0 0
        %2801 = vmatmul.mubr.bf16.gmra.mxu0 %v2664
        %v2802 = vpop.f32.mrf.mxu0
        %v2803 = vadd.f32 0.0, %v2802
        %v2804 = vpop.f32.mrf.mxu0
        %v2805 = vpop.f32.mrf.mxu0
        %v2806 = vadd.f32 0.0, %v2805
        %v2807 = vpop.f32.mrf.mxu0
        %2808 = vmatprep.mubr.bf16.mxu0 0
        %2809 = vmatmul.mubr.bf16.gmra.mxu0 %v2666
        %v2810 = vpop.f32.mrf.mxu0
        %v2811 = vadd.f32 0.0, %v2810
        %v2812 = vpop.f32.mrf.mxu0
        %v2813 = vpop.f32.mrf.mxu0
        %v2814 = vadd.f32 0.0, %v2813
        %v2815 = vpop.f32.mrf.mxu0
        %2816 = vmatprep.mubr.bf16.mxu0 0
        %2817 = vmatmul.mubr.bf16.gmra.mxu0 %v2668
        %v2818 = vpop.f32.mrf.mxu0
        %v2819 = vadd.f32 0.0, %v2818
        %v2820 = vpop.f32.mrf.mxu0
        %v2821 = vpop.f32.mrf.mxu0
        %v2822 = vadd.f32 0.0, %v2821
        %v2823 = vpop.f32.mrf.mxu0
        %2824 = vmatprep.mubr.bf16.mxu0 0
        %2825 = vmatmul.mubr.bf16.gmra.mxu0 %v2670
        %v2826 = vpop.f32.mrf.mxu0
        %v2827 = vadd.f32 0.0, %v2826
        %v2828 = vpop.f32.mrf.mxu0
        %v2829 = vpop.f32.mrf.mxu0
        %v2830 = vadd.f32 0.0, %v2829
        %v2831 = vpop.f32.mrf.mxu0
        %2832 = vdwg.mxu0
        %v2833 = vadd.f32 %v2616, %v2763
        %v2834 = vadd.f32 %v2617, %v2766
        %v2835 = vadd.f32 %v2618, %v2771
        %v2836 = vadd.f32 %v2619, %v2774
        %v2837 = vadd.f32 %v2620, %v2779
        %v2838 = vadd.f32 %v2621, %v2782
        %v2839 = vadd.f32 %v2622, %v2787
        %v2840 = vadd.f32 %v2623, %v2790
        %v2841 = vadd.f32 %v2624, %v2795
        %v2842 = vadd.f32 %v2625, %v2798
        %v2843 = vadd.f32 %v2626, %v2803
        %v2844 = vadd.f32 %v2627, %v2806
        %v2845 = vadd.f32 %v2628, %v2811
        %v2846 = vadd.f32 %v2629, %v2814
        %v2847 = vadd.f32 %v2630, %v2819
        %v2848 = vadd.f32 %v2631, %v2822
        %v2849 = vadd.f32 %v2632, %v2827
        %v2850 = vadd.f32 %v2633, %v2830
        %s2851 = scalar_lea.vmem %s3, 384
        %v2852 = vld [vmem:[%s2851] sm:$0xf]
        %v2853 = vld [vmem:[%s2851 + $0x4] sm:$0xf]
        %v2854 = vld [vmem:[%s2851 + $0x8] sm:$0xf]
        %v2855 = vld [vmem:[%s2851 + $0xc] sm:$0xf]
        %v2856 = vld [vmem:[%s2851 + $0x10] sm:$0xf]
        %v2857 = vld [vmem:[%s2851 + $0x14] sm:$0xf]
        %v2858 = vld [vmem:[%s2851 + $0x18] sm:$0xf]
        %v2859 = vld [vmem:[%s2851 + $0x1c] sm:$0xf]
        %v2860 = vld [vmem:[%s2851 + $0x20] sm:$0xf]
        %v2861 = vld [vmem:[%s2851 + $0x24] sm:$0xf]
        %v2862 = vld [vmem:[%s2851 + $0x28] sm:$0xf]
        %v2863 = vld [vmem:[%s2851 + $0x2c] sm:$0xf]
        %v2864 = vld [vmem:[%s2851 + $0x30] sm:$0xf]
        %v2865 = vld [vmem:[%s2851 + $0x34] sm:$0xf]
        %v2866 = vld [vmem:[%s2851 + $0x38] sm:$0xf]
        %v2867 = vld [vmem:[%s2851 + $0x3c] sm:$0xf]
        %v2884 = vunpack.c.l.b16 %v2852
        %v2885 = vunpack.c.l.b16 %v2853
        %v2886 = vunpack.c.l.b16 %v2854
        %v2887 = vunpack.c.l.b16 %v2855
        %v2888 = vunpack.c.l.b16 %v2856
        %v2889 = vunpack.c.l.b16 %v2857
        %v2890 = vunpack.c.l.b16 %v2858
        %v2891 = vunpack.c.l.b16 %v2859
        %v2892 = vunpack.c.l.b16 %v2860
        %v2893 = vunpack.c.l.b16 %v2861
        %v2894 = vunpack.c.l.b16 %v2862
        %v2895 = vunpack.c.l.b16 %v2863
        %v2896 = vunpack.c.l.b16 %v2864
        %v2897 = vunpack.c.l.b16 %v2865
        %v2898 = vunpack.c.l.b16 %v2866
        %v2899 = vunpack.c.l.b16 %v2867
        %v2900 = vpack.c.b16 %v2885, %v2884
        %v2901 = vpack.c.b16 %v2887, %v2886
        %v2902 = vpack.c.b16 %v2889, %v2888
        %v2903 = vpack.c.b16 %v2891, %v2890
        %v2904 = vpack.c.b16 %v2893, %v2892
        %v2905 = vpack.c.b16 %v2895, %v2894
        %v2906 = vpack.c.b16 %v2897, %v2896
        %v2907 = vpack.c.b16 %v2899, %v2898
        %2916 = vmatprep.subr.bf16.mxu0 0
        %2917 = vmatpush1.bf16.msra.mxu0 %v2907
        %2918 = vmatprep.subr.bf16.mxu0 0
        %2919 = vmatpush1.bf16.msra.mxu0 %v2906
        %2920 = vmatprep.subr.bf16.mxu0 0
        %2921 = vmatpush1.bf16.msra.mxu0 %v2905
        %2922 = vmatprep.subr.bf16.mxu0 0
        %2923 = vmatpush1.bf16.msra.mxu0 %v2904
        %2924 = vmatprep.subr.bf16.mxu0 0
        %2925 = vmatpush1.bf16.msra.mxu0 %v2903
        %2926 = vmatprep.subr.bf16.mxu0 0
        %2927 = vmatpush1.bf16.msra.mxu0 %v2902
        %2928 = vmatprep.subr.bf16.mxu0 0
        %2929 = vmatpush1.bf16.msra.mxu0 %v2901
        %2930 = vmatprep.subr.bf16.mxu0 0
        %2931 = vmatpush1.bf16.msra.mxu0 %v2900
        %2932 = vmatprep.subr.bf16.mxu0 0
        %2933 = vmatpush2.bf16.msra.mxu0 0
        %2934 = vmatprep.subr.bf16.mxu0 0
        %2935 = vmatpush2.bf16.msra.mxu0 0
        %2936 = vmatprep.subr.bf16.mxu0 0
        %2937 = vmatpush2.bf16.msra.mxu0 0
        %2938 = vmatprep.subr.bf16.mxu0 0
        %2939 = vmatpush2.bf16.msra.mxu0 0
        %2940 = vmatprep.subr.bf16.mxu0 0
        %2941 = vmatpush2.bf16.msra.mxu0 0
        %2942 = vmatprep.subr.bf16.mxu0 0
        %2943 = vmatpush2.bf16.msra.mxu0 0
        %2944 = vmatprep.subr.bf16.mxu0 0
        %2945 = vmatpush2.bf16.msra.mxu0 0
        %2946 = vmatprep.subr.bf16.mxu0 0
        %2947 = vmatpush2.bf16.msra.mxu0 0
        %2948 = vmatprep.mubr.bf16.mxu0 0
        %2949 = vmatmul.mubr.bf16.gmra.mxu0 %v2116
        %v2950 = vpop.f32.mrf.mxu0
        %v2951 = vadd.f32 0.0, %v2950
        %v2952 = vpop.f32.mrf.mxu0
        %v2953 = vpop.f32.mrf.mxu0
        %v2954 = vadd.f32 0.0, %v2953
        %v2955 = vpop.f32.mrf.mxu0
        %2956 = vmatprep.mubr.bf16.mxu0 0
        %2957 = vmatmul.mubr.bf16.gmra.mxu0 %v2117
        %v2958 = vpop.f32.mrf.mxu0
        %v2959 = vadd.f32 0.0, %v2958
        %v2960 = vpop.f32.mrf.mxu0
        %v2961 = vpop.f32.mrf.mxu0
        %v2962 = vadd.f32 0.0, %v2961
        %v2963 = vpop.f32.mrf.mxu0
        %2964 = vmatprep.mubr.bf16.mxu0 0
        %2965 = vmatmul.mubr.bf16.gmra.mxu0 %v2118
        %v2966 = vpop.f32.mrf.mxu0
        %v2967 = vadd.f32 0.0, %v2966
        %v2968 = vpop.f32.mrf.mxu0
        %v2969 = vpop.f32.mrf.mxu0
        %v2970 = vadd.f32 0.0, %v2969
        %v2971 = vpop.f32.mrf.mxu0
        %2972 = vmatprep.mubr.bf16.mxu0 0
        %2973 = vmatmul.mubr.bf16.gmra.mxu0 %v2119
        %v2974 = vpop.f32.mrf.mxu0
        %v2975 = vadd.f32 0.0, %v2974
        %v2976 = vpop.f32.mrf.mxu0
        %v2977 = vpop.f32.mrf.mxu0
        %v2978 = vadd.f32 0.0, %v2977
        %v2979 = vpop.f32.mrf.mxu0
        %2980 = vmatprep.mubr.bf16.mxu0 0
        %2981 = vmatmul.mubr.bf16.gmra.mxu0 %v2120
        %v2982 = vpop.f32.mrf.mxu0
        %v2983 = vadd.f32 0.0, %v2982
        %v2984 = vpop.f32.mrf.mxu0
        %v2985 = vpop.f32.mrf.mxu0
        %v2986 = vadd.f32 0.0, %v2985
        %v2987 = vpop.f32.mrf.mxu0
        %2988 = vmatprep.mubr.bf16.mxu0 0
        %2989 = vmatmul.mubr.bf16.gmra.mxu0 %v2121
        %v2990 = vpop.f32.mrf.mxu0
        %v2991 = vadd.f32 0.0, %v2990
        %v2992 = vpop.f32.mrf.mxu0
        %v2993 = vpop.f32.mrf.mxu0
        %v2994 = vadd.f32 0.0, %v2993
        %v2995 = vpop.f32.mrf.mxu0
        %2996 = vmatprep.mubr.bf16.mxu0 0
        %2997 = vmatmul.mubr.bf16.gmra.mxu0 %v2122
        %v2998 = vpop.f32.mrf.mxu0
        %v2999 = vadd.f32 0.0, %v2998
        %v3000 = vpop.f32.mrf.mxu0
        %v3001 = vpop.f32.mrf.mxu0
        %v3002 = vadd.f32 0.0, %v3001
        %v3003 = vpop.f32.mrf.mxu0
        %3004 = vmatprep.mubr.bf16.mxu0 0
        %3005 = vmatmul.mubr.bf16.gmra.mxu0 %v2123
        %v3006 = vpop.f32.mrf.mxu0
        %v3007 = vadd.f32 0.0, %v3006
        %v3008 = vpop.f32.mrf.mxu0
        %v3009 = vpop.f32.mrf.mxu0
        %v3010 = vadd.f32 0.0, %v3009
        %v3011 = vpop.f32.mrf.mxu0
        %3012 = vmatprep.mubr.bf16.mxu0 0
        %3013 = vmatmul.mubr.bf16.gmra.mxu0 %v1478
        %v3014 = vpop.f32.mrf.mxu0
        %v3015 = vadd.f32 0.0, %v3014
        %v3016 = vpop.f32.mrf.mxu0
        %v3017 = vpop.f32.mrf.mxu0
        %v3018 = vadd.f32 0.0, %v3017
        %v3019 = vpop.f32.mrf.mxu0
        %3020 = vdwg.mxu0
        %v3021 = vadd.f32 %v2833, %v2951
        %v3022 = vadd.f32 %v2834, %v2954
        %v3023 = vadd.f32 %v2835, %v2959
        %v3024 = vadd.f32 %v2836, %v2962
        %v3025 = vadd.f32 %v2837, %v2967
        %v3026 = vadd.f32 %v2838, %v2970
        %v3027 = vadd.f32 %v2839, %v2975
        %v3028 = vadd.f32 %v2840, %v2978
        %v3029 = vadd.f32 %v2841, %v2983
        %v3030 = vadd.f32 %v2842, %v2986
        %v3031 = vadd.f32 %v2843, %v2991
        %v3032 = vadd.f32 %v2844, %v2994
        %v3033 = vadd.f32 %v2845, %v2999
        %v3034 = vadd.f32 %v2846, %v3002
        %v3035 = vadd.f32 %v2847, %v3007
        %v3036 = vadd.f32 %v2848, %v3010
        %v3037 = vadd.f32 %v2849, %v3015
        %v3038 = vadd.f32 %v2850, %v3018
        %s3039 = scalar_lea.vmem %s3, 448
        %v3040 = vld [vmem:[%s3039] sm:$0xf]
        %v3041 = vld [vmem:[%s3039 + $0x4] sm:$0xf]
        %v3042 = vld [vmem:[%s3039 + $0x8] sm:$0xf]
        %v3043 = vld [vmem:[%s3039 + $0xc] sm:$0xf]
        %v3044 = vld [vmem:[%s3039 + $0x10] sm:$0xf]
        %v3045 = vld [vmem:[%s3039 + $0x14] sm:$0xf]
        %v3046 = vld [vmem:[%s3039 + $0x18] sm:$0xf]
        %v3047 = vld [vmem:[%s3039 + $0x1c] sm:$0xf]
        %v3048 = vld [vmem:[%s3039 + $0x20] sm:$0xf]
        %v3049 = vld [vmem:[%s3039 + $0x24] sm:$0xf]
        %v3050 = vld [vmem:[%s3039 + $0x28] sm:$0xf]
        %v3051 = vld [vmem:[%s3039 + $0x2c] sm:$0xf]
        %v3052 = vld [vmem:[%s3039 + $0x30] sm:$0xf]
        %v3053 = vld [vmem:[%s3039 + $0x34] sm:$0xf]
        %v3054 = vld [vmem:[%s3039 + $0x38] sm:$0xf]
        %v3055 = vld [vmem:[%s3039 + $0x3c] sm:$0xf]
        %v3056 = vrot.slane %v2380, 1
        %v3057 = vor.u32 %v2377, %v3056
        %v3058 = vrot.slane %v2389, 1
        %v3059 = vsel %vm1496, %v3057, %v3058
        %v3060 = vor.u32 %v2386, %v3058
        %v3061 = vrot.slane %v2398, 1
        %v3062 = vsel %vm1496, %v3060, %v3061
        %v3063 = vor.u32 %v2395, %v3061
        %v3064 = vrot.slane %v2407, 1
        %v3065 = vsel %vm1496, %v3063, %v3064
        %v3066 = vor.u32 %v2404, %v3064
        %v3067 = vrot.slane %v2416, 1
        %v3068 = vsel %vm1496, %v3066, %v3067
        %v3069 = vor.u32 %v2413, %v3067
        %v3070 = vrot.slane %v2425, 1
        %v3071 = vsel %vm1496, %v3069, %v3070
        %v3072 = vor.u32 %v2422, %v3070
        %v3073 = vrot.slane %v2434, 1
        %v3074 = vsel %vm1496, %v3072, %v3073
        %v3075 = vor.u32 %v2431, %v3073
        %v3076 = vrot.slane %v2443, 1
        %v3077 = vsel %vm1496, %v3075, %v3076
        %v3078 = vor.u32 %v2440, %v3076
        %v3079 = vsel %vm1496, %v3078, %v1571
        %v3080 = vor.u32 %v2448, %v1571
        %v3081 = vsel %vm1496, %v3080, %v1571
        %v3107 = vunpack.c.l.b16 %v3040
        %v3108 = vunpack.c.l.b16 %v3041
        %v3109 = vunpack.c.l.b16 %v3042
        %v3110 = vunpack.c.l.b16 %v3043
        %v3111 = vunpack.c.l.b16 %v3044
        %v3112 = vunpack.c.l.b16 %v3045
        %v3113 = vunpack.c.l.b16 %v3046
        %v3114 = vunpack.c.l.b16 %v3047
        %v3115 = vunpack.c.l.b16 %v3048
        %v3116 = vunpack.c.l.b16 %v3049
        %v3117 = vunpack.c.l.b16 %v3050
        %v3118 = vunpack.c.l.b16 %v3051
        %v3119 = vunpack.c.l.b16 %v3052
        %v3120 = vunpack.c.l.b16 %v3053
        %v3121 = vunpack.c.l.b16 %v3054
        %v3122 = vunpack.c.l.b16 %v3055
        %v3123 = vpack.c.b16 %v3108, %v3107
        %v3124 = vpack.c.b16 %v3110, %v3109
        %v3125 = vpack.c.b16 %v3112, %v3111
        %v3126 = vpack.c.b16 %v3114, %v3113
        %v3127 = vpack.c.b16 %v3116, %v3115
        %v3128 = vpack.c.b16 %v3118, %v3117
        %v3129 = vpack.c.b16 %v3120, %v3119
        %v3130 = vpack.c.b16 %v3122, %v3121
        %3139 = vmatprep.subr.bf16.mxu0 0
        %3140 = vmatpush1.bf16.msra.mxu0 %v3130
        %3141 = vmatprep.subr.bf16.mxu0 0
        %3142 = vmatpush1.bf16.msra.mxu0 %v3129
        %3143 = vmatprep.subr.bf16.mxu0 0
        %3144 = vmatpush1.bf16.msra.mxu0 %v3128
        %3145 = vmatprep.subr.bf16.mxu0 0
        %3146 = vmatpush1.bf16.msra.mxu0 %v3127
        %3147 = vmatprep.subr.bf16.mxu0 0
        %3148 = vmatpush1.bf16.msra.mxu0 %v3126
        %3149 = vmatprep.subr.bf16.mxu0 0
        %3150 = vmatpush1.bf16.msra.mxu0 %v3125
        %3151 = vmatprep.subr.bf16.mxu0 0
        %3152 = vmatpush1.bf16.msra.mxu0 %v3124
        %3153 = vmatprep.subr.bf16.mxu0 0
        %3154 = vmatpush1.bf16.msra.mxu0 %v3123
        %3155 = vmatprep.subr.bf16.mxu0 0
        %3156 = vmatpush2.bf16.msra.mxu0 0
        %3157 = vmatprep.subr.bf16.mxu0 0
        %3158 = vmatpush2.bf16.msra.mxu0 0
        %3159 = vmatprep.subr.bf16.mxu0 0
        %3160 = vmatpush2.bf16.msra.mxu0 0
        %3161 = vmatprep.subr.bf16.mxu0 0
        %3162 = vmatpush2.bf16.msra.mxu0 0
        %3163 = vmatprep.subr.bf16.mxu0 0
        %3164 = vmatpush2.bf16.msra.mxu0 0
        %3165 = vmatprep.subr.bf16.mxu0 0
        %3166 = vmatpush2.bf16.msra.mxu0 0
        %3167 = vmatprep.subr.bf16.mxu0 0
        %3168 = vmatpush2.bf16.msra.mxu0 0
        %3169 = vmatprep.subr.bf16.mxu0 0
        %3170 = vmatpush2.bf16.msra.mxu0 0
        %3171 = vmatprep.mubr.bf16.mxu0 0
        %3172 = vmatmul.mubr.bf16.gmra.mxu0 %v3059
        %v3173 = vpop.f32.mrf.mxu0
        %v3174 = vadd.f32 0.0, %v3173
        %v3175 = vpop.f32.mrf.mxu0
        %v3176 = vpop.f32.mrf.mxu0
        %v3177 = vadd.f32 0.0, %v3176
        %v3178 = vpop.f32.mrf.mxu0
        %3179 = vmatprep.mubr.bf16.mxu0 0
        %3180 = vmatmul.mubr.bf16.gmra.mxu0 %v3062
        %v3181 = vpop.f32.mrf.mxu0
        %v3182 = vadd.f32 0.0, %v3181
        %v3183 = vpop.f32.mrf.mxu0
        %v3184 = vpop.f32.mrf.mxu0
        %v3185 = vadd.f32 0.0, %v3184
        %v3186 = vpop.f32.mrf.mxu0
        %3187 = vmatprep.mubr.bf16.mxu0 0
        %3188 = vmatmul.mubr.bf16.gmra.mxu0 %v3065
        %v3189 = vpop.f32.mrf.mxu0
        %v3190 = vadd.f32 0.0, %v3189
        %v3191 = vpop.f32.mrf.mxu0
        %v3192 = vpop.f32.mrf.mxu0
        %v3193 = vadd.f32 0.0, %v3192
        %v3194 = vpop.f32.mrf.mxu0
        %3195 = vmatprep.mubr.bf16.mxu0 0
        %3196 = vmatmul.mubr.bf16.gmra.mxu0 %v3068
        %v3197 = vpop.f32.mrf.mxu0
        %v3198 = vadd.f32 0.0, %v3197
        %v3199 = vpop.f32.mrf.mxu0
        %v3200 = vpop.f32.mrf.mxu0
        %v3201 = vadd.f32 0.0, %v3200
        %v3202 = vpop.f32.mrf.mxu0
        %3203 = vmatprep.mubr.bf16.mxu0 0
        %3204 = vmatmul.mubr.bf16.gmra.mxu0 %v3071
        %v3205 = vpop.f32.mrf.mxu0
        %v3206 = vadd.f32 0.0, %v3205
        %v3207 = vpop.f32.mrf.mxu0
        %v3208 = vpop.f32.mrf.mxu0
        %v3209 = vadd.f32 0.0, %v3208
        %v3210 = vpop.f32.mrf.mxu0
        %3211 = vmatprep.mubr.bf16.mxu0 0
        %3212 = vmatmul.mubr.bf16.gmra.mxu0 %v3074
        %v3213 = vpop.f32.mrf.mxu0
        %v3214 = vadd.f32 0.0, %v3213
        %v3215 = vpop.f32.mrf.mxu0
        %v3216 = vpop.f32.mrf.mxu0
        %v3217 = vadd.f32 0.0, %v3216
        %v3218 = vpop.f32.mrf.mxu0
        %3219 = vmatprep.mubr.bf16.mxu0 0
        %3220 = vmatmul.mubr.bf16.gmra.mxu0 %v3077
        %v3221 = vpop.f32.mrf.mxu0
        %v3222 = vadd.f32 0.0, %v3221
        %v3223 = vpop.f32.mrf.mxu0
        %v3224 = vpop.f32.mrf.mxu0
        %v3225 = vadd.f32 0.0, %v3224
        %v3226 = vpop.f32.mrf.mxu0
        %3227 = vmatprep.mubr.bf16.mxu0 0
        %3228 = vmatmul.mubr.bf16.gmra.mxu0 %v3079
        %v3229 = vpop.f32.mrf.mxu0
        %v3230 = vadd.f32 0.0, %v3229
        %v3231 = vpop.f32.mrf.mxu0
        %v3232 = vpop.f32.mrf.mxu0
        %v3233 = vadd.f32 0.0, %v3232
        %v3234 = vpop.f32.mrf.mxu0
        %3235 = vmatprep.mubr.bf16.mxu0 0
        %3236 = vmatmul.mubr.bf16.gmra.mxu0 %v3081
        %v3237 = vpop.f32.mrf.mxu0
        %v3238 = vadd.f32 0.0, %v3237
        %v3239 = vpop.f32.mrf.mxu0
        %v3240 = vpop.f32.mrf.mxu0
        %v3241 = vadd.f32 0.0, %v3240
        %v3242 = vpop.f32.mrf.mxu0
        %3243 = vdwg.mxu0
        %v3244 = vadd.f32 %v3021, %v3174
        %v3245 = vadd.f32 %v3022, %v3177
        %v3246 = vadd.f32 %v3023, %v3182
        %v3247 = vadd.f32 %v3024, %v3185
        %v3248 = vadd.f32 %v3025, %v3190
        %v3249 = vadd.f32 %v3026, %v3193
        %v3250 = vadd.f32 %v3027, %v3198
        %v3251 = vadd.f32 %v3028, %v3201
        %v3252 = vadd.f32 %v3029, %v3206
        %v3253 = vadd.f32 %v3030, %v3209
        %v3254 = vadd.f32 %v3031, %v3214
        %v3255 = vadd.f32 %v3032, %v3217
        %v3256 = vadd.f32 %v3033, %v3222
        %v3257 = vadd.f32 %v3034, %v3225
        %v3258 = vadd.f32 %v3035, %v3230
        %v3259 = vadd.f32 %v3036, %v3233
        %v3260 = vadd.f32 %v3037, %v3238
        %v3261 = vadd.f32 %v3038, %v3241
        %s3262 = scalar_lea.vmem %s3, 512
        %v3263 = vld [vmem:[%s3262] sm:$0xf]
        %v3264 = vld [vmem:[%s3262 + $0x4] sm:$0xf]
        %v3265 = vld [vmem:[%s3262 + $0x8] sm:$0xf]
        %v3266 = vld [vmem:[%s3262 + $0xc] sm:$0xf]
        %v3267 = vld [vmem:[%s3262 + $0x10] sm:$0xf]
        %v3268 = vld [vmem:[%s3262 + $0x14] sm:$0xf]
        %v3269 = vld [vmem:[%s3262 + $0x18] sm:$0xf]
        %v3270 = vld [vmem:[%s3262 + $0x1c] sm:$0xf]
        %v3271 = vld [vmem:[%s3262 + $0x20] sm:$0xf]
        %v3272 = vld [vmem:[%s3262 + $0x24] sm:$0xf]
        %v3273 = vld [vmem:[%s3262 + $0x28] sm:$0xf]
        %v3274 = vld [vmem:[%s3262 + $0x2c] sm:$0xf]
        %v3275 = vld [vmem:[%s3262 + $0x30] sm:$0xf]
        %v3276 = vld [vmem:[%s3262 + $0x34] sm:$0xf]
        %v3277 = vld [vmem:[%s3262 + $0x38] sm:$0xf]
        %v3278 = vld [vmem:[%s3262 + $0x3c] sm:$0xf]
        %v3279 = vrot.slane %v2116, 1
        %v3280 = vrot.slane %v2117, 1
        %v3281 = vsel %vm1915, %v3279, %v3280
        %v3282 = vrot.slane %v2118, 1
        %v3283 = vsel %vm1915, %v3280, %v3282
        %v3284 = vrot.slane %v2119, 1
        %v3285 = vsel %vm1915, %v3282, %v3284
        %v3286 = vrot.slane %v2120, 1
        %v3287 = vsel %vm1915, %v3284, %v3286
        %v3288 = vrot.slane %v2121, 1
        %v3289 = vsel %vm1915, %v3286, %v3288
        %v3290 = vrot.slane %v2122, 1
        %v3291 = vsel %vm1915, %v3288, %v3290
        %v3292 = vrot.slane %v2123, 1
        %v3293 = vsel %vm1915, %v3290, %v3292
        %v3294 = vsel %vm1915, %v3292, %v1933
        %v3295 = vsel %vm1915, %v1933, %v1933
        %v3321 = vunpack.c.l.b16 %v3263
        %v3322 = vunpack.c.l.b16 %v3264
        %v3323 = vunpack.c.l.b16 %v3265
        %v3324 = vunpack.c.l.b16 %v3266
        %v3325 = vunpack.c.l.b16 %v3267
        %v3326 = vunpack.c.l.b16 %v3268
        %v3327 = vunpack.c.l.b16 %v3269
        %v3328 = vunpack.c.l.b16 %v3270
        %v3329 = vunpack.c.l.b16 %v3271
        %v3330 = vunpack.c.l.b16 %v3272
        %v3331 = vunpack.c.l.b16 %v3273
        %v3332 = vunpack.c.l.b16 %v3274
        %v3333 = vunpack.c.l.b16 %v3275
        %v3334 = vunpack.c.l.b16 %v3276
        %v3335 = vunpack.c.l.b16 %v3277
        %v3336 = vunpack.c.l.b16 %v3278
        %v3337 = vpack.c.b16 %v3322, %v3321
        %v3338 = vpack.c.b16 %v3324, %v3323
        %v3339 = vpack.c.b16 %v3326, %v3325
        %v3340 = vpack.c.b16 %v3328, %v3327
        %v3341 = vpack.c.b16 %v3330, %v3329
        %v3342 = vpack.c.b16 %v3332, %v3331
        %v3343 = vpack.c.b16 %v3334, %v3333
        %v3344 = vpack.c.b16 %v3336, %v3335
        %3353 = vmatprep.subr.bf16.mxu0 0
        %3354 = vmatpush1.bf16.msra.mxu0 %v3344
        %3355 = vmatprep.subr.bf16.mxu0 0
        %3356 = vmatpush1.bf16.msra.mxu0 %v3343
        %3357 = vmatprep.subr.bf16.mxu0 0
        %3358 = vmatpush1.bf16.msra.mxu0 %v3342
        %3359 = vmatprep.subr.bf16.mxu0 0
        %3360 = vmatpush1.bf16.msra.mxu0 %v3341
        %3361 = vmatprep.subr.bf16.mxu0 0
        %3362 = vmatpush1.bf16.msra.mxu0 %v3340
        %3363 = vmatprep.subr.bf16.mxu0 0
        %3364 = vmatpush1.bf16.msra.mxu0 %v3339
        %3365 = vmatprep.subr.bf16.mxu0 0
        %3366 = vmatpush1.bf16.msra.mxu0 %v3338
        %3367 = vmatprep.subr.bf16.mxu0 0
        %3368 = vmatpush1.bf16.msra.mxu0 %v3337
        %3369 = vmatprep.subr.bf16.mxu0 0
        %3370 = vmatpush2.bf16.msra.mxu0 0
        %3371 = vmatprep.subr.bf16.mxu0 0
        %3372 = vmatpush2.bf16.msra.mxu0 0
        %3373 = vmatprep.subr.bf16.mxu0 0
        %3374 = vmatpush2.bf16.msra.mxu0 0
        %3375 = vmatprep.subr.bf16.mxu0 0
        %3376 = vmatpush2.bf16.msra.mxu0 0
        %3377 = vmatprep.subr.bf16.mxu0 0
        %3378 = vmatpush2.bf16.msra.mxu0 0
        %3379 = vmatprep.subr.bf16.mxu0 0
        %3380 = vmatpush2.bf16.msra.mxu0 0
        %3381 = vmatprep.subr.bf16.mxu0 0
        %3382 = vmatpush2.bf16.msra.mxu0 0
        %3383 = vmatprep.subr.bf16.mxu0 0
        %3384 = vmatpush2.bf16.msra.mxu0 0
        %3385 = vmatprep.mubr.bf16.mxu0 0
        %3386 = vmatmul.mubr.bf16.gmra.mxu0 %v3281
        %v3387 = vpop.f32.mrf.mxu0
        %v3388 = vadd.f32 0.0, %v3387
        %v3389 = vpop.f32.mrf.mxu0
        %v3390 = vpop.f32.mrf.mxu0
        %v3391 = vadd.f32 0.0, %v3390
        %v3392 = vpop.f32.mrf.mxu0
        %3393 = vmatprep.mubr.bf16.mxu0 0
        %3394 = vmatmul.mubr.bf16.gmra.mxu0 %v3283
        %v3395 = vpop.f32.mrf.mxu0
        %v3396 = vadd.f32 0.0, %v3395
        %v3397 = vpop.f32.mrf.mxu0
        %v3398 = vpop.f32.mrf.mxu0
        %v3399 = vadd.f32 0.0, %v3398
        %v3400 = vpop.f32.mrf.mxu0
        %3401 = vmatprep.mubr.bf16.mxu0 0
        %3402 = vmatmul.mubr.bf16.gmra.mxu0 %v3285
        %v3403 = vpop.f32.mrf.mxu0
        %v3404 = vadd.f32 0.0, %v3403
        %v3405 = vpop.f32.mrf.mxu0
        %v3406 = vpop.f32.mrf.mxu0
        %v3407 = vadd.f32 0.0, %v3406
        %v3408 = vpop.f32.mrf.mxu0
        %3409 = vmatprep.mubr.bf16.mxu0 0
        %3410 = vmatmul.mubr.bf16.gmra.mxu0 %v3287
        %v3411 = vpop.f32.mrf.mxu0
        %v3412 = vadd.f32 0.0, %v3411
        %v3413 = vpop.f32.mrf.mxu0
        %v3414 = vpop.f32.mrf.mxu0
        %v3415 = vadd.f32 0.0, %v3414
        %v3416 = vpop.f32.mrf.mxu0
        %3417 = vmatprep.mubr.bf16.mxu0 0
        %3418 = vmatmul.mubr.bf16.gmra.mxu0 %v3289
        %v3419 = vpop.f32.mrf.mxu0
        %v3420 = vadd.f32 0.0, %v3419
        %v3421 = vpop.f32.mrf.mxu0
        %v3422 = vpop.f32.mrf.mxu0
        %v3423 = vadd.f32 0.0, %v3422
        %v3424 = vpop.f32.mrf.mxu0
        %3425 = vmatprep.mubr.bf16.mxu0 0
        %3426 = vmatmul.mubr.bf16.gmra.mxu0 %v3291
        %v3427 = vpop.f32.mrf.mxu0
        %v3428 = vadd.f32 0.0, %v3427
        %v3429 = vpop.f32.mrf.mxu0
        %v3430 = vpop.f32.mrf.mxu0
        %v3431 = vadd.f32 0.0, %v3430
        %v3432 = vpop.f32.mrf.mxu0
        %3433 = vmatprep.mubr.bf16.mxu0 0
        %3434 = vmatmul.mubr.bf16.gmra.mxu0 %v3293
        %v3435 = vpop.f32.mrf.mxu0
        %v3436 = vadd.f32 0.0, %v3435
        %v3437 = vpop.f32.mrf.mxu0
        %v3438 = vpop.f32.mrf.mxu0
        %v3439 = vadd.f32 0.0, %v3438
        %v3440 = vpop.f32.mrf.mxu0
        %3441 = vmatprep.mubr.bf16.mxu0 0
        %3442 = vmatmul.mubr.bf16.gmra.mxu0 %v3294
        %v3443 = vpop.f32.mrf.mxu0
        %v3444 = vadd.f32 0.0, %v3443
        %v3445 = vpop.f32.mrf.mxu0
        %v3446 = vpop.f32.mrf.mxu0
        %v3447 = vadd.f32 0.0, %v3446
        %v3448 = vpop.f32.mrf.mxu0
        %3449 = vmatprep.mubr.bf16.mxu0 0
        %3450 = vmatmul.mubr.bf16.gmra.mxu0 %v3295
        %v3451 = vpop.f32.mrf.mxu0
        %v3452 = vadd.f32 0.0, %v3451
        %v3453 = vpop.f32.mrf.mxu0
        %v3454 = vpop.f32.mrf.mxu0
        %v3455 = vadd.f32 0.0, %v3454
        %v3456 = vpop.f32.mrf.mxu0
        %3457 = vdwg.mxu0
        %v3458 = vadd.f32 %v3244, %v3388
        %v3459 = vadd.f32 %v3245, %v3391
        %v3460 = vadd.f32 %v3246, %v3396
        %v3461 = vadd.f32 %v3247, %v3399
        %v3462 = vadd.f32 %v3248, %v3404
        %v3463 = vadd.f32 %v3249, %v3407
        %v3464 = vadd.f32 %v3250, %v3412
        %v3465 = vadd.f32 %v3251, %v3415
        %v3466 = vadd.f32 %v3252, %v3420
        %v3467 = vadd.f32 %v3253, %v3423
        %v3468 = vadd.f32 %v3254, %v3428
        %v3469 = vadd.f32 %v3255, %v3431
        %v3470 = vadd.f32 %v3256, %v3436
        %v3471 = vadd.f32 %v3257, %v3439
        %v3472 = vadd.f32 %v3258, %v3444
        %v3473 = vadd.f32 %v3259, %v3447
        %v3474 = vadd.f32 %v3260, %v3452
        %v3475 = vadd.f32 %v3261, %v3455
        %v3476 = vld [vmem:[%s4] sm:$0x1]
        %v3478 = vlaneseq
        %v3479 = vshrl.u32 %v3478, 7
        %v3480 = vsub.s32 0, %v3479
        %v3481 = vrot.slane %v3476, %v3480
        %v3483 = vadd.f32 %v3458, %v3481
        %v3484 = vadd.f32 %v3459, %v3481
        %v3485 = vadd.f32 %v3460, %v3481
        %v3486 = vadd.f32 %v3461, %v3481
        %v3487 = vadd.f32 %v3462, %v3481
        %v3488 = vadd.f32 %v3463, %v3481
        %v3489 = vadd.f32 %v3464, %v3481
        %v3490 = vadd.f32 %v3465, %v3481
        %v3491 = vadd.f32 %v3466, %v3481
        %v3492 = vadd.f32 %v3467, %v3481
        %v3493 = vadd.f32 %v3468, %v3481
        %v3494 = vadd.f32 %v3469, %v3481
        %v3495 = vadd.f32 %v3470, %v3481
        %v3496 = vadd.f32 %v3471, %v3481
        %v3497 = vadd.f32 %v3472, %v3481
        %v3498 = vadd.f32 %v3473, %v3481
        %v3499 = vadd.f32 %v3474, %v3481
        %v3500 = vadd.f32 %v3475, %v3481
        %v3501 = vmax.f32 %v3483, 0.0
        %v3502 = vmax.f32 %v3484, 0.0
        %v3503 = vmax.f32 %v3485, 0.0
        %v3504 = vmax.f32 %v3486, 0.0
        %v3505 = vmax.f32 %v3487, 0.0
        %v3506 = vmax.f32 %v3488, 0.0
        %v3507 = vmax.f32 %v3489, 0.0
        %v3508 = vmax.f32 %v3490, 0.0
        %v3509 = vmax.f32 %v3491, 0.0
        %v3510 = vmax.f32 %v3492, 0.0
        %v3511 = vmax.f32 %v3493, 0.0
        %v3512 = vmax.f32 %v3494, 0.0
        %v3513 = vmax.f32 %v3495, 0.0
        %v3514 = vmax.f32 %v3496, 0.0
        %v3515 = vmax.f32 %v3497, 0.0
        %v3516 = vmax.f32 %v3498, 0.0
        %v3517 = vmax.f32 %v3499, 0.0
        %v3518 = vmax.f32 %v3500, 0.0
        %v3519 = vpack.c.bf16 %v3502, %v3501
        %v3520 = vpack.c.bf16 %v3504, %v3503
        %v3521 = vpack.c.bf16 %v3506, %v3505
        %v3522 = vpack.c.bf16 %v3508, %v3507
        %v3523 = vpack.c.bf16 %v3510, %v3509
        %v3524 = vpack.c.bf16 %v3512, %v3511
        %v3525 = vpack.c.bf16 %v3514, %v3513
        %v3526 = vpack.c.bf16 %v3516, %v3515
        %v3527 = vpack.c.bf16 %v3518, %v3517
        %v3537 = vunpack.c.l.b16 %v3519
        %v3538 = vunpack.c.h.b16 %v3519
        %v3539 = vunpack.c.l.b16 %v3520
        %v3540 = vunpack.c.h.b16 %v3520
        %v3541 = vunpack.c.l.b16 %v3521
        %v3542 = vunpack.c.h.b16 %v3521
        %v3543 = vunpack.c.l.b16 %v3522
        %v3544 = vunpack.c.h.b16 %v3522
        %v3545 = vunpack.c.l.b16 %v3523
        %v3546 = vunpack.c.h.b16 %v3523
        %v3547 = vunpack.c.l.b16 %v3524
        %v3548 = vunpack.c.h.b16 %v3524
        %v3549 = vunpack.c.l.b16 %v3525
        %v3550 = vunpack.c.h.b16 %v3525
        %v3551 = vunpack.c.l.b16 %v3526
        %v3552 = vunpack.c.h.b16 %v3526
        %v3553 = vunpack.c.l.b16 %v3527
        %v3554 = vunpack.c.h.b16 %v3527
        %v3555 = vpack.c.b16 %v3537, %v3537
        %v3556 = vpack.c.b16 %v3538, %v3538
        %v3557 = vpack.c.b16 %v3539, %v3539
        %v3558 = vpack.c.b16 %v3540, %v3540
        %v3559 = vpack.c.b16 %v3541, %v3541
        %v3560 = vpack.c.b16 %v3542, %v3542
        %v3561 = vpack.c.b16 %v3543, %v3543
        %v3562 = vpack.c.b16 %v3544, %v3544
        %v3563 = vpack.c.b16 %v3545, %v3545
        %v3564 = vpack.c.b16 %v3546, %v3546
        %v3565 = vpack.c.b16 %v3547, %v3547
        %v3566 = vpack.c.b16 %v3548, %v3548
        %v3567 = vpack.c.b16 %v3549, %v3549
        %v3568 = vpack.c.b16 %v3550, %v3550
        %v3569 = vpack.c.b16 %v3551, %v3551
        %v3570 = vpack.c.b16 %v3552, %v3552
        %v3571 = vpack.c.b16 %v3553, %v3553
        %v3572 = vpack.c.b16 %v3554, %v3554
        %3591 = vst [vmem:[%s553] sm:$0xf] %v3555
        %3592 = vst [vmem:[%s553 + $0x4] sm:$0xf] %v3556
        %3593 = vst [vmem:[%s553 + $0x8] sm:$0xf] %v3557
        %3594 = vst [vmem:[%s553 + $0xc] sm:$0xf] %v3558
        %3595 = vst [vmem:[%s553 + $0x10] sm:$0xf] %v3559
        %3596 = vst [vmem:[%s553 + $0x14] sm:$0xf] %v3560
        %3597 = vst [vmem:[%s553 + $0x18] sm:$0xf] %v3561
        %3598 = vst [vmem:[%s553 + $0x1c] sm:$0xf] %v3562
        %3599 = vst [vmem:[%s553 + $0x20] sm:$0xf] %v3563
        %3600 = vst [vmem:[%s553 + $0x24] sm:$0xf] %v3564
        %3601 = vst [vmem:[%s553 + $0x28] sm:$0xf] %v3565
        %3602 = vst [vmem:[%s553 + $0x2c] sm:$0xf] %v3566
        %3603 = vst [vmem:[%s553 + $0x30] sm:$0xf] %v3567
        %3604 = vst [vmem:[%s553 + $0x34] sm:$0xf] %v3568
        %3605 = vst [vmem:[%s553 + $0x38] sm:$0xf] %v3569
        %3606 = vst [vmem:[%s553 + $0x3c] sm:$0xf] %v3570
        %3607 = vst [vmem:[%s553 + $0x40] sm:$0xf] %v3571
        %3608 = vst [vmem:[%s553 + $0x44] sm:$0xf] %v3572
        %s3609 = smul.u32 18, %s16
        %p3610 = scmp.lt.s32.totalorder %s3609, 35
        %s3611 = scalar_select %p3610, %s3609, 35
        %s3612 = smul.addr %s3611, 4
        %s3613 = scalar_lea.vmem %s5, %s3612
        // Predicated region
        $region82: #{convnet_forward.2} parent=76 // pred_check
          %p3614 = pneg %p144
        $region83: #{convnet_forward.2} parent=76 // pred_check_branch
          %3616 = sbr.rel (%p3614) target = $region85
        $region84: #{convnet_forward.2} parent=76 // pred_region
          %s3617 = smul.u32 18, %s16
        $region85: #{convnet_forward.2} parent=76 // pred_fallthru
          _
      $region77: #{convnet_forward.2} parent=5 // pred_fallthru
        _
      %p3618 = scmp.le.s32.totalorder 2, %s11
      // Predicated region
      $region86: #{convnet_forward.2} parent=5 // pred_check
        %p3619 = pneg %p3618
      $region87: #{convnet_forward.2} parent=5 // pred_check_branch
        %3621 = sbr.rel (%p3619) target = $region89
      $region88: #{convnet_forward.2} parent=5 // pred_region
        %s3622 = ssub.s32 %s11, 2
        // Predicated region
        $region90: #{convnet_forward.2} parent=88 // pred_check
          %p3623 = pneg %p150
        $region91: #{convnet_forward.2} parent=88 // pred_check_branch
          %3625 = sbr.rel (%p3623) target = $region93
        $region92: #{convnet_forward.2} parent=88 // pred_region
          %s3626 = smul.u32 18, %s17
          %p3627 = scmp.lt.s32.totalorder %s3626, 35
          %s3628 = scalar_select %p3627, %s3626, 35
          %s3629 = smul.addr %s3628, 4
          %s3630 = scalar_lea.vmem %s5, %s3629
        $region93: #{convnet_forward.2} parent=88 // pred_fallthru
          _
      $region89: #{convnet_forward.2} parent=5 // pred_fallthru
        _
    $region6: #{convnet_forward.2} parent=1 // loop_footer
      %s15 = sadd.s32 1, %s11
    $region7: #{convnet_forward.2} parent=1 // loop_footer_branch
      %10 = sbr.rel target = $region3
    $region8: #{convnet_forward.2} parent=1 // loop_exit
      _

// kernel: convnet_forward.3
$region0: #{convnet_forward.3}
  #allocation0 [shape = 'u32[]', space=smem, size = 0x4, offset = 0x4, fixed_abs, tag = 'smem constant byte address 0x4 - core index']
  #allocation1 [shape = 'u32[144,128]{1,0:T(1,128)}', space=vmem, size = 0x12000, scoped, tag = 'internal scratch']
  %s0 = inlined_call_operand.vmem [shape: bf16[8,2048], index: 0, kind: input, shape index: {}]
  %s1 = inlined_call_operand.vmem [shape: bf16[2048,512], index: 1, kind: input, shape index: {}]
  %s2 = inlined_call_operand.vmem [shape: f32[1,512], index: 2, kind: input, shape index: {}]
  %s3 = inlined_call_operand.vmem [shape: bf16[512,128], index: 3, kind: input, shape index: {}]
  %s4 = inlined_call_operand.vmem [shape: f32[1,128], index: 4, kind: input, shape index: {}]
  %s5 = inlined_call_operand.vmem [shape: f32[8,128], index: 5, kind: output, shape index: {}]
  %s6 = sld [smem:[#allocation0]]
  $region30: #{convnet_forward.3} parent=0
    _
  %s8 = ssub.s32 1, %s6
  %s9 = scalar_select 0, %s8, %s6
  // Predicated region
  $region2: #{convnet_forward.3} parent=0 // pred_check
    _
  $region3: #{convnet_forward.3} parent=0 // pred_check_branch
    %11 = sbr.rel (0) target = $region5
  $region4: #{convnet_forward.3} parent=0 // pred_region
    _
  $region5: #{convnet_forward.3} parent=0 // pred_fallthru
    _
  // Predicated region
  $region6: #{convnet_forward.3} parent=0 // pred_check
    _
  $region7: #{convnet_forward.3} parent=0 // pred_check_branch
    %13 = sbr.rel (0) target = $region9
  $region8: #{convnet_forward.3} parent=0 // pred_region
    _
  $region9: #{convnet_forward.3} parent=0 // pred_fallthru
    _
  // Predicated region
  $region10: #{convnet_forward.3} parent=0 // pred_check
    _
  $region11: #{convnet_forward.3} parent=0 // pred_check_branch
    %15 = sbr.rel (0) target = $region13
  $region12: #{convnet_forward.3} parent=0 // pred_region
    _
  $region13: #{convnet_forward.3} parent=0 // pred_fallthru
    _
  // Predicated region
  $region14: #{convnet_forward.3} parent=0 // pred_check
    _
  $region15: #{convnet_forward.3} parent=0 // pred_check_branch
    %17 = sbr.rel (0) target = $region17
  $region16: #{convnet_forward.3} parent=0 // pred_region
    _
  $region17: #{convnet_forward.3} parent=0 // pred_fallthru
    _
  // Predicated region
  $region18: #{convnet_forward.3} parent=0 // pred_check
    _
  $region19: #{convnet_forward.3} parent=0 // pred_check_branch
    %19 = sbr.rel (0) target = $region21
  $region20: #{convnet_forward.3} parent=0 // pred_region
    _
  $region21: #{convnet_forward.3} parent=0 // pred_fallthru
    _
  %v21 = vld [vmem:[%s0] sm:$0xff]
  %v22 = vld [vmem:[%s0 + $0x8] sm:$0xff]
  %v23 = vld [vmem:[%s0 + $0x10] sm:$0xff]
  %v24 = vld [vmem:[%s0 + $0x18] sm:$0xff]
  %v25 = vld [vmem:[%s0 + $0x20] sm:$0xff]
  %v26 = vld [vmem:[%s0 + $0x28] sm:$0xff]
  %v27 = vld [vmem:[%s0 + $0x30] sm:$0xff]
  %v28 = vld [vmem:[%s0 + $0x38] sm:$0xff]
  %v29 = vld [vmem:[%s1] sm:$0xff]
  %v30 = vld [vmem:[%s1 + $0x8] sm:$0xff]
  %v31 = vld [vmem:[%s1 + $0x10] sm:$0xff]
  %v32 = vld [vmem:[%s1 + $0x18] sm:$0xff]
  %v33 = vld [vmem:[%s1 + $0x20] sm:$0xff]
  %v34 = vld [vmem:[%s1 + $0x28] sm:$0xff]
  %v35 = vld [vmem:[%s1 + $0x30] sm:$0xff]
  %v36 = vld [vmem:[%s1 + $0x38] sm:$0xff]
  %v37 = vld [vmem:[%s1 + $0x40] sm:$0xff]
  %v38 = vld [vmem:[%s1 + $0x48] sm:$0xff]
  %v39 = vld [vmem:[%s1 + $0x50] sm:$0xff]
  %v40 = vld [vmem:[%s1 + $0x58] sm:$0xff]
  %v41 = vld [vmem:[%s1 + $0x60] sm:$0xff]
  %v42 = vld [vmem:[%s1 + $0x68] sm:$0xff]
  %v43 = vld [vmem:[%s1 + $0x70] sm:$0xff]
  %v44 = vld [vmem:[%s1 + $0x78] sm:$0xff]
  %v45 = vld [vmem:[%s1 + $0x80] sm:$0xff]
  %v46 = vld [vmem:[%s1 + $0x88] sm:$0xff]
  %v47 = vld [vmem:[%s1 + $0x90] sm:$0xff]
  %v48 = vld [vmem:[%s1 + $0x98] sm:$0xff]
  %v49 = vld [vmem:[%s1 + $0xa0] sm:$0xff]
  %v50 = vld [vmem:[%s1 + $0xa8] sm:$0xff]
  %v51 = vld [vmem:[%s1 + $0xb0] sm:$0xff]
  %v52 = vld [vmem:[%s1 + $0xb8] sm:$0xff]
  %v53 = vld [vmem:[%s1 + $0xc0] sm:$0xff]
  %v54 = vld [vmem:[%s1 + $0xc8] sm:$0xff]
  %v55 = vld [vmem:[%s1 + $0xd0] sm:$0xff]
  %v56 = vld [vmem:[%s1 + $0xd8] sm:$0xff]
  %v57 = vld [vmem:[%s1 + $0xe0] sm:$0xff]
  %v58 = vld [vmem:[%s1 + $0xe8] sm:$0xff]
  %v59 = vld [vmem:[%s1 + $0xf0] sm:$0xff]
  %v60 = vld [vmem:[%s1 + $0xf8] sm:$0xff]
  %v61 = vld [vmem:[%s1 + $0x100] sm:$0xff]
  %v62 = vld [vmem:[%s1 + $0x108] sm:$0xff]
  %v63 = vld [vmem:[%s1 + $0x110] sm:$0xff]
  %v64 = vld [vmem:[%s1 + $0x118] sm:$0xff]
  %v65 = vld [vmem:[%s1 + $0x120] sm:$0xff]
  %v66 = vld [vmem:[%s1 + $0x128] sm:$0xff]
  %v67 = vld [vmem:[%s1 + $0x130] sm:$0xff]
  %v68 = vld [vmem:[%s1 + $0x138] sm:$0xff]
  %v69 = vld [vmem:[%s1 + $0x140] sm:$0xff]
  %v70 = vld [vmem:[%s1 + $0x148] sm:$0xff]
  %v71 = vld [vmem:[%s1 + $0x150] sm:$0xff]
  %v72 = vld [vmem:[%s1 + $0x158] sm:$0xff]
  %v73 = vld [vmem:[%s1 + $0x160] sm:$0xff]
  %v74 = vld [vmem:[%s1 + $0x168] sm:$0xff]
  %v75 = vld [vmem:[%s1 + $0x170] sm:$0xff]
  %v76 = vld [vmem:[%s1 + $0x178] sm:$0xff]
  %v77 = vld [vmem:[%s1 + $0x180] sm:$0xff]
  %v78 = vld [vmem:[%s1 + $0x188] sm:$0xff]
  %v79 = vld [vmem:[%s1 + $0x190] sm:$0xff]
  %v80 = vld [vmem:[%s1 + $0x198] sm:$0xff]
  %v81 = vld [vmem:[%s1 + $0x1a0] sm:$0xff]
  %v82 = vld [vmem:[%s1 + $0x1a8] sm:$0xff]
  %v83 = vld [vmem:[%s1 + $0x1b0] sm:$0xff]
  %v84 = vld [vmem:[%s1 + $0x1b8] sm:$0xff]
  %v85 = vld [vmem:[%s1 + $0x1c0] sm:$0xff]
  %v86 = vld [vmem:[%s1 + $0x1c8] sm:$0xff]
  %v87 = vld [vmem:[%s1 + $0x1d0] sm:$0xff]
  %v88 = vld [vmem:[%s1 + $0x1d8] sm:$0xff]
  %v89 = vld [vmem:[%s1 + $0x1e0] sm:$0xff]
  %v90 = vld [vmem:[%s1 + $0x1e8] sm:$0xff]
  %v91 = vld [vmem:[%s1 + $0x1f0] sm:$0xff]
  %v92 = vld [vmem:[%s1 + $0x1f8] sm:$0xff]
  %v93 = vld [vmem:[%s1 + $0x200] sm:$0xff]
  %v94 = vld [vmem:[%s1 + $0x208] sm:$0xff]
  %v95 = vld [vmem:[%s1 + $0x210] sm:$0xff]
  %v96 = vld [vmem:[%s1 + $0x218] sm:$0xff]
  %v97 = vld [vmem:[%s1 + $0x220] sm:$0xff]
  %v98 = vld [vmem:[%s1 + $0x228] sm:$0xff]
  %v99 = vld [vmem:[%s1 + $0x230] sm:$0xff]
  %v100 = vld [vmem:[%s1 + $0x238] sm:$0xff]
  %v101 = vld [vmem:[%s1 + $0x240] sm:$0xff]
  %v102 = vld [vmem:[%s1 + $0x248] sm:$0xff]
  %v103 = vld [vmem:[%s1 + $0x250] sm:$0xff]
  %v104 = vld [vmem:[%s1 + $0x258] sm:$0xff]
  %v105 = vld [vmem:[%s1 + $0x260] sm:$0xff]
  %v106 = vld [vmem:[%s1 + $0x268] sm:$0xff]
  %v107 = vld [vmem:[%s1 + $0x270] sm:$0xff]
  %v108 = vld [vmem:[%s1 + $0x278] sm:$0xff]
  %v109 = vld [vmem:[%s1 + $0x280] sm:$0xff]
  %v110 = vld [vmem:[%s1 + $0x288] sm:$0xff]
  %v111 = vld [vmem:[%s1 + $0x290] sm:$0xff]
  %v112 = vld [vmem:[%s1 + $0x298] sm:$0xff]
  %v113 = vld [vmem:[%s1 + $0x2a0] sm:$0xff]
  %v114 = vld [vmem:[%s1 + $0x2a8] sm:$0xff]
  %v115 = vld [vmem:[%s1 + $0x2b0] sm:$0xff]
  %v116 = vld [vmem:[%s1 + $0x2b8] sm:$0xff]
  %v117 = vld [vmem:[%s1 + $0x2c0] sm:$0xff]
  %v118 = vld [vmem:[%s1 + $0x2c8] sm:$0xff]
  %v119 = vld [vmem:[%s1 + $0x2d0] sm:$0xff]
  %v120 = vld [vmem:[%s1 + $0x2d8] sm:$0xff]
  %v121 = vld [vmem:[%s1 + $0x2e0] sm:$0xff]
  %v122 = vld [vmem:[%s1 + $0x2e8] sm:$0xff]
  %v123 = vld [vmem:[%s1 + $0x2f0] sm:$0xff]
  %v124 = vld [vmem:[%s1 + $0x2f8] sm:$0xff]
  %v125 = vld [vmem:[%s1 + $0x300] sm:$0xff]
  %v126 = vld [vmem:[%s1 + $0x308] sm:$0xff]
  %v127 = vld [vmem:[%s1 + $0x310] sm:$0xff]
  %v128 = vld [vmem:[%s1 + $0x318] sm:$0xff]
  %v129 = vld [vmem:[%s1 + $0x320] sm:$0xff]
  %v130 = vld [vmem:[%s1 + $0x328] sm:$0xff]
  %v131 = vld [vmem:[%s1 + $0x330] sm:$0xff]
  %v132 = vld [vmem:[%s1 + $0x338] sm:$0xff]
  %v133 = vld [vmem:[%s1 + $0x340] sm:$0xff]
  %v134 = vld [vmem:[%s1 + $0x348] sm:$0xff]
  %v135 = vld [vmem:[%s1 + $0x350] sm:$0xff]
  %v136 = vld [vmem:[%s1 + $0x358] sm:$0xff]
  %v137 = vld [vmem:[%s1 + $0x360] sm:$0xff]
  %v138 = vld [vmem:[%s1 + $0x368] sm:$0xff]
  %v139 = vld [vmem:[%s1 + $0x370] sm:$0xff]
  %v140 = vld [vmem:[%s1 + $0x378] sm:$0xff]
  %v141 = vld [vmem:[%s1 + $0x380] sm:$0xff]
  %v142 = vld [vmem:[%s1 + $0x388] sm:$0xff]
  %v143 = vld [vmem:[%s1 + $0x390] sm:$0xff]
  %v144 = vld [vmem:[%s1 + $0x398] sm:$0xff]
  %v145 = vld [vmem:[%s1 + $0x3a0] sm:$0xff]
  %v146 = vld [vmem:[%s1 + $0x3a8] sm:$0xff]
  %v147 = vld [vmem:[%s1 + $0x3b0] sm:$0xff]
  %v148 = vld [vmem:[%s1 + $0x3b8] sm:$0xff]
  %v149 = vld [vmem:[%s1 + $0x3c0] sm:$0xff]
  %v150 = vld [vmem:[%s1 + $0x3c8] sm:$0xff]
  %v151 = vld [vmem:[%s1 + $0x3d0] sm:$0xff]
  %v152 = vld [vmem:[%s1 + $0x3d8] sm:$0xff]
  %v153 = vld [vmem:[%s1 + $0x3e0] sm:$0xff]
  %v154 = vld [vmem:[%s1 + $0x3e8] sm:$0xff]
  %v155 = vld [vmem:[%s1 + $0x3f0] sm:$0xff]
  %v156 = vld [vmem:[%s1 + $0x3f8] sm:$0xff]
  %v157 = vld [vmem:[%s1 + $0x400] sm:$0xff]
  %v158 = vld [vmem:[%s1 + $0x408] sm:$0xff]
  %v159 = vld [vmem:[%s1 + $0x410] sm:$0xff]
  %v160 = vld [vmem:[%s1 + $0x418] sm:$0xff]
  %v161 = vld [vmem:[%s1 + $0x420] sm:$0xff]
  %v162 = vld [vmem:[%s1 + $0x428] sm:$0xff]
  %v163 = vld [vmem:[%s1 + $0x430] sm:$0xff]
  %v164 = vld [vmem:[%s1 + $0x438] sm:$0xff]
  %v165 = vld [vmem:[%s1 + $0x440] sm:$0xff]
  %v166 = vld [vmem:[%s1 + $0x448] sm:$0xff]
  %v167 = vld [vmem:[%s1 + $0x450] sm:$0xff]
  %v168 = vld [vmem:[%s1 + $0x458] sm:$0xff]
  %v169 = vld [vmem:[%s1 + $0x460] sm:$0xff]
  %v170 = vld [vmem:[%s1 + $0x468] sm:$0xff]
  %v171 = vld [vmem:[%s1 + $0x470] sm:$0xff]
  %v172 = vld [vmem:[%s1 + $0x478] sm:$0xff]
  %v173 = vld [vmem:[%s1 + $0x480] sm:$0xff]
  %v174 = vld [vmem:[%s1 + $0x488] sm:$0xff]
  %v175 = vld [vmem:[%s1 + $0x490] sm:$0xff]
  %v176 = vld [vmem:[%s1 + $0x498] sm:$0xff]
  %v177 = vld [vmem:[%s1 + $0x4a0] sm:$0xff]
  %v178 = vld [vmem:[%s1 + $0x4a8] sm:$0xff]
  %v179 = vld [vmem:[%s1 + $0x4b0] sm:$0xff]
  %v180 = vld [vmem:[%s1 + $0x4b8] sm:$0xff]
  %v181 = vld [vmem:[%s1 + $0x4c0] sm:$0xff]
  %v182 = vld [vmem:[%s1 + $0x4c8] sm:$0xff]
  %v183 = vld [vmem:[%s1 + $0x4d0] sm:$0xff]
  %v184 = vld [vmem:[%s1 + $0x4d8] sm:$0xff]
  %v185 = vld [vmem:[%s1 + $0x4e0] sm:$0xff]
  %v186 = vld [vmem:[%s1 + $0x4e8] sm:$0xff]
  %v187 = vld [vmem:[%s1 + $0x4f0] sm:$0xff]
  %v188 = vld [vmem:[%s1 + $0x4f8] sm:$0xff]
  %v189 = vld [vmem:[%s1 + $0x500] sm:$0xff]
  %v190 = vld [vmem:[%s1 + $0x508] sm:$0xff]
  %v191 = vld [vmem:[%s1 + $0x510] sm:$0xff]
  %v192 = vld [vmem:[%s1 + $0x518] sm:$0xff]
  %v193 = vld [vmem:[%s1 + $0x520] sm:$0xff]
  %v194 = vld [vmem:[%s1 + $0x528] sm:$0xff]
  %v195 = vld [vmem:[%s1 + $0x530] sm:$0xff]
  %v196 = vld [vmem:[%s1 + $0x538] sm:$0xff]
  %v197 = vld [vmem:[%s1 + $0x540] sm:$0xff]
  %v198 = vld [vmem:[%s1 + $0x548] sm:$0xff]
  %v199 = vld [vmem:[%s1 + $0x550] sm:$0xff]
  %v200 = vld [vmem:[%s1 + $0x558] sm:$0xff]
  %v201 = vld [vmem:[%s1 + $0x560] sm:$0xff]
  %v202 = vld [vmem:[%s1 + $0x568] sm:$0xff]
  %v203 = vld [vmem:[%s1 + $0x570] sm:$0xff]
  %v204 = vld [vmem:[%s1 + $0x578] sm:$0xff]
  %v205 = vld [vmem:[%s1 + $0x580] sm:$0xff]
  %v206 = vld [vmem:[%s1 + $0x588] sm:$0xff]
  %v207 = vld [vmem:[%s1 + $0x590] sm:$0xff]
  %v208 = vld [vmem:[%s1 + $0x598] sm:$0xff]
  %v209 = vld [vmem:[%s1 + $0x5a0] sm:$0xff]
  %v210 = vld [vmem:[%s1 + $0x5a8] sm:$0xff]
  %v211 = vld [vmem:[%s1 + $0x5b0] sm:$0xff]
  %v212 = vld [vmem:[%s1 + $0x5b8] sm:$0xff]
  %v213 = vld [vmem:[%s1 + $0x5c0] sm:$0xff]
  %v214 = vld [vmem:[%s1 + $0x5c8] sm:$0xff]
  %v215 = vld [vmem:[%s1 + $0x5d0] sm:$0xff]
  %v216 = vld [vmem:[%s1 + $0x5d8] sm:$0xff]
  %v217 = vld [vmem:[%s1 + $0x5e0] sm:$0xff]
  %v218 = vld [vmem:[%s1 + $0x5e8] sm:$0xff]
  %v219 = vld [vmem:[%s1 + $0x5f0] sm:$0xff]
  %v220 = vld [vmem:[%s1 + $0x5f8] sm:$0xff]
  %v221 = vld [vmem:[%s1 + $0x600] sm:$0xff]
  %v222 = vld [vmem:[%s1 + $0x608] sm:$0xff]
  %v223 = vld [vmem:[%s1 + $0x610] sm:$0xff]
  %v224 = vld [vmem:[%s1 + $0x618] sm:$0xff]
  %v225 = vld [vmem:[%s1 + $0x620] sm:$0xff]
  %v226 = vld [vmem:[%s1 + $0x628] sm:$0xff]
  %v227 = vld [vmem:[%s1 + $0x630] sm:$0xff]
  %v228 = vld [vmem:[%s1 + $0x638] sm:$0xff]
  %v229 = vld [vmem:[%s1 + $0x640] sm:$0xff]
  %v230 = vld [vmem:[%s1 + $0x648] sm:$0xff]
  %v231 = vld [vmem:[%s1 + $0x650] sm:$0xff]
  %v232 = vld [vmem:[%s1 + $0x658] sm:$0xff]
  %v233 = vld [vmem:[%s1 + $0x660] sm:$0xff]
  %v234 = vld [vmem:[%s1 + $0x668] sm:$0xff]
  %v235 = vld [vmem:[%s1 + $0x670] sm:$0xff]
  %v236 = vld [vmem:[%s1 + $0x678] sm:$0xff]
  %v237 = vld [vmem:[%s1 + $0x680] sm:$0xff]
  %v238 = vld [vmem:[%s1 + $0x688] sm:$0xff]
  %v239 = vld [vmem:[%s1 + $0x690] sm:$0xff]
  %v240 = vld [vmem:[%s1 + $0x698] sm:$0xff]
  %v241 = vld [vmem:[%s1 + $0x6a0] sm:$0xff]
  %v242 = vld [vmem:[%s1 + $0x6a8] sm:$0xff]
  %v243 = vld [vmem:[%s1 + $0x6b0] sm:$0xff]
  %v244 = vld [vmem:[%s1 + $0x6b8] sm:$0xff]
  %v245 = vld [vmem:[%s1 + $0x6c0] sm:$0xff]
  %v246 = vld [vmem:[%s1 + $0x6c8] sm:$0xff]
  %v247 = vld [vmem:[%s1 + $0x6d0] sm:$0xff]
  %v248 = vld [vmem:[%s1 + $0x6d8] sm:$0xff]
  %v249 = vld [vmem:[%s1 + $0x6e0] sm:$0xff]
  %v250 = vld [vmem:[%s1 + $0x6e8] sm:$0xff]
  %v251 = vld [vmem:[%s1 + $0x6f0] sm:$0xff]
  %v252 = vld [vmem:[%s1 + $0x6f8] sm:$0xff]
  %v253 = vld [vmem:[%s1 + $0x700] sm:$0xff]
  %v254 = vld [vmem:[%s1 + $0x708] sm:$0xff]
  %v255 = vld [vmem:[%s1 + $0x710] sm:$0xff]
  %v256 = vld [vmem:[%s1 + $0x718] sm:$0xff]
  %v257 = vld [vmem:[%s1 + $0x720] sm:$0xff]
  %v258 = vld [vmem:[%s1 + $0x728] sm:$0xff]
  %v259 = vld [vmem:[%s1 + $0x730] sm:$0xff]
  %v260 = vld [vmem:[%s1 + $0x738] sm:$0xff]
  %v261 = vld [vmem:[%s1 + $0x740] sm:$0xff]
  %v262 = vld [vmem:[%s1 + $0x748] sm:$0xff]
  %v263 = vld [vmem:[%s1 + $0x750] sm:$0xff]
  %v264 = vld [vmem:[%s1 + $0x758] sm:$0xff]
  %v265 = vld [vmem:[%s1 + $0x760] sm:$0xff]
  %v266 = vld [vmem:[%s1 + $0x768] sm:$0xff]
  %v267 = vld [vmem:[%s1 + $0x770] sm:$0xff]
  %v268 = vld [vmem:[%s1 + $0x778] sm:$0xff]
  %v269 = vld [vmem:[%s1 + $0x780] sm:$0xff]
  %v270 = vld [vmem:[%s1 + $0x788] sm:$0xff]
  %v271 = vld [vmem:[%s1 + $0x790] sm:$0xff]
  %v272 = vld [vmem:[%s1 + $0x798] sm:$0xff]
  %v273 = vld [vmem:[%s1 + $0x7a0] sm:$0xff]
  %v274 = vld [vmem:[%s1 + $0x7a8] sm:$0xff]
  %v275 = vld [vmem:[%s1 + $0x7b0] sm:$0xff]
  %v276 = vld [vmem:[%s1 + $0x7b8] sm:$0xff]
  %v277 = vld [vmem:[%s1 + $0x7c0] sm:$0xff]
  %v278 = vld [vmem:[%s1 + $0x7c8] sm:$0xff]
  %v279 = vld [vmem:[%s1 + $0x7d0] sm:$0xff]
  %v280 = vld [vmem:[%s1 + $0x7d8] sm:$0xff]
  %v281 = vld [vmem:[%s1 + $0x7e0] sm:$0xff]
  %v282 = vld [vmem:[%s1 + $0x7e8] sm:$0xff]
  %v283 = vld [vmem:[%s1 + $0x7f0] sm:$0xff]
  %v284 = vld [vmem:[%s1 + $0x7f8] sm:$0xff]
  %v285 = vld [vmem:[%s1 + $0x800] sm:$0xff]
  %v286 = vld [vmem:[%s1 + $0x808] sm:$0xff]
  %v287 = vld [vmem:[%s1 + $0x810] sm:$0xff]
  %v288 = vld [vmem:[%s1 + $0x818] sm:$0xff]
  %v289 = vld [vmem:[%s1 + $0x820] sm:$0xff]
  %v290 = vld [vmem:[%s1 + $0x828] sm:$0xff]
  %v291 = vld [vmem:[%s1 + $0x830] sm:$0xff]
  %v292 = vld [vmem:[%s1 + $0x838] sm:$0xff]
  %v293 = vld [vmem:[%s1 + $0x840] sm:$0xff]
  %v294 = vld [vmem:[%s1 + $0x848] sm:$0xff]
  %v295 = vld [vmem:[%s1 + $0x850] sm:$0xff]
  %v296 = vld [vmem:[%s1 + $0x858] sm:$0xff]
  %v297 = vld [vmem:[%s1 + $0x860] sm:$0xff]
  %v298 = vld [vmem:[%s1 + $0x868] sm:$0xff]
  %v299 = vld [vmem:[%s1 + $0x870] sm:$0xff]
  %v300 = vld [vmem:[%s1 + $0x878] sm:$0xff]
  %v301 = vld [vmem:[%s1 + $0x880] sm:$0xff]
  %v302 = vld [vmem:[%s1 + $0x888] sm:$0xff]
  %v303 = vld [vmem:[%s1 + $0x890] sm:$0xff]
  %v304 = vld [vmem:[%s1 + $0x898] sm:$0xff]
  %v305 = vld [vmem:[%s1 + $0x8a0] sm:$0xff]
  %v306 = vld [vmem:[%s1 + $0x8a8] sm:$0xff]
  %v307 = vld [vmem:[%s1 + $0x8b0] sm:$0xff]
  %v308 = vld [vmem:[%s1 + $0x8b8] sm:$0xff]
  %v309 = vld [vmem:[%s1 + $0x8c0] sm:$0xff]
  %v310 = vld [vmem:[%s1 + $0x8c8] sm:$0xff]
  %v311 = vld [vmem:[%s1 + $0x8d0] sm:$0xff]
  %v312 = vld [vmem:[%s1 + $0x8d8] sm:$0xff]
  %v313 = vld [vmem:[%s1 + $0x8e0] sm:$0xff]
  %v314 = vld [vmem:[%s1 + $0x8e8] sm:$0xff]
  %v315 = vld [vmem:[%s1 + $0x8f0] sm:$0xff]
  %v316 = vld [vmem:[%s1 + $0x8f8] sm:$0xff]
  %v317 = vld [vmem:[%s1 + $0x900] sm:$0xff]
  %v318 = vld [vmem:[%s1 + $0x908] sm:$0xff]
  %v319 = vld [vmem:[%s1 + $0x910] sm:$0xff]
  %v320 = vld [vmem:[%s1 + $0x918] sm:$0xff]
  %v321 = vld [vmem:[%s1 + $0x920] sm:$0xff]
  %v322 = vld [vmem:[%s1 + $0x928] sm:$0xff]
  %v323 = vld [vmem:[%s1 + $0x930] sm:$0xff]
  %v324 = vld [vmem:[%s1 + $0x938] sm:$0xff]
  %v325 = vld [vmem:[%s1 + $0x940] sm:$0xff]
  %v326 = vld [vmem:[%s1 + $0x948] sm:$0xff]
  %v327 = vld [vmem:[%s1 + $0x950] sm:$0xff]
  %v328 = vld [vmem:[%s1 + $0x958] sm:$0xff]
  %v329 = vld [vmem:[%s1 + $0x960] sm:$0xff]
  %v330 = vld [vmem:[%s1 + $0x968] sm:$0xff]
  %v331 = vld [vmem:[%s1 + $0x970] sm:$0xff]
  %v332 = vld [vmem:[%s1 + $0x978] sm:$0xff]
  %v333 = vld [vmem:[%s1 + $0x980] sm:$0xff]
  %v334 = vld [vmem:[%s1 + $0x988] sm:$0xff]
  %v335 = vld [vmem:[%s1 + $0x990] sm:$0xff]
  %v336 = vld [vmem:[%s1 + $0x998] sm:$0xff]
  %v337 = vld [vmem:[%s1 + $0x9a0] sm:$0xff]
  %v338 = vld [vmem:[%s1 + $0x9a8] sm:$0xff]
  %v339 = vld [vmem:[%s1 + $0x9b0] sm:$0xff]
  %v340 = vld [vmem:[%s1 + $0x9b8] sm:$0xff]
  %v341 = vld [vmem:[%s1 + $0x9c0] sm:$0xff]
  %v342 = vld [vmem:[%s1 + $0x9c8] sm:$0xff]
  %v343 = vld [vmem:[%s1 + $0x9d0] sm:$0xff]
  %v344 = vld [vmem:[%s1 + $0x9d8] sm:$0xff]
  %v345 = vld [vmem:[%s1 + $0x9e0] sm:$0xff]
  %v346 = vld [vmem:[%s1 + $0x9e8] sm:$0xff]
  %v347 = vld [vmem:[%s1 + $0x9f0] sm:$0xff]
  %v348 = vld [vmem:[%s1 + $0x9f8] sm:$0xff]
  %v349 = vld [vmem:[%s1 + $0xa00] sm:$0xff]
  %v350 = vld [vmem:[%s1 + $0xa08] sm:$0xff]
  %v351 = vld [vmem:[%s1 + $0xa10] sm:$0xff]
  %v352 = vld [vmem:[%s1 + $0xa18] sm:$0xff]
  %v353 = vld [vmem:[%s1 + $0xa20] sm:$0xff]
  %v354 = vld [vmem:[%s1 + $0xa28] sm:$0xff]
  %v355 = vld [vmem:[%s1 + $0xa30] sm:$0xff]
  %v356 = vld [vmem:[%s1 + $0xa38] sm:$0xff]
  %v357 = vld [vmem:[%s1 + $0xa40] sm:$0xff]
  %v358 = vld [vmem:[%s1 + $0xa48] sm:$0xff]
  %v359 = vld [vmem:[%s1 + $0xa50] sm:$0xff]
  %v360 = vld [vmem:[%s1 + $0xa58] sm:$0xff]
  %v361 = vld [vmem:[%s1 + $0xa60] sm:$0xff]
  %v362 = vld [vmem:[%s1 + $0xa68] sm:$0xff]
  %v363 = vld [vmem:[%s1 + $0xa70] sm:$0xff]
  %v364 = vld [vmem:[%s1 + $0xa78] sm:$0xff]
  %v365 = vld [vmem:[%s1 + $0xa80] sm:$0xff]
  %v366 = vld [vmem:[%s1 + $0xa88] sm:$0xff]
  %v367 = vld [vmem:[%s1 + $0xa90] sm:$0xff]
  %v368 = vld [vmem:[%s1 + $0xa98] sm:$0xff]
  %v369 = vld [vmem:[%s1 + $0xaa0] sm:$0xff]
  %v370 = vld [vmem:[%s1 + $0xaa8] sm:$0xff]
  %v371 = vld [vmem:[%s1 + $0xab0] sm:$0xff]
  %v372 = vld [vmem:[%s1 + $0xab8] sm:$0xff]
  %v373 = vld [vmem:[%s1 + $0xac0] sm:$0xff]
  %v374 = vld [vmem:[%s1 + $0xac8] sm:$0xff]
  %v375 = vld [vmem:[%s1 + $0xad0] sm:$0xff]
  %v376 = vld [vmem:[%s1 + $0xad8] sm:$0xff]
  %v377 = vld [vmem:[%s1 + $0xae0] sm:$0xff]
  %v378 = vld [vmem:[%s1 + $0xae8] sm:$0xff]
  %v379 = vld [vmem:[%s1 + $0xaf0] sm:$0xff]
  %v380 = vld [vmem:[%s1 + $0xaf8] sm:$0xff]
  %v381 = vld [vmem:[%s1 + $0xb00] sm:$0xff]
  %v382 = vld [vmem:[%s1 + $0xb08] sm:$0xff]
  %v383 = vld [vmem:[%s1 + $0xb10] sm:$0xff]
  %v384 = vld [vmem:[%s1 + $0xb18] sm:$0xff]
  %v385 = vld [vmem:[%s1 + $0xb20] sm:$0xff]
  %v386 = vld [vmem:[%s1 + $0xb28] sm:$0xff]
  %v387 = vld [vmem:[%s1 + $0xb30] sm:$0xff]
  %v388 = vld [vmem:[%s1 + $0xb38] sm:$0xff]
  %v389 = vld [vmem:[%s1 + $0xb40] sm:$0xff]
  %v390 = vld [vmem:[%s1 + $0xb48] sm:$0xff]
  %v391 = vld [vmem:[%s1 + $0xb50] sm:$0xff]
  %v392 = vld [vmem:[%s1 + $0xb58] sm:$0xff]
  %v393 = vld [vmem:[%s1 + $0xb60] sm:$0xff]
  %v394 = vld [vmem:[%s1 + $0xb68] sm:$0xff]
  %v395 = vld [vmem:[%s1 + $0xb70] sm:$0xff]
  %v396 = vld [vmem:[%s1 + $0xb78] sm:$0xff]
  %v397 = vld [vmem:[%s1 + $0xb80] sm:$0xff]
  %v398 = vld [vmem:[%s1 + $0xb88] sm:$0xff]
  %v399 = vld [vmem:[%s1 + $0xb90] sm:$0xff]
  %v400 = vld [vmem:[%s1 + $0xb98] sm:$0xff]
  %v401 = vld [vmem:[%s1 + $0xba0] sm:$0xff]
  %v402 = vld [vmem:[%s1 + $0xba8] sm:$0xff]
  %v403 = vld [vmem:[%s1 + $0xbb0] sm:$0xff]
  %v404 = vld [vmem:[%s1 + $0xbb8] sm:$0xff]
  %v405 = vld [vmem:[%s1 + $0xbc0] sm:$0xff]
  %v406 = vld [vmem:[%s1 + $0xbc8] sm:$0xff]
  %v407 = vld [vmem:[%s1 + $0xbd0] sm:$0xff]
  %v408 = vld [vmem:[%s1 + $0xbd8] sm:$0xff]
  %v409 = vld [vmem:[%s1 + $0xbe0] sm:$0xff]
  %v410 = vld [vmem:[%s1 + $0xbe8] sm:$0xff]
  %v411 = vld [vmem:[%s1 + $0xbf0] sm:$0xff]
  %v412 = vld [vmem:[%s1 + $0xbf8] sm:$0xff]
  %v413 = vld [vmem:[%s1 + $0xc00] sm:$0xff]
  %v414 = vld [vmem:[%s1 + $0xc08] sm:$0xff]
  %v415 = vld [vmem:[%s1 + $0xc10] sm:$0xff]
  %v416 = vld [vmem:[%s1 + $0xc18] sm:$0xff]
  %v417 = vld [vmem:[%s1 + $0xc20] sm:$0xff]
  %v418 = vld [vmem:[%s1 + $0xc28] sm:$0xff]
  %v419 = vld [vmem:[%s1 + $0xc30] sm:$0xff]
  %v420 = vld [vmem:[%s1 + $0xc38] sm:$0xff]
  %v421 = vld [vmem:[%s1 + $0xc40] sm:$0xff]
  %v422 = vld [vmem:[%s1 + $0xc48] sm:$0xff]
  %v423 = vld [vmem:[%s1 + $0xc50] sm:$0xff]
  %v424 = vld [vmem:[%s1 + $0xc58] sm:$0xff]
  %v425 = vld [vmem:[%s1 + $0xc60] sm:$0xff]
  %v426 = vld [vmem:[%s1 + $0xc68] sm:$0xff]
  %v427 = vld [vmem:[%s1 + $0xc70] sm:$0xff]
  %v428 = vld [vmem:[%s1 + $0xc78] sm:$0xff]
  %v429 = vld [vmem:[%s1 + $0xc80] sm:$0xff]
  %v430 = vld [vmem:[%s1 + $0xc88] sm:$0xff]
  %v431 = vld [vmem:[%s1 + $0xc90] sm:$0xff]
  %v432 = vld [vmem:[%s1 + $0xc98] sm:$0xff]
  %v433 = vld [vmem:[%s1 + $0xca0] sm:$0xff]
  %v434 = vld [vmem:[%s1 + $0xca8] sm:$0xff]
  %v435 = vld [vmem:[%s1 + $0xcb0] sm:$0xff]
  %v436 = vld [vmem:[%s1 + $0xcb8] sm:$0xff]
  %v437 = vld [vmem:[%s1 + $0xcc0] sm:$0xff]
  %v438 = vld [vmem:[%s1 + $0xcc8] sm:$0xff]
  %v439 = vld [vmem:[%s1 + $0xcd0] sm:$0xff]
  %v440 = vld [vmem:[%s1 + $0xcd8] sm:$0xff]
  %v441 = vld [vmem:[%s1 + $0xce0] sm:$0xff]
  %v442 = vld [vmem:[%s1 + $0xce8] sm:$0xff]
  %v443 = vld [vmem:[%s1 + $0xcf0] sm:$0xff]
  %v444 = vld [vmem:[%s1 + $0xcf8] sm:$0xff]
  %v445 = vld [vmem:[%s1 + $0xd00] sm:$0xff]
  %v446 = vld [vmem:[%s1 + $0xd08] sm:$0xff]
  %v447 = vld [vmem:[%s1 + $0xd10] sm:$0xff]
  %v448 = vld [vmem:[%s1 + $0xd18] sm:$0xff]
  %v449 = vld [vmem:[%s1 + $0xd20] sm:$0xff]
  %v450 = vld [vmem:[%s1 + $0xd28] sm:$0xff]
  %v451 = vld [vmem:[%s1 + $0xd30] sm:$0xff]
  %v452 = vld [vmem:[%s1 + $0xd38] sm:$0xff]
  %v453 = vld [vmem:[%s1 + $0xd40] sm:$0xff]
  %v454 = vld [vmem:[%s1 + $0xd48] sm:$0xff]
  %v455 = vld [vmem:[%s1 + $0xd50] sm:$0xff]
  %v456 = vld [vmem:[%s1 + $0xd58] sm:$0xff]
  %v457 = vld [vmem:[%s1 + $0xd60] sm:$0xff]
  %v458 = vld [vmem:[%s1 + $0xd68] sm:$0xff]
  %v459 = vld [vmem:[%s1 + $0xd70] sm:$0xff]
  %v460 = vld [vmem:[%s1 + $0xd78] sm:$0xff]
  %v461 = vld [vmem:[%s1 + $0xd80] sm:$0xff]
  %v462 = vld [vmem:[%s1 + $0xd88] sm:$0xff]
  %v463 = vld [vmem:[%s1 + $0xd90] sm:$0xff]
  %v464 = vld [vmem:[%s1 + $0xd98] sm:$0xff]
  %v465 = vld [vmem:[%s1 + $0xda0] sm:$0xff]
  %v466 = vld [vmem:[%s1 + $0xda8] sm:$0xff]
  %v467 = vld [vmem:[%s1 + $0xdb0] sm:$0xff]
  %v468 = vld [vmem:[%s1 + $0xdb8] sm:$0xff]
  %v469 = vld [vmem:[%s1 + $0xdc0] sm:$0xff]
  %v470 = vld [vmem:[%s1 + $0xdc8] sm:$0xff]
  %v471 = vld [vmem:[%s1 + $0xdd0] sm:$0xff]
  %v472 = vld [vmem:[%s1 + $0xdd8] sm:$0xff]
  %v473 = vld [vmem:[%s1 + $0xde0] sm:$0xff]
  %v474 = vld [vmem:[%s1 + $0xde8] sm:$0xff]
  %v475 = vld [vmem:[%s1 + $0xdf0] sm:$0xff]
  %v476 = vld [vmem:[%s1 + $0xdf8] sm:$0xff]
  %v477 = vld [vmem:[%s1 + $0xe00] sm:$0xff]
  %v478 = vld [vmem:[%s1 + $0xe08] sm:$0xff]
  %v479 = vld [vmem:[%s1 + $0xe10] sm:$0xff]
  %v480 = vld [vmem:[%s1 + $0xe18] sm:$0xff]
  %v481 = vld [vmem:[%s1 + $0xe20] sm:$0xff]
  %v482 = vld [vmem:[%s1 + $0xe28] sm:$0xff]
  %v483 = vld [vmem:[%s1 + $0xe30] sm:$0xff]
  %v484 = vld [vmem:[%s1 + $0xe38] sm:$0xff]
  %v485 = vld [vmem:[%s1 + $0xe40] sm:$0xff]
  %v486 = vld [vmem:[%s1 + $0xe48] sm:$0xff]
  %v487 = vld [vmem:[%s1 + $0xe50] sm:$0xff]
  %v488 = vld [vmem:[%s1 + $0xe58] sm:$0xff]
  %v489 = vld [vmem:[%s1 + $0xe60] sm:$0xff]
  %v490 = vld [vmem:[%s1 + $0xe68] sm:$0xff]
  %v491 = vld [vmem:[%s1 + $0xe70] sm:$0xff]
  %v492 = vld [vmem:[%s1 + $0xe78] sm:$0xff]
  %v493 = vld [vmem:[%s1 + $0xe80] sm:$0xff]
  %v494 = vld [vmem:[%s1 + $0xe88] sm:$0xff]
  %v495 = vld [vmem:[%s1 + $0xe90] sm:$0xff]
  %v496 = vld [vmem:[%s1 + $0xe98] sm:$0xff]
  %v497 = vld [vmem:[%s1 + $0xea0] sm:$0xff]
  %v498 = vld [vmem:[%s1 + $0xea8] sm:$0xff]
  %v499 = vld [vmem:[%s1 + $0xeb0] sm:$0xff]
  %v500 = vld [vmem:[%s1 + $0xeb8] sm:$0xff]
  %v501 = vld [vmem:[%s1 + $0xec0] sm:$0xff]
  %v502 = vld [vmem:[%s1 + $0xec8] sm:$0xff]
  %v503 = vld [vmem:[%s1 + $0xed0] sm:$0xff]
  %v504 = vld [vmem:[%s1 + $0xed8] sm:$0xff]
  %v505 = vld [vmem:[%s1 + $0xee0] sm:$0xff]
  %v506 = vld [vmem:[%s1 + $0xee8] sm:$0xff]
  %v507 = vld [vmem:[%s1 + $0xef0] sm:$0xff]
  %v508 = vld [vmem:[%s1 + $0xef8] sm:$0xff]
  %v509 = vld [vmem:[%s1 + $0xf00] sm:$0xff]
  %v510 = vld [vmem:[%s1 + $0xf08] sm:$0xff]
  %v511 = vld [vmem:[%s1 + $0xf10] sm:$0xff]
  %v512 = vld [vmem:[%s1 + $0xf18] sm:$0xff]
  %v513 = vld [vmem:[%s1 + $0xf20] sm:$0xff]
  %v514 = vld [vmem:[%s1 + $0xf28] sm:$0xff]
  %v515 = vld [vmem:[%s1 + $0xf30] sm:$0xff]
  %v516 = vld [vmem:[%s1 + $0xf38] sm:$0xff]
  %v517 = vld [vmem:[%s1 + $0xf40] sm:$0xff]
  %v518 = vld [vmem:[%s1 + $0xf48] sm:$0xff]
  %v519 = vld [vmem:[%s1 + $0xf50] sm:$0xff]
  %v520 = vld [vmem:[%s1 + $0xf58] sm:$0xff]
  %v521 = vld [vmem:[%s1 + $0xf60] sm:$0xff]
  %v522 = vld [vmem:[%s1 + $0xf68] sm:$0xff]
  %v523 = vld [vmem:[%s1 + $0xf70] sm:$0xff]
  %v524 = vld [vmem:[%s1 + $0xf78] sm:$0xff]
  %v525 = vld [vmem:[%s1 + $0xf80] sm:$0xff]
  %v526 = vld [vmem:[%s1 + $0xf88] sm:$0xff]
  %v527 = vld [vmem:[%s1 + $0xf90] sm:$0xff]
  %v528 = vld [vmem:[%s1 + $0xf98] sm:$0xff]
  %v529 = vld [vmem:[%s1 + $0xfa0] sm:$0xff]
  %v530 = vld [vmem:[%s1 + $0xfa8] sm:$0xff]
  %v531 = vld [vmem:[%s1 + $0xfb0] sm:$0xff]
  %v532 = vld [vmem:[%s1 + $0xfb8] sm:$0xff]
  %v533 = vld [vmem:[%s1 + $0xfc0] sm:$0xff]
  %v534 = vld [vmem:[%s1 + $0xfc8] sm:$0xff]
  %v535 = vld [vmem:[%s1 + $0xfd0] sm:$0xff]
  %v536 = vld [vmem:[%s1 + $0xfd8] sm:$0xff]
  %v537 = vld [vmem:[%s1 + $0xfe0] sm:$0xff]
  %v538 = vld [vmem:[%s1 + $0xfe8] sm:$0xff]
  %v539 = vld [vmem:[%s1 + $0xff0] sm:$0xff]
  %v540 = vld [vmem:[%s1 + $0xff8] sm:$0xff]
  %v541 = vld [vmem:[%s2] sm:$0xf]
  %v543 = vlaneseq
  %v544 = vshrl.u32 %v543, 7
  %v545 = vsub.s32 0, %v544
  %v546 = vrot.slane %v541, %v545
  %v547 = vlaneseq
  %v548 = vshrl.u32 %v547, 7
  %v549 = vsub.s32 1, %v548
  %v550 = vrot.slane %v541, %v549
  %v551 = vlaneseq
  %v552 = vshrl.u32 %v551, 7
  %v553 = vsub.s32 2, %v552
  %v554 = vrot.slane %v541, %v553
  %v555 = vlaneseq
  %v556 = vshrl.u32 %v555, 7
  %v557 = vsub.s32 3, %v556
  %v558 = vrot.slane %v541, %v557
  %v571 = vunpack.c.l.b16 %v21
  %v572 = vunpack.c.h.b16 %v21
  %v573 = vunpack.c.l.b16 %v22
  %v574 = vunpack.c.h.b16 %v22
  %v575 = vunpack.c.l.b16 %v23
  %v576 = vunpack.c.h.b16 %v23
  %v577 = vunpack.c.l.b16 %v24
  %v578 = vunpack.c.h.b16 %v24
  %v579 = vunpack.c.l.b16 %v25
  %v580 = vunpack.c.h.b16 %v25
  %v581 = vunpack.c.l.b16 %v26
  %v582 = vunpack.c.h.b16 %v26
  %v583 = vunpack.c.l.b16 %v27
  %v584 = vunpack.c.h.b16 %v27
  %v585 = vunpack.c.l.b16 %v28
  %v586 = vunpack.c.h.b16 %v28
  %v587 = vpack.c.b16 %v571, %v571
  %v588 = vpack.c.b16 %v572, %v572
  %v589 = vpack.c.b16 %v573, %v573
  %v590 = vpack.c.b16 %v574, %v574
  %v591 = vpack.c.b16 %v575, %v575
  %v592 = vpack.c.b16 %v576, %v576
  %v593 = vpack.c.b16 %v577, %v577
  %v594 = vpack.c.b16 %v578, %v578
  %v595 = vpack.c.b16 %v579, %v579
  %v596 = vpack.c.b16 %v580, %v580
  %v597 = vpack.c.b16 %v581, %v581
  %v598 = vpack.c.b16 %v582, %v582
  %v599 = vpack.c.b16 %v583, %v583
  %v600 = vpack.c.b16 %v584, %v584
  %v601 = vpack.c.b16 %v585, %v585
  %v602 = vpack.c.b16 %v586, %v586
  %v1131 = vunpack.c.l.b16 %v29
  %v1132 = vunpack.c.h.b16 %v29
  %v1133 = vunpack.c.l.b16 %v30
  %v1134 = vunpack.c.h.b16 %v30
  %v1135 = vunpack.c.l.b16 %v31
  %v1136 = vunpack.c.h.b16 %v31
  %v1137 = vunpack.c.l.b16 %v32
  %v1138 = vunpack.c.h.b16 %v32
  %v1139 = vunpack.c.l.b16 %v33
  %v1140 = vunpack.c.h.b16 %v33
  %v1141 = vunpack.c.l.b16 %v34
  %v1142 = vunpack.c.h.b16 %v34
  %v1143 = vunpack.c.l.b16 %v35
  %v1144 = vunpack.c.h.b16 %v35
  %v1145 = vunpack.c.l.b16 %v36
  %v1146 = vunpack.c.h.b16 %v36
  %v1147 = vunpack.c.l.b16 %v37
  %v1148 = vunpack.c.h.b16 %v37
  %v1149 = vunpack.c.l.b16 %v38
  %v1150 = vunpack.c.h.b16 %v38
  %v1151 = vunpack.c.l.b16 %v39
  %v1152 = vunpack.c.h.b16 %v39
  %v1153 = vunpack.c.l.b16 %v40
  %v1154 = vunpack.c.h.b16 %v40
  %v1155 = vunpack.c.l.b16 %v41
  %v1156 = vunpack.c.h.b16 %v41
  %v1157 = vunpack.c.l.b16 %v42
  %v1158 = vunpack.c.h.b16 %v42
  %v1159 = vunpack.c.l.b16 %v43
  %v1160 = vunpack.c.h.b16 %v43
  %v1161 = vunpack.c.l.b16 %v44
  %v1162 = vunpack.c.h.b16 %v44
  %v1163 = vunpack.c.l.b16 %v45
  %v1164 = vunpack.c.h.b16 %v45
  %v1165 = vunpack.c.l.b16 %v46
  %v1166 = vunpack.c.h.b16 %v46
  %v1167 = vunpack.c.l.b16 %v47
  %v1168 = vunpack.c.h.b16 %v47
  %v1169 = vunpack.c.l.b16 %v48
  %v1170 = vunpack.c.h.b16 %v48
  %v1171 = vunpack.c.l.b16 %v49
  %v1172 = vunpack.c.h.b16 %v49
  %v1173 = vunpack.c.l.b16 %v50
  %v1174 = vunpack.c.h.b16 %v50
  %v1175 = vunpack.c.l.b16 %v51
  %v1176 = vunpack.c.h.b16 %v51
  %v1177 = vunpack.c.l.b16 %v52
  %v1178 = vunpack.c.h.b16 %v52
  %v1179 = vunpack.c.l.b16 %v53
  %v1180 = vunpack.c.h.b16 %v53
  %v1181 = vunpack.c.l.b16 %v54
  %v1182 = vunpack.c.h.b16 %v54
  %v1183 = vunpack.c.l.b16 %v55
  %v1184 = vunpack.c.h.b16 %v55
  %v1185 = vunpack.c.l.b16 %v56
  %v1186 = vunpack.c.h.b16 %v56
  %v1187 = vunpack.c.l.b16 %v57
  %v1188 = vunpack.c.h.b16 %v57
  %v1189 = vunpack.c.l.b16 %v58
  %v1190 = vunpack.c.h.b16 %v58
  %v1191 = vunpack.c.l.b16 %v59
  %v1192 = vunpack.c.h.b16 %v59
  %v1193 = vunpack.c.l.b16 %v60
  %v1194 = vunpack.c.h.b16 %v60
  %v1195 = vunpack.c.l.b16 %v61
  %v1196 = vunpack.c.h.b16 %v61
  %v1197 = vunpack.c.l.b16 %v62
  %v1198 = vunpack.c.h.b16 %v62
  %v1199 = vunpack.c.l.b16 %v63
  %v1200 = vunpack.c.h.b16 %v63
  %v1201 = vunpack.c.l.b16 %v64
  %v1202 = vunpack.c.h.b16 %v64
  %v1203 = vunpack.c.l.b16 %v65
  %v1204 = vunpack.c.h.b16 %v65
  %v1205 = vunpack.c.l.b16 %v66
  %v1206 = vunpack.c.h.b16 %v66
  %v1207 = vunpack.c.l.b16 %v67
  %v1208 = vunpack.c.h.b16 %v67
  %v1209 = vunpack.c.l.b16 %v68
  %v1210 = vunpack.c.h.b16 %v68
  %v1211 = vunpack.c.l.b16 %v69
  %v1212 = vunpack.c.h.b16 %v69
  %v1213 = vunpack.c.l.b16 %v70
  %v1214 = vunpack.c.h.b16 %v70
  %v1215 = vunpack.c.l.b16 %v71
  %v1216 = vunpack.c.h.b16 %v71
  %v1217 = vunpack.c.l.b16 %v72
  %v1218 = vunpack.c.h.b16 %v72
  %v1219 = vunpack.c.l.b16 %v73
  %v1220 = vunpack.c.h.b16 %v73
  %v1221 = vunpack.c.l.b16 %v74
  %v1222 = vunpack.c.h.b16 %v74
  %v1223 = vunpack.c.l.b16 %v75
  %v1224 = vunpack.c.h.b16 %v75
  %v1225 = vunpack.c.l.b16 %v76
  %v1226 = vunpack.c.h.b16 %v76
  %v1227 = vunpack.c.l.b16 %v77
  %v1228 = vunpack.c.h.b16 %v77
  %v1229 = vunpack.c.l.b16 %v78
  %v1230 = vunpack.c.h.b16 %v78
  %v1231 = vunpack.c.l.b16 %v79
  %v1232 = vunpack.c.h.b16 %v79
  %v1233 = vunpack.c.l.b16 %v80
  %v1234 = vunpack.c.h.b16 %v80
  %v1235 = vunpack.c.l.b16 %v81
  %v1236 = vunpack.c.h.b16 %v81
  %v1237 = vunpack.c.l.b16 %v82
  %v1238 = vunpack.c.h.b16 %v82
  %v1239 = vunpack.c.l.b16 %v83
  %v1240 = vunpack.c.h.b16 %v83
  %v1241 = vunpack.c.l.b16 %v84
  %v1242 = vunpack.c.h.b16 %v84
  %v1243 = vunpack.c.l.b16 %v85
  %v1244 = vunpack.c.h.b16 %v85
  %v1245 = vunpack.c.l.b16 %v86
  %v1246 = vunpack.c.h.b16 %v86
  %v1247 = vunpack.c.l.b16 %v87
  %v1248 = vunpack.c.h.b16 %v87
  %v1249 = vunpack.c.l.b16 %v88
  %v1250 = vunpack.c.h.b16 %v88
  %v1251 = vunpack.c.l.b16 %v89
  %v1252 = vunpack.c.h.b16 %v89
  %v1253 = vunpack.c.l.b16 %v90
  %v1254 = vunpack.c.h.b16 %v90
  %v1255 = vunpack.c.l.b16 %v91
  %v1256 = vunpack.c.h.b16 %v91
  %v1257 = vunpack.c.l.b16 %v92
  %v1258 = vunpack.c.h.b16 %v92
  %v1259 = vunpack.c.l.b16 %v93
  %v1260 = vunpack.c.h.b16 %v93
  %v1261 = vunpack.c.l.b16 %v94
  %v1262 = vunpack.c.h.b16 %v94
  %v1263 = vunpack.c.l.b16 %v95
  %v1264 = vunpack.c.h.b16 %v95
  %v1265 = vunpack.c.l.b16 %v96
  %v1266 = vunpack.c.h.b16 %v96
  %v1267 = vunpack.c.l.b16 %v97
  %v1268 = vunpack.c.h.b16 %v97
  %v1269 = vunpack.c.l.b16 %v98
  %v1270 = vunpack.c.h.b16 %v98
  %v1271 = vunpack.c.l.b16 %v99
  %v1272 = vunpack.c.h.b16 %v99
  %v1273 = vunpack.c.l.b16 %v100
  %v1274 = vunpack.c.h.b16 %v100
  %v1275 = vunpack.c.l.b16 %v101
  %v1276 = vunpack.c.h.b16 %v101
  %v1277 = vunpack.c.l.b16 %v102
  %v1278 = vunpack.c.h.b16 %v102
  %v1279 = vunpack.c.l.b16 %v103
  %v1280 = vunpack.c.h.b16 %v103
  %v1281 = vunpack.c.l.b16 %v104
  %v1282 = vunpack.c.h.b16 %v104
  %v1283 = vunpack.c.l.b16 %v105
  %v1284 = vunpack.c.h.b16 %v105
  %v1285 = vunpack.c.l.b16 %v106
  %v1286 = vunpack.c.h.b16 %v106
  %v1287 = vunpack.c.l.b16 %v107
  %v1288 = vunpack.c.h.b16 %v107
  %v1289 = vunpack.c.l.b16 %v108
  %v1290 = vunpack.c.h.b16 %v108
  %v1291 = vunpack.c.l.b16 %v109
  %v1292 = vunpack.c.h.b16 %v109
  %v1293 = vunpack.c.l.b16 %v110
  %v1294 = vunpack.c.h.b16 %v110
  %v1295 = vunpack.c.l.b16 %v111
  %v1296 = vunpack.c.h.b16 %v111
  %v1297 = vunpack.c.l.b16 %v112
  %v1298 = vunpack.c.h.b16 %v112
  %v1299 = vunpack.c.l.b16 %v113
  %v1300 = vunpack.c.h.b16 %v113
  %v1301 = vunpack.c.l.b16 %v114
  %v1302 = vunpack.c.h.b16 %v114
  %v1303 = vunpack.c.l.b16 %v115
  %v1304 = vunpack.c.h.b16 %v115
  %v1305 = vunpack.c.l.b16 %v116
  %v1306 = vunpack.c.h.b16 %v116
  %v1307 = vunpack.c.l.b16 %v117
  %v1308 = vunpack.c.h.b16 %v117
  %v1309 = vunpack.c.l.b16 %v118
  %v1310 = vunpack.c.h.b16 %v118
  %v1311 = vunpack.c.l.b16 %v119
  %v1312 = vunpack.c.h.b16 %v119
  %v1313 = vunpack.c.l.b16 %v120
  %v1314 = vunpack.c.h.b16 %v120
  %v1315 = vunpack.c.l.b16 %v121
  %v1316 = vunpack.c.h.b16 %v121
  %v1317 = vunpack.c.l.b16 %v122
  %v1318 = vunpack.c.h.b16 %v122
  %v1319 = vunpack.c.l.b16 %v123
  %v1320 = vunpack.c.h.b16 %v123
  %v1321 = vunpack.c.l.b16 %v124
  %v1322 = vunpack.c.h.b16 %v124
  %v1323 = vunpack.c.l.b16 %v125
  %v1324 = vunpack.c.h.b16 %v125
  %v1325 = vunpack.c.l.b16 %v126
  %v1326 = vunpack.c.h.b16 %v126
  %v1327 = vunpack.c.l.b16 %v127
  %v1328 = vunpack.c.h.b16 %v127
  %v1329 = vunpack.c.l.b16 %v128
  %v1330 = vunpack.c.h.b16 %v128
  %v1331 = vunpack.c.l.b16 %v129
  %v1332 = vunpack.c.h.b16 %v129
  %v1333 = vunpack.c.l.b16 %v130
  %v1334 = vunpack.c.h.b16 %v130
  %v1335 = vunpack.c.l.b16 %v131
  %v1336 = vunpack.c.h.b16 %v131
  %v1337 = vunpack.c.l.b16 %v132
  %v1338 = vunpack.c.h.b16 %v132
  %v1339 = vunpack.c.l.b16 %v133
  %v1340 = vunpack.c.h.b16 %v133
  %v1341 = vunpack.c.l.b16 %v134
  %v1342 = vunpack.c.h.b16 %v134
  %v1343 = vunpack.c.l.b16 %v135
  %v1344 = vunpack.c.h.b16 %v135
  %v1345 = vunpack.c.l.b16 %v136
  %v1346 = vunpack.c.h.b16 %v136
  %v1347 = vunpack.c.l.b16 %v137
  %v1348 = vunpack.c.h.b16 %v137
  %v1349 = vunpack.c.l.b16 %v138
  %v1350 = vunpack.c.h.b16 %v138
  %v1351 = vunpack.c.l.b16 %v139
  %v1352 = vunpack.c.h.b16 %v139
  %v1353 = vunpack.c.l.b16 %v140
  %v1354 = vunpack.c.h.b16 %v140
  %v1355 = vunpack.c.l.b16 %v141
  %v1356 = vunpack.c.h.b16 %v141
  %v1357 = vunpack.c.l.b16 %v142
  %v1358 = vunpack.c.h.b16 %v142
  %v1359 = vunpack.c.l.b16 %v143
  %v1360 = vunpack.c.h.b16 %v143
  %v1361 = vunpack.c.l.b16 %v144
  %v1362 = vunpack.c.h.b16 %v144
  %v1363 = vunpack.c.l.b16 %v145
  %v1364 = vunpack.c.h.b16 %v145
  %v1365 = vunpack.c.l.b16 %v146
  %v1366 = vunpack.c.h.b16 %v146
  %v1367 = vunpack.c.l.b16 %v147
  %v1368 = vunpack.c.h.b16 %v147
  %v1369 = vunpack.c.l.b16 %v148
  %v1370 = vunpack.c.h.b16 %v148
  %v1371 = vunpack.c.l.b16 %v149
  %v1372 = vunpack.c.h.b16 %v149
  %v1373 = vunpack.c.l.b16 %v150
  %v1374 = vunpack.c.h.b16 %v150
  %v1375 = vunpack.c.l.b16 %v151
  %v1376 = vunpack.c.h.b16 %v151
  %v1377 = vunpack.c.l.b16 %v152
  %v1378 = vunpack.c.h.b16 %v152
  %v1379 = vunpack.c.l.b16 %v153
  %v1380 = vunpack.c.h.b16 %v153
  %v1381 = vunpack.c.l.b16 %v154
  %v1382 = vunpack.c.h.b16 %v154
  %v1383 = vunpack.c.l.b16 %v155
  %v1384 = vunpack.c.h.b16 %v155
  %v1385 = vunpack.c.l.b16 %v156
  %v1386 = vunpack.c.h.b16 %v156
  %v1387 = vunpack.c.l.b16 %v157
  %v1388 = vunpack.c.h.b16 %v157
  %v1389 = vunpack.c.l.b16 %v158
  %v1390 = vunpack.c.h.b16 %v158
  %v1391 = vunpack.c.l.b16 %v159
  %v1392 = vunpack.c.h.b16 %v159
  %v1393 = vunpack.c.l.b16 %v160
  %v1394 = vunpack.c.h.b16 %v160
  %v1395 = vunpack.c.l.b16 %v161
  %v1396 = vunpack.c.h.b16 %v161
  %v1397 = vunpack.c.l.b16 %v162
  %v1398 = vunpack.c.h.b16 %v162
  %v1399 = vunpack.c.l.b16 %v163
  %v1400 = vunpack.c.h.b16 %v163
  %v1401 = vunpack.c.l.b16 %v164
  %v1402 = vunpack.c.h.b16 %v164
  %v1403 = vunpack.c.l.b16 %v165
  %v1404 = vunpack.c.h.b16 %v165
  %v1405 = vunpack.c.l.b16 %v166
  %v1406 = vunpack.c.h.b16 %v166
  %v1407 = vunpack.c.l.b16 %v167
  %v1408 = vunpack.c.h.b16 %v167
  %v1409 = vunpack.c.l.b16 %v168
  %v1410 = vunpack.c.h.b16 %v168
  %v1411 = vunpack.c.l.b16 %v169
  %v1412 = vunpack.c.h.b16 %v169
  %v1413 = vunpack.c.l.b16 %v170
  %v1414 = vunpack.c.h.b16 %v170
  %v1415 = vunpack.c.l.b16 %v171
  %v1416 = vunpack.c.h.b16 %v171
  %v1417 = vunpack.c.l.b16 %v172
  %v1418 = vunpack.c.h.b16 %v172
  %v1419 = vunpack.c.l.b16 %v173
  %v1420 = vunpack.c.h.b16 %v173
  %v1421 = vunpack.c.l.b16 %v174
  %v1422 = vunpack.c.h.b16 %v174
  %v1423 = vunpack.c.l.b16 %v175
  %v1424 = vunpack.c.h.b16 %v175
  %v1425 = vunpack.c.l.b16 %v176
  %v1426 = vunpack.c.h.b16 %v176
  %v1427 = vunpack.c.l.b16 %v177
  %v1428 = vunpack.c.h.b16 %v177
  %v1429 = vunpack.c.l.b16 %v178
  %v1430 = vunpack.c.h.b16 %v178
  %v1431 = vunpack.c.l.b16 %v179
  %v1432 = vunpack.c.h.b16 %v179
  %v1433 = vunpack.c.l.b16 %v180
  %v1434 = vunpack.c.h.b16 %v180
  %v1435 = vunpack.c.l.b16 %v181
  %v1436 = vunpack.c.h.b16 %v181
  %v1437 = vunpack.c.l.b16 %v182
  %v1438 = vunpack.c.h.b16 %v182
  %v1439 = vunpack.c.l.b16 %v183
  %v1440 = vunpack.c.h.b16 %v183
  %v1441 = vunpack.c.l.b16 %v184
  %v1442 = vunpack.c.h.b16 %v184
  %v1443 = vunpack.c.l.b16 %v185
  %v1444 = vunpack.c.h.b16 %v185
  %v1445 = vunpack.c.l.b16 %v186
  %v1446 = vunpack.c.h.b16 %v186
  %v1447 = vunpack.c.l.b16 %v187
  %v1448 = vunpack.c.h.b16 %v187
  %v1449 = vunpack.c.l.b16 %v188
  %v1450 = vunpack.c.h.b16 %v188
  %v1451 = vunpack.c.l.b16 %v189
  %v1452 = vunpack.c.h.b16 %v189
  %v1453 = vunpack.c.l.b16 %v190
  %v1454 = vunpack.c.h.b16 %v190
  %v1455 = vunpack.c.l.b16 %v191
  %v1456 = vunpack.c.h.b16 %v191
  %v1457 = vunpack.c.l.b16 %v192
  %v1458 = vunpack.c.h.b16 %v192
  %v1459 = vunpack.c.l.b16 %v193
  %v1460 = vunpack.c.h.b16 %v193
  %v1461 = vunpack.c.l.b16 %v194
  %v1462 = vunpack.c.h.b16 %v194
  %v1463 = vunpack.c.l.b16 %v195
  %v1464 = vunpack.c.h.b16 %v195
  %v1465 = vunpack.c.l.b16 %v196
  %v1466 = vunpack.c.h.b16 %v196
  %v1467 = vunpack.c.l.b16 %v197
  %v1468 = vunpack.c.h.b16 %v197
  %v1469 = vunpack.c.l.b16 %v198
  %v1470 = vunpack.c.h.b16 %v198
  %v1471 = vunpack.c.l.b16 %v199
  %v1472 = vunpack.c.h.b16 %v199
  %v1473 = vunpack.c.l.b16 %v200
  %v1474 = vunpack.c.h.b16 %v200
  %v1475 = vunpack.c.l.b16 %v201
  %v1476 = vunpack.c.h.b16 %v201
  %v1477 = vunpack.c.l.b16 %v202
  %v1478 = vunpack.c.h.b16 %v202
  %v1479 = vunpack.c.l.b16 %v203
  %v1480 = vunpack.c.h.b16 %v203
  %v1481 = vunpack.c.l.b16 %v204
  %v1482 = vunpack.c.h.b16 %v204
  %v1483 = vunpack.c.l.b16 %v205
  %v1484 = vunpack.c.h.b16 %v205
  %v1485 = vunpack.c.l.b16 %v206
  %v1486 = vunpack.c.h.b16 %v206
  %v1487 = vunpack.c.l.b16 %v207
  %v1488 = vunpack.c.h.b16 %v207
  %v1489 = vunpack.c.l.b16 %v208
  %v1490 = vunpack.c.h.b16 %v208
  %v1491 = vunpack.c.l.b16 %v209
  %v1492 = vunpack.c.h.b16 %v209
  %v1493 = vunpack.c.l.b16 %v210
  %v1494 = vunpack.c.h.b16 %v210
  %v1495 = vunpack.c.l.b16 %v211
  %v1496 = vunpack.c.h.b16 %v211
  %v1497 = vunpack.c.l.b16 %v212
  %v1498 = vunpack.c.h.b16 %v212
  %v1499 = vunpack.c.l.b16 %v213
  %v1500 = vunpack.c.h.b16 %v213
  %v1501 = vunpack.c.l.b16 %v214
  %v1502 = vunpack.c.h.b16 %v214
  %v1503 = vunpack.c.l.b16 %v215
  %v1504 = vunpack.c.h.b16 %v215
  %v1505 = vunpack.c.l.b16 %v216
  %v1506 = vunpack.c.h.b16 %v216
  %v1507 = vunpack.c.l.b16 %v217
  %v1508 = vunpack.c.h.b16 %v217
  %v1509 = vunpack.c.l.b16 %v218
  %v1510 = vunpack.c.h.b16 %v218
  %v1511 = vunpack.c.l.b16 %v219
  %v1512 = vunpack.c.h.b16 %v219
  %v1513 = vunpack.c.l.b16 %v220
  %v1514 = vunpack.c.h.b16 %v220
  %v1515 = vunpack.c.l.b16 %v221
  %v1516 = vunpack.c.h.b16 %v221
  %v1517 = vunpack.c.l.b16 %v222
  %v1518 = vunpack.c.h.b16 %v222
  %v1519 = vunpack.c.l.b16 %v223
  %v1520 = vunpack.c.h.b16 %v223
  %v1521 = vunpack.c.l.b16 %v224
  %v1522 = vunpack.c.h.b16 %v224
  %v1523 = vunpack.c.l.b16 %v225
  %v1524 = vunpack.c.h.b16 %v225
  %v1525 = vunpack.c.l.b16 %v226
  %v1526 = vunpack.c.h.b16 %v226
  %v1527 = vunpack.c.l.b16 %v227
  %v1528 = vunpack.c.h.b16 %v227
  %v1529 = vunpack.c.l.b16 %v228
  %v1530 = vunpack.c.h.b16 %v228
  %v1531 = vunpack.c.l.b16 %v229
  %v1532 = vunpack.c.h.b16 %v229
  %v1533 = vunpack.c.l.b16 %v230
  %v1534 = vunpack.c.h.b16 %v230
  %v1535 = vunpack.c.l.b16 %v231
  %v1536 = vunpack.c.h.b16 %v231
  %v1537 = vunpack.c.l.b16 %v232
  %v1538 = vunpack.c.h.b16 %v232
  %v1539 = vunpack.c.l.b16 %v233
  %v1540 = vunpack.c.h.b16 %v233
  %v1541 = vunpack.c.l.b16 %v234
  %v1542 = vunpack.c.h.b16 %v234
  %v1543 = vunpack.c.l.b16 %v235
  %v1544 = vunpack.c.h.b16 %v235
  %v1545 = vunpack.c.l.b16 %v236
  %v1546 = vunpack.c.h.b16 %v236
  %v1547 = vunpack.c.l.b16 %v237
  %v1548 = vunpack.c.h.b16 %v237
  %v1549 = vunpack.c.l.b16 %v238
  %v1550 = vunpack.c.h.b16 %v238
  %v1551 = vunpack.c.l.b16 %v239
  %v1552 = vunpack.c.h.b16 %v239
  %v1553 = vunpack.c.l.b16 %v240
  %v1554 = vunpack.c.h.b16 %v240
  %v1555 = vunpack.c.l.b16 %v241
  %v1556 = vunpack.c.h.b16 %v241
  %v1557 = vunpack.c.l.b16 %v242
  %v1558 = vunpack.c.h.b16 %v242
  %v1559 = vunpack.c.l.b16 %v243
  %v1560 = vunpack.c.h.b16 %v243
  %v1561 = vunpack.c.l.b16 %v244
  %v1562 = vunpack.c.h.b16 %v244
  %v1563 = vunpack.c.l.b16 %v245
  %v1564 = vunpack.c.h.b16 %v245
  %v1565 = vunpack.c.l.b16 %v246
  %v1566 = vunpack.c.h.b16 %v246
  %v1567 = vunpack.c.l.b16 %v247
  %v1568 = vunpack.c.h.b16 %v247
  %v1569 = vunpack.c.l.b16 %v248
  %v1570 = vunpack.c.h.b16 %v248
  %v1571 = vunpack.c.l.b16 %v249
  %v1572 = vunpack.c.h.b16 %v249
  %v1573 = vunpack.c.l.b16 %v250
  %v1574 = vunpack.c.h.b16 %v250
  %v1575 = vunpack.c.l.b16 %v251
  %v1576 = vunpack.c.h.b16 %v251
  %v1577 = vunpack.c.l.b16 %v252
  %v1578 = vunpack.c.h.b16 %v252
  %v1579 = vunpack.c.l.b16 %v253
  %v1580 = vunpack.c.h.b16 %v253
  %v1581 = vunpack.c.l.b16 %v254
  %v1582 = vunpack.c.h.b16 %v254
  %v1583 = vunpack.c.l.b16 %v255
  %v1584 = vunpack.c.h.b16 %v255
  %v1585 = vunpack.c.l.b16 %v256
  %v1586 = vunpack.c.h.b16 %v256
  %v1587 = vunpack.c.l.b16 %v257
  %v1588 = vunpack.c.h.b16 %v257
  %v1589 = vunpack.c.l.b16 %v258
  %v1590 = vunpack.c.h.b16 %v258
  %v1591 = vunpack.c.l.b16 %v259
  %v1592 = vunpack.c.h.b16 %v259
  %v1593 = vunpack.c.l.b16 %v260
  %v1594 = vunpack.c.h.b16 %v260
  %v1595 = vunpack.c.l.b16 %v261
  %v1596 = vunpack.c.h.b16 %v261
  %v1597 = vunpack.c.l.b16 %v262
  %v1598 = vunpack.c.h.b16 %v262
  %v1599 = vunpack.c.l.b16 %v263
  %v1600 = vunpack.c.h.b16 %v263
  %v1601 = vunpack.c.l.b16 %v264
  %v1602 = vunpack.c.h.b16 %v264
  %v1603 = vunpack.c.l.b16 %v265
  %v1604 = vunpack.c.h.b16 %v265
  %v1605 = vunpack.c.l.b16 %v266
  %v1606 = vunpack.c.h.b16 %v266
  %v1607 = vunpack.c.l.b16 %v267
  %v1608 = vunpack.c.h.b16 %v267
  %v1609 = vunpack.c.l.b16 %v268
  %v1610 = vunpack.c.h.b16 %v268
  %v1611 = vunpack.c.l.b16 %v269
  %v1612 = vunpack.c.h.b16 %v269
  %v1613 = vunpack.c.l.b16 %v270
  %v1614 = vunpack.c.h.b16 %v270
  %v1615 = vunpack.c.l.b16 %v271
  %v1616 = vunpack.c.h.b16 %v271
  %v1617 = vunpack.c.l.b16 %v272
  %v1618 = vunpack.c.h.b16 %v272
  %v1619 = vunpack.c.l.b16 %v273
  %v1620 = vunpack.c.h.b16 %v273
  %v1621 = vunpack.c.l.b16 %v274
  %v1622 = vunpack.c.h.b16 %v274
  %v1623 = vunpack.c.l.b16 %v275
  %v1624 = vunpack.c.h.b16 %v275
  %v1625 = vunpack.c.l.b16 %v276
  %v1626 = vunpack.c.h.b16 %v276
  %v1627 = vunpack.c.l.b16 %v277
  %v1628 = vunpack.c.h.b16 %v277
  %v1629 = vunpack.c.l.b16 %v278
  %v1630 = vunpack.c.h.b16 %v278
  %v1631 = vunpack.c.l.b16 %v279
  %v1632 = vunpack.c.h.b16 %v279
  %v1633 = vunpack.c.l.b16 %v280
  %v1634 = vunpack.c.h.b16 %v280
  %v1635 = vunpack.c.l.b16 %v281
  %v1636 = vunpack.c.h.b16 %v281
  %v1637 = vunpack.c.l.b16 %v282
  %v1638 = vunpack.c.h.b16 %v282
  %v1639 = vunpack.c.l.b16 %v283
  %v1640 = vunpack.c.h.b16 %v283
  %v1641 = vunpack.c.l.b16 %v284
  %v1642 = vunpack.c.h.b16 %v284
  %v1643 = vunpack.c.l.b16 %v285
  %v1644 = vunpack.c.h.b16 %v285
  %v1645 = vunpack.c.l.b16 %v286
  %v1646 = vunpack.c.h.b16 %v286
  %v1647 = vunpack.c.l.b16 %v287
  %v1648 = vunpack.c.h.b16 %v287
  %v1649 = vunpack.c.l.b16 %v288
  %v1650 = vunpack.c.h.b16 %v288
  %v1651 = vunpack.c.l.b16 %v289
  %v1652 = vunpack.c.h.b16 %v289
  %v1653 = vunpack.c.l.b16 %v290
  %v1654 = vunpack.c.h.b16 %v290
  %v1655 = vunpack.c.l.b16 %v291
  %v1656 = vunpack.c.h.b16 %v291
  %v1657 = vunpack.c.l.b16 %v292
  %v1658 = vunpack.c.h.b16 %v292
  %v1659 = vunpack.c.l.b16 %v293
  %v1660 = vunpack.c.h.b16 %v293
  %v1661 = vunpack.c.l.b16 %v294
  %v1662 = vunpack.c.h.b16 %v294
  %v1663 = vunpack.c.l.b16 %v295
  %v1664 = vunpack.c.h.b16 %v295
  %v1665 = vunpack.c.l.b16 %v296
  %v1666 = vunpack.c.h.b16 %v296
  %v1667 = vunpack.c.l.b16 %v297
  %v1668 = vunpack.c.h.b16 %v297
  %v1669 = vunpack.c.l.b16 %v298
  %v1670 = vunpack.c.h.b16 %v298
  %v1671 = vunpack.c.l.b16 %v299
  %v1672 = vunpack.c.h.b16 %v299
  %v1673 = vunpack.c.l.b16 %v300
  %v1674 = vunpack.c.h.b16 %v300
  %v1675 = vunpack.c.l.b16 %v301
  %v1676 = vunpack.c.h.b16 %v301
  %v1677 = vunpack.c.l.b16 %v302
  %v1678 = vunpack.c.h.b16 %v302
  %v1679 = vunpack.c.l.b16 %v303
  %v1680 = vunpack.c.h.b16 %v303
  %v1681 = vunpack.c.l.b16 %v304
  %v1682 = vunpack.c.h.b16 %v304
  %v1683 = vunpack.c.l.b16 %v305
  %v1684 = vunpack.c.h.b16 %v305
  %v1685 = vunpack.c.l.b16 %v306
  %v1686 = vunpack.c.h.b16 %v306
  %v1687 = vunpack.c.l.b16 %v307
  %v1688 = vunpack.c.h.b16 %v307
  %v1689 = vunpack.c.l.b16 %v308
  %v1690 = vunpack.c.h.b16 %v308
  %v1691 = vunpack.c.l.b16 %v309
  %v1692 = vunpack.c.h.b16 %v309
  %v1693 = vunpack.c.l.b16 %v310
  %v1694 = vunpack.c.h.b16 %v310
  %v1695 = vunpack.c.l.b16 %v311
  %v1696 = vunpack.c.h.b16 %v311
  %v1697 = vunpack.c.l.b16 %v312
  %v1698 = vunpack.c.h.b16 %v312
  %v1699 = vunpack.c.l.b16 %v313
  %v1700 = vunpack.c.h.b16 %v313
  %v1701 = vunpack.c.l.b16 %v314
  %v1702 = vunpack.c.h.b16 %v314
  %v1703 = vunpack.c.l.b16 %v315
  %v1704 = vunpack.c.h.b16 %v315
  %v1705 = vunpack.c.l.b16 %v316
  %v1706 = vunpack.c.h.b16 %v316
  %v1707 = vunpack.c.l.b16 %v317
  %v1708 = vunpack.c.h.b16 %v317
  %v1709 = vunpack.c.l.b16 %v318
  %v1710 = vunpack.c.h.b16 %v318
  %v1711 = vunpack.c.l.b16 %v319
  %v1712 = vunpack.c.h.b16 %v319
  %v1713 = vunpack.c.l.b16 %v320
  %v1714 = vunpack.c.h.b16 %v320
  %v1715 = vunpack.c.l.b16 %v321
  %v1716 = vunpack.c.h.b16 %v321
  %v1717 = vunpack.c.l.b16 %v322
  %v1718 = vunpack.c.h.b16 %v322
  %v1719 = vunpack.c.l.b16 %v323
  %v1720 = vunpack.c.h.b16 %v323
  %v1721 = vunpack.c.l.b16 %v324
  %v1722 = vunpack.c.h.b16 %v324
  %v1723 = vunpack.c.l.b16 %v325
  %v1724 = vunpack.c.h.b16 %v325
  %v1725 = vunpack.c.l.b16 %v326
  %v1726 = vunpack.c.h.b16 %v326
  %v1727 = vunpack.c.l.b16 %v327
  %v1728 = vunpack.c.h.b16 %v327
  %v1729 = vunpack.c.l.b16 %v328
  %v1730 = vunpack.c.h.b16 %v328
  %v1731 = vunpack.c.l.b16 %v329
  %v1732 = vunpack.c.h.b16 %v329
  %v1733 = vunpack.c.l.b16 %v330
  %v1734 = vunpack.c.h.b16 %v330
  %v1735 = vunpack.c.l.b16 %v331
  %v1736 = vunpack.c.h.b16 %v331
  %v1737 = vunpack.c.l.b16 %v332
  %v1738 = vunpack.c.h.b16 %v332
  %v1739 = vunpack.c.l.b16 %v333
  %v1740 = vunpack.c.h.b16 %v333
  %v1741 = vunpack.c.l.b16 %v334
  %v1742 = vunpack.c.h.b16 %v334
  %v1743 = vunpack.c.l.b16 %v335
  %v1744 = vunpack.c.h.b16 %v335
  %v1745 = vunpack.c.l.b16 %v336
  %v1746 = vunpack.c.h.b16 %v336
  %v1747 = vunpack.c.l.b16 %v337
  %v1748 = vunpack.c.h.b16 %v337
  %v1749 = vunpack.c.l.b16 %v338
  %v1750 = vunpack.c.h.b16 %v338
  %v1751 = vunpack.c.l.b16 %v339
  %v1752 = vunpack.c.h.b16 %v339
  %v1753 = vunpack.c.l.b16 %v340
  %v1754 = vunpack.c.h.b16 %v340
  %v1755 = vunpack.c.l.b16 %v341
  %v1756 = vunpack.c.h.b16 %v341
  %v1757 = vunpack.c.l.b16 %v342
  %v1758 = vunpack.c.h.b16 %v342
  %v1759 = vunpack.c.l.b16 %v343
  %v1760 = vunpack.c.h.b16 %v343
  %v1761 = vunpack.c.l.b16 %v344
  %v1762 = vunpack.c.h.b16 %v344
  %v1763 = vunpack.c.l.b16 %v345
  %v1764 = vunpack.c.h.b16 %v345
  %v1765 = vunpack.c.l.b16 %v346
  %v1766 = vunpack.c.h.b16 %v346
  %v1767 = vunpack.c.l.b16 %v347
  %v1768 = vunpack.c.h.b16 %v347
  %v1769 = vunpack.c.l.b16 %v348
  %v1770 = vunpack.c.h.b16 %v348
  %v1771 = vunpack.c.l.b16 %v349
  %v1772 = vunpack.c.h.b16 %v349
  %v1773 = vunpack.c.l.b16 %v350
  %v1774 = vunpack.c.h.b16 %v350
  %v1775 = vunpack.c.l.b16 %v351
  %v1776 = vunpack.c.h.b16 %v351
  %v1777 = vunpack.c.l.b16 %v352
  %v1778 = vunpack.c.h.b16 %v352
  %v1779 = vunpack.c.l.b16 %v353
  %v1780 = vunpack.c.h.b16 %v353
  %v1781 = vunpack.c.l.b16 %v354
  %v1782 = vunpack.c.h.b16 %v354
  %v1783 = vunpack.c.l.b16 %v355
  %v1784 = vunpack.c.h.b16 %v355
  %v1785 = vunpack.c.l.b16 %v356
  %v1786 = vunpack.c.h.b16 %v356
  %v1787 = vunpack.c.l.b16 %v357
  %v1788 = vunpack.c.h.b16 %v357
  %v1789 = vunpack.c.l.b16 %v358
  %v1790 = vunpack.c.h.b16 %v358
  %v1791 = vunpack.c.l.b16 %v359
  %v1792 = vunpack.c.h.b16 %v359
  %v1793 = vunpack.c.l.b16 %v360
  %v1794 = vunpack.c.h.b16 %v360
  %v1795 = vunpack.c.l.b16 %v361
  %v1796 = vunpack.c.h.b16 %v361
  %v1797 = vunpack.c.l.b16 %v362
  %v1798 = vunpack.c.h.b16 %v362
  %v1799 = vunpack.c.l.b16 %v363
  %v1800 = vunpack.c.h.b16 %v363
  %v1801 = vunpack.c.l.b16 %v364
  %v1802 = vunpack.c.h.b16 %v364
  %v1803 = vunpack.c.l.b16 %v365
  %v1804 = vunpack.c.h.b16 %v365
  %v1805 = vunpack.c.l.b16 %v366
  %v1806 = vunpack.c.h.b16 %v366
  %v1807 = vunpack.c.l.b16 %v367
  %v1808 = vunpack.c.h.b16 %v367
  %v1809 = vunpack.c.l.b16 %v368
  %v1810 = vunpack.c.h.b16 %v368
  %v1811 = vunpack.c.l.b16 %v369
  %v1812 = vunpack.c.h.b16 %v369
  %v1813 = vunpack.c.l.b16 %v370
  %v1814 = vunpack.c.h.b16 %v370
  %v1815 = vunpack.c.l.b16 %v371
  %v1816 = vunpack.c.h.b16 %v371
  %v1817 = vunpack.c.l.b16 %v372
  %v1818 = vunpack.c.h.b16 %v372
  %v1819 = vunpack.c.l.b16 %v373
  %v1820 = vunpack.c.h.b16 %v373
  %v1821 = vunpack.c.l.b16 %v374
  %v1822 = vunpack.c.h.b16 %v374
  %v1823 = vunpack.c.l.b16 %v375
  %v1824 = vunpack.c.h.b16 %v375
  %v1825 = vunpack.c.l.b16 %v376
  %v1826 = vunpack.c.h.b16 %v376
  %v1827 = vunpack.c.l.b16 %v377
  %v1828 = vunpack.c.h.b16 %v377
  %v1829 = vunpack.c.l.b16 %v378
  %v1830 = vunpack.c.h.b16 %v378
  %v1831 = vunpack.c.l.b16 %v379
  %v1832 = vunpack.c.h.b16 %v379
  %v1833 = vunpack.c.l.b16 %v380
  %v1834 = vunpack.c.h.b16 %v380
  %v1835 = vunpack.c.l.b16 %v381
  %v1836 = vunpack.c.h.b16 %v381
  %v1837 = vunpack.c.l.b16 %v382
  %v1838 = vunpack.c.h.b16 %v382
  %v1839 = vunpack.c.l.b16 %v383
  %v1840 = vunpack.c.h.b16 %v383
  %v1841 = vunpack.c.l.b16 %v384
  %v1842 = vunpack.c.h.b16 %v384
  %v1843 = vunpack.c.l.b16 %v385
  %v1844 = vunpack.c.h.b16 %v385
  %v1845 = vunpack.c.l.b16 %v386
  %v1846 = vunpack.c.h.b16 %v386
  %v1847 = vunpack.c.l.b16 %v387
  %v1848 = vunpack.c.h.b16 %v387
  %v1849 = vunpack.c.l.b16 %v388
  %v1850 = vunpack.c.h.b16 %v388
  %v1851 = vunpack.c.l.b16 %v389
  %v1852 = vunpack.c.h.b16 %v389
  %v1853 = vunpack.c.l.b16 %v390
  %v1854 = vunpack.c.h.b16 %v390
  %v1855 = vunpack.c.l.b16 %v391
  %v1856 = vunpack.c.h.b16 %v391
  %v1857 = vunpack.c.l.b16 %v392
  %v1858 = vunpack.c.h.b16 %v392
  %v1859 = vunpack.c.l.b16 %v393
  %v1860 = vunpack.c.h.b16 %v393
  %v1861 = vunpack.c.l.b16 %v394
  %v1862 = vunpack.c.h.b16 %v394
  %v1863 = vunpack.c.l.b16 %v395
  %v1864 = vunpack.c.h.b16 %v395
  %v1865 = vunpack.c.l.b16 %v396
  %v1866 = vunpack.c.h.b16 %v396
  %v1867 = vunpack.c.l.b16 %v397
  %v1868 = vunpack.c.h.b16 %v397
  %v1869 = vunpack.c.l.b16 %v398
  %v1870 = vunpack.c.h.b16 %v398
  %v1871 = vunpack.c.l.b16 %v399
  %v1872 = vunpack.c.h.b16 %v399
  %v1873 = vunpack.c.l.b16 %v400
  %v1874 = vunpack.c.h.b16 %v400
  %v1875 = vunpack.c.l.b16 %v401
  %v1876 = vunpack.c.h.b16 %v401
  %v1877 = vunpack.c.l.b16 %v402
  %v1878 = vunpack.c.h.b16 %v402
  %v1879 = vunpack.c.l.b16 %v403
  %v1880 = vunpack.c.h.b16 %v403
  %v1881 = vunpack.c.l.b16 %v404
  %v1882 = vunpack.c.h.b16 %v404
  %v1883 = vunpack.c.l.b16 %v405
  %v1884 = vunpack.c.h.b16 %v405
  %v1885 = vunpack.c.l.b16 %v406
  %v1886 = vunpack.c.h.b16 %v406
  %v1887 = vunpack.c.l.b16 %v407
  %v1888 = vunpack.c.h.b16 %v407
  %v1889 = vunpack.c.l.b16 %v408
  %v1890 = vunpack.c.h.b16 %v408
  %v1891 = vunpack.c.l.b16 %v409
  %v1892 = vunpack.c.h.b16 %v409
  %v1893 = vunpack.c.l.b16 %v410
  %v1894 = vunpack.c.h.b16 %v410
  %v1895 = vunpack.c.l.b16 %v411
  %v1896 = vunpack.c.h.b16 %v411
  %v1897 = vunpack.c.l.b16 %v412
  %v1898 = vunpack.c.h.b16 %v412
  %v1899 = vunpack.c.l.b16 %v413
  %v1900 = vunpack.c.h.b16 %v413
  %v1901 = vunpack.c.l.b16 %v414
  %v1902 = vunpack.c.h.b16 %v414
  %v1903 = vunpack.c.l.b16 %v415
  %v1904 = vunpack.c.h.b16 %v415
  %v1905 = vunpack.c.l.b16 %v416
  %v1906 = vunpack.c.h.b16 %v416
  %v1907 = vunpack.c.l.b16 %v417
  %v1908 = vunpack.c.h.b16 %v417
  %v1909 = vunpack.c.l.b16 %v418
  %v1910 = vunpack.c.h.b16 %v418
  %v1911 = vunpack.c.l.b16 %v419
  %v1912 = vunpack.c.h.b16 %v419
  %v1913 = vunpack.c.l.b16 %v420
  %v1914 = vunpack.c.h.b16 %v420
  %v1915 = vunpack.c.l.b16 %v421
  %v1916 = vunpack.c.h.b16 %v421
  %v1917 = vunpack.c.l.b16 %v422
  %v1918 = vunpack.c.h.b16 %v422
  %v1919 = vunpack.c.l.b16 %v423
  %v1920 = vunpack.c.h.b16 %v423
  %v1921 = vunpack.c.l.b16 %v424
  %v1922 = vunpack.c.h.b16 %v424
  %v1923 = vunpack.c.l.b16 %v425
  %v1924 = vunpack.c.h.b16 %v425
  %v1925 = vunpack.c.l.b16 %v426
  %v1926 = vunpack.c.h.b16 %v426
  %v1927 = vunpack.c.l.b16 %v427
  %v1928 = vunpack.c.h.b16 %v427
  %v1929 = vunpack.c.l.b16 %v428
  %v1930 = vunpack.c.h.b16 %v428
  %v1931 = vunpack.c.l.b16 %v429
  %v1932 = vunpack.c.h.b16 %v429
  %v1933 = vunpack.c.l.b16 %v430
  %v1934 = vunpack.c.h.b16 %v430
  %v1935 = vunpack.c.l.b16 %v431
  %v1936 = vunpack.c.h.b16 %v431
  %v1937 = vunpack.c.l.b16 %v432
  %v1938 = vunpack.c.h.b16 %v432
  %v1939 = vunpack.c.l.b16 %v433
  %v1940 = vunpack.c.h.b16 %v433
  %v1941 = vunpack.c.l.b16 %v434
  %v1942 = vunpack.c.h.b16 %v434
  %v1943 = vunpack.c.l.b16 %v435
  %v1944 = vunpack.c.h.b16 %v435
  %v1945 = vunpack.c.l.b16 %v436
  %v1946 = vunpack.c.h.b16 %v436
  %v1947 = vunpack.c.l.b16 %v437
  %v1948 = vunpack.c.h.b16 %v437
  %v1949 = vunpack.c.l.b16 %v438
  %v1950 = vunpack.c.h.b16 %v438
  %v1951 = vunpack.c.l.b16 %v439
  %v1952 = vunpack.c.h.b16 %v439
  %v1953 = vunpack.c.l.b16 %v440
  %v1954 = vunpack.c.h.b16 %v440
  %v1955 = vunpack.c.l.b16 %v441
  %v1956 = vunpack.c.h.b16 %v441
  %v1957 = vunpack.c.l.b16 %v442
  %v1958 = vunpack.c.h.b16 %v442
  %v1959 = vunpack.c.l.b16 %v443
  %v1960 = vunpack.c.h.b16 %v443
  %v1961 = vunpack.c.l.b16 %v444
  %v1962 = vunpack.c.h.b16 %v444
  %v1963 = vunpack.c.l.b16 %v445
  %v1964 = vunpack.c.h.b16 %v445
  %v1965 = vunpack.c.l.b16 %v446
  %v1966 = vunpack.c.h.b16 %v446
  %v1967 = vunpack.c.l.b16 %v447
  %v1968 = vunpack.c.h.b16 %v447
  %v1969 = vunpack.c.l.b16 %v448
  %v1970 = vunpack.c.h.b16 %v448
  %v1971 = vunpack.c.l.b16 %v449
  %v1972 = vunpack.c.h.b16 %v449
  %v1973 = vunpack.c.l.b16 %v450
  %v1974 = vunpack.c.h.b16 %v450
  %v1975 = vunpack.c.l.b16 %v451
  %v1976 = vunpack.c.h.b16 %v451
  %v1977 = vunpack.c.l.b16 %v452
  %v1978 = vunpack.c.h.b16 %v452
  %v1979 = vunpack.c.l.b16 %v453
  %v1980 = vunpack.c.h.b16 %v453
  %v1981 = vunpack.c.l.b16 %v454
  %v1982 = vunpack.c.h.b16 %v454
  %v1983 = vunpack.c.l.b16 %v455
  %v1984 = vunpack.c.h.b16 %v455
  %v1985 = vunpack.c.l.b16 %v456
  %v1986 = vunpack.c.h.b16 %v456
  %v1987 = vunpack.c.l.b16 %v457
  %v1988 = vunpack.c.h.b16 %v457
  %v1989 = vunpack.c.l.b16 %v458
  %v1990 = vunpack.c.h.b16 %v458
  %v1991 = vunpack.c.l.b16 %v459
  %v1992 = vunpack.c.h.b16 %v459
  %v1993 = vunpack.c.l.b16 %v460
  %v1994 = vunpack.c.h.b16 %v460
  %v1995 = vunpack.c.l.b16 %v461
  %v1996 = vunpack.c.h.b16 %v461
  %v1997 = vunpack.c.l.b16 %v462
  %v1998 = vunpack.c.h.b16 %v462
  %v1999 = vunpack.c.l.b16 %v463
  %v2000 = vunpack.c.h.b16 %v463
  %v2001 = vunpack.c.l.b16 %v464
  %v2002 = vunpack.c.h.b16 %v464
  %v2003 = vunpack.c.l.b16 %v465
  %v2004 = vunpack.c.h.b16 %v465
  %v2005 = vunpack.c.l.b16 %v466
  %v2006 = vunpack.c.h.b16 %v466
  %v2007 = vunpack.c.l.b16 %v467
  %v2008 = vunpack.c.h.b16 %v467
  %v2009 = vunpack.c.l.b16 %v468
  %v2010 = vunpack.c.h.b16 %v468
  %v2011 = vunpack.c.l.b16 %v469
  %v2012 = vunpack.c.h.b16 %v469
  %v2013 = vunpack.c.l.b16 %v470
  %v2014 = vunpack.c.h.b16 %v470
  %v2015 = vunpack.c.l.b16 %v471
  %v2016 = vunpack.c.h.b16 %v471
  %v2017 = vunpack.c.l.b16 %v472
  %v2018 = vunpack.c.h.b16 %v472
  %v2019 = vunpack.c.l.b16 %v473
  %v2020 = vunpack.c.h.b16 %v473
  %v2021 = vunpack.c.l.b16 %v474
  %v2022 = vunpack.c.h.b16 %v474
  %v2023 = vunpack.c.l.b16 %v475
  %v2024 = vunpack.c.h.b16 %v475
  %v2025 = vunpack.c.l.b16 %v476
  %v2026 = vunpack.c.h.b16 %v476
  %v2027 = vunpack.c.l.b16 %v477
  %v2028 = vunpack.c.h.b16 %v477
  %v2029 = vunpack.c.l.b16 %v478
  %v2030 = vunpack.c.h.b16 %v478
  %v2031 = vunpack.c.l.b16 %v479
  %v2032 = vunpack.c.h.b16 %v479
  %v2033 = vunpack.c.l.b16 %v480
  %v2034 = vunpack.c.h.b16 %v480
  %v2035 = vunpack.c.l.b16 %v481
  %v2036 = vunpack.c.h.b16 %v481
  %v2037 = vunpack.c.l.b16 %v482
  %v2038 = vunpack.c.h.b16 %v482
  %v2039 = vunpack.c.l.b16 %v483
  %v2040 = vunpack.c.h.b16 %v483
  %v2041 = vunpack.c.l.b16 %v484
  %v2042 = vunpack.c.h.b16 %v484
  %v2043 = vunpack.c.l.b16 %v485
  %v2044 = vunpack.c.h.b16 %v485
  %v2045 = vunpack.c.l.b16 %v486
  %v2046 = vunpack.c.h.b16 %v486
  %v2047 = vunpack.c.l.b16 %v487
  %v2048 = vunpack.c.h.b16 %v487
  %v2049 = vunpack.c.l.b16 %v488
  %v2050 = vunpack.c.h.b16 %v488
  %v2051 = vunpack.c.l.b16 %v489
  %v2052 = vunpack.c.h.b16 %v489
  %v2053 = vunpack.c.l.b16 %v490
  %v2054 = vunpack.c.h.b16 %v490
  %v2055 = vunpack.c.l.b16 %v491
  %v2056 = vunpack.c.h.b16 %v491
  %v2057 = vunpack.c.l.b16 %v492
  %v2058 = vunpack.c.h.b16 %v492
  %v2059 = vunpack.c.l.b16 %v493
  %v2060 = vunpack.c.h.b16 %v493
  %v2061 = vunpack.c.l.b16 %v494
  %v2062 = vunpack.c.h.b16 %v494
  %v2063 = vunpack.c.l.b16 %v495
  %v2064 = vunpack.c.h.b16 %v495
  %v2065 = vunpack.c.l.b16 %v496
  %v2066 = vunpack.c.h.b16 %v496
  %v2067 = vunpack.c.l.b16 %v497
  %v2068 = vunpack.c.h.b16 %v497
  %v2069 = vunpack.c.l.b16 %v498
  %v2070 = vunpack.c.h.b16 %v498
  %v2071 = vunpack.c.l.b16 %v499
  %v2072 = vunpack.c.h.b16 %v499
  %v2073 = vunpack.c.l.b16 %v500
  %v2074 = vunpack.c.h.b16 %v500
  %v2075 = vunpack.c.l.b16 %v501
  %v2076 = vunpack.c.h.b16 %v501
  %v2077 = vunpack.c.l.b16 %v502
  %v2078 = vunpack.c.h.b16 %v502
  %v2079 = vunpack.c.l.b16 %v503
  %v2080 = vunpack.c.h.b16 %v503
  %v2081 = vunpack.c.l.b16 %v504
  %v2082 = vunpack.c.h.b16 %v504
  %v2083 = vunpack.c.l.b16 %v505
  %v2084 = vunpack.c.h.b16 %v505
  %v2085 = vunpack.c.l.b16 %v506
  %v2086 = vunpack.c.h.b16 %v506
  %v2087 = vunpack.c.l.b16 %v507
  %v2088 = vunpack.c.h.b16 %v507
  %v2089 = vunpack.c.l.b16 %v508
  %v2090 = vunpack.c.h.b16 %v508
  %v2091 = vunpack.c.l.b16 %v509
  %v2092 = vunpack.c.h.b16 %v509
  %v2093 = vunpack.c.l.b16 %v510
  %v2094 = vunpack.c.h.b16 %v510
  %v2095 = vunpack.c.l.b16 %v511
  %v2096 = vunpack.c.h.b16 %v511
  %v2097 = vunpack.c.l.b16 %v512
  %v2098 = vunpack.c.h.b16 %v512
  %v2099 = vunpack.c.l.b16 %v513
  %v2100 = vunpack.c.h.b16 %v513
  %v2101 = vunpack.c.l.b16 %v514
  %v2102 = vunpack.c.h.b16 %v514
  %v2103 = vunpack.c.l.b16 %v515
  %v2104 = vunpack.c.h.b16 %v515
  %v2105 = vunpack.c.l.b16 %v516
  %v2106 = vunpack.c.h.b16 %v516
  %v2107 = vunpack.c.l.b16 %v517
  %v2108 = vunpack.c.h.b16 %v517
  %v2109 = vunpack.c.l.b16 %v518
  %v2110 = vunpack.c.h.b16 %v518
  %v2111 = vunpack.c.l.b16 %v519
  %v2112 = vunpack.c.h.b16 %v519
  %v2113 = vunpack.c.l.b16 %v520
  %v2114 = vunpack.c.h.b16 %v520
  %v2115 = vunpack.c.l.b16 %v521
  %v2116 = vunpack.c.h.b16 %v521
  %v2117 = vunpack.c.l.b16 %v522
  %v2118 = vunpack.c.h.b16 %v522
  %v2119 = vunpack.c.l.b16 %v523
  %v2120 = vunpack.c.h.b16 %v523
  %v2121 = vunpack.c.l.b16 %v524
  %v2122 = vunpack.c.h.b16 %v524
  %v2123 = vunpack.c.l.b16 %v525
  %v2124 = vunpack.c.h.b16 %v525
  %v2125 = vunpack.c.l.b16 %v526
  %v2126 = vunpack.c.h.b16 %v526
  %v2127 = vunpack.c.l.b16 %v527
  %v2128 = vunpack.c.h.b16 %v527
  %v2129 = vunpack.c.l.b16 %v528
  %v2130 = vunpack.c.h.b16 %v528
  %v2131 = vunpack.c.l.b16 %v529
  %v2132 = vunpack.c.h.b16 %v529
  %v2133 = vunpack.c.l.b16 %v530
  %v2134 = vunpack.c.h.b16 %v530
  %v2135 = vunpack.c.l.b16 %v531
  %v2136 = vunpack.c.h.b16 %v531
  %v2137 = vunpack.c.l.b16 %v532
  %v2138 = vunpack.c.h.b16 %v532
  %v2139 = vunpack.c.l.b16 %v533
  %v2140 = vunpack.c.h.b16 %v533
  %v2141 = vunpack.c.l.b16 %v534
  %v2142 = vunpack.c.h.b16 %v534
  %v2143 = vunpack.c.l.b16 %v535
  %v2144 = vunpack.c.h.b16 %v535
  %v2145 = vunpack.c.l.b16 %v536
  %v2146 = vunpack.c.h.b16 %v536
  %v2147 = vunpack.c.l.b16 %v537
  %v2148 = vunpack.c.h.b16 %v537
  %v2149 = vunpack.c.l.b16 %v538
  %v2150 = vunpack.c.h.b16 %v538
  %v2151 = vunpack.c.l.b16 %v539
  %v2152 = vunpack.c.h.b16 %v539
  %v2153 = vunpack.c.l.b16 %v540
  %v2154 = vunpack.c.h.b16 %v540
  %v2155 = vpack.c.b16 %v1135, %v1131
  %v2156 = vpack.c.b16 %v1136, %v1132
  %v2157 = vpack.c.b16 %v1137, %v1133
  %v2158 = vpack.c.b16 %v1138, %v1134
  %v2159 = vpack.c.b16 %v1143, %v1139
  %v2160 = vpack.c.b16 %v1144, %v1140
  %v2161 = vpack.c.b16 %v1145, %v1141
  %v2162 = vpack.c.b16 %v1146, %v1142
  %v2163 = vpack.c.b16 %v1151, %v1147
  %v2164 = vpack.c.b16 %v1152, %v1148
  %v2165 = vpack.c.b16 %v1153, %v1149
  %v2166 = vpack.c.b16 %v1154, %v1150
  %v2167 = vpack.c.b16 %v1159, %v1155
  %v2168 = vpack.c.b16 %v1160, %v1156
  %v2169 = vpack.c.b16 %v1161, %v1157
  %v2170 = vpack.c.b16 %v1162, %v1158
  %v2171 = vpack.c.b16 %v1167, %v1163
  %v2172 = vpack.c.b16 %v1168, %v1164
  %v2173 = vpack.c.b16 %v1169, %v1165
  %v2174 = vpack.c.b16 %v1170, %v1166
  %v2175 = vpack.c.b16 %v1175, %v1171
  %v2176 = vpack.c.b16 %v1176, %v1172
  %v2177 = vpack.c.b16 %v1177, %v1173
  %v2178 = vpack.c.b16 %v1178, %v1174
  %v2179 = vpack.c.b16 %v1183, %v1179
  %v2180 = vpack.c.b16 %v1184, %v1180
  %v2181 = vpack.c.b16 %v1185, %v1181
  %v2182 = vpack.c.b16 %v1186, %v1182
  %v2183 = vpack.c.b16 %v1191, %v1187
  %v2184 = vpack.c.b16 %v1192, %v1188
  %v2185 = vpack.c.b16 %v1193, %v1189
  %v2186 = vpack.c.b16 %v1194, %v1190
  %v2187 = vpack.c.b16 %v1199, %v1195
  %v2188 = vpack.c.b16 %v1200, %v1196
  %v2189 = vpack.c.b16 %v1201, %v1197
  %v2190 = vpack.c.b16 %v1202, %v1198
  %v2191 = vpack.c.b16 %v1207, %v1203
  %v2192 = vpack.c.b16 %v1208, %v1204
  %v2193 = vpack.c.b16 %v1209, %v1205
  %v2194 = vpack.c.b16 %v1210, %v1206
  %v2195 = vpack.c.b16 %v1215, %v1211
  %v2196 = vpack.c.b16 %v1216, %v1212
  %v2197 = vpack.c.b16 %v1217, %v1213
  %v2198 = vpack.c.b16 %v1218, %v1214
  %v2199 = vpack.c.b16 %v1223, %v1219
  %v2200 = vpack.c.b16 %v1224, %v1220
  %v2201 = vpack.c.b16 %v1225, %v1221
  %v2202 = vpack.c.b16 %v1226, %v1222
  %v2203 = vpack.c.b16 %v1231, %v1227
  %v2204 = vpack.c.b16 %v1232, %v1228
  %v2205 = vpack.c.b16 %v1233, %v1229
  %v2206 = vpack.c.b16 %v1234, %v1230
  %v2207 = vpack.c.b16 %v1239, %v1235
  %v2208 = vpack.c.b16 %v1240, %v1236
  %v2209 = vpack.c.b16 %v1241, %v1237
  %v2210 = vpack.c.b16 %v1242, %v1238
  %v2211 = vpack.c.b16 %v1247, %v1243
  %v2212 = vpack.c.b16 %v1248, %v1244
  %v2213 = vpack.c.b16 %v1249, %v1245
  %v2214 = vpack.c.b16 %v1250, %v1246
  %v2215 = vpack.c.b16 %v1255, %v1251
  %v2216 = vpack.c.b16 %v1256, %v1252
  %v2217 = vpack.c.b16 %v1257, %v1253
  %v2218 = vpack.c.b16 %v1258, %v1254
  %v2219 = vpack.c.b16 %v1263, %v1259
  %v2220 = vpack.c.b16 %v1264, %v1260
  %v2221 = vpack.c.b16 %v1265, %v1261
  %v2222 = vpack.c.b16 %v1266, %v1262
  %v2223 = vpack.c.b16 %v1271, %v1267
  %v2224 = vpack.c.b16 %v1272, %v1268
  %v2225 = vpack.c.b16 %v1273, %v1269
  %v2226 = vpack.c.b16 %v1274, %v1270
  %v2227 = vpack.c.b16 %v1279, %v1275
  %v2228 = vpack.c.b16 %v1280, %v1276
  %v2229 = vpack.c.b16 %v1281, %v1277
  %v2230 = vpack.c.b16 %v1282, %v1278
  %v2231 = vpack.c.b16 %v1287, %v1283
  %v2232 = vpack.c.b16 %v1288, %v1284
  %v2233 = vpack.c.b16 %v1289, %v1285
  %v2234 = vpack.c.b16 %v1290, %v1286
  %v2235 = vpack.c.b16 %v1295, %v1291
  %v2236 = vpack.c.b16 %v1296, %v1292
  %v2237 = vpack.c.b16 %v1297, %v1293
  %v2238 = vpack.c.b16 %v1298, %v1294
  %v2239 = vpack.c.b16 %v1303, %v1299
  %v2240 = vpack.c.b16 %v1304, %v1300
  %v2241 = vpack.c.b16 %v1305, %v1301
  %v2242 = vpack.c.b16 %v1306, %v1302
  %v2243 = vpack.c.b16 %v1311, %v1307
  %v2244 = vpack.c.b16 %v1312, %v1308
  %v2245 = vpack.c.b16 %v1313, %v1309
  %v2246 = vpack.c.b16 %v1314, %v1310
  %v2247 = vpack.c.b16 %v1319, %v1315
  %v2248 = vpack.c.b16 %v1320, %v1316
  %v2249 = vpack.c.b16 %v1321, %v1317
  %v2250 = vpack.c.b16 %v1322, %v1318
  %v2251 = vpack.c.b16 %v1327, %v1323
  %v2252 = vpack.c.b16 %v1328, %v1324
  %v2253 = vpack.c.b16 %v1329, %v1325
  %v2254 = vpack.c.b16 %v1330, %v1326
  %v2255 = vpack.c.b16 %v1335, %v1331
  %v2256 = vpack.c.b16 %v1336, %v1332
  %v2257 = vpack.c.b16 %v1337, %v1333
  %v2258 = vpack.c.b16 %v1338, %v1334
  %v2259 = vpack.c.b16 %v1343, %v1339
  %v2260 = vpack.c.b16 %v1344, %v1340
  %v2261 = vpack.c.b16 %v1345, %v1341
  %v2262 = vpack.c.b16 %v1346, %v1342
  %v2263 = vpack.c.b16 %v1351, %v1347
  %v2264 = vpack.c.b16 %v1352, %v1348
  %v2265 = vpack.c.b16 %v1353, %v1349
  %v2266 = vpack.c.b16 %v1354, %v1350
  %v2267 = vpack.c.b16 %v1359, %v1355
  %v2268 = vpack.c.b16 %v1360, %v1356
  %v2269 = vpack.c.b16 %v1361, %v1357
  %v2270 = vpack.c.b16 %v1362, %v1358
  %v2271 = vpack.c.b16 %v1367, %v1363
  %v2272 = vpack.c.b16 %v1368, %v1364
  %v2273 = vpack.c.b16 %v1369, %v1365
  %v2274 = vpack.c.b16 %v1370, %v1366
  %v2275 = vpack.c.b16 %v1375, %v1371
  %v2276 = vpack.c.b16 %v1376, %v1372
  %v2277 = vpack.c.b16 %v1377, %v1373
  %v2278 = vpack.c.b16 %v1378, %v1374
  %v2279 = vpack.c.b16 %v1383, %v1379
  %v2280 = vpack.c.b16 %v1384, %v1380
  %v2281 = vpack.c.b16 %v1385, %v1381
  %v2282 = vpack.c.b16 %v1386, %v1382
  %v2283 = vpack.c.b16 %v1391, %v1387
  %v2284 = vpack.c.b16 %v1392, %v1388
  %v2285 = vpack.c.b16 %v1393, %v1389
  %v2286 = vpack.c.b16 %v1394, %v1390
  %v2287 = vpack.c.b16 %v1399, %v1395
  %v2288 = vpack.c.b16 %v1400, %v1396
  %v2289 = vpack.c.b16 %v1401, %v1397
  %v2290 = vpack.c.b16 %v1402, %v1398
  %v2291 = vpack.c.b16 %v1407, %v1403
  %v2292 = vpack.c.b16 %v1408, %v1404
  %v2293 = vpack.c.b16 %v1409, %v1405
  %v2294 = vpack.c.b16 %v1410, %v1406
  %v2295 = vpack.c.b16 %v1415, %v1411
  %v2296 = vpack.c.b16 %v1416, %v1412
  %v2297 = vpack.c.b16 %v1417, %v1413
  %v2298 = vpack.c.b16 %v1418, %v1414
  %v2299 = vpack.c.b16 %v1423, %v1419
  %v2300 = vpack.c.b16 %v1424, %v1420
  %v2301 = vpack.c.b16 %v1425, %v1421
  %v2302 = vpack.c.b16 %v1426, %v1422
  %v2303 = vpack.c.b16 %v1431, %v1427
  %v2304 = vpack.c.b16 %v1432, %v1428
  %v2305 = vpack.c.b16 %v1433, %v1429
  %v2306 = vpack.c.b16 %v1434, %v1430
  %v2307 = vpack.c.b16 %v1439, %v1435
  %v2308 = vpack.c.b16 %v1440, %v1436
  %v2309 = vpack.c.b16 %v1441, %v1437
  %v2310 = vpack.c.b16 %v1442, %v1438
  %v2311 = vpack.c.b16 %v1447, %v1443
  %v2312 = vpack.c.b16 %v1448, %v1444
  %v2313 = vpack.c.b16 %v1449, %v1445
  %v2314 = vpack.c.b16 %v1450, %v1446
  %v2315 = vpack.c.b16 %v1455, %v1451
  %v2316 = vpack.c.b16 %v1456, %v1452
  %v2317 = vpack.c.b16 %v1457, %v1453
  %v2318 = vpack.c.b16 %v1458, %v1454
  %v2319 = vpack.c.b16 %v1463, %v1459
  %v2320 = vpack.c.b16 %v1464, %v1460
  %v2321 = vpack.c.b16 %v1465, %v1461
  %v2322 = vpack.c.b16 %v1466, %v1462
  %v2323 = vpack.c.b16 %v1471, %v1467
  %v2324 = vpack.c.b16 %v1472, %v1468
  %v2325 = vpack.c.b16 %v1473, %v1469
  %v2326 = vpack.c.b16 %v1474, %v1470
  %v2327 = vpack.c.b16 %v1479, %v1475
  %v2328 = vpack.c.b16 %v1480, %v1476
  %v2329 = vpack.c.b16 %v1481, %v1477
  %v2330 = vpack.c.b16 %v1482, %v1478
  %v2331 = vpack.c.b16 %v1487, %v1483
  %v2332 = vpack.c.b16 %v1488, %v1484
  %v2333 = vpack.c.b16 %v1489, %v1485
  %v2334 = vpack.c.b16 %v1490, %v1486
  %v2335 = vpack.c.b16 %v1495, %v1491
  %v2336 = vpack.c.b16 %v1496, %v1492
  %v2337 = vpack.c.b16 %v1497, %v1493
  %v2338 = vpack.c.b16 %v1498, %v1494
  %v2339 = vpack.c.b16 %v1503, %v1499
  %v2340 = vpack.c.b16 %v1504, %v1500
  %v2341 = vpack.c.b16 %v1505, %v1501
  %v2342 = vpack.c.b16 %v1506, %v1502
  %v2343 = vpack.c.b16 %v1511, %v1507
  %v2344 = vpack.c.b16 %v1512, %v1508
  %v2345 = vpack.c.b16 %v1513, %v1509
  %v2346 = vpack.c.b16 %v1514, %v1510
  %v2347 = vpack.c.b16 %v1519, %v1515
  %v2348 = vpack.c.b16 %v1520, %v1516
  %v2349 = vpack.c.b16 %v1521, %v1517
  %v2350 = vpack.c.b16 %v1522, %v1518
  %v2351 = vpack.c.b16 %v1527, %v1523
  %v2352 = vpack.c.b16 %v1528, %v1524
  %v2353 = vpack.c.b16 %v1529, %v1525
  %v2354 = vpack.c.b16 %v1530, %v1526
  %v2355 = vpack.c.b16 %v1535, %v1531
  %v2356 = vpack.c.b16 %v1536, %v1532
  %v2357 = vpack.c.b16 %v1537, %v1533
  %v2358 = vpack.c.b16 %v1538, %v1534
  %v2359 = vpack.c.b16 %v1543, %v1539
  %v2360 = vpack.c.b16 %v1544, %v1540
  %v2361 = vpack.c.b16 %v1545, %v1541
  %v2362 = vpack.c.b16 %v1546, %v1542
  %v2363 = vpack.c.b16 %v1551, %v1547
  %v2364 = vpack.c.b16 %v1552, %v1548
  %v2365 = vpack.c.b16 %v1553, %v1549
  %v2366 = vpack.c.b16 %v1554, %v1550
  %v2367 = vpack.c.b16 %v1559, %v1555
  %v2368 = vpack.c.b16 %v1560, %v1556
  %v2369 = vpack.c.b16 %v1561, %v1557
  %v2370 = vpack.c.b16 %v1562, %v1558
  %v2371 = vpack.c.b16 %v1567, %v1563
  %v2372 = vpack.c.b16 %v1568, %v1564
  %v2373 = vpack.c.b16 %v1569, %v1565
  %v2374 = vpack.c.b16 %v1570, %v1566
  %v2375 = vpack.c.b16 %v1575, %v1571
  %v2376 = vpack.c.b16 %v1576, %v1572
  %v2377 = vpack.c.b16 %v1577, %v1573
  %v2378 = vpack.c.b16 %v1578, %v1574
  %v2379 = vpack.c.b16 %v1583, %v1579
  %v2380 = vpack.c.b16 %v1584, %v1580
  %v2381 = vpack.c.b16 %v1585, %v1581
  %v2382 = vpack.c.b16 %v1586, %v1582
  %v2383 = vpack.c.b16 %v1591, %v1587
  %v2384 = vpack.c.b16 %v1592, %v1588
  %v2385 = vpack.c.b16 %v1593, %v1589
  %v2386 = vpack.c.b16 %v1594, %v1590
  %v2387 = vpack.c.b16 %v1599, %v1595
  %v2388 = vpack.c.b16 %v1600, %v1596
  %v2389 = vpack.c.b16 %v1601, %v1597
  %v2390 = vpack.c.b16 %v1602, %v1598
  %v2391 = vpack.c.b16 %v1607, %v1603
  %v2392 = vpack.c.b16 %v1608, %v1604
  %v2393 = vpack.c.b16 %v1609, %v1605
  %v2394 = vpack.c.b16 %v1610, %v1606
  %v2395 = vpack.c.b16 %v1615, %v1611
  %v2396 = vpack.c.b16 %v1616, %v1612
  %v2397 = vpack.c.b16 %v1617, %v1613
  %v2398 = vpack.c.b16 %v1618, %v1614
  %v2399 = vpack.c.b16 %v1623, %v1619
  %v2400 = vpack.c.b16 %v1624, %v1620
  %v2401 = vpack.c.b16 %v1625, %v1621
  %v2402 = vpack.c.b16 %v1626, %v1622
  %v2403 = vpack.c.b16 %v1631, %v1627
  %v2404 = vpack.c.b16 %v1632, %v1628
  %v2405 = vpack.c.b16 %v1633, %v1629
  %v2406 = vpack.c.b16 %v1634, %v1630
  %v2407 = vpack.c.b16 %v1639, %v1635
  %v2408 = vpack.c.b16 %v1640, %v1636
  %v2409 = vpack.c.b16 %v1641, %v1637
  %v2410 = vpack.c.b16 %v1642, %v1638
  %v2411 = vpack.c.b16 %v1647, %v1643
  %v2412 = vpack.c.b16 %v1648, %v1644
  %v2413 = vpack.c.b16 %v1649, %v1645
  %v2414 = vpack.c.b16 %v1650, %v1646
  %v2415 = vpack.c.b16 %v1655, %v1651
  %v2416 = vpack.c.b16 %v1656, %v1652
  %v2417 = vpack.c.b16 %v1657, %v1653
  %v2418 = vpack.c.b16 %v1658, %v1654
  %v2419 = vpack.c.b16 %v1663, %v1659
  %v2420 = vpack.c.b16 %v1664, %v1660
  %v2421 = vpack.c.b16 %v1665, %v1661
  %v2422 = vpack.c.b16 %v1666, %v1662
  %v2423 = vpack.c.b16 %v1671, %v1667
  %v2424 = vpack.c.b16 %v1672, %v1668
  %v2425 = vpack.c.b16 %v1673, %v1669
  %v2426 = vpack.c.b16 %v1674, %v1670
  %v2427 = vpack.c.b16 %v1679, %v1675
  %v2428 = vpack.c.b16 %v1680, %v1676
  %v2429 = vpack.c.b16 %v1681, %v1677
  %v2430 = vpack.c.b16 %v1682, %v1678
  %v2431 = vpack.c.b16 %v1687, %v1683
  %v2432 = vpack.c.b16 %v1688, %v1684
  %v2433 = vpack.c.b16 %v1689, %v1685
  %v2434 = vpack.c.b16 %v1690, %v1686
  %v2435 = vpack.c.b16 %v1695, %v1691
  %v2436 = vpack.c.b16 %v1696, %v1692
  %v2437 = vpack.c.b16 %v1697, %v1693
  %v2438 = vpack.c.b16 %v1698, %v1694
  %v2439 = vpack.c.b16 %v1703, %v1699
  %v2440 = vpack.c.b16 %v1704, %v1700
  %v2441 = vpack.c.b16 %v1705, %v1701
  %v2442 = vpack.c.b16 %v1706, %v1702
  %v2443 = vpack.c.b16 %v1711, %v1707
  %v2444 = vpack.c.b16 %v1712, %v1708
  %v2445 = vpack.c.b16 %v1713, %v1709
  %v2446 = vpack.c.b16 %v1714, %v1710
  %v2447 = vpack.c.b16 %v1719, %v1715
  %v2448 = vpack.c.b16 %v1720, %v1716
  %v2449 = vpack.c.b16 %v1721, %v1717
  %v2450 = vpack.c.b16 %v1722, %v1718
  %v2451 = vpack.c.b16 %v1727, %v1723
  %v2452 = vpack.c.b16 %v1728, %v1724
  %v2453 = vpack.c.b16 %v1729, %v1725
  %v2454 = vpack.c.b16 %v1730, %v1726
  %v2455 = vpack.c.b16 %v1735, %v1731
  %v2456 = vpack.c.b16 %v1736, %v1732
  %v2457 = vpack.c.b16 %v1737, %v1733
  %v2458 = vpack.c.b16 %v1738, %v1734
  %v2459 = vpack.c.b16 %v1743, %v1739
  %v2460 = vpack.c.b16 %v1744, %v1740
  %v2461 = vpack.c.b16 %v1745, %v1741
  %v2462 = vpack.c.b16 %v1746, %v1742
  %v2463 = vpack.c.b16 %v1751, %v1747
  %v2464 = vpack.c.b16 %v1752, %v1748
  %v2465 = vpack.c.b16 %v1753, %v1749
  %v2466 = vpack.c.b16 %v1754, %v1750
  %v2467 = vpack.c.b16 %v1759, %v1755
  %v2468 = vpack.c.b16 %v1760, %v1756
  %v2469 = vpack.c.b16 %v1761, %v1757
  %v2470 = vpack.c.b16 %v1762, %v1758
  %v2471 = vpack.c.b16 %v1767, %v1763
  %v2472 = vpack.c.b16 %v1768, %v1764
  %v2473 = vpack.c.b16 %v1769, %v1765
  %v2474 = vpack.c.b16 %v1770, %v1766
  %v2475 = vpack.c.b16 %v1775, %v1771
  %v2476 = vpack.c.b16 %v1776, %v1772
  %v2477 = vpack.c.b16 %v1777, %v1773
  %v2478 = vpack.c.b16 %v1778, %v1774
  %v2479 = vpack.c.b16 %v1783, %v1779
  %v2480 = vpack.c.b16 %v1784, %v1780
  %v2481 = vpack.c.b16 %v1785, %v1781
  %v2482 = vpack.c.b16 %v1786, %v1782
  %v2483 = vpack.c.b16 %v1791, %v1787
  %v2484 = vpack.c.b16 %v1792, %v1788
  %v2485 = vpack.c.b16 %v1793, %v1789
  %v2486 = vpack.c.b16 %v1794, %v1790
  %v2487 = vpack.c.b16 %v1799, %v1795
  %v2488 = vpack.c.b16 %v1800, %v1796
  %v2489 = vpack.c.b16 %v1801, %v1797
  %v2490 = vpack.c.b16 %v1802, %v1798
  %v2491 = vpack.c.b16 %v1807, %v1803
  %v2492 = vpack.c.b16 %v1808, %v1804
  %v2493 = vpack.c.b16 %v1809, %v1805
  %v2494 = vpack.c.b16 %v1810, %v1806
  %v2495 = vpack.c.b16 %v1815, %v1811
  %v2496 = vpack.c.b16 %v1816, %v1812
  %v2497 = vpack.c.b16 %v1817, %v1813
  %v2498 = vpack.c.b16 %v1818, %v1814
  %v2499 = vpack.c.b16 %v1823, %v1819
  %v2500 = vpack.c.b16 %v1824, %v1820
  %v2501 = vpack.c.b16 %v1825, %v1821
  %v2502 = vpack.c.b16 %v1826, %v1822
  %v2503 = vpack.c.b16 %v1831, %v1827
  %v2504 = vpack.c.b16 %v1832, %v1828
  %v2505 = vpack.c.b16 %v1833, %v1829
  %v2506 = vpack.c.b16 %v1834, %v1830
  %v2507 = vpack.c.b16 %v1839, %v1835
  %v2508 = vpack.c.b16 %v1840, %v1836
  %v2509 = vpack.c.b16 %v1841, %v1837
  %v2510 = vpack.c.b16 %v1842, %v1838
  %v2511 = vpack.c.b16 %v1847, %v1843
  %v2512 = vpack.c.b16 %v1848, %v1844
  %v2513 = vpack.c.b16 %v1849, %v1845
  %v2514 = vpack.c.b16 %v1850, %v1846
  %v2515 = vpack.c.b16 %v1855, %v1851
  %v2516 = vpack.c.b16 %v1856, %v1852
  %v2517 = vpack.c.b16 %v1857, %v1853
  %v2518 = vpack.c.b16 %v1858, %v1854
  %v2519 = vpack.c.b16 %v1863, %v1859
  %v2520 = vpack.c.b16 %v1864, %v1860
  %v2521 = vpack.c.b16 %v1865, %v1861
  %v2522 = vpack.c.b16 %v1866, %v1862
  %v2523 = vpack.c.b16 %v1871, %v1867
  %v2524 = vpack.c.b16 %v1872, %v1868
  %v2525 = vpack.c.b16 %v1873, %v1869
  %v2526 = vpack.c.b16 %v1874, %v1870
  %v2527 = vpack.c.b16 %v1879, %v1875
  %v2528 = vpack.c.b16 %v1880, %v1876
  %v2529 = vpack.c.b16 %v1881, %v1877
  %v2530 = vpack.c.b16 %v1882, %v1878
  %v2531 = vpack.c.b16 %v1887, %v1883
  %v2532 = vpack.c.b16 %v1888, %v1884
  %v2533 = vpack.c.b16 %v1889, %v1885
  %v2534 = vpack.c.b16 %v1890, %v1886
  %v2535 = vpack.c.b16 %v1895, %v1891
  %v2536 = vpack.c.b16 %v1896, %v1892
  %v2537 = vpack.c.b16 %v1897, %v1893
  %v2538 = vpack.c.b16 %v1898, %v1894
  %v2539 = vpack.c.b16 %v1903, %v1899
  %v2540 = vpack.c.b16 %v1904, %v1900
  %v2541 = vpack.c.b16 %v1905, %v1901
  %v2542 = vpack.c.b16 %v1906, %v1902
  %v2543 = vpack.c.b16 %v1911, %v1907
  %v2544 = vpack.c.b16 %v1912, %v1908
  %v2545 = vpack.c.b16 %v1913, %v1909
  %v2546 = vpack.c.b16 %v1914, %v1910
  %v2547 = vpack.c.b16 %v1919, %v1915
  %v2548 = vpack.c.b16 %v1920, %v1916
  %v2549 = vpack.c.b16 %v1921, %v1917
  %v2550 = vpack.c.b16 %v1922, %v1918
  %v2551 = vpack.c.b16 %v1927, %v1923
  %v2552 = vpack.c.b16 %v1928, %v1924
  %v2553 = vpack.c.b16 %v1929, %v1925
  %v2554 = vpack.c.b16 %v1930, %v1926
  %v2555 = vpack.c.b16 %v1935, %v1931
  %v2556 = vpack.c.b16 %v1936, %v1932
  %v2557 = vpack.c.b16 %v1937, %v1933
  %v2558 = vpack.c.b16 %v1938, %v1934
  %v2559 = vpack.c.b16 %v1943, %v1939
  %v2560 = vpack.c.b16 %v1944, %v1940
  %v2561 = vpack.c.b16 %v1945, %v1941
  %v2562 = vpack.c.b16 %v1946, %v1942
  %v2563 = vpack.c.b16 %v1951, %v1947
  %v2564 = vpack.c.b16 %v1952, %v1948
  %v2565 = vpack.c.b16 %v1953, %v1949
  %v2566 = vpack.c.b16 %v1954, %v1950
  %v2567 = vpack.c.b16 %v1959, %v1955
  %v2568 = vpack.c.b16 %v1960, %v1956
  %v2569 = vpack.c.b16 %v1961, %v1957
  %v2570 = vpack.c.b16 %v1962, %v1958
  %v2571 = vpack.c.b16 %v1967, %v1963
  %v2572 = vpack.c.b16 %v1968, %v1964
  %v2573 = vpack.c.b16 %v1969, %v1965
  %v2574 = vpack.c.b16 %v1970, %v1966
  %v2575 = vpack.c.b16 %v1975, %v1971
  %v2576 = vpack.c.b16 %v1976, %v1972
  %v2577 = vpack.c.b16 %v1977, %v1973
  %v2578 = vpack.c.b16 %v1978, %v1974
  %v2579 = vpack.c.b16 %v1983, %v1979
  %v2580 = vpack.c.b16 %v1984, %v1980
  %v2581 = vpack.c.b16 %v1985, %v1981
  %v2582 = vpack.c.b16 %v1986, %v1982
  %v2583 = vpack.c.b16 %v1991, %v1987
  %v2584 = vpack.c.b16 %v1992, %v1988
  %v2585 = vpack.c.b16 %v1993, %v1989
  %v2586 = vpack.c.b16 %v1994, %v1990
  %v2587 = vpack.c.b16 %v1999, %v1995
  %v2588 = vpack.c.b16 %v2000, %v1996
  %v2589 = vpack.c.b16 %v2001, %v1997
  %v2590 = vpack.c.b16 %v2002, %v1998
  %v2591 = vpack.c.b16 %v2007, %v2003
  %v2592 = vpack.c.b16 %v2008, %v2004
  %v2593 = vpack.c.b16 %v2009, %v2005
  %v2594 = vpack.c.b16 %v2010, %v2006
  %v2595 = vpack.c.b16 %v2015, %v2011
  %v2596 = vpack.c.b16 %v2016, %v2012
  %v2597 = vpack.c.b16 %v2017, %v2013
  %v2598 = vpack.c.b16 %v2018, %v2014
  %v2599 = vpack.c.b16 %v2023, %v2019
  %v2600 = vpack.c.b16 %v2024, %v2020
  %v2601 = vpack.c.b16 %v2025, %v2021
  %v2602 = vpack.c.b16 %v2026, %v2022
  %v2603 = vpack.c.b16 %v2031, %v2027
  %v2604 = vpack.c.b16 %v2032, %v2028
  %v2605 = vpack.c.b16 %v2033, %v2029
  %v2606 = vpack.c.b16 %v2034, %v2030
  %v2607 = vpack.c.b16 %v2039, %v2035
  %v2608 = vpack.c.b16 %v2040, %v2036
  %v2609 = vpack.c.b16 %v2041, %v2037
  %v2610 = vpack.c.b16 %v2042, %v2038
  %v2611 = vpack.c.b16 %v2047, %v2043
  %v2612 = vpack.c.b16 %v2048, %v2044
  %v2613 = vpack.c.b16 %v2049, %v2045
  %v2614 = vpack.c.b16 %v2050, %v2046
  %v2615 = vpack.c.b16 %v2055, %v2051
  %v2616 = vpack.c.b16 %v2056, %v2052
  %v2617 = vpack.c.b16 %v2057, %v2053
  %v2618 = vpack.c.b16 %v2058, %v2054
  %v2619 = vpack.c.b16 %v2063, %v2059
  %v2620 = vpack.c.b16 %v2064, %v2060
  %v2621 = vpack.c.b16 %v2065, %v2061
  %v2622 = vpack.c.b16 %v2066, %v2062
  %v2623 = vpack.c.b16 %v2071, %v2067
  %v2624 = vpack.c.b16 %v2072, %v2068
  %v2625 = vpack.c.b16 %v2073, %v2069
  %v2626 = vpack.c.b16 %v2074, %v2070
  %v2627 = vpack.c.b16 %v2079, %v2075
  %v2628 = vpack.c.b16 %v2080, %v2076
  %v2629 = vpack.c.b16 %v2081, %v2077
  %v2630 = vpack.c.b16 %v2082, %v2078
  %v2631 = vpack.c.b16 %v2087, %v2083
  %v2632 = vpack.c.b16 %v2088, %v2084
  %v2633 = vpack.c.b16 %v2089, %v2085
  %v2634 = vpack.c.b16 %v2090, %v2086
  %v2635 = vpack.c.b16 %v2095, %v2091
  %v2636 = vpack.c.b16 %v2096, %v2092
  %v2637 = vpack.c.b16 %v2097, %v2093
  %v2638 = vpack.c.b16 %v2098, %v2094
  %v2639 = vpack.c.b16 %v2103, %v2099
  %v2640 = vpack.c.b16 %v2104, %v2100
  %v2641 = vpack.c.b16 %v2105, %v2101
  %v2642 = vpack.c.b16 %v2106, %v2102
  %v2643 = vpack.c.b16 %v2111, %v2107
  %v2644 = vpack.c.b16 %v2112, %v2108
  %v2645 = vpack.c.b16 %v2113, %v2109
  %v2646 = vpack.c.b16 %v2114, %v2110
  %v2647 = vpack.c.b16 %v2119, %v2115
  %v2648 = vpack.c.b16 %v2120, %v2116
  %v2649 = vpack.c.b16 %v2121, %v2117
  %v2650 = vpack.c.b16 %v2122, %v2118
  %v2651 = vpack.c.b16 %v2127, %v2123
  %v2652 = vpack.c.b16 %v2128, %v2124
  %v2653 = vpack.c.b16 %v2129, %v2125
  %v2654 = vpack.c.b16 %v2130, %v2126
  %v2655 = vpack.c.b16 %v2135, %v2131
  %v2656 = vpack.c.b16 %v2136, %v2132
  %v2657 = vpack.c.b16 %v2137, %v2133
  %v2658 = vpack.c.b16 %v2138, %v2134
  %v2659 = vpack.c.b16 %v2143, %v2139
  %v2660 = vpack.c.b16 %v2144, %v2140
  %v2661 = vpack.c.b16 %v2145, %v2141
  %v2662 = vpack.c.b16 %v2146, %v2142
  %v2663 = vpack.c.b16 %v2151, %v2147
  %v2664 = vpack.c.b16 %v2152, %v2148
  %v2665 = vpack.c.b16 %v2153, %v2149
  %v2666 = vpack.c.b16 %v2154, %v2150
  %3179 = vmatprep.subr.bf16.mxu0 %v2184
  %3180 = vmatpush1.bf16.msra.mxu0 %v2183
  %3181 = vmatprep.subr.bf16.mxu0 %v2180
  %3182 = vmatpush1.bf16.msra.mxu0 %v2179
  %3183 = vmatprep.subr.bf16.mxu0 %v2176
  %3184 = vmatpush1.bf16.msra.mxu0 %v2175
  %3185 = vmatprep.subr.bf16.mxu0 %v2172
  %3186 = vmatpush1.bf16.msra.mxu0 %v2171
  %3187 = vmatprep.subr.bf16.mxu0 %v2168
  %3188 = vmatpush1.bf16.msra.mxu0 %v2167
  %3189 = vmatprep.subr.bf16.mxu0 %v2164
  %3190 = vmatpush1.bf16.msra.mxu0 %v2163
  %3191 = vmatprep.subr.bf16.mxu0 %v2160
  %3192 = vmatpush1.bf16.msra.mxu0 %v2159
  %3193 = vmatprep.subr.bf16.mxu0 %v2156
  %3194 = vmatpush1.bf16.msra.mxu0 %v2155
  %3195 = vmatprep.subr.bf16.mxu0 %v2216
  %3196 = vmatpush2.bf16.msra.mxu0 %v2215
  %3197 = vmatprep.subr.bf16.mxu0 %v2212
  %3198 = vmatpush2.bf16.msra.mxu0 %v2211
  %3199 = vmatprep.subr.bf16.mxu0 %v2208
  %3200 = vmatpush2.bf16.msra.mxu0 %v2207
  %3201 = vmatprep.subr.bf16.mxu0 %v2204
  %3202 = vmatpush2.bf16.msra.mxu0 %v2203
  %3203 = vmatprep.subr.bf16.mxu0 %v2200
  %3204 = vmatpush2.bf16.msra.mxu0 %v2199
  %3205 = vmatprep.subr.bf16.mxu0 %v2196
  %3206 = vmatpush2.bf16.msra.mxu0 %v2195
  %3207 = vmatprep.subr.bf16.mxu0 %v2192
  %3208 = vmatpush2.bf16.msra.mxu0 %v2191
  %3209 = vmatprep.subr.bf16.mxu0 %v2188
  %3210 = vmatpush2.bf16.msra.mxu0 %v2187
  %3211 = vmatprep.mubr.bf16.mxu0 %v588
  %3212 = vmatmul.mubr.bf16.gmra.mxu0 %v587
  %v3213 = vpop.f32.mrf.mxu0
  %v3214 = vadd.f32 %v546, %v3213
  %v3215 = vpop.f32.mrf.mxu0
  %v3216 = vadd.f32 %v550, %v3215
  %v3217 = vpop.f32.mrf.mxu0
  %v3218 = vpop.f32.mrf.mxu0
  %3219 = vdwg.mxu0
  %3220 = vmatprep.subr.bf16.mxu0 %v2248
  %3221 = vmatpush1.bf16.msra.mxu0 %v2247
  %3222 = vmatprep.subr.bf16.mxu0 %v2244
  %3223 = vmatpush1.bf16.msra.mxu0 %v2243
  %3224 = vmatprep.subr.bf16.mxu0 %v2240
  %3225 = vmatpush1.bf16.msra.mxu0 %v2239
  %3226 = vmatprep.subr.bf16.mxu0 %v2236
  %3227 = vmatpush1.bf16.msra.mxu0 %v2235
  %3228 = vmatprep.subr.bf16.mxu0 %v2232
  %3229 = vmatpush1.bf16.msra.mxu0 %v2231
  %3230 = vmatprep.subr.bf16.mxu0 %v2228
  %3231 = vmatpush1.bf16.msra.mxu0 %v2227
  %3232 = vmatprep.subr.bf16.mxu0 %v2224
  %3233 = vmatpush1.bf16.msra.mxu0 %v2223
  %3234 = vmatprep.subr.bf16.mxu0 %v2220
  %3235 = vmatpush1.bf16.msra.mxu0 %v2219
  %3236 = vmatprep.subr.bf16.mxu0 %v2280
  %3237 = vmatpush2.bf16.msra.mxu0 %v2279
  %3238 = vmatprep.subr.bf16.mxu0 %v2276
  %3239 = vmatpush2.bf16.msra.mxu0 %v2275
  %3240 = vmatprep.subr.bf16.mxu0 %v2272
  %3241 = vmatpush2.bf16.msra.mxu0 %v2271
  %3242 = vmatprep.subr.bf16.mxu0 %v2268
  %3243 = vmatpush2.bf16.msra.mxu0 %v2267
  %3244 = vmatprep.subr.bf16.mxu0 %v2264
  %3245 = vmatpush2.bf16.msra.mxu0 %v2263
  %3246 = vmatprep.subr.bf16.mxu0 %v2260
  %3247 = vmatpush2.bf16.msra.mxu0 %v2259
  %3248 = vmatprep.subr.bf16.mxu0 %v2256
  %3249 = vmatpush2.bf16.msra.mxu0 %v2255
  %3250 = vmatprep.subr.bf16.mxu0 %v2252
  %3251 = vmatpush2.bf16.msra.mxu0 %v2251
  %3252 = vmatprep.mubr.bf16.mxu0 %v590
  %3253 = vmatmul.mubr.bf16.gmra.mxu0 %v589
  %v3254 = vpop.f32.mrf.mxu0
  %v3255 = vadd.f32 %v3214, %v3254
  %v3256 = vpop.f32.mrf.mxu0
  %v3257 = vadd.f32 %v3216, %v3256
  %v3258 = vpop.f32.mrf.mxu0
  %v3259 = vpop.f32.mrf.mxu0
  %3260 = vdwg.mxu0
  %3261 = vmatprep.subr.bf16.mxu0 %v2312
  %3262 = vmatpush1.bf16.msra.mxu0 %v2311
  %3263 = vmatprep.subr.bf16.mxu0 %v2308
  %3264 = vmatpush1.bf16.msra.mxu0 %v2307
  %3265 = vmatprep.subr.bf16.mxu0 %v2304
  %3266 = vmatpush1.bf16.msra.mxu0 %v2303
  %3267 = vmatprep.subr.bf16.mxu0 %v2300
  %3268 = vmatpush1.bf16.msra.mxu0 %v2299
  %3269 = vmatprep.subr.bf16.mxu0 %v2296
  %3270 = vmatpush1.bf16.msra.mxu0 %v2295
  %3271 = vmatprep.subr.bf16.mxu0 %v2292
  %3272 = vmatpush1.bf16.msra.mxu0 %v2291
  %3273 = vmatprep.subr.bf16.mxu0 %v2288
  %3274 = vmatpush1.bf16.msra.mxu0 %v2287
  %3275 = vmatprep.subr.bf16.mxu0 %v2284
  %3276 = vmatpush1.bf16.msra.mxu0 %v2283
  %3277 = vmatprep.subr.bf16.mxu0 %v2344
  %3278 = vmatpush2.bf16.msra.mxu0 %v2343
  %3279 = vmatprep.subr.bf16.mxu0 %v2340
  %3280 = vmatpush2.bf16.msra.mxu0 %v2339
  %3281 = vmatprep.subr.bf16.mxu0 %v2336
  %3282 = vmatpush2.bf16.msra.mxu0 %v2335
  %3283 = vmatprep.subr.bf16.mxu0 %v2332
  %3284 = vmatpush2.bf16.msra.mxu0 %v2331
  %3285 = vmatprep.subr.bf16.mxu0 %v2328
  %3286 = vmatpush2.bf16.msra.mxu0 %v2327
  %3287 = vmatprep.subr.bf16.mxu0 %v2324
  %3288 = vmatpush2.bf16.msra.mxu0 %v2323
  %3289 = vmatprep.subr.bf16.mxu0 %v2320
  %3290 = vmatpush2.bf16.msra.mxu0 %v2319
  %3291 = vmatprep.subr.bf16.mxu0 %v2316
  %3292 = vmatpush2.bf16.msra.mxu0 %v2315
  %3293 = vmatprep.mubr.bf16.mxu0 %v592
  %3294 = vmatmul.mubr.bf16.gmra.mxu0 %v591
  %v3295 = vpop.f32.mrf.mxu0
  %v3296 = vadd.f32 %v3255, %v3295
  %v3297 = vpop.f32.mrf.mxu0
  %v3298 = vadd.f32 %v3257, %v3297
  %v3299 = vpop.f32.mrf.mxu0
  %v3300 = vpop.f32.mrf.mxu0
  %3301 = vdwg.mxu0
  %3302 = vmatprep.subr.bf16.mxu0 %v2376
  %3303 = vmatpush1.bf16.msra.mxu0 %v2375
  %3304 = vmatprep.subr.bf16.mxu0 %v2372
  %3305 = vmatpush1.bf16.msra.mxu0 %v2371
  %3306 = vmatprep.subr.bf16.mxu0 %v2368
  %3307 = vmatpush1.bf16.msra.mxu0 %v2367
  %3308 = vmatprep.subr.bf16.mxu0 %v2364
  %3309 = vmatpush1.bf16.msra.mxu0 %v2363
  %3310 = vmatprep.subr.bf16.mxu0 %v2360
  %3311 = vmatpush1.bf16.msra.mxu0 %v2359
  %3312 = vmatprep.subr.bf16.mxu0 %v2356
  %3313 = vmatpush1.bf16.msra.mxu0 %v2355
  %3314 = vmatprep.subr.bf16.mxu0 %v2352
  %3315 = vmatpush1.bf16.msra.mxu0 %v2351
  %3316 = vmatprep.subr.bf16.mxu0 %v2348
  %3317 = vmatpush1.bf16.msra.mxu0 %v2347
  %3318 = vmatprep.subr.bf16.mxu0 %v2408
  %3319 = vmatpush2.bf16.msra.mxu0 %v2407
  %3320 = vmatprep.subr.bf16.mxu0 %v2404
  %3321 = vmatpush2.bf16.msra.mxu0 %v2403
  %3322 = vmatprep.subr.bf16.mxu0 %v2400
  %3323 = vmatpush2.bf16.msra.mxu0 %v2399
  %3324 = vmatprep.subr.bf16.mxu0 %v2396
  %3325 = vmatpush2.bf16.msra.mxu0 %v2395
  %3326 = vmatprep.subr.bf16.mxu0 %v2392
  %3327 = vmatpush2.bf16.msra.mxu0 %v2391
  %3328 = vmatprep.subr.bf16.mxu0 %v2388
  %3329 = vmatpush2.bf16.msra.mxu0 %v2387
  %3330 = vmatprep.subr.bf16.mxu0 %v2384
  %3331 = vmatpush2.bf16.msra.mxu0 %v2383
  %3332 = vmatprep.subr.bf16.mxu0 %v2380
  %3333 = vmatpush2.bf16.msra.mxu0 %v2379
  %3334 = vmatprep.mubr.bf16.mxu0 %v594
  %3335 = vmatmul.mubr.bf16.gmra.mxu0 %v593
  %v3336 = vpop.f32.mrf.mxu0
  %v3337 = vadd.f32 %v3296, %v3336
  %v3338 = vpop.f32.mrf.mxu0
  %v3339 = vadd.f32 %v3298, %v3338
  %v3340 = vpop.f32.mrf.mxu0
  %v3341 = vpop.f32.mrf.mxu0
  %3342 = vdwg.mxu0
  %3343 = vmatprep.subr.bf16.mxu0 %v2440
  %3344 = vmatpush1.bf16.msra.mxu0 %v2439
  %3345 = vmatprep.subr.bf16.mxu0 %v2436
  %3346 = vmatpush1.bf16.msra.mxu0 %v2435
  %3347 = vmatprep.subr.bf16.mxu0 %v2432
  %3348 = vmatpush1.bf16.msra.mxu0 %v2431
  %3349 = vmatprep.subr.bf16.mxu0 %v2428
  %3350 = vmatpush1.bf16.msra.mxu0 %v2427
  %3351 = vmatprep.subr.bf16.mxu0 %v2424
  %3352 = vmatpush1.bf16.msra.mxu0 %v2423
  %3353 = vmatprep.subr.bf16.mxu0 %v2420
  %3354 = vmatpush1.bf16.msra.mxu0 %v2419
  %3355 = vmatprep.subr.bf16.mxu0 %v2416
  %3356 = vmatpush1.bf16.msra.mxu0 %v2415
  %3357 = vmatprep.subr.bf16.mxu0 %v2412
  %3358 = vmatpush1.bf16.msra.mxu0 %v2411
  %3359 = vmatprep.subr.bf16.mxu0 %v2472
  %3360 = vmatpush2.bf16.msra.mxu0 %v2471
  %3361 = vmatprep.subr.bf16.mxu0 %v2468
  %3362 = vmatpush2.bf16.msra.mxu0 %v2467
  %3363 = vmatprep.subr.bf16.mxu0 %v2464
  %3364 = vmatpush2.bf16.msra.mxu0 %v2463
  %3365 = vmatprep.subr.bf16.mxu0 %v2460
  %3366 = vmatpush2.bf16.msra.mxu0 %v2459
  %3367 = vmatprep.subr.bf16.mxu0 %v2456
  %3368 = vmatpush2.bf16.msra.mxu0 %v2455
  %3369 = vmatprep.subr.bf16.mxu0 %v2452
  %3370 = vmatpush2.bf16.msra.mxu0 %v2451
  %3371 = vmatprep.subr.bf16.mxu0 %v2448
  %3372 = vmatpush2.bf16.msra.mxu0 %v2447
  %3373 = vmatprep.subr.bf16.mxu0 %v2444
  %3374 = vmatpush2.bf16.msra.mxu0 %v2443
  %3375 = vmatprep.mubr.bf16.mxu0 %v596
  %3376 = vmatmul.mubr.bf16.gmra.mxu0 %v595
  %v3377 = vpop.f32.mrf.mxu0
  %v3378 = vadd.f32 %v3337, %v3377
  %v3379 = vpop.f32.mrf.mxu0
  %v3380 = vadd.f32 %v3339, %v3379
  %v3381 = vpop.f32.mrf.mxu0
  %v3382 = vpop.f32.mrf.mxu0
  %3383 = vdwg.mxu0
  %3384 = vmatprep.subr.bf16.mxu0 %v2504
  %3385 = vmatpush1.bf16.msra.mxu0 %v2503
  %3386 = vmatprep.subr.bf16.mxu0 %v2500
  %3387 = vmatpush1.bf16.msra.mxu0 %v2499
  %3388 = vmatprep.subr.bf16.mxu0 %v2496
  %3389 = vmatpush1.bf16.msra.mxu0 %v2495
  %3390 = vmatprep.subr.bf16.mxu0 %v2492
  %3391 = vmatpush1.bf16.msra.mxu0 %v2491
  %3392 = vmatprep.subr.bf16.mxu0 %v2488
  %3393 = vmatpush1.bf16.msra.mxu0 %v2487
  %3394 = vmatprep.subr.bf16.mxu0 %v2484
  %3395 = vmatpush1.bf16.msra.mxu0 %v2483
  %3396 = vmatprep.subr.bf16.mxu0 %v2480
  %3397 = vmatpush1.bf16.msra.mxu0 %v2479
  %3398 = vmatprep.subr.bf16.mxu0 %v2476
  %3399 = vmatpush1.bf16.msra.mxu0 %v2475
  %3400 = vmatprep.subr.bf16.mxu0 %v2536
  %3401 = vmatpush2.bf16.msra.mxu0 %v2535
  %3402 = vmatprep.subr.bf16.mxu0 %v2532
  %3403 = vmatpush2.bf16.msra.mxu0 %v2531
  %3404 = vmatprep.subr.bf16.mxu0 %v2528
  %3405 = vmatpush2.bf16.msra.mxu0 %v2527
  %3406 = vmatprep.subr.bf16.mxu0 %v2524
  %3407 = vmatpush2.bf16.msra.mxu0 %v2523
  %3408 = vmatprep.subr.bf16.mxu0 %v2520
  %3409 = vmatpush2.bf16.msra.mxu0 %v2519
  %3410 = vmatprep.subr.bf16.mxu0 %v2516
  %3411 = vmatpush2.bf16.msra.mxu0 %v2515
  %3412 = vmatprep.subr.bf16.mxu0 %v2512
  %3413 = vmatpush2.bf16.msra.mxu0 %v2511
  %3414 = vmatprep.subr.bf16.mxu0 %v2508
  %3415 = vmatpush2.bf16.msra.mxu0 %v2507
  %3416 = vmatprep.mubr.bf16.mxu0 %v598
  %3417 = vmatmul.mubr.bf16.gmra.mxu0 %v597
  %v3418 = vpop.f32.mrf.mxu0
  %v3419 = vadd.f32 %v3378, %v3418
  %v3420 = vpop.f32.mrf.mxu0
  %v3421 = vadd.f32 %v3380, %v3420
  %v3422 = vpop.f32.mrf.mxu0
  %v3423 = vpop.f32.mrf.mxu0
  %3424 = vdwg.mxu0
  %3425 = vmatprep.subr.bf16.mxu0 %v2568
  %3426 = vmatpush1.bf16.msra.mxu0 %v2567
  %3427 = vmatprep.subr.bf16.mxu0 %v2564
  %3428 = vmatpush1.bf16.msra.mxu0 %v2563
  %3429 = vmatprep.subr.bf16.mxu0 %v2560
  %3430 = vmatpush1.bf16.msra.mxu0 %v2559
  %3431 = vmatprep.subr.bf16.mxu0 %v2556
  %3432 = vmatpush1.bf16.msra.mxu0 %v2555
  %3433 = vmatprep.subr.bf16.mxu0 %v2552
  %3434 = vmatpush1.bf16.msra.mxu0 %v2551
  %3435 = vmatprep.subr.bf16.mxu0 %v2548
  %3436 = vmatpush1.bf16.msra.mxu0 %v2547
  %3437 = vmatprep.subr.bf16.mxu0 %v2544
  %3438 = vmatpush1.bf16.msra.mxu0 %v2543
  %3439 = vmatprep.subr.bf16.mxu0 %v2540
  %3440 = vmatpush1.bf16.msra.mxu0 %v2539
  %3441 = vmatprep.subr.bf16.mxu0 %v2600
  %3442 = vmatpush2.bf16.msra.mxu0 %v2599
  %3443 = vmatprep.subr.bf16.mxu0 %v2596
  %3444 = vmatpush2.bf16.msra.mxu0 %v2595
  %3445 = vmatprep.subr.bf16.mxu0 %v2592
  %3446 = vmatpush2.bf16.msra.mxu0 %v2591
  %3447 = vmatprep.subr.bf16.mxu0 %v2588
  %3448 = vmatpush2.bf16.msra.mxu0 %v2587
  %3449 = vmatprep.subr.bf16.mxu0 %v2584
  %3450 = vmatpush2.bf16.msra.mxu0 %v2583
  %3451 = vmatprep.subr.bf16.mxu0 %v2580
  %3452 = vmatpush2.bf16.msra.mxu0 %v2579
  %3453 = vmatprep.subr.bf16.mxu0 %v2576
  %3454 = vmatpush2.bf16.msra.mxu0 %v2575
  %3455 = vmatprep.subr.bf16.mxu0 %v2572
  %3456 = vmatpush2.bf16.msra.mxu0 %v2571
  %3457 = vmatprep.mubr.bf16.mxu0 %v600
  %3458 = vmatmul.mubr.bf16.gmra.mxu0 %v599
  %v3459 = vpop.f32.mrf.mxu0
  %v3460 = vadd.f32 %v3419, %v3459
  %v3461 = vpop.f32.mrf.mxu0
  %v3462 = vadd.f32 %v3421, %v3461
  %v3463 = vpop.f32.mrf.mxu0
  %v3464 = vpop.f32.mrf.mxu0
  %3465 = vdwg.mxu0
  %3466 = vmatprep.subr.bf16.mxu0 %v2632
  %3467 = vmatpush1.bf16.msra.mxu0 %v2631
  %3468 = vmatprep.subr.bf16.mxu0 %v2628
  %3469 = vmatpush1.bf16.msra.mxu0 %v2627
  %3470 = vmatprep.subr.bf16.mxu0 %v2624
  %3471 = vmatpush1.bf16.msra.mxu0 %v2623
  %3472 = vmatprep.subr.bf16.mxu0 %v2620
  %3473 = vmatpush1.bf16.msra.mxu0 %v2619
  %3474 = vmatprep.subr.bf16.mxu0 %v2616
  %3475 = vmatpush1.bf16.msra.mxu0 %v2615
  %3476 = vmatprep.subr.bf16.mxu0 %v2612
  %3477 = vmatpush1.bf16.msra.mxu0 %v2611
  %3478 = vmatprep.subr.bf16.mxu0 %v2608
  %3479 = vmatpush1.bf16.msra.mxu0 %v2607
  %3480 = vmatprep.subr.bf16.mxu0 %v2604
  %3481 = vmatpush1.bf16.msra.mxu0 %v2603
  %3482 = vmatprep.subr.bf16.mxu0 %v2664
  %3483 = vmatpush2.bf16.msra.mxu0 %v2663
  %3484 = vmatprep.subr.bf16.mxu0 %v2660
  %3485 = vmatpush2.bf16.msra.mxu0 %v2659
  %3486 = vmatprep.subr.bf16.mxu0 %v2656
  %3487 = vmatpush2.bf16.msra.mxu0 %v2655
  %3488 = vmatprep.subr.bf16.mxu0 %v2652
  %3489 = vmatpush2.bf16.msra.mxu0 %v2651
  %3490 = vmatprep.subr.bf16.mxu0 %v2648
  %3491 = vmatpush2.bf16.msra.mxu0 %v2647
  %3492 = vmatprep.subr.bf16.mxu0 %v2644
  %3493 = vmatpush2.bf16.msra.mxu0 %v2643
  %3494 = vmatprep.subr.bf16.mxu0 %v2640
  %3495 = vmatpush2.bf16.msra.mxu0 %v2639
  %3496 = vmatprep.subr.bf16.mxu0 %v2636
  %3497 = vmatpush2.bf16.msra.mxu0 %v2635
  %3498 = vmatprep.mubr.bf16.mxu0 %v602
  %3499 = vmatmul.mubr.bf16.gmra.mxu0 %v601
  %v3500 = vpop.f32.mrf.mxu0
  %v3501 = vadd.f32 %v3460, %v3500
  %v3502 = vpop.f32.mrf.mxu0
  %v3503 = vadd.f32 %v3462, %v3502
  %v3504 = vpop.f32.mrf.mxu0
  %v3505 = vpop.f32.mrf.mxu0
  %3506 = vdwg.mxu0
  %3507 = vmatprep.subr.bf16.mxu0 %v2186
  %3508 = vmatpush1.bf16.msra.mxu0 %v2185
  %3509 = vmatprep.subr.bf16.mxu0 %v2182
  %3510 = vmatpush1.bf16.msra.mxu0 %v2181
  %3511 = vmatprep.subr.bf16.mxu0 %v2178
  %3512 = vmatpush1.bf16.msra.mxu0 %v2177
  %3513 = vmatprep.subr.bf16.mxu0 %v2174
  %3514 = vmatpush1.bf16.msra.mxu0 %v2173
  %3515 = vmatprep.subr.bf16.mxu0 %v2170
  %3516 = vmatpush1.bf16.msra.mxu0 %v2169
  %3517 = vmatprep.subr.bf16.mxu0 %v2166
  %3518 = vmatpush1.bf16.msra.mxu0 %v2165
  %3519 = vmatprep.subr.bf16.mxu0 %v2162
  %3520 = vmatpush1.bf16.msra.mxu0 %v2161
  %3521 = vmatprep.subr.bf16.mxu0 %v2158
  %3522 = vmatpush1.bf16.msra.mxu0 %v2157
  %3523 = vmatprep.subr.bf16.mxu0 %v2218
  %3524 = vmatpush2.bf16.msra.mxu0 %v2217
  %3525 = vmatprep.subr.bf16.mxu0 %v2214
  %3526 = vmatpush2.bf16.msra.mxu0 %v2213
  %3527 = vmatprep.subr.bf16.mxu0 %v2210
  %3528 = vmatpush2.bf16.msra.mxu0 %v2209
  %3529 = vmatprep.subr.bf16.mxu0 %v2206
  %3530 = vmatpush2.bf16.msra.mxu0 %v2205
  %3531 = vmatprep.subr.bf16.mxu0 %v2202
  %3532 = vmatpush2.bf16.msra.mxu0 %v2201
  %3533 = vmatprep.subr.bf16.mxu0 %v2198
  %3534 = vmatpush2.bf16.msra.mxu0 %v2197
  %3535 = vmatprep.subr.bf16.mxu0 %v2194
  %3536 = vmatpush2.bf16.msra.mxu0 %v2193
  %3537 = vmatprep.subr.bf16.mxu0 %v2190
  %3538 = vmatpush2.bf16.msra.mxu0 %v2189
  %3539 = vmatprep.mubr.bf16.mxu0 %v588
  %3540 = vmatmul.mubr.bf16.gmra.mxu0 %v587
  %v3541 = vpop.f32.mrf.mxu0
  %v3542 = vadd.f32 %v554, %v3541
  %v3543 = vpop.f32.mrf.mxu0
  %v3544 = vadd.f32 %v558, %v3543
  %v3545 = vpop.f32.mrf.mxu0
  %v3546 = vpop.f32.mrf.mxu0
  %3547 = vdwg.mxu0
  %3548 = vmatprep.subr.bf16.mxu0 %v2250
  %3549 = vmatpush1.bf16.msra.mxu0 %v2249
  %3550 = vmatprep.subr.bf16.mxu0 %v2246
  %3551 = vmatpush1.bf16.msra.mxu0 %v2245
  %3552 = vmatprep.subr.bf16.mxu0 %v2242
  %3553 = vmatpush1.bf16.msra.mxu0 %v2241
  %3554 = vmatprep.subr.bf16.mxu0 %v2238
  %3555 = vmatpush1.bf16.msra.mxu0 %v2237
  %3556 = vmatprep.subr.bf16.mxu0 %v2234
  %3557 = vmatpush1.bf16.msra.mxu0 %v2233
  %3558 = vmatprep.subr.bf16.mxu0 %v2230
  %3559 = vmatpush1.bf16.msra.mxu0 %v2229
  %3560 = vmatprep.subr.bf16.mxu0 %v2226
  %3561 = vmatpush1.bf16.msra.mxu0 %v2225
  %3562 = vmatprep.subr.bf16.mxu0 %v2222
  %3563 = vmatpush1.bf16.msra.mxu0 %v2221
  %3564 = vmatprep.subr.bf16.mxu0 %v2282
  %3565 = vmatpush2.bf16.msra.mxu0 %v2281
  %3566 = vmatprep.subr.bf16.mxu0 %v2278
  %3567 = vmatpush2.bf16.msra.mxu0 %v2277
  %3568 = vmatprep.subr.bf16.mxu0 %v2274
  %3569 = vmatpush2.bf16.msra.mxu0 %v2273
  %3570 = vmatprep.subr.bf16.mxu0 %v2270
  %3571 = vmatpush2.bf16.msra.mxu0 %v2269
  %3572 = vmatprep.subr.bf16.mxu0 %v2266
  %3573 = vmatpush2.bf16.msra.mxu0 %v2265
  %3574 = vmatprep.subr.bf16.mxu0 %v2262
  %3575 = vmatpush2.bf16.msra.mxu0 %v2261
  %3576 = vmatprep.subr.bf16.mxu0 %v2258
  %3577 = vmatpush2.bf16.msra.mxu0 %v2257
  %3578 = vmatprep.subr.bf16.mxu0 %v2254
  %3579 = vmatpush2.bf16.msra.mxu0 %v2253
  %3580 = vmatprep.mubr.bf16.mxu0 %v590
  %3581 = vmatmul.mubr.bf16.gmra.mxu0 %v589
  %v3582 = vpop.f32.mrf.mxu0
  %v3583 = vadd.f32 %v3542, %v3582
  %v3584 = vpop.f32.mrf.mxu0
  %v3585 = vadd.f32 %v3544, %v3584
  %v3586 = vpop.f32.mrf.mxu0
  %v3587 = vpop.f32.mrf.mxu0
  %3588 = vdwg.mxu0
  %3589 = vmatprep.subr.bf16.mxu0 %v2314
  %3590 = vmatpush1.bf16.msra.mxu0 %v2313
  %3591 = vmatprep.subr.bf16.mxu0 %v2310
  %3592 = vmatpush1.bf16.msra.mxu0 %v2309
  %3593 = vmatprep.subr.bf16.mxu0 %v2306
  %3594 = vmatpush1.bf16.msra.mxu0 %v2305
  %3595 = vmatprep.subr.bf16.mxu0 %v2302
  %3596 = vmatpush1.bf16.msra.mxu0 %v2301
  %3597 = vmatprep.subr.bf16.mxu0 %v2298
  %3598 = vmatpush1.bf16.msra.mxu0 %v2297
  %3599 = vmatprep.subr.bf16.mxu0 %v2294
  %3600 = vmatpush1.bf16.msra.mxu0 %v2293
  %3601 = vmatprep.subr.bf16.mxu0 %v2290
  %3602 = vmatpush1.bf16.msra.mxu0 %v2289
  %3603 = vmatprep.subr.bf16.mxu0 %v2286
  %3604 = vmatpush1.bf16.msra.mxu0 %v2285
  %3605 = vmatprep.subr.bf16.mxu0 %v2346
  %3606 = vmatpush2.bf16.msra.mxu0 %v2345
  %3607 = vmatprep.subr.bf16.mxu0 %v2342
  %3608 = vmatpush2.bf16.msra.mxu0 %v2341
  %3609 = vmatprep.subr.bf16.mxu0 %v2338
  %3610 = vmatpush2.bf16.msra.mxu0 %v2337
  %3611 = vmatprep.subr.bf16.mxu0 %v2334
  %3612 = vmatpush2.bf16.msra.mxu0 %v2333
  %3613 = vmatprep.subr.bf16.mxu0 %v2330
  %3614 = vmatpush2.bf16.msra.mxu0 %v2329
  %3615 = vmatprep.subr.bf16.mxu0 %v2326
  %3616 = vmatpush2.bf16.msra.mxu0 %v2325
  %3617 = vmatprep.subr.bf16.mxu0 %v2322
  %3618 = vmatpush2.bf16.msra.mxu0 %v2321
  %3619 = vmatprep.subr.bf16.mxu0 %v2318
  %3620 = vmatpush2.bf16.msra.mxu0 %v2317
  %3621 = vmatprep.mubr.bf16.mxu0 %v592
  %3622 = vmatmul.mubr.bf16.gmra.mxu0 %v591
  %v3623 = vpop.f32.mrf.mxu0
  %v3624 = vadd.f32 %v3583, %v3623
  %v3625 = vpop.f32.mrf.mxu0
  %v3626 = vadd.f32 %v3585, %v3625
  %v3627 = vpop.f32.mrf.mxu0
  %v3628 = vpop.f32.mrf.mxu0
  %3629 = vdwg.mxu0
  %3630 = vmatprep.subr.bf16.mxu0 %v2378
  %3631 = vmatpush1.bf16.msra.mxu0 %v2377
  %3632 = vmatprep.subr.bf16.mxu0 %v2374
  %3633 = vmatpush1.bf16.msra.mxu0 %v2373
  %3634 = vmatprep.subr.bf16.mxu0 %v2370
  %3635 = vmatpush1.bf16.msra.mxu0 %v2369
  %3636 = vmatprep.subr.bf16.mxu0 %v2366
  %3637 = vmatpush1.bf16.msra.mxu0 %v2365
  %3638 = vmatprep.subr.bf16.mxu0 %v2362
  %3639 = vmatpush1.bf16.msra.mxu0 %v2361
  %3640 = vmatprep.subr.bf16.mxu0 %v2358
  %3641 = vmatpush1.bf16.msra.mxu0 %v2357
  %3642 = vmatprep.subr.bf16.mxu0 %v2354
  %3643 = vmatpush1.bf16.msra.mxu0 %v2353
  %3644 = vmatprep.subr.bf16.mxu0 %v2350
  %3645 = vmatpush1.bf16.msra.mxu0 %v2349
  %3646 = vmatprep.subr.bf16.mxu0 %v2410
  %3647 = vmatpush2.bf16.msra.mxu0 %v2409
  %3648 = vmatprep.subr.bf16.mxu0 %v2406
  %3649 = vmatpush2.bf16.msra.mxu0 %v2405
  %3650 = vmatprep.subr.bf16.mxu0 %v2402
  %3651 = vmatpush2.bf16.msra.mxu0 %v2401
  %3652 = vmatprep.subr.bf16.mxu0 %v2398
  %3653 = vmatpush2.bf16.msra.mxu0 %v2397
  %3654 = vmatprep.subr.bf16.mxu0 %v2394
  %3655 = vmatpush2.bf16.msra.mxu0 %v2393
  %3656 = vmatprep.subr.bf16.mxu0 %v2390
  %3657 = vmatpush2.bf16.msra.mxu0 %v2389
  %3658 = vmatprep.subr.bf16.mxu0 %v2386
  %3659 = vmatpush2.bf16.msra.mxu0 %v2385
  %3660 = vmatprep.subr.bf16.mxu0 %v2382
  %3661 = vmatpush2.bf16.msra.mxu0 %v2381
  %3662 = vmatprep.mubr.bf16.mxu0 %v594
  %3663 = vmatmul.mubr.bf16.gmra.mxu0 %v593
  %v3664 = vpop.f32.mrf.mxu0
  %v3665 = vadd.f32 %v3624, %v3664
  %v3666 = vpop.f32.mrf.mxu0
  %v3667 = vadd.f32 %v3626, %v3666
  %v3668 = vpop.f32.mrf.mxu0
  %v3669 = vpop.f32.mrf.mxu0
  %3670 = vdwg.mxu0
  %3671 = vmatprep.subr.bf16.mxu0 %v2442
  %3672 = vmatpush1.bf16.msra.mxu0 %v2441
  %3673 = vmatprep.subr.bf16.mxu0 %v2438
  %3674 = vmatpush1.bf16.msra.mxu0 %v2437
  %3675 = vmatprep.subr.bf16.mxu0 %v2434
  %3676 = vmatpush1.bf16.msra.mxu0 %v2433
  %3677 = vmatprep.subr.bf16.mxu0 %v2430
  %3678 = vmatpush1.bf16.msra.mxu0 %v2429
  %3679 = vmatprep.subr.bf16.mxu0 %v2426
  %3680 = vmatpush1.bf16.msra.mxu0 %v2425
  %3681 = vmatprep.subr.bf16.mxu0 %v2422
  %3682 = vmatpush1.bf16.msra.mxu0 %v2421
  %3683 = vmatprep.subr.bf16.mxu0 %v2418
  %3684 = vmatpush1.bf16.msra.mxu0 %v2417
  %3685 = vmatprep.subr.bf16.mxu0 %v2414
  %3686 = vmatpush1.bf16.msra.mxu0 %v2413
  %3687 = vmatprep.subr.bf16.mxu0 %v2474
  %3688 = vmatpush2.bf16.msra.mxu0 %v2473
  %3689 = vmatprep.subr.bf16.mxu0 %v2470
  %3690 = vmatpush2.bf16.msra.mxu0 %v2469
  %3691 = vmatprep.subr.bf16.mxu0 %v2466
  %3692 = vmatpush2.bf16.msra.mxu0 %v2465
  %3693 = vmatprep.subr.bf16.mxu0 %v2462
  %3694 = vmatpush2.bf16.msra.mxu0 %v2461
  %3695 = vmatprep.subr.bf16.mxu0 %v2458
  %3696 = vmatpush2.bf16.msra.mxu0 %v2457
  %3697 = vmatprep.subr.bf16.mxu0 %v2454
  %3698 = vmatpush2.bf16.msra.mxu0 %v2453
  %3699 = vmatprep.subr.bf16.mxu0 %v2450
  %3700 = vmatpush2.bf16.msra.mxu0 %v2449
  %3701 = vmatprep.subr.bf16.mxu0 %v2446
  %3702 = vmatpush2.bf16.msra.mxu0 %v2445
  %3703 = vmatprep.mubr.bf16.mxu0 %v596
  %3704 = vmatmul.mubr.bf16.gmra.mxu0 %v595
  %v3705 = vpop.f32.mrf.mxu0
  %v3706 = vadd.f32 %v3665, %v3705
  %v3707 = vpop.f32.mrf.mxu0
  %v3708 = vadd.f32 %v3667, %v3707
  %v3709 = vpop.f32.mrf.mxu0
  %v3710 = vpop.f32.mrf.mxu0
  %3711 = vdwg.mxu0
  %3712 = vmatprep.subr.bf16.mxu0 %v2506
  %3713 = vmatpush1.bf16.msra.mxu0 %v2505
  %3714 = vmatprep.subr.bf16.mxu0 %v2502
  %3715 = vmatpush1.bf16.msra.mxu0 %v2501
  %3716 = vmatprep.subr.bf16.mxu0 %v2498
  %3717 = vmatpush1.bf16.msra.mxu0 %v2497
  %3718 = vmatprep.subr.bf16.mxu0 %v2494
  %3719 = vmatpush1.bf16.msra.mxu0 %v2493
  %3720 = vmatprep.subr.bf16.mxu0 %v2490
  %3721 = vmatpush1.bf16.msra.mxu0 %v2489
  %3722 = vmatprep.subr.bf16.mxu0 %v2486
  %3723 = vmatpush1.bf16.msra.mxu0 %v2485
  %3724 = vmatprep.subr.bf16.mxu0 %v2482
  %3725 = vmatpush1.bf16.msra.mxu0 %v2481
  %3726 = vmatprep.subr.bf16.mxu0 %v2478
  %3727 = vmatpush1.bf16.msra.mxu0 %v2477
  %3728 = vmatprep.subr.bf16.mxu0 %v2538
  %3729 = vmatpush2.bf16.msra.mxu0 %v2537
  %3730 = vmatprep.subr.bf16.mxu0 %v2534
  %3731 = vmatpush2.bf16.msra.mxu0 %v2533
  %3732 = vmatprep.subr.bf16.mxu0 %v2530
  %3733 = vmatpush2.bf16.msra.mxu0 %v2529
  %3734 = vmatprep.subr.bf16.mxu0 %v2526
  %3735 = vmatpush2.bf16.msra.mxu0 %v2525
  %3736 = vmatprep.subr.bf16.mxu0 %v2522
  %3737 = vmatpush2.bf16.msra.mxu0 %v2521
  %3738 = vmatprep.subr.bf16.mxu0 %v2518
  %3739 = vmatpush2.bf16.msra.mxu0 %v2517
  %3740 = vmatprep.subr.bf16.mxu0 %v2514
  %3741 = vmatpush2.bf16.msra.mxu0 %v2513
  %3742 = vmatprep.subr.bf16.mxu0 %v2510
  %3743 = vmatpush2.bf16.msra.mxu0 %v2509
  %3744 = vmatprep.mubr.bf16.mxu0 %v598
  %3745 = vmatmul.mubr.bf16.gmra.mxu0 %v597
  %v3746 = vpop.f32.mrf.mxu0
  %v3747 = vadd.f32 %v3706, %v3746
  %v3748 = vpop.f32.mrf.mxu0
  %v3749 = vadd.f32 %v3708, %v3748
  %v3750 = vpop.f32.mrf.mxu0
  %v3751 = vpop.f32.mrf.mxu0
  %3752 = vdwg.mxu0
  %3753 = vmatprep.subr.bf16.mxu0 %v2570
  %3754 = vmatpush1.bf16.msra.mxu0 %v2569
  %3755 = vmatprep.subr.bf16.mxu0 %v2566
  %3756 = vmatpush1.bf16.msra.mxu0 %v2565
  %3757 = vmatprep.subr.bf16.mxu0 %v2562
  %3758 = vmatpush1.bf16.msra.mxu0 %v2561
  %3759 = vmatprep.subr.bf16.mxu0 %v2558
  %3760 = vmatpush1.bf16.msra.mxu0 %v2557
  %3761 = vmatprep.subr.bf16.mxu0 %v2554
  %3762 = vmatpush1.bf16.msra.mxu0 %v2553
  %3763 = vmatprep.subr.bf16.mxu0 %v2550
  %3764 = vmatpush1.bf16.msra.mxu0 %v2549
  %3765 = vmatprep.subr.bf16.mxu0 %v2546
  %3766 = vmatpush1.bf16.msra.mxu0 %v2545
  %3767 = vmatprep.subr.bf16.mxu0 %v2542
  %3768 = vmatpush1.bf16.msra.mxu0 %v2541
  %3769 = vmatprep.subr.bf16.mxu0 %v2602
  %3770 = vmatpush2.bf16.msra.mxu0 %v2601
  %3771 = vmatprep.subr.bf16.mxu0 %v2598
  %3772 = vmatpush2.bf16.msra.mxu0 %v2597
  %3773 = vmatprep.subr.bf16.mxu0 %v2594
  %3774 = vmatpush2.bf16.msra.mxu0 %v2593
  %3775 = vmatprep.subr.bf16.mxu0 %v2590
  %3776 = vmatpush2.bf16.msra.mxu0 %v2589
  %3777 = vmatprep.subr.bf16.mxu0 %v2586
  %3778 = vmatpush2.bf16.msra.mxu0 %v2585
  %3779 = vmatprep.subr.bf16.mxu0 %v2582
  %3780 = vmatpush2.bf16.msra.mxu0 %v2581
  %3781 = vmatprep.subr.bf16.mxu0 %v2578
  %3782 = vmatpush2.bf16.msra.mxu0 %v2577
  %3783 = vmatprep.subr.bf16.mxu0 %v2574
  %3784 = vmatpush2.bf16.msra.mxu0 %v2573
  %3785 = vmatprep.mubr.bf16.mxu0 %v600
  %3786 = vmatmul.mubr.bf16.gmra.mxu0 %v599
  %v3787 = vpop.f32.mrf.mxu0
  %v3788 = vadd.f32 %v3747, %v3787
  %v3789 = vpop.f32.mrf.mxu0
  %v3790 = vadd.f32 %v3749, %v3789
  %v3791 = vpop.f32.mrf.mxu0
  %v3792 = vpop.f32.mrf.mxu0
  %3793 = vdwg.mxu0
  %3794 = vmatprep.subr.bf16.mxu0 %v2634
  %3795 = vmatpush1.bf16.msra.mxu0 %v2633
  %3796 = vmatprep.subr.bf16.mxu0 %v2630
  %3797 = vmatpush1.bf16.msra.mxu0 %v2629
  %3798 = vmatprep.subr.bf16.mxu0 %v2626
  %3799 = vmatpush1.bf16.msra.mxu0 %v2625
  %3800 = vmatprep.subr.bf16.mxu0 %v2622
  %3801 = vmatpush1.bf16.msra.mxu0 %v2621
  %3802 = vmatprep.subr.bf16.mxu0 %v2618
  %3803 = vmatpush1.bf16.msra.mxu0 %v2617
  %3804 = vmatprep.subr.bf16.mxu0 %v2614
  %3805 = vmatpush1.bf16.msra.mxu0 %v2613
  %3806 = vmatprep.subr.bf16.mxu0 %v2610
  %3807 = vmatpush1.bf16.msra.mxu0 %v2609
  %3808 = vmatprep.subr.bf16.mxu0 %v2606
  %3809 = vmatpush1.bf16.msra.mxu0 %v2605
  %3810 = vmatprep.subr.bf16.mxu0 %v2666
  %3811 = vmatpush2.bf16.msra.mxu0 %v2665
  %3812 = vmatprep.subr.bf16.mxu0 %v2662
  %3813 = vmatpush2.bf16.msra.mxu0 %v2661
  %3814 = vmatprep.subr.bf16.mxu0 %v2658
  %3815 = vmatpush2.bf16.msra.mxu0 %v2657
  %3816 = vmatprep.subr.bf16.mxu0 %v2654
  %3817 = vmatpush2.bf16.msra.mxu0 %v2653
  %3818 = vmatprep.subr.bf16.mxu0 %v2650
  %3819 = vmatpush2.bf16.msra.mxu0 %v2649
  %3820 = vmatprep.subr.bf16.mxu0 %v2646
  %3821 = vmatpush2.bf16.msra.mxu0 %v2645
  %3822 = vmatprep.subr.bf16.mxu0 %v2642
  %3823 = vmatpush2.bf16.msra.mxu0 %v2641
  %3824 = vmatprep.subr.bf16.mxu0 %v2638
  %3825 = vmatpush2.bf16.msra.mxu0 %v2637
  %3826 = vmatprep.mubr.bf16.mxu0 %v602
  %3827 = vmatmul.mubr.bf16.gmra.mxu0 %v601
  %v3828 = vpop.f32.mrf.mxu0
  %v3829 = vadd.f32 %v3788, %v3828
  %v3830 = vpop.f32.mrf.mxu0
  %v3831 = vadd.f32 %v3790, %v3830
  %v3832 = vpop.f32.mrf.mxu0
  %v3833 = vpop.f32.mrf.mxu0
  %3834 = vdwg.mxu0
  %v3835 = vmax.f32 %v3501, 0.0
  %v3836 = vmax.f32 %v3503, 0.0
  %v3837 = vmax.f32 %v3829, 0.0
  %v3838 = vmax.f32 %v3831, 0.0
  %v3839 = vpack.c.bf16 %v3835, %v3835
  %v3840 = vpack.c.bf16 %v3836, %v3836
  %v3841 = vpack.c.bf16 %v3837, %v3837
  %v3842 = vpack.c.bf16 %v3838, %v3838
  %v3843 = vld [vmem:[%s3] sm:$0xf]
  %v3844 = vld [vmem:[%s3 + $0x4] sm:$0xf]
  %v3845 = vld [vmem:[%s3 + $0x8] sm:$0xf]
  %v3846 = vld [vmem:[%s3 + $0xc] sm:$0xf]
  %v3847 = vld [vmem:[%s3 + $0x10] sm:$0xf]
  %v3848 = vld [vmem:[%s3 + $0x14] sm:$0xf]
  %v3849 = vld [vmem:[%s3 + $0x18] sm:$0xf]
  %v3850 = vld [vmem:[%s3 + $0x1c] sm:$0xf]
  %v3851 = vld [vmem:[%s3 + $0x20] sm:$0xf]
  %v3852 = vld [vmem:[%s3 + $0x24] sm:$0xf]
  %v3853 = vld [vmem:[%s3 + $0x28] sm:$0xf]
  %v3854 = vld [vmem:[%s3 + $0x2c] sm:$0xf]
  %v3855 = vld [vmem:[%s3 + $0x30] sm:$0xf]
  %v3856 = vld [vmem:[%s3 + $0x34] sm:$0xf]
  %v3857 = vld [vmem:[%s3 + $0x38] sm:$0xf]
  %v3858 = vld [vmem:[%s3 + $0x3c] sm:$0xf]
  %v3859 = vld [vmem:[%s3 + $0x40] sm:$0xf]
  %v3860 = vld [vmem:[%s3 + $0x44] sm:$0xf]
  %v3861 = vld [vmem:[%s3 + $0x48] sm:$0xf]
  %v3862 = vld [vmem:[%s3 + $0x4c] sm:$0xf]
  %v3863 = vld [vmem:[%s3 + $0x50] sm:$0xf]
  %v3864 = vld [vmem:[%s3 + $0x54] sm:$0xf]
  %v3865 = vld [vmem:[%s3 + $0x58] sm:$0xf]
  %v3866 = vld [vmem:[%s3 + $0x5c] sm:$0xf]
  %v3867 = vld [vmem:[%s3 + $0x60] sm:$0xf]
  %v3868 = vld [vmem:[%s3 + $0x64] sm:$0xf]
  %v3869 = vld [vmem:[%s3 + $0x68] sm:$0xf]
  %v3870 = vld [vmem:[%s3 + $0x6c] sm:$0xf]
  %v3871 = vld [vmem:[%s3 + $0x70] sm:$0xf]
  %v3872 = vld [vmem:[%s3 + $0x74] sm:$0xf]
  %v3873 = vld [vmem:[%s3 + $0x78] sm:$0xf]
  %v3874 = vld [vmem:[%s3 + $0x7c] sm:$0xf]
  %v3875 = vld [vmem:[%s3 + $0x80] sm:$0xf]
  %v3876 = vld [vmem:[%s3 + $0x84] sm:$0xf]
  %v3877 = vld [vmem:[%s3 + $0x88] sm:$0xf]
  %v3878 = vld [vmem:[%s3 + $0x8c] sm:$0xf]
  %v3879 = vld [vmem:[%s3 + $0x90] sm:$0xf]
  %v3880 = vld [vmem:[%s3 + $0x94] sm:$0xf]
  %v3881 = vld [vmem:[%s3 + $0x98] sm:$0xf]
  %v3882 = vld [vmem:[%s3 + $0x9c] sm:$0xf]
  %v3883 = vld [vmem:[%s3 + $0xa0] sm:$0xf]
  %v3884 = vld [vmem:[%s3 + $0xa4] sm:$0xf]
  %v3885 = vld [vmem:[%s3 + $0xa8] sm:$0xf]
  %v3886 = vld [vmem:[%s3 + $0xac] sm:$0xf]
  %v3887 = vld [vmem:[%s3 + $0xb0] sm:$0xf]
  %v3888 = vld [vmem:[%s3 + $0xb4] sm:$0xf]
  %v3889 = vld [vmem:[%s3 + $0xb8] sm:$0xf]
  %v3890 = vld [vmem:[%s3 + $0xbc] sm:$0xf]
  %v3891 = vld [vmem:[%s3 + $0xc0] sm:$0xf]
  %v3892 = vld [vmem:[%s3 + $0xc4] sm:$0xf]
  %v3893 = vld [vmem:[%s3 + $0xc8] sm:$0xf]
  %v3894 = vld [vmem:[%s3 + $0xcc] sm:$0xf]
  %v3895 = vld [vmem:[%s3 + $0xd0] sm:$0xf]
  %v3896 = vld [vmem:[%s3 + $0xd4] sm:$0xf]
  %v3897 = vld [vmem:[%s3 + $0xd8] sm:$0xf]
  %v3898 = vld [vmem:[%s3 + $0xdc] sm:$0xf]
  %v3899 = vld [vmem:[%s3 + $0xe0] sm:$0xf]
  %v3900 = vld [vmem:[%s3 + $0xe4] sm:$0xf]
  %v3901 = vld [vmem:[%s3 + $0xe8] sm:$0xf]
  %v3902 = vld [vmem:[%s3 + $0xec] sm:$0xf]
  %v3903 = vld [vmem:[%s3 + $0xf0] sm:$0xf]
  %v3904 = vld [vmem:[%s3 + $0xf4] sm:$0xf]
  %v3905 = vld [vmem:[%s3 + $0xf8] sm:$0xf]
  %v3906 = vld [vmem:[%s3 + $0xfc] sm:$0xf]
  %v3907 = vld [vmem:[%s4] sm:$0x1]
  %v3909 = vlaneseq
  %v3910 = vshrl.u32 %v3909, 7
  %v3911 = vsub.s32 0, %v3910
  %v3912 = vrot.slane %v3907, %v3911
  %v3978 = vunpack.c.l.b16 %v3843
  %v3979 = vunpack.c.l.b16 %v3844
  %v3980 = vunpack.c.l.b16 %v3845
  %v3981 = vunpack.c.l.b16 %v3846
  %v3982 = vunpack.c.l.b16 %v3847
  %v3983 = vunpack.c.l.b16 %v3848
  %v3984 = vunpack.c.l.b16 %v3849
  %v3985 = vunpack.c.l.b16 %v3850
  %v3986 = vunpack.c.l.b16 %v3851
  %v3987 = vunpack.c.l.b16 %v3852
  %v3988 = vunpack.c.l.b16 %v3853
  %v3989 = vunpack.c.l.b16 %v3854
  %v3990 = vunpack.c.l.b16 %v3855
  %v3991 = vunpack.c.l.b16 %v3856
  %v3992 = vunpack.c.l.b16 %v3857
  %v3993 = vunpack.c.l.b16 %v3858
  %v3994 = vunpack.c.l.b16 %v3859
  %v3995 = vunpack.c.l.b16 %v3860
  %v3996 = vunpack.c.l.b16 %v3861
  %v3997 = vunpack.c.l.b16 %v3862
  %v3998 = vunpack.c.l.b16 %v3863
  %v3999 = vunpack.c.l.b16 %v3864
  %v4000 = vunpack.c.l.b16 %v3865
  %v4001 = vunpack.c.l.b16 %v3866
  %v4002 = vunpack.c.l.b16 %v3867
  %v4003 = vunpack.c.l.b16 %v3868
  %v4004 = vunpack.c.l.b16 %v3869
  %v4005 = vunpack.c.l.b16 %v3870
  %v4006 = vunpack.c.l.b16 %v3871
  %v4007 = vunpack.c.l.b16 %v3872
  %v4008 = vunpack.c.l.b16 %v3873
  %v4009 = vunpack.c.l.b16 %v3874
  %v4010 = vunpack.c.l.b16 %v3875
  %v4011 = vunpack.c.l.b16 %v3876
  %v4012 = vunpack.c.l.b16 %v3877
  %v4013 = vunpack.c.l.b16 %v3878
  %v4014 = vunpack.c.l.b16 %v3879
  %v4015 = vunpack.c.l.b16 %v3880
  %v4016 = vunpack.c.l.b16 %v3881
  %v4017 = vunpack.c.l.b16 %v3882
  %v4018 = vunpack.c.l.b16 %v3883
  %v4019 = vunpack.c.l.b16 %v3884
  %v4020 = vunpack.c.l.b16 %v3885
  %v4021 = vunpack.c.l.b16 %v3886
  %v4022 = vunpack.c.l.b16 %v3887
  %v4023 = vunpack.c.l.b16 %v3888
  %v4024 = vunpack.c.l.b16 %v3889
  %v4025 = vunpack.c.l.b16 %v3890
  %v4026 = vunpack.c.l.b16 %v3891
  %v4027 = vunpack.c.l.b16 %v3892
  %v4028 = vunpack.c.l.b16 %v3893
  %v4029 = vunpack.c.l.b16 %v3894
  %v4030 = vunpack.c.l.b16 %v3895
  %v4031 = vunpack.c.l.b16 %v3896
  %v4032 = vunpack.c.l.b16 %v3897
  %v4033 = vunpack.c.l.b16 %v3898
  %v4034 = vunpack.c.l.b16 %v3899
  %v4035 = vunpack.c.l.b16 %v3900
  %v4036 = vunpack.c.l.b16 %v3901
  %v4037 = vunpack.c.l.b16 %v3902
  %v4038 = vunpack.c.l.b16 %v3903
  %v4039 = vunpack.c.l.b16 %v3904
  %v4040 = vunpack.c.l.b16 %v3905
  %v4041 = vunpack.c.l.b16 %v3906
  %v4042 = vpack.c.b16 %v3979, %v3978
  %v4043 = vpack.c.b16 %v3981, %v3980
  %v4044 = vpack.c.b16 %v3983, %v3982
  %v4045 = vpack.c.b16 %v3985, %v3984
  %v4046 = vpack.c.b16 %v3987, %v3986
  %v4047 = vpack.c.b16 %v3989, %v3988
  %v4048 = vpack.c.b16 %v3991, %v3990
  %v4049 = vpack.c.b16 %v3993, %v3992
  %v4050 = vpack.c.b16 %v3995, %v3994
  %v4051 = vpack.c.b16 %v3997, %v3996
  %v4052 = vpack.c.b16 %v3999, %v3998
  %v4053 = vpack.c.b16 %v4001, %v4000
  %v4054 = vpack.c.b16 %v4003, %v4002
  %v4055 = vpack.c.b16 %v4005, %v4004
  %v4056 = vpack.c.b16 %v4007, %v4006
  %v4057 = vpack.c.b16 %v4009, %v4008
  %v4058 = vpack.c.b16 %v4011, %v4010
  %v4059 = vpack.c.b16 %v4013, %v4012
  %v4060 = vpack.c.b16 %v4015, %v4014
  %v4061 = vpack.c.b16 %v4017, %v4016
  %v4062 = vpack.c.b16 %v4019, %v4018
  %v4063 = vpack.c.b16 %v4021, %v4020
  %v4064 = vpack.c.b16 %v4023, %v4022
  %v4065 = vpack.c.b16 %v4025, %v4024
  %v4066 = vpack.c.b16 %v4027, %v4026
  %v4067 = vpack.c.b16 %v4029, %v4028
  %v4068 = vpack.c.b16 %v4031, %v4030
  %v4069 = vpack.c.b16 %v4033, %v4032
  %v4070 = vpack.c.b16 %v4035, %v4034
  %v4071 = vpack.c.b16 %v4037, %v4036
  %v4072 = vpack.c.b16 %v4039, %v4038
  %v4073 = vpack.c.b16 %v4041, %v4040
  %4106 = vmatprep.subr.bf16.mxu0 0
  %4107 = vmatpush1.bf16.msra.mxu0 %v4049
  %4108 = vmatprep.subr.bf16.mxu0 0
  %4109 = vmatpush1.bf16.msra.mxu0 %v4048
  %4110 = vmatprep.subr.bf16.mxu0 0
  %4111 = vmatpush1.bf16.msra.mxu0 %v4047
  %4112 = vmatprep.subr.bf16.mxu0 0
  %4113 = vmatpush1.bf16.msra.mxu0 %v4046
  %4114 = vmatprep.subr.bf16.mxu0 0
  %4115 = vmatpush1.bf16.msra.mxu0 %v4045
  %4116 = vmatprep.subr.bf16.mxu0 0
  %4117 = vmatpush1.bf16.msra.mxu0 %v4044
  %4118 = vmatprep.subr.bf16.mxu0 0
  %4119 = vmatpush1.bf16.msra.mxu0 %v4043
  %4120 = vmatprep.subr.bf16.mxu0 0
  %4121 = vmatpush1.bf16.msra.mxu0 %v4042
  %4122 = vmatprep.subr.bf16.mxu0 0
  %4123 = vmatpush2.bf16.msra.mxu0 %v4057
  %4124 = vmatprep.subr.bf16.mxu0 0
  %4125 = vmatpush2.bf16.msra.mxu0 %v4056
  %4126 = vmatprep.subr.bf16.mxu0 0
  %4127 = vmatpush2.bf16.msra.mxu0 %v4055
  %4128 = vmatprep.subr.bf16.mxu0 0
  %4129 = vmatpush2.bf16.msra.mxu0 %v4054
  %4130 = vmatprep.subr.bf16.mxu0 0
  %4131 = vmatpush2.bf16.msra.mxu0 %v4053
  %4132 = vmatprep.subr.bf16.mxu0 0
  %4133 = vmatpush2.bf16.msra.mxu0 %v4052
  %4134 = vmatprep.subr.bf16.mxu0 0
  %4135 = vmatpush2.bf16.msra.mxu0 %v4051
  %4136 = vmatprep.subr.bf16.mxu0 0
  %4137 = vmatpush2.bf16.msra.mxu0 %v4050
  %4138 = vmatprep.mubr.bf16.mxu0 %v3840
  %4139 = vmatmul.mubr.bf16.gmra.mxu0 %v3839
  %v4140 = vpop.f32.mrf.mxu0
  %v4141 = vadd.f32 %v3912, %v4140
  %v4142 = vpop.f32.mrf.mxu0
  %v4143 = vpop.f32.mrf.mxu0
  %v4144 = vpop.f32.mrf.mxu0
  %4145 = vdwg.mxu0
  %4146 = vmatprep.subr.bf16.mxu0 0
  %4147 = vmatpush1.bf16.msra.mxu0 %v4065
  %4148 = vmatprep.subr.bf16.mxu0 0
  %4149 = vmatpush1.bf16.msra.mxu0 %v4064
  %4150 = vmatprep.subr.bf16.mxu0 0
  %4151 = vmatpush1.bf16.msra.mxu0 %v4063
  %4152 = vmatprep.subr.bf16.mxu0 0
  %4153 = vmatpush1.bf16.msra.mxu0 %v4062
  %4154 = vmatprep.subr.bf16.mxu0 0
  %4155 = vmatpush1.bf16.msra.mxu0 %v4061
  %4156 = vmatprep.subr.bf16.mxu0 0
  %4157 = vmatpush1.bf16.msra.mxu0 %v4060
  %4158 = vmatprep.subr.bf16.mxu0 0
  %4159 = vmatpush1.bf16.msra.mxu0 %v4059
  %4160 = vmatprep.subr.bf16.mxu0 0
  %4161 = vmatpush1.bf16.msra.mxu0 %v4058
  %4162 = vmatprep.subr.bf16.mxu0 0
  %4163 = vmatpush2.bf16.msra.mxu0 %v4073
  %4164 = vmatprep.subr.bf16.mxu0 0
  %4165 = vmatpush2.bf16.msra.mxu0 %v4072
  %4166 = vmatprep.subr.bf16.mxu0 0
  %4167 = vmatpush2.bf16.msra.mxu0 %v4071
  %4168 = vmatprep.subr.bf16.mxu0 0
  %4169 = vmatpush2.bf16.msra.mxu0 %v4070
  %4170 = vmatprep.subr.bf16.mxu0 0
  %4171 = vmatpush2.bf16.msra.mxu0 %v4069
  %4172 = vmatprep.subr.bf16.mxu0 0
  %4173 = vmatpush2.bf16.msra.mxu0 %v4068
  %4174 = vmatprep.subr.bf16.mxu0 0
  %4175 = vmatpush2.bf16.msra.mxu0 %v4067
  %4176 = vmatprep.subr.bf16.mxu0 0
  %4177 = vmatpush2.bf16.msra.mxu0 %v4066
  %4178 = vmatprep.mubr.bf16.mxu0 %v3842
  %4179 = vmatmul.mubr.bf16.gmra.mxu0 %v3841
  %v4180 = vpop.f32.mrf.mxu0
  %v4181 = vadd.f32 %v4141, %v4180
  %v4182 = vpop.f32.mrf.mxu0
  %v4183 = vpop.f32.mrf.mxu0
  %v4184 = vpop.f32.mrf.mxu0
  %4185 = vdwg.mxu0
  %v4186 = vlaneseq
  %v4187 = vand.u32 %v4186, 127
  %vm4188 = vcmp.lt.s32.totalorder %v4187, 10
  %v4189 = vsel %vm4188, %v4181, -1e+30
  %4190 = vmax.xlane.f32.xlu0 %v4189
  %v4191 = vpop.xlane.xlu0 %4190
  %v4192 = vsub.f32 %v4189, %v4191
  %v4193 = vmul.f32 %v4192, 1.442695
  %v4194 = vpow.pop %v4193
  %4195 = vadd.xlane.f32.xlu0 %v4194
  %v4196 = vpop.xlane.xlu0 %4195
  %v4197 = vlog2.pop %v4196
  %v4198 = vmul.f32 %v4197, 0.6931472
  %v4199 = vsub.f32 %v4192, %v4198
  %4200 = vst [vmem:[%s5] sm:$0xff] %v4199
  // Predicated region
  $region22: #{convnet_forward.3} parent=0 // pred_check
    _
  $region23: #{convnet_forward.3} parent=0 // pred_check_branch
    %4202 = sbr.rel (0) target = $region25
  $region24: #{convnet_forward.3} parent=0 // pred_region
    _
  $region25: #{convnet_forward.3} parent=0 // pred_fallthru
    _
  // Predicated region
  $region26: #{convnet_forward.3} parent=0 // pred_check
    _
  $region27: #{convnet_forward.3} parent=0 // pred_check_branch
    %4204 = sbr.rel (0) target = $region29
  $region28: #{convnet_forward.3} parent=0 // pred_region
    _
  $region29: #{convnet_forward.3} parent=0 // pred_fallthru
    _

</llo_original>
